<compile_context>
chip_gen: v7x
topology: tpu7x:2x2x1
jax: 0.10.0
libtpu: 0.0.40
codegen_flags: <defaults>
</compile_context>

<pallas_src>
import numpy as np
import jax
import jax.numpy as jnp
from jax import lax
from jax.experimental import pallas as pl
from jax.experimental.pallas import tpu as pltpu

# NF4 lookup table (the module stores it as fp16, so round through fp16).
_NF4_LUT_F32 = [-1.0, -0.6961928009986877, -0.5250730514526367, -0.39491748809814453,
                -0.28444138169288635, -0.18477343022823334, -0.09105003625154495, 0.0,
                0.07958029955625534, 0.16093020141124725, 0.24611230194568634,
                0.33791524171829224, 0.44070982933044434, 0.5626170039176941,
                0.7229568362236023, 1.0]
NF4_LUT = [float(np.float16(v)) for v in _NF4_LUT_F32]


def _nf4_select_tree(byte_i32, shift):
    """NF4 LUT lookup of the nibble at bit `shift` via a 4-level select tree.

    4 bit-tests + 15 selects (vs 15 compares + 15 selects of a linear chain).
    Works directly on the (possibly sign-extended) int32 view of the byte:
    bits 0..7 are unaffected by sign extension.
    """
    b0 = (byte_i32 & (1 << shift)) != 0
    b1 = (byte_i32 & (2 << shift)) != 0
    b2 = (byte_i32 & (4 << shift)) != 0
    b3 = (byte_i32 & (8 << shift)) != 0
    c = lambda v: jnp.float32(v)
    l0 = [jnp.where(b0, c(NF4_LUT[2 * k + 1]), c(NF4_LUT[2 * k])) for k in range(8)]
    l1 = [jnp.where(b1, l0[2 * k + 1], l0[2 * k]) for k in range(4)]
    l2 = [jnp.where(b2, l1[2 * k + 1], l1[2 * k]) for k in range(2)]
    return jnp.where(b3, l2[1], l2[0])


def _choose_groups_per_block(ngroups):
    # More groups per block => fewer grid steps and longer MXU contractions.
    for g in (8, 4, 2):
        if ngroups % g == 0:
            return g
    return 1


def prepare_quant_weights(qweight, scales, group_size, groups_per_block=None):
    """One-time per-layer weight prep (hoisted out of the per-call forward path).

    Returns:
      qw_prep: (KB, N, Kblk//2) int8 -- within each K-block, low nibbles are the
               codes of the first Kblk/2 infeatures of the block (in order) and
               high nibbles the second Kblk/2.
      sc_prep: (KB, N, GPB) float32 per-(outfeature, local-group) scales.
    """
    N, half_K = qweight.shape
    K = 2 * half_K
    if group_size in (-1, None):
        group_size = K
    assert group_size % 2 == 0
    # TODO(synk): ragged last group (infeatures % group_size != 0) not supported.
    assert K % group_size == 0
    ngroups = K // group_size
    gpb = groups_per_block if groups_per_block is not None else _choose_groups_per_block(ngroups)
    assert ngroups % gpb == 0 and gpb in (1, 2, 4, 8)
    kblk = gpb * group_size
    kb = K // kblk

    q = qweight.astype(jnp.int32)
    lo = q & 0xF                      # code of even infeature of each byte
    hi = (q >> 4) & 0xF               # code of odd  infeature of each byte
    codes = jnp.stack([lo, hi], axis=-1).reshape(N, K)        # natural k order
    codes = codes.reshape(N, kb, kblk)
    new_lo = codes[:, :, : kblk // 2]                         # first half of block
    new_hi = codes[:, :, kblk // 2:]                          # second half of block
    packed = new_lo | (new_hi << 4)                           # 0..255
    packed = jnp.where(packed >= 128, packed - 256, packed).astype(jnp.int8)
    qw_prep = jnp.transpose(packed, (1, 0, 2))                # (KB, N, kblk//2)

    sc = scales.astype(jnp.float32).reshape(N, kb, gpb)
    sc_prep = jnp.transpose(sc, (1, 0, 2))                    # (KB, N, gpb)
    return qw_prep, sc_prep


def quant_linear_forward(x, qw_prep, sc_prep, bias):
    """NF4 grouped-quant linear with pre-packed weights: y = x @ dequant(W).T + b."""
    orig_shape = x.shape
    K = orig_shape[-1]
    M = int(np.prod(orig_shape[:-1]))
    KB, N, half_kblk = qw_prep.shape
    gpb = sc_prep.shape[-1]
    kblk = 2 * half_kblk
    G = kblk // gpb                    # group_size
    assert KB * kblk == K
    out_dtype = x.dtype
    half_groups = gpb // 2             # groups per nibble plane (0 iff gpb == 1)

    # ---- tile sizes ----------------------------------------------------------
    if N % 256 == 0:
        tn = 256
    elif N % 128 == 0:
        tn = 128
    else:
        tn = N                          # full-dim block (small layers)
    # cap tm so the double-buffered bf16 full-K x block stays <= ~8 MiB
    rows_cap = max(16, ((8 * 1024 * 1024) // (2 * 2 * K)) // 16 * 16)
    tm = min(256, rows_cap, max(16, -(-M // 16) * 16))
    tm = max(16, (tm // 16) * 16)
    M_pad = -(-M // tm) * tm

    # ---- glue: layout only (no compute, no per-call weight work) -------------
    x2 = x.reshape(M, K).astype(jnp.bfloat16)
    if M_pad != M:
        x2 = jnp.pad(x2, ((0, M_pad - M), (0, 0)))
    if bias is None:
        b2 = jnp.zeros((1, N), jnp.float32)
    else:
        b2 = bias.astype(jnp.float32).reshape(1, N)

    def kernel(x_ref, qw_ref, sc_ref, b_ref, o_ref, acc_ref):
        g = pl.program_id(2)

        @pl.when(g == 0)
        def _():
            acc_ref[...] = jnp.zeros_like(acc_ref)

        byte = qw_ref[0].astype(jnp.int32)     # (tn, kblk//2) packed codes
        # TODO(synk): on v6e/v7x the select tree + scaling could run in bf16 for
        # 2x VPU throughput; kept f32 so the same kernel also lowers on v5e.
        w_lo = _nf4_select_tree(byte, 0)       # weights for 1st half of K-block
        w_hi = _nf4_select_tree(byte, 4)       # weights for 2nd half of K-block
        sc = sc_ref[0]                         # (tn, gpb) per-group scales

        def scale_plane(w, g0):
            if half_groups == 0:               # gpb == 1: both halves are group 0
                return w * sc[:, 0:1]
            pieces = [w[:, gi * G:(gi + 1) * G] * sc[:, g0 + gi:g0 + gi + 1]
                      for gi in range(half_groups)]
            return pieces[0] if half_groups == 1 else jnp.concatenate(pieces, axis=1)

        w_lo = scale_plane(w_lo, 0).astype(jnp.bfloat16)
        w_hi = scale_plane(w_hi, half_groups).astype(jnp.bfloat16)

        lo_start = g * kblk
        hi_start = g * kblk + half_kblk
        if half_kblk % 128 == 0:
            lo_start = pl.multiple_of(lo_start, 128)
            hi_start = pl.multiple_of(hi_start, 128)
        x_lo = x_ref[:, pl.ds(lo_start, half_kblk)]    # (tm, kblk/2) bf16
        x_hi = x_ref[:, pl.ds(hi_start, half_kblk)]

        dn = (((1,), (1,)), ((), ()))                  # contract last dims: x @ W.T
        part = lax.dot_general(x_lo, w_lo, dn, preferred_element_type=jnp.float32)
        part = part + lax.dot_general(x_hi, w_hi, dn, preferred_element_type=jnp.float32)
        acc_ref[...] += part

        @pl.when(g == pl.num_programs(2) - 1)
        def _():
            o_ref[...] = (acc_ref[...] + b_ref[...]).astype(o_ref.dtype)

    # Explicit VMEM budget (default scoped limits: 16 MiB v5e / 32 MiB v6e,v7x).
    out_bytes = jnp.dtype(out_dtype).itemsize
    vmem_est = (2 * (tm * K * 2 + tn * half_kblk + tn * gpb * 4 + tn * 4
                     + tm * tn * out_bytes) + tm * tn * 4)
    vmem_limit = int(min(max(2 * vmem_est, 16 * 1024 * 1024), 48 * 1024 * 1024))

    grid = (M_pad // tm, N // tn, KB)

    out = pl.pallas_call(
        kernel,
        out_shape=jax.ShapeDtypeStruct((M_pad, N), out_dtype),
        grid_spec=pltpu.PrefetchScalarGridSpec(
            num_scalar_prefetch=0,
            grid=grid,
            in_specs=[
                pl.BlockSpec((tm, K), lambda i, j, g: (i, 0)),                # x (resident across j, g)
                pl.BlockSpec((1, tn, half_kblk), lambda i, j, g: (g, j, 0)),  # packed qweight
                pl.BlockSpec((1, tn, gpb), lambda i, j, g: (g, j, 0)),        # scales
                pl.BlockSpec((1, tn), lambda i, j, g: (0, j)),                # bias
            ],
            out_specs=pl.BlockSpec((tm, tn), lambda i, j, g: (i, j)),
            scratch_shapes=[pltpu.VMEM((tm, tn), jnp.float32)],
        ),
        compiler_params=pltpu.CompilerParams(
            dimension_semantics=("parallel", "parallel", "arbitrary"),
            vmem_limit_bytes=vmem_limit),
    )(x2, qw_prep, sc_prep, b2)

    out = out[:M]
    return out.reshape(orig_shape[:-1] + (N,))


if __name__ == "__main__":
    bits = 4
    group_size = 128
    infeatures = 1024
    outfeatures = 512
    batch, seq = 2, 8

    key = jax.random.PRNGKey(0)
    k1, k2, k3, k4 = jax.random.split(key, 4)

    x = jax.random.normal(k1, (batch, seq, infeatures), dtype=jnp.float32)
    # qweight buffer: (outfeatures, infeatures // 8 * bits) int8 = packed NF4 codes
    qweight = jax.random.randint(
        k2, (outfeatures, infeatures // 8 * bits), -128, 128, dtype=jnp.int32
    ).astype(jnp.int8)
    scales = (0.5 + jax.random.uniform(k3, (outfeatures, infeatures // group_size))
              ).astype(jnp.float16)
    bias = (0.1 * jax.random.normal(k4, (outfeatures,))).astype(jnp.float16)

    # one-time per-layer weight prep, then the per-call forward
    qw_prep, sc_prep = prepare_quant_weights(qweight, scales, group_size)
    qw_prep, sc_prep = jax.block_until_ready((qw_prep, sc_prep))

    y = quant_linear_forward(x, qw_prep, sc_prep, bias)
    y = jax.block_until_ready(y)

    # pure-JAX f32 reference of the same NF4 dequant-matmul (sanity check only)
    lut = jnp.asarray(NF4_LUT, dtype=jnp.float32)
    q32 = qweight.astype(jnp.int32)
    codes = jnp.stack([q32 & 0xF, (q32 >> 4) & 0xF], axis=-1).reshape(outfeatures, infeatures)
    g_idx = jnp.arange(infeatures) // group_size
    W = lut[codes] * scales.astype(jnp.float32)[:, g_idx]          # (N, K)
    ref = x.reshape(-1, infeatures) @ W.T + bias.astype(jnp.float32)[None, :]
    ref = ref.reshape(batch, seq, outfeatures)

    assert y.shape == (batch, seq, outfeatures)
    rel_err = float(jnp.max(jnp.abs(y - ref)) / (jnp.max(jnp.abs(ref)) + 1e-6))
    assert rel_err < 5e-2, f"max relative error too large: {rel_err}"
    print("KERNEL_OK")
</pallas_src>

<mosaic_0001>
module attributes {stable_mosaic.version = 11 : i64} {
  func.func @kernel(%arg0: i32, %arg1: i32, %arg2: i32, %arg3: memref<16x1024xbf16, #tpu.memory_space<vmem>>, %arg4: memref<1x256x512xi8, #tpu.memory_space<vmem>>, %arg5: memref<1x256x8xf32, #tpu.memory_space<vmem>>, %arg6: memref<1x256xf32, #tpu.memory_space<vmem>>, %arg7: memref<16x256xf32, #tpu.memory_space<vmem>>, %arg8: memref<16x256xf32, #tpu.memory_space<vmem>>) attributes {dimension_semantics = [#tpu.dimension_semantics<parallel>, #tpu.dimension_semantics<parallel>, #tpu.dimension_semantics<arbitrary>], iteration_bounds = array<i64: 1, 2, 1>, scalar_prefetch = 0 : i64, scratch_operands = 1 : i64, tpu.core_type = #tpu.core_type<tc>, window_params = [{transform_indices = @transform_0, window_bounds = array<i64: 16, 1024>}, {transform_indices = @transform_1, window_bounds = array<i64: 1, 256, 512>}, {transform_indices = @transform_2, window_bounds = array<i64: 1, 256, 8>}, {transform_indices = @transform_3, window_bounds = array<i64: 1, 256>}, {transform_indices = @transform_4, window_bounds = array<i64: 16, 256>}]} {
    %c0_i32 = arith.constant 0 : i32
    %0 = arith.cmpi eq, %arg2, %c0_i32 : i32
    %1 = arith.extui %0 : i1 to i32
    %c0_i32_0 = arith.constant 0 : i32
    %2 = arith.cmpi ne, %1, %c0_i32_0 : i32
    scf.if %2 {
      %cst_56 = arith.constant 0.000000e+00 : f32
      %156 = vector.broadcast %cst_56 : f32 to vector<16x256xf32>
      %c0_57 = arith.constant 0 : index
      %c0_58 = arith.constant 0 : index
      %157 = vector.load %arg8[%c0_57, %c0_58] : memref<16x256xf32, #tpu.memory_space<vmem>>, vector<16x256xf32>
      tpu.vector_store %arg8[%c0_57, %c0_58], %156 {strides = array<i32>} : memref<16x256xf32, #tpu.memory_space<vmem>>, vector<16x256xf32>,
    } else {
    }
    %c0 = arith.constant 0 : index
    %c0_1 = arith.constant 0 : index
    %c0_2 = arith.constant 0 : index
    %3 = vector.load %arg4[%c0, %c0_1, %c0_2] : memref<1x256x512xi8, #tpu.memory_space<vmem>>, vector<1x256x512xi8>
    %4 = vector.shape_cast %3 : vector<1x256x512xi8> to vector<256x512xi8>
    %5 = arith.extsi %4 : vector<256x512xi8> to vector<256x512xi32>
    %c1_i32 = arith.constant 1 : i32
    %6 = vector.broadcast %c1_i32 : i32 to vector<256x512xi32>
    %7 = arith.andi %5, %6 : vector<256x512xi32>
    %c0_i32_3 = arith.constant 0 : i32
    %8 = vector.broadcast %c0_i32_3 : i32 to vector<256x512xi32>
    %9 = arith.cmpi ne, %7, %8 : vector<256x512xi32>
    %c2_i32 = arith.constant 2 : i32
    %10 = vector.broadcast %c2_i32 : i32 to vector<256x512xi32>
    %11 = arith.andi %5, %10 : vector<256x512xi32>
    %c0_i32_4 = arith.constant 0 : i32
    %12 = vector.broadcast %c0_i32_4 : i32 to vector<256x512xi32>
    %13 = arith.cmpi ne, %11, %12 : vector<256x512xi32>
    %c4_i32 = arith.constant 4 : i32
    %14 = vector.broadcast %c4_i32 : i32 to vector<256x512xi32>
    %15 = arith.andi %5, %14 : vector<256x512xi32>
    %c0_i32_5 = arith.constant 0 : i32
    %16 = vector.broadcast %c0_i32_5 : i32 to vector<256x512xi32>
    %17 = arith.cmpi ne, %15, %16 : vector<256x512xi32>
    %c8_i32 = arith.constant 8 : i32
    %18 = vector.broadcast %c8_i32 : i32 to vector<256x512xi32>
    %19 = arith.andi %5, %18 : vector<256x512xi32>
    %c0_i32_6 = arith.constant 0 : i32
    %20 = vector.broadcast %c0_i32_6 : i32 to vector<256x512xi32>
    %21 = arith.cmpi ne, %19, %20 : vector<256x512xi32>
    %cst = arith.constant -0.696289063 : f32
    %cst_7 = arith.constant -1.000000e+00 : f32
    %22 = vector.broadcast %cst : f32 to vector<256x512xf32>
    %23 = vector.broadcast %cst_7 : f32 to vector<256x512xf32>
    %24 = arith.select %9, %22, %23 : vector<256x512xi1>, vector<256x512xf32>
    %cst_8 = arith.constant -0.395019531 : f32
    %cst_9 = arith.constant -0.524902344 : f32
    %25 = vector.broadcast %cst_8 : f32 to vector<256x512xf32>
    %26 = vector.broadcast %cst_9 : f32 to vector<256x512xf32>
    %27 = arith.select %9, %25, %26 : vector<256x512xi1>, vector<256x512xf32>
    %cst_10 = arith.constant -0.184814453 : f32
    %cst_11 = arith.constant -0.284423828 : f32
    %28 = vector.broadcast %cst_10 : f32 to vector<256x512xf32>
    %29 = vector.broadcast %cst_11 : f32 to vector<256x512xf32>
    %30 = arith.select %9, %28, %29 : vector<256x512xi1>, vector<256x512xf32>
    %cst_12 = arith.constant 0.000000e+00 : f32
    %cst_13 = arith.constant -0.0910644531 : f32
    %31 = vector.broadcast %cst_12 : f32 to vector<256x512xf32>
    %32 = vector.broadcast %cst_13 : f32 to vector<256x512xf32>
    %33 = arith.select %9, %31, %32 : vector<256x512xi1>, vector<256x512xf32>
    %cst_14 = arith.constant 0.160888672 : f32
    %cst_15 = arith.constant 0.0795898438 : f32
    %34 = vector.broadcast %cst_14 : f32 to vector<256x512xf32>
    %35 = vector.broadcast %cst_15 : f32 to vector<256x512xf32>
    %36 = arith.select %9, %34, %35 : vector<256x512xi1>, vector<256x512xf32>
    %cst_16 = arith.constant 0.337890625 : f32
    %cst_17 = arith.constant 0.24609375 : f32
    %37 = vector.broadcast %cst_16 : f32 to vector<256x512xf32>
    %38 = vector.broadcast %cst_17 : f32 to vector<256x512xf32>
    %39 = arith.select %9, %37, %38 : vector<256x512xi1>, vector<256x512xf32>
    %cst_18 = arith.constant 5.625000e-01 : f32
    %cst_19 = arith.constant 0.440673828 : f32
    %40 = vector.broadcast %cst_18 : f32 to vector<256x512xf32>
    %41 = vector.broadcast %cst_19 : f32 to vector<256x512xf32>
    %42 = arith.select %9, %40, %41 : vector<256x512xi1>, vector<256x512xf32>
    %cst_20 = arith.constant 1.000000e+00 : f32
    %cst_21 = arith.constant 0.723144531 : f32
    %43 = vector.broadcast %cst_20 : f32 to vector<256x512xf32>
    %44 = vector.broadcast %cst_21 : f32 to vector<256x512xf32>
    %45 = arith.select %9, %43, %44 : vector<256x512xi1>, vector<256x512xf32>
    %46 = arith.select %13, %27, %24 : vector<256x512xi1>, vector<256x512xf32>
    %47 = arith.select %13, %33, %30 : vector<256x512xi1>, vector<256x512xf32>
    %48 = arith.select %13, %39, %36 : vector<256x512xi1>, vector<256x512xf32>
    %49 = arith.select %13, %45, %42 : vector<256x512xi1>, vector<256x512xf32>
    %50 = arith.select %17, %47, %46 : vector<256x512xi1>, vector<256x512xf32>
    %51 = arith.select %17, %49, %48 : vector<256x512xi1>, vector<256x512xf32>
    %52 = arith.select %21, %51, %50 : vector<256x512xi1>, vector<256x512xf32>
    %c16_i32 = arith.constant 16 : i32
    %53 = vector.broadcast %c16_i32 : i32 to vector<256x512xi32>
    %54 = arith.andi %5, %53 : vector<256x512xi32>
    %c0_i32_22 = arith.constant 0 : i32
    %55 = vector.broadcast %c0_i32_22 : i32 to vector<256x512xi32>
    %56 = arith.cmpi ne, %54, %55 : vector<256x512xi32>
    %c32_i32 = arith.constant 32 : i32
    %57 = vector.broadcast %c32_i32 : i32 to vector<256x512xi32>
    %58 = arith.andi %5, %57 : vector<256x512xi32>
    %c0_i32_23 = arith.constant 0 : i32
    %59 = vector.broadcast %c0_i32_23 : i32 to vector<256x512xi32>
    %60 = arith.cmpi ne, %58, %59 : vector<256x512xi32>
    %c64_i32 = arith.constant 64 : i32
    %61 = vector.broadcast %c64_i32 : i32 to vector<256x512xi32>
    %62 = arith.andi %5, %61 : vector<256x512xi32>
    %c0_i32_24 = arith.constant 0 : i32
    %63 = vector.broadcast %c0_i32_24 : i32 to vector<256x512xi32>
    %64 = arith.cmpi ne, %62, %63 : vector<256x512xi32>
    %c128_i32 = arith.constant 128 : i32
    %65 = vector.broadcast %c128_i32 : i32 to vector<256x512xi32>
    %66 = arith.andi %5, %65 : vector<256x512xi32>
    %c0_i32_25 = arith.constant 0 : i32
    %67 = vector.broadcast %c0_i32_25 : i32 to vector<256x512xi32>
    %68 = arith.cmpi ne, %66, %67 : vector<256x512xi32>
    %cst_26 = arith.constant -0.696289063 : f32
    %cst_27 = arith.constant -1.000000e+00 : f32
    %69 = vector.broadcast %cst_26 : f32 to vector<256x512xf32>
    %70 = vector.broadcast %cst_27 : f32 to vector<256x512xf32>
    %71 = arith.select %56, %69, %70 : vector<256x512xi1>, vector<256x512xf32>
    %cst_28 = arith.constant -0.395019531 : f32
    %cst_29 = arith.constant -0.524902344 : f32
    %72 = vector.broadcast %cst_28 : f32 to vector<256x512xf32>
    %73 = vector.broadcast %cst_29 : f32 to vector<256x512xf32>
    %74 = arith.select %56, %72, %73 : vector<256x512xi1>, vector<256x512xf32>
    %cst_30 = arith.constant -0.184814453 : f32
    %cst_31 = arith.constant -0.284423828 : f32
    %75 = vector.broadcast %cst_30 : f32 to vector<256x512xf32>
    %76 = vector.broadcast %cst_31 : f32 to vector<256x512xf32>
    %77 = arith.select %56, %75, %76 : vector<256x512xi1>, vector<256x512xf32>
    %cst_32 = arith.constant 0.000000e+00 : f32
    %cst_33 = arith.constant -0.0910644531 : f32
    %78 = vector.broadcast %cst_32 : f32 to vector<256x512xf32>
    %79 = vector.broadcast %cst_33 : f32 to vector<256x512xf32>
    %80 = arith.select %56, %78, %79 : vector<256x512xi1>, vector<256x512xf32>
    %cst_34 = arith.constant 0.160888672 : f32
    %cst_35 = arith.constant 0.0795898438 : f32
    %81 = vector.broadcast %cst_34 : f32 to vector<256x512xf32>
    %82 = vector.broadcast %cst_35 : f32 to vector<256x512xf32>
    %83 = arith.select %56, %81, %82 : vector<256x512xi1>, vector<256x512xf32>
    %cst_36 = arith.constant 0.337890625 : f32
    %cst_37 = arith.constant 0.24609375 : f32
    %84 = vector.broadcast %cst_36 : f32 to vector<256x512xf32>
    %85 = vector.broadcast %cst_37 : f32 to vector<256x512xf32>
    %86 = arith.select %56, %84, %85 : vector<256x512xi1>, vector<256x512xf32>
    %cst_38 = arith.constant 5.625000e-01 : f32
    %cst_39 = arith.constant 0.440673828 : f32
    %87 = vector.broadcast %cst_38 : f32 to vector<256x512xf32>
    %88 = vector.broadcast %cst_39 : f32 to vector<256x512xf32>
    %89 = arith.select %56, %87, %88 : vector<256x512xi1>, vector<256x512xf32>
    %cst_40 = arith.constant 1.000000e+00 : f32
    %cst_41 = arith.constant 0.723144531 : f32
    %90 = vector.broadcast %cst_40 : f32 to vector<256x512xf32>
    %91 = vector.broadcast %cst_41 : f32 to vector<256x512xf32>
    %92 = arith.select %56, %90, %91 : vector<256x512xi1>, vector<256x512xf32>
    %93 = arith.select %60, %74, %71 : vector<256x512xi1>, vector<256x512xf32>
    %94 = arith.select %60, %80, %77 : vector<256x512xi1>, vector<256x512xf32>
    %95 = arith.select %60, %86, %83 : vector<256x512xi1>, vector<256x512xf32>
    %96 = arith.select %60, %92, %89 : vector<256x512xi1>, vector<256x512xf32>
    %97 = arith.select %64, %94, %93 : vector<256x512xi1>, vector<256x512xf32>
    %98 = arith.select %64, %96, %95 : vector<256x512xi1>, vector<256x512xf32>
    %99 = arith.select %68, %98, %97 : vector<256x512xi1>, vector<256x512xf32>
    %c0_42 = arith.constant 0 : index
    %c0_43 = arith.constant 0 : index
    %c0_44 = arith.constant 0 : index
    %100 = vector.load %arg5[%c0_42, %c0_43, %c0_44] : memref<1x256x8xf32, #tpu.memory_space<vmem>>, vector<1x256x8xf32>
    %101 = vector.shape_cast %100 : vector<1x256x8xf32> to vector<256x8xf32>
    %102 = vector.extract_strided_slice %52 {offsets = [0, 0], sizes = [256, 128], strides = [1, 1]} : vector<256x512xf32> to vector<256x128xf32>
    %103 = vector.extract_strided_slice %101 {offsets = [0, 0], sizes = [256, 1], strides = [1, 1]} : vector<256x8xf32> to vector<256x1xf32>
    %104 = vector.broadcast %103 : vector<256x1xf32> to vector<256x128xf32>
    %105 = arith.mulf %102, %104 : vector<256x128xf32>
    %106 = vector.extract_strided_slice %52 {offsets = [0, 128], sizes = [256, 128], strides = [1, 1]} : vector<256x512xf32> to vector<256x128xf32>
    %107 = vector.extract_strided_slice %101 {offsets = [0, 1], sizes = [256, 1], strides = [1, 1]} : vector<256x8xf32> to vector<256x1xf32>
    %108 = vector.broadcast %107 : vector<256x1xf32> to vector<256x128xf32>
    %109 = arith.mulf %106, %108 : vector<256x128xf32>
    %110 = vector.extract_strided_slice %52 {offsets = [0, 256], sizes = [256, 128], strides = [1, 1]} : vector<256x512xf32> to vector<256x128xf32>
    %111 = vector.extract_strided_slice %101 {offsets = [0, 2], sizes = [256, 1], strides = [1, 1]} : vector<256x8xf32> to vector<256x1xf32>
    %112 = vector.broadcast %111 : vector<256x1xf32> to vector<256x128xf32>
    %113 = arith.mulf %110, %112 : vector<256x128xf32>
    %114 = vector.extract_strided_slice %52 {offsets = [0, 384], sizes = [256, 128], strides = [1, 1]} : vector<256x512xf32> to vector<256x128xf32>
    %115 = vector.extract_strided_slice %101 {offsets = [0, 3], sizes = [256, 1], strides = [1, 1]} : vector<256x8xf32> to vector<256x1xf32>
    %116 = vector.broadcast %115 : vector<256x1xf32> to vector<256x128xf32>
    %117 = arith.mulf %114, %116 : vector<256x128xf32>
    %118 = tpu.concatenate %105, %109, %113, %117 in 1 : vector<256x128xf32>, vector<256x128xf32>, vector<256x128xf32>, vector<256x128xf32> -> vector<256x512xf32>
    %119 = arith.truncf %118 : vector<256x512xf32> to vector<256x512xbf16>
    %120 = vector.extract_strided_slice %99 {offsets = [0, 0], sizes = [256, 128], strides = [1, 1]} : vector<256x512xf32> to vector<256x128xf32>
    %121 = vector.extract_strided_slice %101 {offsets = [0, 4], sizes = [256, 1], strides = [1, 1]} : vector<256x8xf32> to vector<256x1xf32>
    %122 = vector.broadcast %121 : vector<256x1xf32> to vector<256x128xf32>
    %123 = arith.mulf %120, %122 : vector<256x128xf32>
    %124 = vector.extract_strided_slice %99 {offsets = [0, 128], sizes = [256, 128], strides = [1, 1]} : vector<256x512xf32> to vector<256x128xf32>
    %125 = vector.extract_strided_slice %101 {offsets = [0, 5], sizes = [256, 1], strides = [1, 1]} : vector<256x8xf32> to vector<256x1xf32>
    %126 = vector.broadcast %125 : vector<256x1xf32> to vector<256x128xf32>
    %127 = arith.mulf %124, %126 : vector<256x128xf32>
    %128 = vector.extract_strided_slice %99 {offsets = [0, 256], sizes = [256, 128], strides = [1, 1]} : vector<256x512xf32> to vector<256x128xf32>
    %129 = vector.extract_strided_slice %101 {offsets = [0, 6], sizes = [256, 1], strides = [1, 1]} : vector<256x8xf32> to vector<256x1xf32>
    %130 = vector.broadcast %129 : vector<256x1xf32> to vector<256x128xf32>
    %131 = arith.mulf %128, %130 : vector<256x128xf32>
    %132 = vector.extract_strided_slice %99 {offsets = [0, 384], sizes = [256, 128], strides = [1, 1]} : vector<256x512xf32> to vector<256x128xf32>
    %133 = vector.extract_strided_slice %101 {offsets = [0, 7], sizes = [256, 1], strides = [1, 1]} : vector<256x8xf32> to vector<256x1xf32>
    %134 = vector.broadcast %133 : vector<256x1xf32> to vector<256x128xf32>
    %135 = arith.mulf %132, %134 : vector<256x128xf32>
    %136 = tpu.concatenate %123, %127, %131, %135 in 1 : vector<256x128xf32>, vector<256x128xf32>, vector<256x128xf32>, vector<256x128xf32> -> vector<256x512xf32>
    %137 = arith.truncf %136 : vector<256x512xf32> to vector<256x512xbf16>
    %c1024_i32 = arith.constant 1024 : i32
    %138 = arith.muli %arg2, %c1024_i32 : i32
    %c1024_i32_45 = arith.constant 1024 : i32
    %139 = arith.muli %arg2, %c1024_i32_45 : i32
    %c512_i32 = arith.constant 512 : i32
    %140 = arith.addi %139, %c512_i32 : i32
    %141 = tpu.assume_multiple %138, 128 : i32
    %142 = tpu.assume_multiple %140, 128 : i32
    %c0_46 = arith.constant 0 : index
    %143 = arith.index_cast %141 : i32 to index
    %144 = vector.load %arg3[%c0_46, %143] : memref<16x1024xbf16, #tpu.memory_space<vmem>>, vector<16x512xbf16>
    %c0_47 = arith.constant 0 : index
    %145 = arith.index_cast %142 : i32 to index
    %146 = vector.load %arg3[%c0_47, %145] : memref<16x1024xbf16, #tpu.memory_space<vmem>>, vector<16x512xbf16>
    %cst_48 = arith.constant dense<0.000000e+00> : vector<16x256xf32>
    %147 = tpu.matmul %144, %119, %cst_48 {dimension_numbers = #tpu.dot_dimension_numbers<[1], [1], [0], [0], [0, 0, 1, 0], [], []>} : vector<16x512xbf16>, vector<256x512xbf16>, vector<16x256xf32> -> vector<16x256xf32>
    %cst_49 = arith.constant dense<0.000000e+00> : vector<16x256xf32>
    %148 = tpu.matmul %146, %137, %cst_49 {dimension_numbers = #tpu.dot_dimension_numbers<[1], [1], [0], [0], [0, 0, 1, 0], [], []>} : vector<16x512xbf16>, vector<256x512xbf16>, vector<16x256xf32> -> vector<16x256xf32>
    %149 = arith.addf %147, %148 : vector<16x256xf32>
    %c0_50 = arith.constant 0 : index
    %c0_51 = arith.constant 0 : index
    %150 = vector.load %arg8[%c0_50, %c0_51] : memref<16x256xf32, #tpu.memory_space<vmem>>, vector<16x256xf32>
    %151 = arith.addf %150, %149 : vector<16x256xf32>
    %c0_52 = arith.constant 0 : index
    %c0_53 = arith.constant 0 : index
    %152 = vector.load %arg8[%c0_52, %c0_53] : memref<16x256xf32, #tpu.memory_space<vmem>>, vector<16x256xf32>
    tpu.vector_store %arg8[%c0_52, %c0_53], %151 {strides = array<i32>} : memref<16x256xf32, #tpu.memory_space<vmem>>, vector<16x256xf32>,
    %c0_i32_54 = arith.constant 0 : i32
    %153 = arith.cmpi eq, %arg2, %c0_i32_54 : i32
    %154 = arith.extui %153 : i1 to i32
    %c0_i32_55 = arith.constant 0 : i32
    %155 = arith.cmpi ne, %154, %c0_i32_55 : i32
    scf.if %155 {
      %c0_56 = arith.constant 0 : index
      %c0_57 = arith.constant 0 : index
      %156 = vector.load %arg8[%c0_56, %c0_57] : memref<16x256xf32, #tpu.memory_space<vmem>>, vector<16x256xf32>
      %c0_58 = arith.constant 0 : index
      %c0_59 = arith.constant 0 : index
      %157 = vector.load %arg6[%c0_58, %c0_59] : memref<1x256xf32, #tpu.memory_space<vmem>>, vector<1x256xf32>
      %158 = vector.broadcast %157 : vector<1x256xf32> to vector<16x256xf32>
      %159 = arith.addf %156, %158 : vector<16x256xf32>
      %c0_60 = arith.constant 0 : index
      %c0_61 = arith.constant 0 : index
      %160 = vector.load %arg7[%c0_60, %c0_61] : memref<16x256xf32, #tpu.memory_space<vmem>>, vector<16x256xf32>
      tpu.vector_store %arg7[%c0_60, %c0_61], %159 {strides = array<i32>} : memref<16x256xf32, #tpu.memory_space<vmem>>, vector<16x256xf32>,
    } else {
    }
    return
  }
  func.func @transform_0(%arg0: i32, %arg1: i32, %arg2: i32) -> (i32, i32) {
    %c0_i32 = arith.constant 0 : i32
    %c0_i32_0 = arith.constant 0 : i32
    return %arg0, %c0_i32 : i32, i32
  }
  func.func @transform_1(%arg0: i32, %arg1: i32, %arg2: i32) -> (i32, i32, i32) {
    %c0_i32 = arith.constant 0 : i32
    %c0_i32_0 = arith.constant 0 : i32
    return %arg2, %arg1, %c0_i32 : i32, i32, i32
  }
  func.func @transform_2(%arg0: i32, %arg1: i32, %arg2: i32) -> (i32, i32, i32) {
    %c0_i32 = arith.constant 0 : i32
    %c0_i32_0 = arith.constant 0 : i32
    return %arg2, %arg1, %c0_i32 : i32, i32, i32
  }
  func.func @transform_3(%arg0: i32, %arg1: i32, %arg2: i32) -> (i32, i32) {
    %c0_i32 = arith.constant 0 : i32
    %c0_i32_0 = arith.constant 0 : i32
    return %c0_i32, %arg1 : i32, i32
  }
  func.func @transform_4(%arg0: i32, %arg1: i32, %arg2: i32) -> (i32, i32) {
    %c0_i32 = arith.constant 0 : i32
    return %arg0, %arg1 : i32, i32
  }
}

</mosaic_0001>

<llo_original>
// kernel: tpu_custom_call.1
$region0: #{tpu_custom_call.1}
  #allocation0 [shape = 'u32[]', space=smem, size = 0x4, offset = 0x4, fixed_abs, tag = 'smem constant byte address 0x4 - core index']
  #allocation1 [shape = 'u32[144,128]{1,0:T(1,128)}', space=vmem, size = 0x12000, scoped, tag = 'internal scratch']
  #allocation2 [shape = 'f32[16,256]{1,0:T(8,128)}', space=vmem, size = 0x4000, scoped, tag = 'scratch operand']
  %s0 = inlined_call_operand.hbm [shape: bf16[16,1024], index: 0, kind: input, shape index: {}]
  %s1 = inlined_call_operand.vmem [shape: s8[1,512,512], index: 1, kind: input, shape index: {}]
  %s2 = inlined_call_operand.vmem [shape: f32[1,512,8], index: 2, kind: input, shape index: {}]
  %s3 = inlined_call_operand.vmem [shape: f32[1,512], index: 3, kind: input, shape index: {}]
  %s4 = inlined_call_operand.hbm [shape: f32[16,512], index: 4, kind: output, shape index: {}]
  %s5 = sld [smem:[#allocation0]]
  $region61: #{tpu_custom_call.1} parent=0
    _
  %s7 = ssub.s32 1, %s5
  %s8 = scalar_select 0, %s7, %s5
  $region1: #{tpu_custom_call.1} parent=0
    #allocation3 [shape = 'u8[32768]{0}', space=vmem, size = 0x8000, scoped, tag = 'input window, operand 0, single buffered']
    #allocation4 [shape = 's32[2]{0}', space=sflag, size = 0x8, scoped, tag = 'scoped memory for tpu_custom_call.1']
    #allocation5 [shape = 's32[2]{0}', space=sflag, size = 0x8, scoped, tag = 'scoped memory for tpu_custom_call.1']
    #allocation6 [shape = 'u8[32768]{0}', space=vmem, size = 0x8000, scoped, tag = 'output window, operand 0']
    %9 = vsyncpa [#allocation4], 0
    %10 = vsyncpa [#allocation5], 0
    %s11 = scalar_lea.sflag [#allocation5], 1
    %12 = vsyncpa %s11, 0
    loop: start=0, step=1, limit=4
    $region2: #{tpu_custom_call.1} parent=1 // loop_pre_header
      _
    $region3: #{tpu_custom_call.1} parent=1 // loop_header
      %s14 = sphi 0, %s18
      %p15 = scmp.ge.s32.totalorder %s14, 4
      %s21 = sphi 0, %s40
      %s22 = sphi 0, %s36
      %s23 = sphi 0, %s32
      %s24 = sphi 0, %s21
      %s25 = sphi 0, %s22
      %s26 = sphi 0, %s23
      %s27 = sphi 0, %s24
      %s28 = sphi 0, %s25
      %s29 = sphi 0, %s26
      %s43 = sphi 0, %s45
      %s46 = sphi 0, %s43
      %s47 = sphi 0, %s46
      %s63 = sphi 0, %s47
      %s71 = sphi 0, %s73
      %s74 = sphi 0, %s71
      %s75 = sphi 0, %s74
      %s91 = sphi 0, %s75
      %s99 = sphi 0, %s101
      %s102 = sphi 0, %s99
      %s103 = sphi 0, %s102
      %s119 = sphi 0, %s103
      %s125 = sphi 0, %s127
      %s128 = sphi 0, %s125
      %s129 = sphi 0, %s128
      %s145 = sphi 0, %s129
      %s153 = sphi 0, %s155
      %s156 = sphi 0, %s153
      %s157 = sphi 0, %s156
      %s173 = sphi 0, %s157
    $region4: #{tpu_custom_call.1} parent=1 // loop_header_branch
      %17 = sbr.rel (%p15) target = $region8
    $region5: #{tpu_custom_call.1} parent=1 // loop_body
      %s19 = ssub.s32 %s14, 1
      %s20 = ssub.s32 %s14, 2
      %s30 = sadd.s32 1, %s23
      %p31 = scmp.ge.s32.totalorder %s30, 1
      %s32 = scalar_select %p31, 0, %s30
      %s33 = sadd.s32 1, %s22
      %s34 = scalar_select %p31, %s33, %s22
      %p35 = scmp.ge.s32.totalorder %s34, 2
      %s36 = scalar_select %p35, 0, %s34
      %s37 = sadd.s32 1, %s21
      %s38 = scalar_select %p35, %s37, %s21
      %p39 = scmp.ge.s32.totalorder %s38, 1
      %s40 = scalar_select %p39, 0, %s38
      %s41 = ssub.s32 %s21, %s40
      %p42 = scmp.eq.s32.totalorder %s41, 0
      %s44 = sadd.s32 %s43, 1
      %s45 = scalar_select %p42, %s43, %s44
      %p48 = pneg %p42
      %p49 = scmp.eq.s32.totalorder %s14, 1
      %p50 = por %p48, %p49
      %p51 = scmp.ne.s32.totalorder %s43, %s46
      %p52 = scmp.eq.s32.totalorder %s14, 0
      %p53 = por %p51, %p52
      %p54 = scmp.ne.s32.totalorder %s43, %s46
      %p55 = scmp.eq.s32.totalorder %s19, 1
      %p56 = por %p54, %p55
      %p57 = scmp.ne.s32.totalorder %s46, %s47
      %p58 = scmp.eq.s32.totalorder %s19, 0
      %p59 = por %p57, %p58
      %p60 = scmp.ne.s32.totalorder %s46, %s47
      %p61 = scmp.eq.s32.totalorder %s20, 1
      %p62 = por %p60, %p61
      %p64 = scmp.ne.s32.totalorder %s47, %s63
      %p65 = scmp.eq.s32.totalorder %s20, 0
      %p66 = por %p64, %p65
      %s67 = ssub.s32 %s23, %s32
      %s68 = ssub.s32 %s22, %s36
      %s69 = sor.u32 %s67, %s68
      %p70 = scmp.eq.s32.totalorder %s69, 0
      %s72 = sadd.s32 %s71, 1
      %s73 = scalar_select %p70, %s71, %s72
      %p76 = pneg %p70
      %p77 = scmp.eq.s32.totalorder %s14, 1
      %p78 = por %p76, %p77
      %p79 = scmp.ne.s32.totalorder %s71, %s74
      %p80 = scmp.eq.s32.totalorder %s14, 0
      %p81 = por %p79, %p80
      %p82 = scmp.ne.s32.totalorder %s71, %s74
      %p83 = scmp.eq.s32.totalorder %s19, 1
      %p84 = por %p82, %p83
      %p85 = scmp.ne.s32.totalorder %s74, %s75
      %p86 = scmp.eq.s32.totalorder %s19, 0
      %p87 = por %p85, %p86
      %p88 = scmp.ne.s32.totalorder %s74, %s75
      %p89 = scmp.eq.s32.totalorder %s20, 1
      %p90 = por %p88, %p89
      %p92 = scmp.ne.s32.totalorder %s75, %s91
      %p93 = scmp.eq.s32.totalorder %s20, 0
      %p94 = por %p92, %p93
      %s95 = ssub.s32 %s23, %s32
      %s96 = ssub.s32 %s22, %s36
      %s97 = sor.u32 %s95, %s96
      %p98 = scmp.eq.s32.totalorder %s97, 0
      %s100 = sadd.s32 %s99, 1
      %s101 = scalar_select %p98, %s99, %s100
      %p104 = pneg %p98
      %p105 = scmp.eq.s32.totalorder %s14, 1
      %p106 = por %p104, %p105
      %p107 = scmp.ne.s32.totalorder %s99, %s102
      %p108 = scmp.eq.s32.totalorder %s14, 0
      %p109 = por %p107, %p108
      %p110 = scmp.ne.s32.totalorder %s99, %s102
      %p111 = scmp.eq.s32.totalorder %s19, 1
      %p112 = por %p110, %p111
      %p113 = scmp.ne.s32.totalorder %s102, %s103
      %p114 = scmp.eq.s32.totalorder %s19, 0
      %p115 = por %p113, %p114
      %p116 = scmp.ne.s32.totalorder %s102, %s103
      %p117 = scmp.eq.s32.totalorder %s20, 1
      %p118 = por %p116, %p117
      %p120 = scmp.ne.s32.totalorder %s103, %s119
      %p121 = scmp.eq.s32.totalorder %s20, 0
      %p122 = por %p120, %p121
      %s123 = ssub.s32 %s22, %s36
      %p124 = scmp.eq.s32.totalorder %s123, 0
      %s126 = sadd.s32 %s125, 1
      %s127 = scalar_select %p124, %s125, %s126
      %p130 = pneg %p124
      %p131 = scmp.eq.s32.totalorder %s14, 1
      %p132 = por %p130, %p131
      %p133 = scmp.ne.s32.totalorder %s125, %s128
      %p134 = scmp.eq.s32.totalorder %s14, 0
      %p135 = por %p133, %p134
      %p136 = scmp.ne.s32.totalorder %s125, %s128
      %p137 = scmp.eq.s32.totalorder %s19, 1
      %p138 = por %p136, %p137
      %p139 = scmp.ne.s32.totalorder %s128, %s129
      %p140 = scmp.eq.s32.totalorder %s19, 0
      %p141 = por %p139, %p140
      %p142 = scmp.ne.s32.totalorder %s128, %s129
      %p143 = scmp.eq.s32.totalorder %s20, 1
      %p144 = por %p142, %p143
      %p146 = scmp.ne.s32.totalorder %s129, %s145
      %p147 = scmp.eq.s32.totalorder %s20, 0
      %p148 = por %p146, %p147
      %s149 = ssub.s32 %s21, %s40
      %s150 = ssub.s32 %s22, %s36
      %s151 = sor.u32 %s149, %s150
      %p152 = scmp.eq.s32.totalorder %s151, 0
      %s154 = sadd.s32 %s153, 1
      %s155 = scalar_select %p152, %s153, %s154
      %p158 = pneg %p152
      %p159 = scmp.eq.s32.totalorder %s14, 1
      %p160 = por %p158, %p159
      %p161 = scmp.ne.s32.totalorder %s153, %s156
      %p162 = scmp.eq.s32.totalorder %s14, 0
      %p163 = por %p161, %p162
      %p164 = scmp.ne.s32.totalorder %s153, %s156
      %p165 = scmp.eq.s32.totalorder %s19, 1
      %p166 = por %p164, %p165
      %p167 = scmp.ne.s32.totalorder %s156, %s157
      %p168 = scmp.eq.s32.totalorder %s19, 0
      %p169 = por %p167, %p168
      %p170 = scmp.ne.s32.totalorder %s156, %s157
      %p171 = scmp.eq.s32.totalorder %s20, 1
      %p172 = por %p170, %p171
      %p174 = scmp.ne.s32.totalorder %s157, %s173
      %p175 = scmp.eq.s32.totalorder %s20, 0
      %p176 = por %p174, %p175
      %p177 = scmp.le.s32.totalorder 1, %s14
      %p178 = scmp.lt.s32.totalorder %s14, 3
      %p179 = pnand %p177, %p178
      %p180 = pneg %p179
      // Predicated region
      $region9: #{tpu_custom_call.1} parent=5 // pred_check
        _
      $region10: #{tpu_custom_call.1} parent=5 // pred_check_branch
        %182 = sbr.rel (%p179) target = $region12
      $region11: #{tpu_custom_call.1} parent=5 // pred_region
        %s183 = ssub.s32 %s14, 1
        // Predicated region
        $region13: #{tpu_custom_call.1} parent=11 // pred_check
          %p184 = pneg %p59
        $region14: #{tpu_custom_call.1} parent=11 // pred_check_branch
          %186 = sbr.rel (%p184) target = $region16
        $region15: #{tpu_custom_call.1} parent=11 // pred_region
          %s187 = smul.u32 2, %s24
          %s189 = ssub.s32 1024, 1024
          %190 = vsyncadd [#allocation4], %s189
          %s191 = smul.addr %s187, 8
          %s192 = smul.addr %s191, 64
          %s193 = scalar_lea.hbm %s0, %s192
          %s194 = sshll.u32 [#allocation3], 4
          %s195 = int_to_ptr.vmem [resolvable:$true] %s194
          %200 = dma.hbm_to_vmem [thread:$0]  %s193, 1024, %s195, [#allocation4], 512, 512, 32
        $region16: #{tpu_custom_call.1} parent=11 // pred_fallthru
          _
      $region12: #{tpu_custom_call.1} parent=5 // pred_fallthru
        _
      %p201 = scmp.lt.s32.totalorder %s14, 2
      // Predicated region
      $region17: #{tpu_custom_call.1} parent=5 // pred_check
        %p202 = pneg %p201
      $region18: #{tpu_custom_call.1} parent=5 // pred_check_branch
        %204 = sbr.rel (%p202) target = $region20
      $region19: #{tpu_custom_call.1} parent=5 // pred_region
        // Predicated region
        $region21: #{tpu_custom_call.1} parent=19 // pred_check
          %p205 = pneg %p81
        $region22: #{tpu_custom_call.1} parent=19 // pred_check_branch
          %207 = sbr.rel (%p205) target = $region24
        $region23: #{tpu_custom_call.1} parent=19 // pred_region
          %s208 = smul.u32 8, %s22
          %p209 = scmp.lt.s32.totalorder %s23, 0
          %s210 = scalar_select %p209, %s23, 0
          %p211 = scmp.lt.s32.totalorder %s208, 15
          %s212 = scalar_select %p211, %s208, 15
          %s213 = smul.addr %s212, 4
          %s214 = smul.addr %s210, 64
          %s215 = sadd.s32 %s213, %s214
          %s216 = smul.addr %s215, 8
          %s217 = scalar_lea.vmem %s1, %s216
          %s218 = smul.u32 8, %s22
        $region24: #{tpu_custom_call.1} parent=19 // pred_fallthru
          _
        // Predicated region
        $region25: #{tpu_custom_call.1} parent=19 // pred_check
          %p219 = pneg %p109
        $region26: #{tpu_custom_call.1} parent=19 // pred_check_branch
          %221 = sbr.rel (%p219) target = $region28
        $region27: #{tpu_custom_call.1} parent=19 // pred_region
          %s222 = smul.u32 32, %s22
          %p223 = scmp.lt.s32.totalorder %s23, 0
          %s224 = scalar_select %p223, %s23, 0
          %p225 = scmp.lt.s32.totalorder %s222, 63
          %s226 = scalar_select %p225, %s222, 63
          %s227 = smul.addr %s224, 64
          %s228 = sadd.s32 %s226, %s227
          %s229 = smul.addr %s228, 8
          %s230 = scalar_lea.vmem %s2, %s229
          %s231 = smul.u32 32, %s22
        $region28: #{tpu_custom_call.1} parent=19 // pred_fallthru
          _
        // Predicated region
        $region29: #{tpu_custom_call.1} parent=19 // pred_check
          %p232 = pneg %p135
        $region30: #{tpu_custom_call.1} parent=19 // pred_check_branch
          %234 = sbr.rel (%p232) target = $region32
        $region31: #{tpu_custom_call.1} parent=19 // pred_region
          %s235 = smul.u32 2, %s22
          %p236 = scmp.lt.s32.totalorder %s235, 3
          %s237 = scalar_select %p236, %s235, 3
          %s238 = scalar_lea.vmem %s3, %s237
          %s239 = smul.u32 2, %s22
        $region32: #{tpu_custom_call.1} parent=19 // pred_fallthru
          _
      $region20: #{tpu_custom_call.1} parent=5 // pred_fallthru
        _
      %p240 = scmp.le.s32.totalorder 1, %s14
      %p241 = scmp.lt.s32.totalorder %s14, 3
      %p242 = pnand %p240, %p241
      %p243 = pneg %p242
      // Predicated region
      $region33: #{tpu_custom_call.1} parent=5 // pred_check
        _
      $region34: #{tpu_custom_call.1} parent=5 // pred_check_branch
        %245 = sbr.rel (%p242) target = $region36
      $region35: #{tpu_custom_call.1} parent=5 // pred_region
        %s246 = ssub.s32 %s14, 1
        // Predicated region
        $region37: #{tpu_custom_call.1} parent=35 // pred_check
          %p247 = pneg %p59
        $region38: #{tpu_custom_call.1} parent=35 // pred_check_branch
          %249 = sbr.rel (%p247) target = $region40
        $region39: #{tpu_custom_call.1} parent=35 // pred_region
          %250 = dma.done [#allocation4], 1024
        $region40: #{tpu_custom_call.1} parent=35 // pred_fallthru
          _
        %p251 = pneg %p59
        %p252 = pneg %p56
        %s253 = smul.u32 8, %s25
        %p254 = scmp.lt.s32.totalorder %s26, 0
        %s255 = scalar_select %p254, %s26, 0
        %p256 = scmp.lt.s32.totalorder %s253, 15
        %s257 = scalar_select %p256, %s253, 15
        %s258 = smul.addr %s257, 4
        %s259 = smul.addr %s255, 64
        %s260 = sadd.s32 %s258, %s259
        %s261 = smul.addr %s260, 8
        %s262 = scalar_lea.vmem %s1, %s261
        %p263 = pneg %p87
        %p264 = pneg %p84
        %s265 = smul.u32 32, %s25
        %p266 = scmp.lt.s32.totalorder %s26, 0
        %s267 = scalar_select %p266, %s26, 0
        %p268 = scmp.lt.s32.totalorder %s265, 63
        %s269 = scalar_select %p268, %s265, 63
        %s270 = smul.addr %s267, 64
        %s271 = sadd.s32 %s269, %s270
        %s272 = smul.addr %s271, 8
        %s273 = scalar_lea.vmem %s2, %s272
        %p274 = pneg %p115
        %p275 = pneg %p112
        %s276 = smul.u32 2, %s25
        %p277 = scmp.lt.s32.totalorder %s276, 3
        %s278 = scalar_select %p277, %s276, 3
        %s279 = scalar_lea.vmem %s3, %s278
        %p280 = pneg %p141
        %p281 = pneg %p138
        %p282 = pneg %p169
        %p283 = pneg %p166
        %s284 = sand.u32 %s156, 1
        %s285 = scalar_lea.sflag [#allocation5], %s284
        %s286 = sand.u32 %s156, 1
        %s287 = smul.addr %s286, 32
        %s288 = scalar_lea.vmem [#allocation6], %s287
        %s289 = smul.u32 2, %s24
        %s290 = smul.u32 8, %s25
        %p291 = scmp.lt.s32.totalorder %s26, 0
        %s292 = scalar_select %p291, %s26, 0
        %p293 = scmp.lt.s32.totalorder %s290, 15
        %s294 = scalar_select %p293, %s290, 15
        %s295 = smul.addr %s294, 4
        %s296 = smul.addr %s292, 64
        %s297 = sadd.s32 %s295, %s296
        %s298 = smul.addr %s297, 8
        %s299 = scalar_lea.vmem %s1, %s298
        %s300 = smul.u32 8, %s25
        %s301 = smul.u32 32, %s25
        %p302 = scmp.lt.s32.totalorder %s26, 0
        %s303 = scalar_select %p302, %s26, 0
        %p304 = scmp.lt.s32.totalorder %s301, 63
        %s305 = scalar_select %p304, %s301, 63
        %s306 = smul.addr %s303, 64
        %s307 = sadd.s32 %s305, %s306
        %s308 = smul.addr %s307, 8
        %s309 = scalar_lea.vmem %s2, %s308
        %s310 = smul.u32 32, %s25
        %s311 = smul.u32 2, %s25
        %p312 = scmp.lt.s32.totalorder %s311, 3
        %s313 = scalar_select %p312, %s311, 3
        %s314 = scalar_lea.vmem %s3, %s313
        %s315 = smul.u32 2, %s25
        %s316 = smul.u32 2, %s24
        %s317 = smul.u32 2, %s25
        %p318 = scmp.eq.s32.totalorder %s26, 0
        // Predicated region
        $region41: #{tpu_custom_call.1} parent=35 // pred_check
          %p319 = pneg %p318
        $region42: #{tpu_custom_call.1} parent=35 // pred_check_branch
          %321 = sbr.rel (%p319) target = $region44
        $region43: #{tpu_custom_call.1} parent=35 // pred_region
          %322 = vst [vmem:[#allocation2] sm:$0xff] 0.0
          %323 = vst [vmem:[#allocation2 + $0x8] sm:$0xff] 0.0
          %324 = vst [vmem:[#allocation2 + $0x10] sm:$0xff] 0.0
          %325 = vst [vmem:[#allocation2 + $0x18] sm:$0xff] 0.0
        $region44: #{tpu_custom_call.1} parent=35 // pred_fallthru
          _
        %v326 = vld [vmem:[%s299] sm:$0xff]
        %v327 = vld [vmem:[%s299 + $0x8] sm:$0xff]
        %v328 = vld [vmem:[%s299 + $0x10] sm:$0xff]
        %v329 = vld [vmem:[%s299 + $0x18] sm:$0xff]
        %v330 = vld [vmem:[%s299 + $0x20] sm:$0xff]
        %v331 = vld [vmem:[%s299 + $0x28] sm:$0xff]
        %v332 = vld [vmem:[%s299 + $0x30] sm:$0xff]
        %v333 = vld [vmem:[%s299 + $0x38] sm:$0xff]
        %v334 = vld [vmem:[%s299 + $0x40] sm:$0xff]
        %v335 = vld [vmem:[%s299 + $0x48] sm:$0xff]
        %v336 = vld [vmem:[%s299 + $0x50] sm:$0xff]
        %v337 = vld [vmem:[%s299 + $0x58] sm:$0xff]
        %v338 = vld [vmem:[%s299 + $0x60] sm:$0xff]
        %v339 = vld [vmem:[%s299 + $0x68] sm:$0xff]
        %v340 = vld [vmem:[%s299 + $0x70] sm:$0xff]
        %v341 = vld [vmem:[%s299 + $0x78] sm:$0xff]
        %v342 = vld [vmem:[%s299 + $0x80] sm:$0xff]
        %v343 = vld [vmem:[%s299 + $0x88] sm:$0xff]
        %v344 = vld [vmem:[%s299 + $0x90] sm:$0xff]
        %v345 = vld [vmem:[%s299 + $0x98] sm:$0xff]
        %v346 = vld [vmem:[%s299 + $0xa0] sm:$0xff]
        %v347 = vld [vmem:[%s299 + $0xa8] sm:$0xff]
        %v348 = vld [vmem:[%s299 + $0xb0] sm:$0xff]
        %v349 = vld [vmem:[%s299 + $0xb8] sm:$0xff]
        %v350 = vld [vmem:[%s299 + $0xc0] sm:$0xff]
        %v351 = vld [vmem:[%s299 + $0xc8] sm:$0xff]
        %v352 = vld [vmem:[%s299 + $0xd0] sm:$0xff]
        %v353 = vld [vmem:[%s299 + $0xd8] sm:$0xff]
        %v354 = vld [vmem:[%s299 + $0xe0] sm:$0xff]
        %v355 = vld [vmem:[%s299 + $0xe8] sm:$0xff]
        %v356 = vld [vmem:[%s299 + $0xf0] sm:$0xff]
        %v357 = vld [vmem:[%s299 + $0xf8] sm:$0xff]
        %v358 = vunpack.c.0.s8 %v326
        %v359 = vunpack.c.0.s8 %v327
        %v360 = vunpack.c.0.s8 %v328
        %v361 = vunpack.c.0.s8 %v329
        %v362 = vunpack.c.1.s8 %v326
        %v363 = vunpack.c.1.s8 %v327
        %v364 = vunpack.c.1.s8 %v328
        %v365 = vunpack.c.1.s8 %v329
        %v366 = vunpack.c.2.s8 %v326
        %v367 = vunpack.c.2.s8 %v327
        %v368 = vunpack.c.2.s8 %v328
        %v369 = vunpack.c.2.s8 %v329
        %v370 = vunpack.c.3.s8 %v326
        %v371 = vunpack.c.3.s8 %v327
        %v372 = vunpack.c.3.s8 %v328
        %v373 = vunpack.c.3.s8 %v329
        %v374 = vunpack.c.0.s8 %v330
        %v375 = vunpack.c.0.s8 %v331
        %v376 = vunpack.c.0.s8 %v332
        %v377 = vunpack.c.0.s8 %v333
        %v378 = vunpack.c.1.s8 %v330
        %v379 = vunpack.c.1.s8 %v331
        %v380 = vunpack.c.1.s8 %v332
        %v381 = vunpack.c.1.s8 %v333
        %v382 = vunpack.c.2.s8 %v330
        %v383 = vunpack.c.2.s8 %v331
        %v384 = vunpack.c.2.s8 %v332
        %v385 = vunpack.c.2.s8 %v333
        %v386 = vunpack.c.3.s8 %v330
        %v387 = vunpack.c.3.s8 %v331
        %v388 = vunpack.c.3.s8 %v332
        %v389 = vunpack.c.3.s8 %v333
        %v390 = vunpack.c.0.s8 %v334
        %v391 = vunpack.c.0.s8 %v335
        %v392 = vunpack.c.0.s8 %v336
        %v393 = vunpack.c.0.s8 %v337
        %v394 = vunpack.c.1.s8 %v334
        %v395 = vunpack.c.1.s8 %v335
        %v396 = vunpack.c.1.s8 %v336
        %v397 = vunpack.c.1.s8 %v337
        %v398 = vunpack.c.2.s8 %v334
        %v399 = vunpack.c.2.s8 %v335
        %v400 = vunpack.c.2.s8 %v336
        %v401 = vunpack.c.2.s8 %v337
        %v402 = vunpack.c.3.s8 %v334
        %v403 = vunpack.c.3.s8 %v335
        %v404 = vunpack.c.3.s8 %v336
        %v405 = vunpack.c.3.s8 %v337
        %v406 = vunpack.c.0.s8 %v338
        %v407 = vunpack.c.0.s8 %v339
        %v408 = vunpack.c.0.s8 %v340
        %v409 = vunpack.c.0.s8 %v341
        %v410 = vunpack.c.1.s8 %v338
        %v411 = vunpack.c.1.s8 %v339
        %v412 = vunpack.c.1.s8 %v340
        %v413 = vunpack.c.1.s8 %v341
        %v414 = vunpack.c.2.s8 %v338
        %v415 = vunpack.c.2.s8 %v339
        %v416 = vunpack.c.2.s8 %v340
        %v417 = vunpack.c.2.s8 %v341
        %v418 = vunpack.c.3.s8 %v338
        %v419 = vunpack.c.3.s8 %v339
        %v420 = vunpack.c.3.s8 %v340
        %v421 = vunpack.c.3.s8 %v341
        %v422 = vunpack.c.0.s8 %v342
        %v423 = vunpack.c.0.s8 %v343
        %v424 = vunpack.c.0.s8 %v344
        %v425 = vunpack.c.0.s8 %v345
        %v426 = vunpack.c.1.s8 %v342
        %v427 = vunpack.c.1.s8 %v343
        %v428 = vunpack.c.1.s8 %v344
        %v429 = vunpack.c.1.s8 %v345
        %v430 = vunpack.c.2.s8 %v342
        %v431 = vunpack.c.2.s8 %v343
        %v432 = vunpack.c.2.s8 %v344
        %v433 = vunpack.c.2.s8 %v345
        %v434 = vunpack.c.3.s8 %v342
        %v435 = vunpack.c.3.s8 %v343
        %v436 = vunpack.c.3.s8 %v344
        %v437 = vunpack.c.3.s8 %v345
        %v438 = vunpack.c.0.s8 %v346
        %v439 = vunpack.c.0.s8 %v347
        %v440 = vunpack.c.0.s8 %v348
        %v441 = vunpack.c.0.s8 %v349
        %v442 = vunpack.c.1.s8 %v346
        %v443 = vunpack.c.1.s8 %v347
        %v444 = vunpack.c.1.s8 %v348
        %v445 = vunpack.c.1.s8 %v349
        %v446 = vunpack.c.2.s8 %v346
        %v447 = vunpack.c.2.s8 %v347
        %v448 = vunpack.c.2.s8 %v348
        %v449 = vunpack.c.2.s8 %v349
        %v450 = vunpack.c.3.s8 %v346
        %v451 = vunpack.c.3.s8 %v347
        %v452 = vunpack.c.3.s8 %v348
        %v453 = vunpack.c.3.s8 %v349
        %v454 = vunpack.c.0.s8 %v350
        %v455 = vunpack.c.0.s8 %v351
        %v456 = vunpack.c.0.s8 %v352
        %v457 = vunpack.c.0.s8 %v353
        %v458 = vunpack.c.1.s8 %v350
        %v459 = vunpack.c.1.s8 %v351
        %v460 = vunpack.c.1.s8 %v352
        %v461 = vunpack.c.1.s8 %v353
        %v462 = vunpack.c.2.s8 %v350
        %v463 = vunpack.c.2.s8 %v351
        %v464 = vunpack.c.2.s8 %v352
        %v465 = vunpack.c.2.s8 %v353
        %v466 = vunpack.c.3.s8 %v350
        %v467 = vunpack.c.3.s8 %v351
        %v468 = vunpack.c.3.s8 %v352
        %v469 = vunpack.c.3.s8 %v353
        %v470 = vunpack.c.0.s8 %v354
        %v471 = vunpack.c.0.s8 %v355
        %v472 = vunpack.c.0.s8 %v356
        %v473 = vunpack.c.0.s8 %v357
        %v474 = vunpack.c.1.s8 %v354
        %v475 = vunpack.c.1.s8 %v355
        %v476 = vunpack.c.1.s8 %v356
        %v477 = vunpack.c.1.s8 %v357
        %v478 = vunpack.c.2.s8 %v354
        %v479 = vunpack.c.2.s8 %v355
        %v480 = vunpack.c.2.s8 %v356
        %v481 = vunpack.c.2.s8 %v357
        %v482 = vunpack.c.3.s8 %v354
        %v483 = vunpack.c.3.s8 %v355
        %v484 = vunpack.c.3.s8 %v356
        %v485 = vunpack.c.3.s8 %v357
        %v486 = vand.u32 %v358, 1
        %v487 = vand.u32 %v359, 1
        %v488 = vand.u32 %v360, 1
        %v489 = vand.u32 %v361, 1
        %v490 = vand.u32 %v362, 1
        %v491 = vand.u32 %v363, 1
        %v492 = vand.u32 %v364, 1
        %v493 = vand.u32 %v365, 1
        %v494 = vand.u32 %v366, 1
        %v495 = vand.u32 %v367, 1
        %v496 = vand.u32 %v368, 1
        %v497 = vand.u32 %v369, 1
        %v498 = vand.u32 %v370, 1
        %v499 = vand.u32 %v371, 1
        %v500 = vand.u32 %v372, 1
        %v501 = vand.u32 %v373, 1
        %v502 = vand.u32 %v374, 1
        %v503 = vand.u32 %v375, 1
        %v504 = vand.u32 %v376, 1
        %v505 = vand.u32 %v377, 1
        %v506 = vand.u32 %v378, 1
        %v507 = vand.u32 %v379, 1
        %v508 = vand.u32 %v380, 1
        %v509 = vand.u32 %v381, 1
        %v510 = vand.u32 %v382, 1
        %v511 = vand.u32 %v383, 1
        %v512 = vand.u32 %v384, 1
        %v513 = vand.u32 %v385, 1
        %v514 = vand.u32 %v386, 1
        %v515 = vand.u32 %v387, 1
        %v516 = vand.u32 %v388, 1
        %v517 = vand.u32 %v389, 1
        %v518 = vand.u32 %v390, 1
        %v519 = vand.u32 %v391, 1
        %v520 = vand.u32 %v392, 1
        %v521 = vand.u32 %v393, 1
        %v522 = vand.u32 %v394, 1
        %v523 = vand.u32 %v395, 1
        %v524 = vand.u32 %v396, 1
        %v525 = vand.u32 %v397, 1
        %v526 = vand.u32 %v398, 1
        %v527 = vand.u32 %v399, 1
        %v528 = vand.u32 %v400, 1
        %v529 = vand.u32 %v401, 1
        %v530 = vand.u32 %v402, 1
        %v531 = vand.u32 %v403, 1
        %v532 = vand.u32 %v404, 1
        %v533 = vand.u32 %v405, 1
        %v534 = vand.u32 %v406, 1
        %v535 = vand.u32 %v407, 1
        %v536 = vand.u32 %v408, 1
        %v537 = vand.u32 %v409, 1
        %v538 = vand.u32 %v410, 1
        %v539 = vand.u32 %v411, 1
        %v540 = vand.u32 %v412, 1
        %v541 = vand.u32 %v413, 1
        %v542 = vand.u32 %v414, 1
        %v543 = vand.u32 %v415, 1
        %v544 = vand.u32 %v416, 1
        %v545 = vand.u32 %v417, 1
        %v546 = vand.u32 %v418, 1
        %v547 = vand.u32 %v419, 1
        %v548 = vand.u32 %v420, 1
        %v549 = vand.u32 %v421, 1
        %v550 = vand.u32 %v422, 1
        %v551 = vand.u32 %v423, 1
        %v552 = vand.u32 %v424, 1
        %v553 = vand.u32 %v425, 1
        %v554 = vand.u32 %v426, 1
        %v555 = vand.u32 %v427, 1
        %v556 = vand.u32 %v428, 1
        %v557 = vand.u32 %v429, 1
        %v558 = vand.u32 %v430, 1
        %v559 = vand.u32 %v431, 1
        %v560 = vand.u32 %v432, 1
        %v561 = vand.u32 %v433, 1
        %v562 = vand.u32 %v434, 1
        %v563 = vand.u32 %v435, 1
        %v564 = vand.u32 %v436, 1
        %v565 = vand.u32 %v437, 1
        %v566 = vand.u32 %v438, 1
        %v567 = vand.u32 %v439, 1
        %v568 = vand.u32 %v440, 1
        %v569 = vand.u32 %v441, 1
        %v570 = vand.u32 %v442, 1
        %v571 = vand.u32 %v443, 1
        %v572 = vand.u32 %v444, 1
        %v573 = vand.u32 %v445, 1
        %v574 = vand.u32 %v446, 1
        %v575 = vand.u32 %v447, 1
        %v576 = vand.u32 %v448, 1
        %v577 = vand.u32 %v449, 1
        %v578 = vand.u32 %v450, 1
        %v579 = vand.u32 %v451, 1
        %v580 = vand.u32 %v452, 1
        %v581 = vand.u32 %v453, 1
        %v582 = vand.u32 %v454, 1
        %v583 = vand.u32 %v455, 1
        %v584 = vand.u32 %v456, 1
        %v585 = vand.u32 %v457, 1
        %v586 = vand.u32 %v458, 1
        %v587 = vand.u32 %v459, 1
        %v588 = vand.u32 %v460, 1
        %v589 = vand.u32 %v461, 1
        %v590 = vand.u32 %v462, 1
        %v591 = vand.u32 %v463, 1
        %v592 = vand.u32 %v464, 1
        %v593 = vand.u32 %v465, 1
        %v594 = vand.u32 %v466, 1
        %v595 = vand.u32 %v467, 1
        %v596 = vand.u32 %v468, 1
        %v597 = vand.u32 %v469, 1
        %v598 = vand.u32 %v470, 1
        %v599 = vand.u32 %v471, 1
        %v600 = vand.u32 %v472, 1
        %v601 = vand.u32 %v473, 1
        %v602 = vand.u32 %v474, 1
        %v603 = vand.u32 %v475, 1
        %v604 = vand.u32 %v476, 1
        %v605 = vand.u32 %v477, 1
        %v606 = vand.u32 %v478, 1
        %v607 = vand.u32 %v479, 1
        %v608 = vand.u32 %v480, 1
        %v609 = vand.u32 %v481, 1
        %v610 = vand.u32 %v482, 1
        %v611 = vand.u32 %v483, 1
        %v612 = vand.u32 %v484, 1
        %v613 = vand.u32 %v485, 1
        %vm614 = vcmp.ne.s32.totalorder %v486, 0
        %vm615 = vcmp.ne.s32.totalorder %v487, 0
        %vm616 = vcmp.ne.s32.totalorder %v488, 0
        %vm617 = vcmp.ne.s32.totalorder %v489, 0
        %vm618 = vcmp.ne.s32.totalorder %v490, 0
        %vm619 = vcmp.ne.s32.totalorder %v491, 0
        %vm620 = vcmp.ne.s32.totalorder %v492, 0
        %vm621 = vcmp.ne.s32.totalorder %v493, 0
        %vm622 = vcmp.ne.s32.totalorder %v494, 0
        %vm623 = vcmp.ne.s32.totalorder %v495, 0
        %vm624 = vcmp.ne.s32.totalorder %v496, 0
        %vm625 = vcmp.ne.s32.totalorder %v497, 0
        %vm626 = vcmp.ne.s32.totalorder %v498, 0
        %vm627 = vcmp.ne.s32.totalorder %v499, 0
        %vm628 = vcmp.ne.s32.totalorder %v500, 0
        %vm629 = vcmp.ne.s32.totalorder %v501, 0
        %vm630 = vcmp.ne.s32.totalorder %v502, 0
        %vm631 = vcmp.ne.s32.totalorder %v503, 0
        %vm632 = vcmp.ne.s32.totalorder %v504, 0
        %vm633 = vcmp.ne.s32.totalorder %v505, 0
        %vm634 = vcmp.ne.s32.totalorder %v506, 0
        %vm635 = vcmp.ne.s32.totalorder %v507, 0
        %vm636 = vcmp.ne.s32.totalorder %v508, 0
        %vm637 = vcmp.ne.s32.totalorder %v509, 0
        %vm638 = vcmp.ne.s32.totalorder %v510, 0
        %vm639 = vcmp.ne.s32.totalorder %v511, 0
        %vm640 = vcmp.ne.s32.totalorder %v512, 0
        %vm641 = vcmp.ne.s32.totalorder %v513, 0
        %vm642 = vcmp.ne.s32.totalorder %v514, 0
        %vm643 = vcmp.ne.s32.totalorder %v515, 0
        %vm644 = vcmp.ne.s32.totalorder %v516, 0
        %vm645 = vcmp.ne.s32.totalorder %v517, 0
        %vm646 = vcmp.ne.s32.totalorder %v518, 0
        %vm647 = vcmp.ne.s32.totalorder %v519, 0
        %vm648 = vcmp.ne.s32.totalorder %v520, 0
        %vm649 = vcmp.ne.s32.totalorder %v521, 0
        %vm650 = vcmp.ne.s32.totalorder %v522, 0
        %vm651 = vcmp.ne.s32.totalorder %v523, 0
        %vm652 = vcmp.ne.s32.totalorder %v524, 0
        %vm653 = vcmp.ne.s32.totalorder %v525, 0
        %vm654 = vcmp.ne.s32.totalorder %v526, 0
        %vm655 = vcmp.ne.s32.totalorder %v527, 0
        %vm656 = vcmp.ne.s32.totalorder %v528, 0
        %vm657 = vcmp.ne.s32.totalorder %v529, 0
        %vm658 = vcmp.ne.s32.totalorder %v530, 0
        %vm659 = vcmp.ne.s32.totalorder %v531, 0
        %vm660 = vcmp.ne.s32.totalorder %v532, 0
        %vm661 = vcmp.ne.s32.totalorder %v533, 0
        %vm662 = vcmp.ne.s32.totalorder %v534, 0
        %vm663 = vcmp.ne.s32.totalorder %v535, 0
        %vm664 = vcmp.ne.s32.totalorder %v536, 0
        %vm665 = vcmp.ne.s32.totalorder %v537, 0
        %vm666 = vcmp.ne.s32.totalorder %v538, 0
        %vm667 = vcmp.ne.s32.totalorder %v539, 0
        %vm668 = vcmp.ne.s32.totalorder %v540, 0
        %vm669 = vcmp.ne.s32.totalorder %v541, 0
        %vm670 = vcmp.ne.s32.totalorder %v542, 0
        %vm671 = vcmp.ne.s32.totalorder %v543, 0
        %vm672 = vcmp.ne.s32.totalorder %v544, 0
        %vm673 = vcmp.ne.s32.totalorder %v545, 0
        %vm674 = vcmp.ne.s32.totalorder %v546, 0
        %vm675 = vcmp.ne.s32.totalorder %v547, 0
        %vm676 = vcmp.ne.s32.totalorder %v548, 0
        %vm677 = vcmp.ne.s32.totalorder %v549, 0
        %vm678 = vcmp.ne.s32.totalorder %v550, 0
        %vm679 = vcmp.ne.s32.totalorder %v551, 0
        %vm680 = vcmp.ne.s32.totalorder %v552, 0
        %vm681 = vcmp.ne.s32.totalorder %v553, 0
        %vm682 = vcmp.ne.s32.totalorder %v554, 0
        %vm683 = vcmp.ne.s32.totalorder %v555, 0
        %vm684 = vcmp.ne.s32.totalorder %v556, 0
        %vm685 = vcmp.ne.s32.totalorder %v557, 0
        %vm686 = vcmp.ne.s32.totalorder %v558, 0
        %vm687 = vcmp.ne.s32.totalorder %v559, 0
        %vm688 = vcmp.ne.s32.totalorder %v560, 0
        %vm689 = vcmp.ne.s32.totalorder %v561, 0
        %vm690 = vcmp.ne.s32.totalorder %v562, 0
        %vm691 = vcmp.ne.s32.totalorder %v563, 0
        %vm692 = vcmp.ne.s32.totalorder %v564, 0
        %vm693 = vcmp.ne.s32.totalorder %v565, 0
        %vm694 = vcmp.ne.s32.totalorder %v566, 0
        %vm695 = vcmp.ne.s32.totalorder %v567, 0
        %vm696 = vcmp.ne.s32.totalorder %v568, 0
        %vm697 = vcmp.ne.s32.totalorder %v569, 0
        %vm698 = vcmp.ne.s32.totalorder %v570, 0
        %vm699 = vcmp.ne.s32.totalorder %v571, 0
        %vm700 = vcmp.ne.s32.totalorder %v572, 0
        %vm701 = vcmp.ne.s32.totalorder %v573, 0
        %vm702 = vcmp.ne.s32.totalorder %v574, 0
        %vm703 = vcmp.ne.s32.totalorder %v575, 0
        %vm704 = vcmp.ne.s32.totalorder %v576, 0
        %vm705 = vcmp.ne.s32.totalorder %v577, 0
        %vm706 = vcmp.ne.s32.totalorder %v578, 0
        %vm707 = vcmp.ne.s32.totalorder %v579, 0
        %vm708 = vcmp.ne.s32.totalorder %v580, 0
        %vm709 = vcmp.ne.s32.totalorder %v581, 0
        %vm710 = vcmp.ne.s32.totalorder %v582, 0
        %vm711 = vcmp.ne.s32.totalorder %v583, 0
        %vm712 = vcmp.ne.s32.totalorder %v584, 0
        %vm713 = vcmp.ne.s32.totalorder %v585, 0
        %vm714 = vcmp.ne.s32.totalorder %v586, 0
        %vm715 = vcmp.ne.s32.totalorder %v587, 0
        %vm716 = vcmp.ne.s32.totalorder %v588, 0
        %vm717 = vcmp.ne.s32.totalorder %v589, 0
        %vm718 = vcmp.ne.s32.totalorder %v590, 0
        %vm719 = vcmp.ne.s32.totalorder %v591, 0
        %vm720 = vcmp.ne.s32.totalorder %v592, 0
        %vm721 = vcmp.ne.s32.totalorder %v593, 0
        %vm722 = vcmp.ne.s32.totalorder %v594, 0
        %vm723 = vcmp.ne.s32.totalorder %v595, 0
        %vm724 = vcmp.ne.s32.totalorder %v596, 0
        %vm725 = vcmp.ne.s32.totalorder %v597, 0
        %vm726 = vcmp.ne.s32.totalorder %v598, 0
        %vm727 = vcmp.ne.s32.totalorder %v599, 0
        %vm728 = vcmp.ne.s32.totalorder %v600, 0
        %vm729 = vcmp.ne.s32.totalorder %v601, 0
        %vm730 = vcmp.ne.s32.totalorder %v602, 0
        %vm731 = vcmp.ne.s32.totalorder %v603, 0
        %vm732 = vcmp.ne.s32.totalorder %v604, 0
        %vm733 = vcmp.ne.s32.totalorder %v605, 0
        %vm734 = vcmp.ne.s32.totalorder %v606, 0
        %vm735 = vcmp.ne.s32.totalorder %v607, 0
        %vm736 = vcmp.ne.s32.totalorder %v608, 0
        %vm737 = vcmp.ne.s32.totalorder %v609, 0
        %vm738 = vcmp.ne.s32.totalorder %v610, 0
        %vm739 = vcmp.ne.s32.totalorder %v611, 0
        %vm740 = vcmp.ne.s32.totalorder %v612, 0
        %vm741 = vcmp.ne.s32.totalorder %v613, 0
        %v742 = vand.u32 %v358, 2
        %v743 = vand.u32 %v359, 2
        %v744 = vand.u32 %v360, 2
        %v745 = vand.u32 %v361, 2
        %v746 = vand.u32 %v362, 2
        %v747 = vand.u32 %v363, 2
        %v748 = vand.u32 %v364, 2
        %v749 = vand.u32 %v365, 2
        %v750 = vand.u32 %v366, 2
        %v751 = vand.u32 %v367, 2
        %v752 = vand.u32 %v368, 2
        %v753 = vand.u32 %v369, 2
        %v754 = vand.u32 %v370, 2
        %v755 = vand.u32 %v371, 2
        %v756 = vand.u32 %v372, 2
        %v757 = vand.u32 %v373, 2
        %v758 = vand.u32 %v374, 2
        %v759 = vand.u32 %v375, 2
        %v760 = vand.u32 %v376, 2
        %v761 = vand.u32 %v377, 2
        %v762 = vand.u32 %v378, 2
        %v763 = vand.u32 %v379, 2
        %v764 = vand.u32 %v380, 2
        %v765 = vand.u32 %v381, 2
        %v766 = vand.u32 %v382, 2
        %v767 = vand.u32 %v383, 2
        %v768 = vand.u32 %v384, 2
        %v769 = vand.u32 %v385, 2
        %v770 = vand.u32 %v386, 2
        %v771 = vand.u32 %v387, 2
        %v772 = vand.u32 %v388, 2
        %v773 = vand.u32 %v389, 2
        %v774 = vand.u32 %v390, 2
        %v775 = vand.u32 %v391, 2
        %v776 = vand.u32 %v392, 2
        %v777 = vand.u32 %v393, 2
        %v778 = vand.u32 %v394, 2
        %v779 = vand.u32 %v395, 2
        %v780 = vand.u32 %v396, 2
        %v781 = vand.u32 %v397, 2
        %v782 = vand.u32 %v398, 2
        %v783 = vand.u32 %v399, 2
        %v784 = vand.u32 %v400, 2
        %v785 = vand.u32 %v401, 2
        %v786 = vand.u32 %v402, 2
        %v787 = vand.u32 %v403, 2
        %v788 = vand.u32 %v404, 2
        %v789 = vand.u32 %v405, 2
        %v790 = vand.u32 %v406, 2
        %v791 = vand.u32 %v407, 2
        %v792 = vand.u32 %v408, 2
        %v793 = vand.u32 %v409, 2
        %v794 = vand.u32 %v410, 2
        %v795 = vand.u32 %v411, 2
        %v796 = vand.u32 %v412, 2
        %v797 = vand.u32 %v413, 2
        %v798 = vand.u32 %v414, 2
        %v799 = vand.u32 %v415, 2
        %v800 = vand.u32 %v416, 2
        %v801 = vand.u32 %v417, 2
        %v802 = vand.u32 %v418, 2
        %v803 = vand.u32 %v419, 2
        %v804 = vand.u32 %v420, 2
        %v805 = vand.u32 %v421, 2
        %v806 = vand.u32 %v422, 2
        %v807 = vand.u32 %v423, 2
        %v808 = vand.u32 %v424, 2
        %v809 = vand.u32 %v425, 2
        %v810 = vand.u32 %v426, 2
        %v811 = vand.u32 %v427, 2
        %v812 = vand.u32 %v428, 2
        %v813 = vand.u32 %v429, 2
        %v814 = vand.u32 %v430, 2
        %v815 = vand.u32 %v431, 2
        %v816 = vand.u32 %v432, 2
        %v817 = vand.u32 %v433, 2
        %v818 = vand.u32 %v434, 2
        %v819 = vand.u32 %v435, 2
        %v820 = vand.u32 %v436, 2
        %v821 = vand.u32 %v437, 2
        %v822 = vand.u32 %v438, 2
        %v823 = vand.u32 %v439, 2
        %v824 = vand.u32 %v440, 2
        %v825 = vand.u32 %v441, 2
        %v826 = vand.u32 %v442, 2
        %v827 = vand.u32 %v443, 2
        %v828 = vand.u32 %v444, 2
        %v829 = vand.u32 %v445, 2
        %v830 = vand.u32 %v446, 2
        %v831 = vand.u32 %v447, 2
        %v832 = vand.u32 %v448, 2
        %v833 = vand.u32 %v449, 2
        %v834 = vand.u32 %v450, 2
        %v835 = vand.u32 %v451, 2
        %v836 = vand.u32 %v452, 2
        %v837 = vand.u32 %v453, 2
        %v838 = vand.u32 %v454, 2
        %v839 = vand.u32 %v455, 2
        %v840 = vand.u32 %v456, 2
        %v841 = vand.u32 %v457, 2
        %v842 = vand.u32 %v458, 2
        %v843 = vand.u32 %v459, 2
        %v844 = vand.u32 %v460, 2
        %v845 = vand.u32 %v461, 2
        %v846 = vand.u32 %v462, 2
        %v847 = vand.u32 %v463, 2
        %v848 = vand.u32 %v464, 2
        %v849 = vand.u32 %v465, 2
        %v850 = vand.u32 %v466, 2
        %v851 = vand.u32 %v467, 2
        %v852 = vand.u32 %v468, 2
        %v853 = vand.u32 %v469, 2
        %v854 = vand.u32 %v470, 2
        %v855 = vand.u32 %v471, 2
        %v856 = vand.u32 %v472, 2
        %v857 = vand.u32 %v473, 2
        %v858 = vand.u32 %v474, 2
        %v859 = vand.u32 %v475, 2
        %v860 = vand.u32 %v476, 2
        %v861 = vand.u32 %v477, 2
        %v862 = vand.u32 %v478, 2
        %v863 = vand.u32 %v479, 2
        %v864 = vand.u32 %v480, 2
        %v865 = vand.u32 %v481, 2
        %v866 = vand.u32 %v482, 2
        %v867 = vand.u32 %v483, 2
        %v868 = vand.u32 %v484, 2
        %v869 = vand.u32 %v485, 2
        %vm870 = vcmp.ne.s32.totalorder %v742, 0
        %vm871 = vcmp.ne.s32.totalorder %v743, 0
        %vm872 = vcmp.ne.s32.totalorder %v744, 0
        %vm873 = vcmp.ne.s32.totalorder %v745, 0
        %vm874 = vcmp.ne.s32.totalorder %v746, 0
        %vm875 = vcmp.ne.s32.totalorder %v747, 0
        %vm876 = vcmp.ne.s32.totalorder %v748, 0
        %vm877 = vcmp.ne.s32.totalorder %v749, 0
        %vm878 = vcmp.ne.s32.totalorder %v750, 0
        %vm879 = vcmp.ne.s32.totalorder %v751, 0
        %vm880 = vcmp.ne.s32.totalorder %v752, 0
        %vm881 = vcmp.ne.s32.totalorder %v753, 0
        %vm882 = vcmp.ne.s32.totalorder %v754, 0
        %vm883 = vcmp.ne.s32.totalorder %v755, 0
        %vm884 = vcmp.ne.s32.totalorder %v756, 0
        %vm885 = vcmp.ne.s32.totalorder %v757, 0
        %vm886 = vcmp.ne.s32.totalorder %v758, 0
        %vm887 = vcmp.ne.s32.totalorder %v759, 0
        %vm888 = vcmp.ne.s32.totalorder %v760, 0
        %vm889 = vcmp.ne.s32.totalorder %v761, 0
        %vm890 = vcmp.ne.s32.totalorder %v762, 0
        %vm891 = vcmp.ne.s32.totalorder %v763, 0
        %vm892 = vcmp.ne.s32.totalorder %v764, 0
        %vm893 = vcmp.ne.s32.totalorder %v765, 0
        %vm894 = vcmp.ne.s32.totalorder %v766, 0
        %vm895 = vcmp.ne.s32.totalorder %v767, 0
        %vm896 = vcmp.ne.s32.totalorder %v768, 0
        %vm897 = vcmp.ne.s32.totalorder %v769, 0
        %vm898 = vcmp.ne.s32.totalorder %v770, 0
        %vm899 = vcmp.ne.s32.totalorder %v771, 0
        %vm900 = vcmp.ne.s32.totalorder %v772, 0
        %vm901 = vcmp.ne.s32.totalorder %v773, 0
        %vm902 = vcmp.ne.s32.totalorder %v774, 0
        %vm903 = vcmp.ne.s32.totalorder %v775, 0
        %vm904 = vcmp.ne.s32.totalorder %v776, 0
        %vm905 = vcmp.ne.s32.totalorder %v777, 0
        %vm906 = vcmp.ne.s32.totalorder %v778, 0
        %vm907 = vcmp.ne.s32.totalorder %v779, 0
        %vm908 = vcmp.ne.s32.totalorder %v780, 0
        %vm909 = vcmp.ne.s32.totalorder %v781, 0
        %vm910 = vcmp.ne.s32.totalorder %v782, 0
        %vm911 = vcmp.ne.s32.totalorder %v783, 0
        %vm912 = vcmp.ne.s32.totalorder %v784, 0
        %vm913 = vcmp.ne.s32.totalorder %v785, 0
        %vm914 = vcmp.ne.s32.totalorder %v786, 0
        %vm915 = vcmp.ne.s32.totalorder %v787, 0
        %vm916 = vcmp.ne.s32.totalorder %v788, 0
        %vm917 = vcmp.ne.s32.totalorder %v789, 0
        %vm918 = vcmp.ne.s32.totalorder %v790, 0
        %vm919 = vcmp.ne.s32.totalorder %v791, 0
        %vm920 = vcmp.ne.s32.totalorder %v792, 0
        %vm921 = vcmp.ne.s32.totalorder %v793, 0
        %vm922 = vcmp.ne.s32.totalorder %v794, 0
        %vm923 = vcmp.ne.s32.totalorder %v795, 0
        %vm924 = vcmp.ne.s32.totalorder %v796, 0
        %vm925 = vcmp.ne.s32.totalorder %v797, 0
        %vm926 = vcmp.ne.s32.totalorder %v798, 0
        %vm927 = vcmp.ne.s32.totalorder %v799, 0
        %vm928 = vcmp.ne.s32.totalorder %v800, 0
        %vm929 = vcmp.ne.s32.totalorder %v801, 0
        %vm930 = vcmp.ne.s32.totalorder %v802, 0
        %vm931 = vcmp.ne.s32.totalorder %v803, 0
        %vm932 = vcmp.ne.s32.totalorder %v804, 0
        %vm933 = vcmp.ne.s32.totalorder %v805, 0
        %vm934 = vcmp.ne.s32.totalorder %v806, 0
        %vm935 = vcmp.ne.s32.totalorder %v807, 0
        %vm936 = vcmp.ne.s32.totalorder %v808, 0
        %vm937 = vcmp.ne.s32.totalorder %v809, 0
        %vm938 = vcmp.ne.s32.totalorder %v810, 0
        %vm939 = vcmp.ne.s32.totalorder %v811, 0
        %vm940 = vcmp.ne.s32.totalorder %v812, 0
        %vm941 = vcmp.ne.s32.totalorder %v813, 0
        %vm942 = vcmp.ne.s32.totalorder %v814, 0
        %vm943 = vcmp.ne.s32.totalorder %v815, 0
        %vm944 = vcmp.ne.s32.totalorder %v816, 0
        %vm945 = vcmp.ne.s32.totalorder %v817, 0
        %vm946 = vcmp.ne.s32.totalorder %v818, 0
        %vm947 = vcmp.ne.s32.totalorder %v819, 0
        %vm948 = vcmp.ne.s32.totalorder %v820, 0
        %vm949 = vcmp.ne.s32.totalorder %v821, 0
        %vm950 = vcmp.ne.s32.totalorder %v822, 0
        %vm951 = vcmp.ne.s32.totalorder %v823, 0
        %vm952 = vcmp.ne.s32.totalorder %v824, 0
        %vm953 = vcmp.ne.s32.totalorder %v825, 0
        %vm954 = vcmp.ne.s32.totalorder %v826, 0
        %vm955 = vcmp.ne.s32.totalorder %v827, 0
        %vm956 = vcmp.ne.s32.totalorder %v828, 0
        %vm957 = vcmp.ne.s32.totalorder %v829, 0
        %vm958 = vcmp.ne.s32.totalorder %v830, 0
        %vm959 = vcmp.ne.s32.totalorder %v831, 0
        %vm960 = vcmp.ne.s32.totalorder %v832, 0
        %vm961 = vcmp.ne.s32.totalorder %v833, 0
        %vm962 = vcmp.ne.s32.totalorder %v834, 0
        %vm963 = vcmp.ne.s32.totalorder %v835, 0
        %vm964 = vcmp.ne.s32.totalorder %v836, 0
        %vm965 = vcmp.ne.s32.totalorder %v837, 0
        %vm966 = vcmp.ne.s32.totalorder %v838, 0
        %vm967 = vcmp.ne.s32.totalorder %v839, 0
        %vm968 = vcmp.ne.s32.totalorder %v840, 0
        %vm969 = vcmp.ne.s32.totalorder %v841, 0
        %vm970 = vcmp.ne.s32.totalorder %v842, 0
        %vm971 = vcmp.ne.s32.totalorder %v843, 0
        %vm972 = vcmp.ne.s32.totalorder %v844, 0
        %vm973 = vcmp.ne.s32.totalorder %v845, 0
        %vm974 = vcmp.ne.s32.totalorder %v846, 0
        %vm975 = vcmp.ne.s32.totalorder %v847, 0
        %vm976 = vcmp.ne.s32.totalorder %v848, 0
        %vm977 = vcmp.ne.s32.totalorder %v849, 0
        %vm978 = vcmp.ne.s32.totalorder %v850, 0
        %vm979 = vcmp.ne.s32.totalorder %v851, 0
        %vm980 = vcmp.ne.s32.totalorder %v852, 0
        %vm981 = vcmp.ne.s32.totalorder %v853, 0
        %vm982 = vcmp.ne.s32.totalorder %v854, 0
        %vm983 = vcmp.ne.s32.totalorder %v855, 0
        %vm984 = vcmp.ne.s32.totalorder %v856, 0
        %vm985 = vcmp.ne.s32.totalorder %v857, 0
        %vm986 = vcmp.ne.s32.totalorder %v858, 0
        %vm987 = vcmp.ne.s32.totalorder %v859, 0
        %vm988 = vcmp.ne.s32.totalorder %v860, 0
        %vm989 = vcmp.ne.s32.totalorder %v861, 0
        %vm990 = vcmp.ne.s32.totalorder %v862, 0
        %vm991 = vcmp.ne.s32.totalorder %v863, 0
        %vm992 = vcmp.ne.s32.totalorder %v864, 0
        %vm993 = vcmp.ne.s32.totalorder %v865, 0
        %vm994 = vcmp.ne.s32.totalorder %v866, 0
        %vm995 = vcmp.ne.s32.totalorder %v867, 0
        %vm996 = vcmp.ne.s32.totalorder %v868, 0
        %vm997 = vcmp.ne.s32.totalorder %v869, 0
        %v998 = vand.u32 %v358, 4
        %v999 = vand.u32 %v359, 4
        %v1000 = vand.u32 %v360, 4
        %v1001 = vand.u32 %v361, 4
        %v1002 = vand.u32 %v362, 4
        %v1003 = vand.u32 %v363, 4
        %v1004 = vand.u32 %v364, 4
        %v1005 = vand.u32 %v365, 4
        %v1006 = vand.u32 %v366, 4
        %v1007 = vand.u32 %v367, 4
        %v1008 = vand.u32 %v368, 4
        %v1009 = vand.u32 %v369, 4
        %v1010 = vand.u32 %v370, 4
        %v1011 = vand.u32 %v371, 4
        %v1012 = vand.u32 %v372, 4
        %v1013 = vand.u32 %v373, 4
        %v1014 = vand.u32 %v374, 4
        %v1015 = vand.u32 %v375, 4
        %v1016 = vand.u32 %v376, 4
        %v1017 = vand.u32 %v377, 4
        %v1018 = vand.u32 %v378, 4
        %v1019 = vand.u32 %v379, 4
        %v1020 = vand.u32 %v380, 4
        %v1021 = vand.u32 %v381, 4
        %v1022 = vand.u32 %v382, 4
        %v1023 = vand.u32 %v383, 4
        %v1024 = vand.u32 %v384, 4
        %v1025 = vand.u32 %v385, 4
        %v1026 = vand.u32 %v386, 4
        %v1027 = vand.u32 %v387, 4
        %v1028 = vand.u32 %v388, 4
        %v1029 = vand.u32 %v389, 4
        %v1030 = vand.u32 %v390, 4
        %v1031 = vand.u32 %v391, 4
        %v1032 = vand.u32 %v392, 4
        %v1033 = vand.u32 %v393, 4
        %v1034 = vand.u32 %v394, 4
        %v1035 = vand.u32 %v395, 4
        %v1036 = vand.u32 %v396, 4
        %v1037 = vand.u32 %v397, 4
        %v1038 = vand.u32 %v398, 4
        %v1039 = vand.u32 %v399, 4
        %v1040 = vand.u32 %v400, 4
        %v1041 = vand.u32 %v401, 4
        %v1042 = vand.u32 %v402, 4
        %v1043 = vand.u32 %v403, 4
        %v1044 = vand.u32 %v404, 4
        %v1045 = vand.u32 %v405, 4
        %v1046 = vand.u32 %v406, 4
        %v1047 = vand.u32 %v407, 4
        %v1048 = vand.u32 %v408, 4
        %v1049 = vand.u32 %v409, 4
        %v1050 = vand.u32 %v410, 4
        %v1051 = vand.u32 %v411, 4
        %v1052 = vand.u32 %v412, 4
        %v1053 = vand.u32 %v413, 4
        %v1054 = vand.u32 %v414, 4
        %v1055 = vand.u32 %v415, 4
        %v1056 = vand.u32 %v416, 4
        %v1057 = vand.u32 %v417, 4
        %v1058 = vand.u32 %v418, 4
        %v1059 = vand.u32 %v419, 4
        %v1060 = vand.u32 %v420, 4
        %v1061 = vand.u32 %v421, 4
        %v1062 = vand.u32 %v422, 4
        %v1063 = vand.u32 %v423, 4
        %v1064 = vand.u32 %v424, 4
        %v1065 = vand.u32 %v425, 4
        %v1066 = vand.u32 %v426, 4
        %v1067 = vand.u32 %v427, 4
        %v1068 = vand.u32 %v428, 4
        %v1069 = vand.u32 %v429, 4
        %v1070 = vand.u32 %v430, 4
        %v1071 = vand.u32 %v431, 4
        %v1072 = vand.u32 %v432, 4
        %v1073 = vand.u32 %v433, 4
        %v1074 = vand.u32 %v434, 4
        %v1075 = vand.u32 %v435, 4
        %v1076 = vand.u32 %v436, 4
        %v1077 = vand.u32 %v437, 4
        %v1078 = vand.u32 %v438, 4
        %v1079 = vand.u32 %v439, 4
        %v1080 = vand.u32 %v440, 4
        %v1081 = vand.u32 %v441, 4
        %v1082 = vand.u32 %v442, 4
        %v1083 = vand.u32 %v443, 4
        %v1084 = vand.u32 %v444, 4
        %v1085 = vand.u32 %v445, 4
        %v1086 = vand.u32 %v446, 4
        %v1087 = vand.u32 %v447, 4
        %v1088 = vand.u32 %v448, 4
        %v1089 = vand.u32 %v449, 4
        %v1090 = vand.u32 %v450, 4
        %v1091 = vand.u32 %v451, 4
        %v1092 = vand.u32 %v452, 4
        %v1093 = vand.u32 %v453, 4
        %v1094 = vand.u32 %v454, 4
        %v1095 = vand.u32 %v455, 4
        %v1096 = vand.u32 %v456, 4
        %v1097 = vand.u32 %v457, 4
        %v1098 = vand.u32 %v458, 4
        %v1099 = vand.u32 %v459, 4
        %v1100 = vand.u32 %v460, 4
        %v1101 = vand.u32 %v461, 4
        %v1102 = vand.u32 %v462, 4
        %v1103 = vand.u32 %v463, 4
        %v1104 = vand.u32 %v464, 4
        %v1105 = vand.u32 %v465, 4
        %v1106 = vand.u32 %v466, 4
        %v1107 = vand.u32 %v467, 4
        %v1108 = vand.u32 %v468, 4
        %v1109 = vand.u32 %v469, 4
        %v1110 = vand.u32 %v470, 4
        %v1111 = vand.u32 %v471, 4
        %v1112 = vand.u32 %v472, 4
        %v1113 = vand.u32 %v473, 4
        %v1114 = vand.u32 %v474, 4
        %v1115 = vand.u32 %v475, 4
        %v1116 = vand.u32 %v476, 4
        %v1117 = vand.u32 %v477, 4
        %v1118 = vand.u32 %v478, 4
        %v1119 = vand.u32 %v479, 4
        %v1120 = vand.u32 %v480, 4
        %v1121 = vand.u32 %v481, 4
        %v1122 = vand.u32 %v482, 4
        %v1123 = vand.u32 %v483, 4
        %v1124 = vand.u32 %v484, 4
        %v1125 = vand.u32 %v485, 4
        %vm1126 = vcmp.ne.s32.totalorder %v998, 0
        %vm1127 = vcmp.ne.s32.totalorder %v999, 0
        %vm1128 = vcmp.ne.s32.totalorder %v1000, 0
        %vm1129 = vcmp.ne.s32.totalorder %v1001, 0
        %vm1130 = vcmp.ne.s32.totalorder %v1002, 0
        %vm1131 = vcmp.ne.s32.totalorder %v1003, 0
        %vm1132 = vcmp.ne.s32.totalorder %v1004, 0
        %vm1133 = vcmp.ne.s32.totalorder %v1005, 0
        %vm1134 = vcmp.ne.s32.totalorder %v1006, 0
        %vm1135 = vcmp.ne.s32.totalorder %v1007, 0
        %vm1136 = vcmp.ne.s32.totalorder %v1008, 0
        %vm1137 = vcmp.ne.s32.totalorder %v1009, 0
        %vm1138 = vcmp.ne.s32.totalorder %v1010, 0
        %vm1139 = vcmp.ne.s32.totalorder %v1011, 0
        %vm1140 = vcmp.ne.s32.totalorder %v1012, 0
        %vm1141 = vcmp.ne.s32.totalorder %v1013, 0
        %vm1142 = vcmp.ne.s32.totalorder %v1014, 0
        %vm1143 = vcmp.ne.s32.totalorder %v1015, 0
        %vm1144 = vcmp.ne.s32.totalorder %v1016, 0
        %vm1145 = vcmp.ne.s32.totalorder %v1017, 0
        %vm1146 = vcmp.ne.s32.totalorder %v1018, 0
        %vm1147 = vcmp.ne.s32.totalorder %v1019, 0
        %vm1148 = vcmp.ne.s32.totalorder %v1020, 0
        %vm1149 = vcmp.ne.s32.totalorder %v1021, 0
        %vm1150 = vcmp.ne.s32.totalorder %v1022, 0
        %vm1151 = vcmp.ne.s32.totalorder %v1023, 0
        %vm1152 = vcmp.ne.s32.totalorder %v1024, 0
        %vm1153 = vcmp.ne.s32.totalorder %v1025, 0
        %vm1154 = vcmp.ne.s32.totalorder %v1026, 0
        %vm1155 = vcmp.ne.s32.totalorder %v1027, 0
        %vm1156 = vcmp.ne.s32.totalorder %v1028, 0
        %vm1157 = vcmp.ne.s32.totalorder %v1029, 0
        %vm1158 = vcmp.ne.s32.totalorder %v1030, 0
        %vm1159 = vcmp.ne.s32.totalorder %v1031, 0
        %vm1160 = vcmp.ne.s32.totalorder %v1032, 0
        %vm1161 = vcmp.ne.s32.totalorder %v1033, 0
        %vm1162 = vcmp.ne.s32.totalorder %v1034, 0
        %vm1163 = vcmp.ne.s32.totalorder %v1035, 0
        %vm1164 = vcmp.ne.s32.totalorder %v1036, 0
        %vm1165 = vcmp.ne.s32.totalorder %v1037, 0
        %vm1166 = vcmp.ne.s32.totalorder %v1038, 0
        %vm1167 = vcmp.ne.s32.totalorder %v1039, 0
        %vm1168 = vcmp.ne.s32.totalorder %v1040, 0
        %vm1169 = vcmp.ne.s32.totalorder %v1041, 0
        %vm1170 = vcmp.ne.s32.totalorder %v1042, 0
        %vm1171 = vcmp.ne.s32.totalorder %v1043, 0
        %vm1172 = vcmp.ne.s32.totalorder %v1044, 0
        %vm1173 = vcmp.ne.s32.totalorder %v1045, 0
        %vm1174 = vcmp.ne.s32.totalorder %v1046, 0
        %vm1175 = vcmp.ne.s32.totalorder %v1047, 0
        %vm1176 = vcmp.ne.s32.totalorder %v1048, 0
        %vm1177 = vcmp.ne.s32.totalorder %v1049, 0
        %vm1178 = vcmp.ne.s32.totalorder %v1050, 0
        %vm1179 = vcmp.ne.s32.totalorder %v1051, 0
        %vm1180 = vcmp.ne.s32.totalorder %v1052, 0
        %vm1181 = vcmp.ne.s32.totalorder %v1053, 0
        %vm1182 = vcmp.ne.s32.totalorder %v1054, 0
        %vm1183 = vcmp.ne.s32.totalorder %v1055, 0
        %vm1184 = vcmp.ne.s32.totalorder %v1056, 0
        %vm1185 = vcmp.ne.s32.totalorder %v1057, 0
        %vm1186 = vcmp.ne.s32.totalorder %v1058, 0
        %vm1187 = vcmp.ne.s32.totalorder %v1059, 0
        %vm1188 = vcmp.ne.s32.totalorder %v1060, 0
        %vm1189 = vcmp.ne.s32.totalorder %v1061, 0
        %vm1190 = vcmp.ne.s32.totalorder %v1062, 0
        %vm1191 = vcmp.ne.s32.totalorder %v1063, 0
        %vm1192 = vcmp.ne.s32.totalorder %v1064, 0
        %vm1193 = vcmp.ne.s32.totalorder %v1065, 0
        %vm1194 = vcmp.ne.s32.totalorder %v1066, 0
        %vm1195 = vcmp.ne.s32.totalorder %v1067, 0
        %vm1196 = vcmp.ne.s32.totalorder %v1068, 0
        %vm1197 = vcmp.ne.s32.totalorder %v1069, 0
        %vm1198 = vcmp.ne.s32.totalorder %v1070, 0
        %vm1199 = vcmp.ne.s32.totalorder %v1071, 0
        %vm1200 = vcmp.ne.s32.totalorder %v1072, 0
        %vm1201 = vcmp.ne.s32.totalorder %v1073, 0
        %vm1202 = vcmp.ne.s32.totalorder %v1074, 0
        %vm1203 = vcmp.ne.s32.totalorder %v1075, 0
        %vm1204 = vcmp.ne.s32.totalorder %v1076, 0
        %vm1205 = vcmp.ne.s32.totalorder %v1077, 0
        %vm1206 = vcmp.ne.s32.totalorder %v1078, 0
        %vm1207 = vcmp.ne.s32.totalorder %v1079, 0
        %vm1208 = vcmp.ne.s32.totalorder %v1080, 0
        %vm1209 = vcmp.ne.s32.totalorder %v1081, 0
        %vm1210 = vcmp.ne.s32.totalorder %v1082, 0
        %vm1211 = vcmp.ne.s32.totalorder %v1083, 0
        %vm1212 = vcmp.ne.s32.totalorder %v1084, 0
        %vm1213 = vcmp.ne.s32.totalorder %v1085, 0
        %vm1214 = vcmp.ne.s32.totalorder %v1086, 0
        %vm1215 = vcmp.ne.s32.totalorder %v1087, 0
        %vm1216 = vcmp.ne.s32.totalorder %v1088, 0
        %vm1217 = vcmp.ne.s32.totalorder %v1089, 0
        %vm1218 = vcmp.ne.s32.totalorder %v1090, 0
        %vm1219 = vcmp.ne.s32.totalorder %v1091, 0
        %vm1220 = vcmp.ne.s32.totalorder %v1092, 0
        %vm1221 = vcmp.ne.s32.totalorder %v1093, 0
        %vm1222 = vcmp.ne.s32.totalorder %v1094, 0
        %vm1223 = vcmp.ne.s32.totalorder %v1095, 0
        %vm1224 = vcmp.ne.s32.totalorder %v1096, 0
        %vm1225 = vcmp.ne.s32.totalorder %v1097, 0
        %vm1226 = vcmp.ne.s32.totalorder %v1098, 0
        %vm1227 = vcmp.ne.s32.totalorder %v1099, 0
        %vm1228 = vcmp.ne.s32.totalorder %v1100, 0
        %vm1229 = vcmp.ne.s32.totalorder %v1101, 0
        %vm1230 = vcmp.ne.s32.totalorder %v1102, 0
        %vm1231 = vcmp.ne.s32.totalorder %v1103, 0
        %vm1232 = vcmp.ne.s32.totalorder %v1104, 0
        %vm1233 = vcmp.ne.s32.totalorder %v1105, 0
        %vm1234 = vcmp.ne.s32.totalorder %v1106, 0
        %vm1235 = vcmp.ne.s32.totalorder %v1107, 0
        %vm1236 = vcmp.ne.s32.totalorder %v1108, 0
        %vm1237 = vcmp.ne.s32.totalorder %v1109, 0
        %vm1238 = vcmp.ne.s32.totalorder %v1110, 0
        %vm1239 = vcmp.ne.s32.totalorder %v1111, 0
        %vm1240 = vcmp.ne.s32.totalorder %v1112, 0
        %vm1241 = vcmp.ne.s32.totalorder %v1113, 0
        %vm1242 = vcmp.ne.s32.totalorder %v1114, 0
        %vm1243 = vcmp.ne.s32.totalorder %v1115, 0
        %vm1244 = vcmp.ne.s32.totalorder %v1116, 0
        %vm1245 = vcmp.ne.s32.totalorder %v1117, 0
        %vm1246 = vcmp.ne.s32.totalorder %v1118, 0
        %vm1247 = vcmp.ne.s32.totalorder %v1119, 0
        %vm1248 = vcmp.ne.s32.totalorder %v1120, 0
        %vm1249 = vcmp.ne.s32.totalorder %v1121, 0
        %vm1250 = vcmp.ne.s32.totalorder %v1122, 0
        %vm1251 = vcmp.ne.s32.totalorder %v1123, 0
        %vm1252 = vcmp.ne.s32.totalorder %v1124, 0
        %vm1253 = vcmp.ne.s32.totalorder %v1125, 0
        %v1254 = vand.u32 %v358, 8
        %v1255 = vand.u32 %v359, 8
        %v1256 = vand.u32 %v360, 8
        %v1257 = vand.u32 %v361, 8
        %v1258 = vand.u32 %v362, 8
        %v1259 = vand.u32 %v363, 8
        %v1260 = vand.u32 %v364, 8
        %v1261 = vand.u32 %v365, 8
        %v1262 = vand.u32 %v366, 8
        %v1263 = vand.u32 %v367, 8
        %v1264 = vand.u32 %v368, 8
        %v1265 = vand.u32 %v369, 8
        %v1266 = vand.u32 %v370, 8
        %v1267 = vand.u32 %v371, 8
        %v1268 = vand.u32 %v372, 8
        %v1269 = vand.u32 %v373, 8
        %v1270 = vand.u32 %v374, 8
        %v1271 = vand.u32 %v375, 8
        %v1272 = vand.u32 %v376, 8
        %v1273 = vand.u32 %v377, 8
        %v1274 = vand.u32 %v378, 8
        %v1275 = vand.u32 %v379, 8
        %v1276 = vand.u32 %v380, 8
        %v1277 = vand.u32 %v381, 8
        %v1278 = vand.u32 %v382, 8
        %v1279 = vand.u32 %v383, 8
        %v1280 = vand.u32 %v384, 8
        %v1281 = vand.u32 %v385, 8
        %v1282 = vand.u32 %v386, 8
        %v1283 = vand.u32 %v387, 8
        %v1284 = vand.u32 %v388, 8
        %v1285 = vand.u32 %v389, 8
        %v1286 = vand.u32 %v390, 8
        %v1287 = vand.u32 %v391, 8
        %v1288 = vand.u32 %v392, 8
        %v1289 = vand.u32 %v393, 8
        %v1290 = vand.u32 %v394, 8
        %v1291 = vand.u32 %v395, 8
        %v1292 = vand.u32 %v396, 8
        %v1293 = vand.u32 %v397, 8
        %v1294 = vand.u32 %v398, 8
        %v1295 = vand.u32 %v399, 8
        %v1296 = vand.u32 %v400, 8
        %v1297 = vand.u32 %v401, 8
        %v1298 = vand.u32 %v402, 8
        %v1299 = vand.u32 %v403, 8
        %v1300 = vand.u32 %v404, 8
        %v1301 = vand.u32 %v405, 8
        %v1302 = vand.u32 %v406, 8
        %v1303 = vand.u32 %v407, 8
        %v1304 = vand.u32 %v408, 8
        %v1305 = vand.u32 %v409, 8
        %v1306 = vand.u32 %v410, 8
        %v1307 = vand.u32 %v411, 8
        %v1308 = vand.u32 %v412, 8
        %v1309 = vand.u32 %v413, 8
        %v1310 = vand.u32 %v414, 8
        %v1311 = vand.u32 %v415, 8
        %v1312 = vand.u32 %v416, 8
        %v1313 = vand.u32 %v417, 8
        %v1314 = vand.u32 %v418, 8
        %v1315 = vand.u32 %v419, 8
        %v1316 = vand.u32 %v420, 8
        %v1317 = vand.u32 %v421, 8
        %v1318 = vand.u32 %v422, 8
        %v1319 = vand.u32 %v423, 8
        %v1320 = vand.u32 %v424, 8
        %v1321 = vand.u32 %v425, 8
        %v1322 = vand.u32 %v426, 8
        %v1323 = vand.u32 %v427, 8
        %v1324 = vand.u32 %v428, 8
        %v1325 = vand.u32 %v429, 8
        %v1326 = vand.u32 %v430, 8
        %v1327 = vand.u32 %v431, 8
        %v1328 = vand.u32 %v432, 8
        %v1329 = vand.u32 %v433, 8
        %v1330 = vand.u32 %v434, 8
        %v1331 = vand.u32 %v435, 8
        %v1332 = vand.u32 %v436, 8
        %v1333 = vand.u32 %v437, 8
        %v1334 = vand.u32 %v438, 8
        %v1335 = vand.u32 %v439, 8
        %v1336 = vand.u32 %v440, 8
        %v1337 = vand.u32 %v441, 8
        %v1338 = vand.u32 %v442, 8
        %v1339 = vand.u32 %v443, 8
        %v1340 = vand.u32 %v444, 8
        %v1341 = vand.u32 %v445, 8
        %v1342 = vand.u32 %v446, 8
        %v1343 = vand.u32 %v447, 8
        %v1344 = vand.u32 %v448, 8
        %v1345 = vand.u32 %v449, 8
        %v1346 = vand.u32 %v450, 8
        %v1347 = vand.u32 %v451, 8
        %v1348 = vand.u32 %v452, 8
        %v1349 = vand.u32 %v453, 8
        %v1350 = vand.u32 %v454, 8
        %v1351 = vand.u32 %v455, 8
        %v1352 = vand.u32 %v456, 8
        %v1353 = vand.u32 %v457, 8
        %v1354 = vand.u32 %v458, 8
        %v1355 = vand.u32 %v459, 8
        %v1356 = vand.u32 %v460, 8
        %v1357 = vand.u32 %v461, 8
        %v1358 = vand.u32 %v462, 8
        %v1359 = vand.u32 %v463, 8
        %v1360 = vand.u32 %v464, 8
        %v1361 = vand.u32 %v465, 8
        %v1362 = vand.u32 %v466, 8
        %v1363 = vand.u32 %v467, 8
        %v1364 = vand.u32 %v468, 8
        %v1365 = vand.u32 %v469, 8
        %v1366 = vand.u32 %v470, 8
        %v1367 = vand.u32 %v471, 8
        %v1368 = vand.u32 %v472, 8
        %v1369 = vand.u32 %v473, 8
        %v1370 = vand.u32 %v474, 8
        %v1371 = vand.u32 %v475, 8
        %v1372 = vand.u32 %v476, 8
        %v1373 = vand.u32 %v477, 8
        %v1374 = vand.u32 %v478, 8
        %v1375 = vand.u32 %v479, 8
        %v1376 = vand.u32 %v480, 8
        %v1377 = vand.u32 %v481, 8
        %v1378 = vand.u32 %v482, 8
        %v1379 = vand.u32 %v483, 8
        %v1380 = vand.u32 %v484, 8
        %v1381 = vand.u32 %v485, 8
        %vm1382 = vcmp.ne.s32.totalorder %v1254, 0
        %vm1383 = vcmp.ne.s32.totalorder %v1255, 0
        %vm1384 = vcmp.ne.s32.totalorder %v1256, 0
        %vm1385 = vcmp.ne.s32.totalorder %v1257, 0
        %vm1386 = vcmp.ne.s32.totalorder %v1258, 0
        %vm1387 = vcmp.ne.s32.totalorder %v1259, 0
        %vm1388 = vcmp.ne.s32.totalorder %v1260, 0
        %vm1389 = vcmp.ne.s32.totalorder %v1261, 0
        %vm1390 = vcmp.ne.s32.totalorder %v1262, 0
        %vm1391 = vcmp.ne.s32.totalorder %v1263, 0
        %vm1392 = vcmp.ne.s32.totalorder %v1264, 0
        %vm1393 = vcmp.ne.s32.totalorder %v1265, 0
        %vm1394 = vcmp.ne.s32.totalorder %v1266, 0
        %vm1395 = vcmp.ne.s32.totalorder %v1267, 0
        %vm1396 = vcmp.ne.s32.totalorder %v1268, 0
        %vm1397 = vcmp.ne.s32.totalorder %v1269, 0
        %vm1398 = vcmp.ne.s32.totalorder %v1270, 0
        %vm1399 = vcmp.ne.s32.totalorder %v1271, 0
        %vm1400 = vcmp.ne.s32.totalorder %v1272, 0
        %vm1401 = vcmp.ne.s32.totalorder %v1273, 0
        %vm1402 = vcmp.ne.s32.totalorder %v1274, 0
        %vm1403 = vcmp.ne.s32.totalorder %v1275, 0
        %vm1404 = vcmp.ne.s32.totalorder %v1276, 0
        %vm1405 = vcmp.ne.s32.totalorder %v1277, 0
        %vm1406 = vcmp.ne.s32.totalorder %v1278, 0
        %vm1407 = vcmp.ne.s32.totalorder %v1279, 0
        %vm1408 = vcmp.ne.s32.totalorder %v1280, 0
        %vm1409 = vcmp.ne.s32.totalorder %v1281, 0
        %vm1410 = vcmp.ne.s32.totalorder %v1282, 0
        %vm1411 = vcmp.ne.s32.totalorder %v1283, 0
        %vm1412 = vcmp.ne.s32.totalorder %v1284, 0
        %vm1413 = vcmp.ne.s32.totalorder %v1285, 0
        %vm1414 = vcmp.ne.s32.totalorder %v1286, 0
        %vm1415 = vcmp.ne.s32.totalorder %v1287, 0
        %vm1416 = vcmp.ne.s32.totalorder %v1288, 0
        %vm1417 = vcmp.ne.s32.totalorder %v1289, 0
        %vm1418 = vcmp.ne.s32.totalorder %v1290, 0
        %vm1419 = vcmp.ne.s32.totalorder %v1291, 0
        %vm1420 = vcmp.ne.s32.totalorder %v1292, 0
        %vm1421 = vcmp.ne.s32.totalorder %v1293, 0
        %vm1422 = vcmp.ne.s32.totalorder %v1294, 0
        %vm1423 = vcmp.ne.s32.totalorder %v1295, 0
        %vm1424 = vcmp.ne.s32.totalorder %v1296, 0
        %vm1425 = vcmp.ne.s32.totalorder %v1297, 0
        %vm1426 = vcmp.ne.s32.totalorder %v1298, 0
        %vm1427 = vcmp.ne.s32.totalorder %v1299, 0
        %vm1428 = vcmp.ne.s32.totalorder %v1300, 0
        %vm1429 = vcmp.ne.s32.totalorder %v1301, 0
        %vm1430 = vcmp.ne.s32.totalorder %v1302, 0
        %vm1431 = vcmp.ne.s32.totalorder %v1303, 0
        %vm1432 = vcmp.ne.s32.totalorder %v1304, 0
        %vm1433 = vcmp.ne.s32.totalorder %v1305, 0
        %vm1434 = vcmp.ne.s32.totalorder %v1306, 0
        %vm1435 = vcmp.ne.s32.totalorder %v1307, 0
        %vm1436 = vcmp.ne.s32.totalorder %v1308, 0
        %vm1437 = vcmp.ne.s32.totalorder %v1309, 0
        %vm1438 = vcmp.ne.s32.totalorder %v1310, 0
        %vm1439 = vcmp.ne.s32.totalorder %v1311, 0
        %vm1440 = vcmp.ne.s32.totalorder %v1312, 0
        %vm1441 = vcmp.ne.s32.totalorder %v1313, 0
        %vm1442 = vcmp.ne.s32.totalorder %v1314, 0
        %vm1443 = vcmp.ne.s32.totalorder %v1315, 0
        %vm1444 = vcmp.ne.s32.totalorder %v1316, 0
        %vm1445 = vcmp.ne.s32.totalorder %v1317, 0
        %vm1446 = vcmp.ne.s32.totalorder %v1318, 0
        %vm1447 = vcmp.ne.s32.totalorder %v1319, 0
        %vm1448 = vcmp.ne.s32.totalorder %v1320, 0
        %vm1449 = vcmp.ne.s32.totalorder %v1321, 0
        %vm1450 = vcmp.ne.s32.totalorder %v1322, 0
        %vm1451 = vcmp.ne.s32.totalorder %v1323, 0
        %vm1452 = vcmp.ne.s32.totalorder %v1324, 0
        %vm1453 = vcmp.ne.s32.totalorder %v1325, 0
        %vm1454 = vcmp.ne.s32.totalorder %v1326, 0
        %vm1455 = vcmp.ne.s32.totalorder %v1327, 0
        %vm1456 = vcmp.ne.s32.totalorder %v1328, 0
        %vm1457 = vcmp.ne.s32.totalorder %v1329, 0
        %vm1458 = vcmp.ne.s32.totalorder %v1330, 0
        %vm1459 = vcmp.ne.s32.totalorder %v1331, 0
        %vm1460 = vcmp.ne.s32.totalorder %v1332, 0
        %vm1461 = vcmp.ne.s32.totalorder %v1333, 0
        %vm1462 = vcmp.ne.s32.totalorder %v1334, 0
        %vm1463 = vcmp.ne.s32.totalorder %v1335, 0
        %vm1464 = vcmp.ne.s32.totalorder %v1336, 0
        %vm1465 = vcmp.ne.s32.totalorder %v1337, 0
        %vm1466 = vcmp.ne.s32.totalorder %v1338, 0
        %vm1467 = vcmp.ne.s32.totalorder %v1339, 0
        %vm1468 = vcmp.ne.s32.totalorder %v1340, 0
        %vm1469 = vcmp.ne.s32.totalorder %v1341, 0
        %vm1470 = vcmp.ne.s32.totalorder %v1342, 0
        %vm1471 = vcmp.ne.s32.totalorder %v1343, 0
        %vm1472 = vcmp.ne.s32.totalorder %v1344, 0
        %vm1473 = vcmp.ne.s32.totalorder %v1345, 0
        %vm1474 = vcmp.ne.s32.totalorder %v1346, 0
        %vm1475 = vcmp.ne.s32.totalorder %v1347, 0
        %vm1476 = vcmp.ne.s32.totalorder %v1348, 0
        %vm1477 = vcmp.ne.s32.totalorder %v1349, 0
        %vm1478 = vcmp.ne.s32.totalorder %v1350, 0
        %vm1479 = vcmp.ne.s32.totalorder %v1351, 0
        %vm1480 = vcmp.ne.s32.totalorder %v1352, 0
        %vm1481 = vcmp.ne.s32.totalorder %v1353, 0
        %vm1482 = vcmp.ne.s32.totalorder %v1354, 0
        %vm1483 = vcmp.ne.s32.totalorder %v1355, 0
        %vm1484 = vcmp.ne.s32.totalorder %v1356, 0
        %vm1485 = vcmp.ne.s32.totalorder %v1357, 0
        %vm1486 = vcmp.ne.s32.totalorder %v1358, 0
        %vm1487 = vcmp.ne.s32.totalorder %v1359, 0
        %vm1488 = vcmp.ne.s32.totalorder %v1360, 0
        %vm1489 = vcmp.ne.s32.totalorder %v1361, 0
        %vm1490 = vcmp.ne.s32.totalorder %v1362, 0
        %vm1491 = vcmp.ne.s32.totalorder %v1363, 0
        %vm1492 = vcmp.ne.s32.totalorder %v1364, 0
        %vm1493 = vcmp.ne.s32.totalorder %v1365, 0
        %vm1494 = vcmp.ne.s32.totalorder %v1366, 0
        %vm1495 = vcmp.ne.s32.totalorder %v1367, 0
        %vm1496 = vcmp.ne.s32.totalorder %v1368, 0
        %vm1497 = vcmp.ne.s32.totalorder %v1369, 0
        %vm1498 = vcmp.ne.s32.totalorder %v1370, 0
        %vm1499 = vcmp.ne.s32.totalorder %v1371, 0
        %vm1500 = vcmp.ne.s32.totalorder %v1372, 0
        %vm1501 = vcmp.ne.s32.totalorder %v1373, 0
        %vm1502 = vcmp.ne.s32.totalorder %v1374, 0
        %vm1503 = vcmp.ne.s32.totalorder %v1375, 0
        %vm1504 = vcmp.ne.s32.totalorder %v1376, 0
        %vm1505 = vcmp.ne.s32.totalorder %v1377, 0
        %vm1506 = vcmp.ne.s32.totalorder %v1378, 0
        %vm1507 = vcmp.ne.s32.totalorder %v1379, 0
        %vm1508 = vcmp.ne.s32.totalorder %v1380, 0
        %vm1509 = vcmp.ne.s32.totalorder %v1381, 0
        %v1510 = vsel %vm614, -0.69628906, -1.0
        %v1511 = vsel %vm615, -0.69628906, -1.0
        %v1512 = vsel %vm616, -0.69628906, -1.0
        %v1513 = vsel %vm617, -0.69628906, -1.0
        %v1514 = vsel %vm618, -0.69628906, -1.0
        %v1515 = vsel %vm619, -0.69628906, -1.0
        %v1516 = vsel %vm620, -0.69628906, -1.0
        %v1517 = vsel %vm621, -0.69628906, -1.0
        %v1518 = vsel %vm622, -0.69628906, -1.0
        %v1519 = vsel %vm623, -0.69628906, -1.0
        %v1520 = vsel %vm624, -0.69628906, -1.0
        %v1521 = vsel %vm625, -0.69628906, -1.0
        %v1522 = vsel %vm626, -0.69628906, -1.0
        %v1523 = vsel %vm627, -0.69628906, -1.0
        %v1524 = vsel %vm628, -0.69628906, -1.0
        %v1525 = vsel %vm629, -0.69628906, -1.0
        %v1526 = vsel %vm630, -0.69628906, -1.0
        %v1527 = vsel %vm631, -0.69628906, -1.0
        %v1528 = vsel %vm632, -0.69628906, -1.0
        %v1529 = vsel %vm633, -0.69628906, -1.0
        %v1530 = vsel %vm634, -0.69628906, -1.0
        %v1531 = vsel %vm635, -0.69628906, -1.0
        %v1532 = vsel %vm636, -0.69628906, -1.0
        %v1533 = vsel %vm637, -0.69628906, -1.0
        %v1534 = vsel %vm638, -0.69628906, -1.0
        %v1535 = vsel %vm639, -0.69628906, -1.0
        %v1536 = vsel %vm640, -0.69628906, -1.0
        %v1537 = vsel %vm641, -0.69628906, -1.0
        %v1538 = vsel %vm642, -0.69628906, -1.0
        %v1539 = vsel %vm643, -0.69628906, -1.0
        %v1540 = vsel %vm644, -0.69628906, -1.0
        %v1541 = vsel %vm645, -0.69628906, -1.0
        %v1542 = vsel %vm646, -0.69628906, -1.0
        %v1543 = vsel %vm647, -0.69628906, -1.0
        %v1544 = vsel %vm648, -0.69628906, -1.0
        %v1545 = vsel %vm649, -0.69628906, -1.0
        %v1546 = vsel %vm650, -0.69628906, -1.0
        %v1547 = vsel %vm651, -0.69628906, -1.0
        %v1548 = vsel %vm652, -0.69628906, -1.0
        %v1549 = vsel %vm653, -0.69628906, -1.0
        %v1550 = vsel %vm654, -0.69628906, -1.0
        %v1551 = vsel %vm655, -0.69628906, -1.0
        %v1552 = vsel %vm656, -0.69628906, -1.0
        %v1553 = vsel %vm657, -0.69628906, -1.0
        %v1554 = vsel %vm658, -0.69628906, -1.0
        %v1555 = vsel %vm659, -0.69628906, -1.0
        %v1556 = vsel %vm660, -0.69628906, -1.0
        %v1557 = vsel %vm661, -0.69628906, -1.0
        %v1558 = vsel %vm662, -0.69628906, -1.0
        %v1559 = vsel %vm663, -0.69628906, -1.0
        %v1560 = vsel %vm664, -0.69628906, -1.0
        %v1561 = vsel %vm665, -0.69628906, -1.0
        %v1562 = vsel %vm666, -0.69628906, -1.0
        %v1563 = vsel %vm667, -0.69628906, -1.0
        %v1564 = vsel %vm668, -0.69628906, -1.0
        %v1565 = vsel %vm669, -0.69628906, -1.0
        %v1566 = vsel %vm670, -0.69628906, -1.0
        %v1567 = vsel %vm671, -0.69628906, -1.0
        %v1568 = vsel %vm672, -0.69628906, -1.0
        %v1569 = vsel %vm673, -0.69628906, -1.0
        %v1570 = vsel %vm674, -0.69628906, -1.0
        %v1571 = vsel %vm675, -0.69628906, -1.0
        %v1572 = vsel %vm676, -0.69628906, -1.0
        %v1573 = vsel %vm677, -0.69628906, -1.0
        %v1574 = vsel %vm678, -0.69628906, -1.0
        %v1575 = vsel %vm679, -0.69628906, -1.0
        %v1576 = vsel %vm680, -0.69628906, -1.0
        %v1577 = vsel %vm681, -0.69628906, -1.0
        %v1578 = vsel %vm682, -0.69628906, -1.0
        %v1579 = vsel %vm683, -0.69628906, -1.0
        %v1580 = vsel %vm684, -0.69628906, -1.0
        %v1581 = vsel %vm685, -0.69628906, -1.0
        %v1582 = vsel %vm686, -0.69628906, -1.0
        %v1583 = vsel %vm687, -0.69628906, -1.0
        %v1584 = vsel %vm688, -0.69628906, -1.0
        %v1585 = vsel %vm689, -0.69628906, -1.0
        %v1586 = vsel %vm690, -0.69628906, -1.0
        %v1587 = vsel %vm691, -0.69628906, -1.0
        %v1588 = vsel %vm692, -0.69628906, -1.0
        %v1589 = vsel %vm693, -0.69628906, -1.0
        %v1590 = vsel %vm694, -0.69628906, -1.0
        %v1591 = vsel %vm695, -0.69628906, -1.0
        %v1592 = vsel %vm696, -0.69628906, -1.0
        %v1593 = vsel %vm697, -0.69628906, -1.0
        %v1594 = vsel %vm698, -0.69628906, -1.0
        %v1595 = vsel %vm699, -0.69628906, -1.0
        %v1596 = vsel %vm700, -0.69628906, -1.0
        %v1597 = vsel %vm701, -0.69628906, -1.0
        %v1598 = vsel %vm702, -0.69628906, -1.0
        %v1599 = vsel %vm703, -0.69628906, -1.0
        %v1600 = vsel %vm704, -0.69628906, -1.0
        %v1601 = vsel %vm705, -0.69628906, -1.0
        %v1602 = vsel %vm706, -0.69628906, -1.0
        %v1603 = vsel %vm707, -0.69628906, -1.0
        %v1604 = vsel %vm708, -0.69628906, -1.0
        %v1605 = vsel %vm709, -0.69628906, -1.0
        %v1606 = vsel %vm710, -0.69628906, -1.0
        %v1607 = vsel %vm711, -0.69628906, -1.0
        %v1608 = vsel %vm712, -0.69628906, -1.0
        %v1609 = vsel %vm713, -0.69628906, -1.0
        %v1610 = vsel %vm714, -0.69628906, -1.0
        %v1611 = vsel %vm715, -0.69628906, -1.0
        %v1612 = vsel %vm716, -0.69628906, -1.0
        %v1613 = vsel %vm717, -0.69628906, -1.0
        %v1614 = vsel %vm718, -0.69628906, -1.0
        %v1615 = vsel %vm719, -0.69628906, -1.0
        %v1616 = vsel %vm720, -0.69628906, -1.0
        %v1617 = vsel %vm721, -0.69628906, -1.0
        %v1618 = vsel %vm722, -0.69628906, -1.0
        %v1619 = vsel %vm723, -0.69628906, -1.0
        %v1620 = vsel %vm724, -0.69628906, -1.0
        %v1621 = vsel %vm725, -0.69628906, -1.0
        %v1622 = vsel %vm726, -0.69628906, -1.0
        %v1623 = vsel %vm727, -0.69628906, -1.0
        %v1624 = vsel %vm728, -0.69628906, -1.0
        %v1625 = vsel %vm729, -0.69628906, -1.0
        %v1626 = vsel %vm730, -0.69628906, -1.0
        %v1627 = vsel %vm731, -0.69628906, -1.0
        %v1628 = vsel %vm732, -0.69628906, -1.0
        %v1629 = vsel %vm733, -0.69628906, -1.0
        %v1630 = vsel %vm734, -0.69628906, -1.0
        %v1631 = vsel %vm735, -0.69628906, -1.0
        %v1632 = vsel %vm736, -0.69628906, -1.0
        %v1633 = vsel %vm737, -0.69628906, -1.0
        %v1634 = vsel %vm738, -0.69628906, -1.0
        %v1635 = vsel %vm739, -0.69628906, -1.0
        %v1636 = vsel %vm740, -0.69628906, -1.0
        %v1637 = vsel %vm741, -0.69628906, -1.0
        %v1638 = vsel %vm614, -0.39501953, -0.52490234
        %v1639 = vsel %vm615, -0.39501953, -0.52490234
        %v1640 = vsel %vm616, -0.39501953, -0.52490234
        %v1641 = vsel %vm617, -0.39501953, -0.52490234
        %v1642 = vsel %vm618, -0.39501953, -0.52490234
        %v1643 = vsel %vm619, -0.39501953, -0.52490234
        %v1644 = vsel %vm620, -0.39501953, -0.52490234
        %v1645 = vsel %vm621, -0.39501953, -0.52490234
        %v1646 = vsel %vm622, -0.39501953, -0.52490234
        %v1647 = vsel %vm623, -0.39501953, -0.52490234
        %v1648 = vsel %vm624, -0.39501953, -0.52490234
        %v1649 = vsel %vm625, -0.39501953, -0.52490234
        %v1650 = vsel %vm626, -0.39501953, -0.52490234
        %v1651 = vsel %vm627, -0.39501953, -0.52490234
        %v1652 = vsel %vm628, -0.39501953, -0.52490234
        %v1653 = vsel %vm629, -0.39501953, -0.52490234
        %v1654 = vsel %vm630, -0.39501953, -0.52490234
        %v1655 = vsel %vm631, -0.39501953, -0.52490234
        %v1656 = vsel %vm632, -0.39501953, -0.52490234
        %v1657 = vsel %vm633, -0.39501953, -0.52490234
        %v1658 = vsel %vm634, -0.39501953, -0.52490234
        %v1659 = vsel %vm635, -0.39501953, -0.52490234
        %v1660 = vsel %vm636, -0.39501953, -0.52490234
        %v1661 = vsel %vm637, -0.39501953, -0.52490234
        %v1662 = vsel %vm638, -0.39501953, -0.52490234
        %v1663 = vsel %vm639, -0.39501953, -0.52490234
        %v1664 = vsel %vm640, -0.39501953, -0.52490234
        %v1665 = vsel %vm641, -0.39501953, -0.52490234
        %v1666 = vsel %vm642, -0.39501953, -0.52490234
        %v1667 = vsel %vm643, -0.39501953, -0.52490234
        %v1668 = vsel %vm644, -0.39501953, -0.52490234
        %v1669 = vsel %vm645, -0.39501953, -0.52490234
        %v1670 = vsel %vm646, -0.39501953, -0.52490234
        %v1671 = vsel %vm647, -0.39501953, -0.52490234
        %v1672 = vsel %vm648, -0.39501953, -0.52490234
        %v1673 = vsel %vm649, -0.39501953, -0.52490234
        %v1674 = vsel %vm650, -0.39501953, -0.52490234
        %v1675 = vsel %vm651, -0.39501953, -0.52490234
        %v1676 = vsel %vm652, -0.39501953, -0.52490234
        %v1677 = vsel %vm653, -0.39501953, -0.52490234
        %v1678 = vsel %vm654, -0.39501953, -0.52490234
        %v1679 = vsel %vm655, -0.39501953, -0.52490234
        %v1680 = vsel %vm656, -0.39501953, -0.52490234
        %v1681 = vsel %vm657, -0.39501953, -0.52490234
        %v1682 = vsel %vm658, -0.39501953, -0.52490234
        %v1683 = vsel %vm659, -0.39501953, -0.52490234
        %v1684 = vsel %vm660, -0.39501953, -0.52490234
        %v1685 = vsel %vm661, -0.39501953, -0.52490234
        %v1686 = vsel %vm662, -0.39501953, -0.52490234
        %v1687 = vsel %vm663, -0.39501953, -0.52490234
        %v1688 = vsel %vm664, -0.39501953, -0.52490234
        %v1689 = vsel %vm665, -0.39501953, -0.52490234
        %v1690 = vsel %vm666, -0.39501953, -0.52490234
        %v1691 = vsel %vm667, -0.39501953, -0.52490234
        %v1692 = vsel %vm668, -0.39501953, -0.52490234
        %v1693 = vsel %vm669, -0.39501953, -0.52490234
        %v1694 = vsel %vm670, -0.39501953, -0.52490234
        %v1695 = vsel %vm671, -0.39501953, -0.52490234
        %v1696 = vsel %vm672, -0.39501953, -0.52490234
        %v1697 = vsel %vm673, -0.39501953, -0.52490234
        %v1698 = vsel %vm674, -0.39501953, -0.52490234
        %v1699 = vsel %vm675, -0.39501953, -0.52490234
        %v1700 = vsel %vm676, -0.39501953, -0.52490234
        %v1701 = vsel %vm677, -0.39501953, -0.52490234
        %v1702 = vsel %vm678, -0.39501953, -0.52490234
        %v1703 = vsel %vm679, -0.39501953, -0.52490234
        %v1704 = vsel %vm680, -0.39501953, -0.52490234
        %v1705 = vsel %vm681, -0.39501953, -0.52490234
        %v1706 = vsel %vm682, -0.39501953, -0.52490234
        %v1707 = vsel %vm683, -0.39501953, -0.52490234
        %v1708 = vsel %vm684, -0.39501953, -0.52490234
        %v1709 = vsel %vm685, -0.39501953, -0.52490234
        %v1710 = vsel %vm686, -0.39501953, -0.52490234
        %v1711 = vsel %vm687, -0.39501953, -0.52490234
        %v1712 = vsel %vm688, -0.39501953, -0.52490234
        %v1713 = vsel %vm689, -0.39501953, -0.52490234
        %v1714 = vsel %vm690, -0.39501953, -0.52490234
        %v1715 = vsel %vm691, -0.39501953, -0.52490234
        %v1716 = vsel %vm692, -0.39501953, -0.52490234
        %v1717 = vsel %vm693, -0.39501953, -0.52490234
        %v1718 = vsel %vm694, -0.39501953, -0.52490234
        %v1719 = vsel %vm695, -0.39501953, -0.52490234
        %v1720 = vsel %vm696, -0.39501953, -0.52490234
        %v1721 = vsel %vm697, -0.39501953, -0.52490234
        %v1722 = vsel %vm698, -0.39501953, -0.52490234
        %v1723 = vsel %vm699, -0.39501953, -0.52490234
        %v1724 = vsel %vm700, -0.39501953, -0.52490234
        %v1725 = vsel %vm701, -0.39501953, -0.52490234
        %v1726 = vsel %vm702, -0.39501953, -0.52490234
        %v1727 = vsel %vm703, -0.39501953, -0.52490234
        %v1728 = vsel %vm704, -0.39501953, -0.52490234
        %v1729 = vsel %vm705, -0.39501953, -0.52490234
        %v1730 = vsel %vm706, -0.39501953, -0.52490234
        %v1731 = vsel %vm707, -0.39501953, -0.52490234
        %v1732 = vsel %vm708, -0.39501953, -0.52490234
        %v1733 = vsel %vm709, -0.39501953, -0.52490234
        %v1734 = vsel %vm710, -0.39501953, -0.52490234
        %v1735 = vsel %vm711, -0.39501953, -0.52490234
        %v1736 = vsel %vm712, -0.39501953, -0.52490234
        %v1737 = vsel %vm713, -0.39501953, -0.52490234
        %v1738 = vsel %vm714, -0.39501953, -0.52490234
        %v1739 = vsel %vm715, -0.39501953, -0.52490234
        %v1740 = vsel %vm716, -0.39501953, -0.52490234
        %v1741 = vsel %vm717, -0.39501953, -0.52490234
        %v1742 = vsel %vm718, -0.39501953, -0.52490234
        %v1743 = vsel %vm719, -0.39501953, -0.52490234
        %v1744 = vsel %vm720, -0.39501953, -0.52490234
        %v1745 = vsel %vm721, -0.39501953, -0.52490234
        %v1746 = vsel %vm722, -0.39501953, -0.52490234
        %v1747 = vsel %vm723, -0.39501953, -0.52490234
        %v1748 = vsel %vm724, -0.39501953, -0.52490234
        %v1749 = vsel %vm725, -0.39501953, -0.52490234
        %v1750 = vsel %vm726, -0.39501953, -0.52490234
        %v1751 = vsel %vm727, -0.39501953, -0.52490234
        %v1752 = vsel %vm728, -0.39501953, -0.52490234
        %v1753 = vsel %vm729, -0.39501953, -0.52490234
        %v1754 = vsel %vm730, -0.39501953, -0.52490234
        %v1755 = vsel %vm731, -0.39501953, -0.52490234
        %v1756 = vsel %vm732, -0.39501953, -0.52490234
        %v1757 = vsel %vm733, -0.39501953, -0.52490234
        %v1758 = vsel %vm734, -0.39501953, -0.52490234
        %v1759 = vsel %vm735, -0.39501953, -0.52490234
        %v1760 = vsel %vm736, -0.39501953, -0.52490234
        %v1761 = vsel %vm737, -0.39501953, -0.52490234
        %v1762 = vsel %vm738, -0.39501953, -0.52490234
        %v1763 = vsel %vm739, -0.39501953, -0.52490234
        %v1764 = vsel %vm740, -0.39501953, -0.52490234
        %v1765 = vsel %vm741, -0.39501953, -0.52490234
        %v1766 = vsel %vm614, -0.18481445, -0.28442383
        %v1767 = vsel %vm615, -0.18481445, -0.28442383
        %v1768 = vsel %vm616, -0.18481445, -0.28442383
        %v1769 = vsel %vm617, -0.18481445, -0.28442383
        %v1770 = vsel %vm618, -0.18481445, -0.28442383
        %v1771 = vsel %vm619, -0.18481445, -0.28442383
        %v1772 = vsel %vm620, -0.18481445, -0.28442383
        %v1773 = vsel %vm621, -0.18481445, -0.28442383
        %v1774 = vsel %vm622, -0.18481445, -0.28442383
        %v1775 = vsel %vm623, -0.18481445, -0.28442383
        %v1776 = vsel %vm624, -0.18481445, -0.28442383
        %v1777 = vsel %vm625, -0.18481445, -0.28442383
        %v1778 = vsel %vm626, -0.18481445, -0.28442383
        %v1779 = vsel %vm627, -0.18481445, -0.28442383
        %v1780 = vsel %vm628, -0.18481445, -0.28442383
        %v1781 = vsel %vm629, -0.18481445, -0.28442383
        %v1782 = vsel %vm630, -0.18481445, -0.28442383
        %v1783 = vsel %vm631, -0.18481445, -0.28442383
        %v1784 = vsel %vm632, -0.18481445, -0.28442383
        %v1785 = vsel %vm633, -0.18481445, -0.28442383
        %v1786 = vsel %vm634, -0.18481445, -0.28442383
        %v1787 = vsel %vm635, -0.18481445, -0.28442383
        %v1788 = vsel %vm636, -0.18481445, -0.28442383
        %v1789 = vsel %vm637, -0.18481445, -0.28442383
        %v1790 = vsel %vm638, -0.18481445, -0.28442383
        %v1791 = vsel %vm639, -0.18481445, -0.28442383
        %v1792 = vsel %vm640, -0.18481445, -0.28442383
        %v1793 = vsel %vm641, -0.18481445, -0.28442383
        %v1794 = vsel %vm642, -0.18481445, -0.28442383
        %v1795 = vsel %vm643, -0.18481445, -0.28442383
        %v1796 = vsel %vm644, -0.18481445, -0.28442383
        %v1797 = vsel %vm645, -0.18481445, -0.28442383
        %v1798 = vsel %vm646, -0.18481445, -0.28442383
        %v1799 = vsel %vm647, -0.18481445, -0.28442383
        %v1800 = vsel %vm648, -0.18481445, -0.28442383
        %v1801 = vsel %vm649, -0.18481445, -0.28442383
        %v1802 = vsel %vm650, -0.18481445, -0.28442383
        %v1803 = vsel %vm651, -0.18481445, -0.28442383
        %v1804 = vsel %vm652, -0.18481445, -0.28442383
        %v1805 = vsel %vm653, -0.18481445, -0.28442383
        %v1806 = vsel %vm654, -0.18481445, -0.28442383
        %v1807 = vsel %vm655, -0.18481445, -0.28442383
        %v1808 = vsel %vm656, -0.18481445, -0.28442383
        %v1809 = vsel %vm657, -0.18481445, -0.28442383
        %v1810 = vsel %vm658, -0.18481445, -0.28442383
        %v1811 = vsel %vm659, -0.18481445, -0.28442383
        %v1812 = vsel %vm660, -0.18481445, -0.28442383
        %v1813 = vsel %vm661, -0.18481445, -0.28442383
        %v1814 = vsel %vm662, -0.18481445, -0.28442383
        %v1815 = vsel %vm663, -0.18481445, -0.28442383
        %v1816 = vsel %vm664, -0.18481445, -0.28442383
        %v1817 = vsel %vm665, -0.18481445, -0.28442383
        %v1818 = vsel %vm666, -0.18481445, -0.28442383
        %v1819 = vsel %vm667, -0.18481445, -0.28442383
        %v1820 = vsel %vm668, -0.18481445, -0.28442383
        %v1821 = vsel %vm669, -0.18481445, -0.28442383
        %v1822 = vsel %vm670, -0.18481445, -0.28442383
        %v1823 = vsel %vm671, -0.18481445, -0.28442383
        %v1824 = vsel %vm672, -0.18481445, -0.28442383
        %v1825 = vsel %vm673, -0.18481445, -0.28442383
        %v1826 = vsel %vm674, -0.18481445, -0.28442383
        %v1827 = vsel %vm675, -0.18481445, -0.28442383
        %v1828 = vsel %vm676, -0.18481445, -0.28442383
        %v1829 = vsel %vm677, -0.18481445, -0.28442383
        %v1830 = vsel %vm678, -0.18481445, -0.28442383
        %v1831 = vsel %vm679, -0.18481445, -0.28442383
        %v1832 = vsel %vm680, -0.18481445, -0.28442383
        %v1833 = vsel %vm681, -0.18481445, -0.28442383
        %v1834 = vsel %vm682, -0.18481445, -0.28442383
        %v1835 = vsel %vm683, -0.18481445, -0.28442383
        %v1836 = vsel %vm684, -0.18481445, -0.28442383
        %v1837 = vsel %vm685, -0.18481445, -0.28442383
        %v1838 = vsel %vm686, -0.18481445, -0.28442383
        %v1839 = vsel %vm687, -0.18481445, -0.28442383
        %v1840 = vsel %vm688, -0.18481445, -0.28442383
        %v1841 = vsel %vm689, -0.18481445, -0.28442383
        %v1842 = vsel %vm690, -0.18481445, -0.28442383
        %v1843 = vsel %vm691, -0.18481445, -0.28442383
        %v1844 = vsel %vm692, -0.18481445, -0.28442383
        %v1845 = vsel %vm693, -0.18481445, -0.28442383
        %v1846 = vsel %vm694, -0.18481445, -0.28442383
        %v1847 = vsel %vm695, -0.18481445, -0.28442383
        %v1848 = vsel %vm696, -0.18481445, -0.28442383
        %v1849 = vsel %vm697, -0.18481445, -0.28442383
        %v1850 = vsel %vm698, -0.18481445, -0.28442383
        %v1851 = vsel %vm699, -0.18481445, -0.28442383
        %v1852 = vsel %vm700, -0.18481445, -0.28442383
        %v1853 = vsel %vm701, -0.18481445, -0.28442383
        %v1854 = vsel %vm702, -0.18481445, -0.28442383
        %v1855 = vsel %vm703, -0.18481445, -0.28442383
        %v1856 = vsel %vm704, -0.18481445, -0.28442383
        %v1857 = vsel %vm705, -0.18481445, -0.28442383
        %v1858 = vsel %vm706, -0.18481445, -0.28442383
        %v1859 = vsel %vm707, -0.18481445, -0.28442383
        %v1860 = vsel %vm708, -0.18481445, -0.28442383
        %v1861 = vsel %vm709, -0.18481445, -0.28442383
        %v1862 = vsel %vm710, -0.18481445, -0.28442383
        %v1863 = vsel %vm711, -0.18481445, -0.28442383
        %v1864 = vsel %vm712, -0.18481445, -0.28442383
        %v1865 = vsel %vm713, -0.18481445, -0.28442383
        %v1866 = vsel %vm714, -0.18481445, -0.28442383
        %v1867 = vsel %vm715, -0.18481445, -0.28442383
        %v1868 = vsel %vm716, -0.18481445, -0.28442383
        %v1869 = vsel %vm717, -0.18481445, -0.28442383
        %v1870 = vsel %vm718, -0.18481445, -0.28442383
        %v1871 = vsel %vm719, -0.18481445, -0.28442383
        %v1872 = vsel %vm720, -0.18481445, -0.28442383
        %v1873 = vsel %vm721, -0.18481445, -0.28442383
        %v1874 = vsel %vm722, -0.18481445, -0.28442383
        %v1875 = vsel %vm723, -0.18481445, -0.28442383
        %v1876 = vsel %vm724, -0.18481445, -0.28442383
        %v1877 = vsel %vm725, -0.18481445, -0.28442383
        %v1878 = vsel %vm726, -0.18481445, -0.28442383
        %v1879 = vsel %vm727, -0.18481445, -0.28442383
        %v1880 = vsel %vm728, -0.18481445, -0.28442383
        %v1881 = vsel %vm729, -0.18481445, -0.28442383
        %v1882 = vsel %vm730, -0.18481445, -0.28442383
        %v1883 = vsel %vm731, -0.18481445, -0.28442383
        %v1884 = vsel %vm732, -0.18481445, -0.28442383
        %v1885 = vsel %vm733, -0.18481445, -0.28442383
        %v1886 = vsel %vm734, -0.18481445, -0.28442383
        %v1887 = vsel %vm735, -0.18481445, -0.28442383
        %v1888 = vsel %vm736, -0.18481445, -0.28442383
        %v1889 = vsel %vm737, -0.18481445, -0.28442383
        %v1890 = vsel %vm738, -0.18481445, -0.28442383
        %v1891 = vsel %vm739, -0.18481445, -0.28442383
        %v1892 = vsel %vm740, -0.18481445, -0.28442383
        %v1893 = vsel %vm741, -0.18481445, -0.28442383
        %v1894 = vsel %vm614, 0.0, -0.09106445
        %v1895 = vsel %vm615, 0.0, -0.09106445
        %v1896 = vsel %vm616, 0.0, -0.09106445
        %v1897 = vsel %vm617, 0.0, -0.09106445
        %v1898 = vsel %vm618, 0.0, -0.09106445
        %v1899 = vsel %vm619, 0.0, -0.09106445
        %v1900 = vsel %vm620, 0.0, -0.09106445
        %v1901 = vsel %vm621, 0.0, -0.09106445
        %v1902 = vsel %vm622, 0.0, -0.09106445
        %v1903 = vsel %vm623, 0.0, -0.09106445
        %v1904 = vsel %vm624, 0.0, -0.09106445
        %v1905 = vsel %vm625, 0.0, -0.09106445
        %v1906 = vsel %vm626, 0.0, -0.09106445
        %v1907 = vsel %vm627, 0.0, -0.09106445
        %v1908 = vsel %vm628, 0.0, -0.09106445
        %v1909 = vsel %vm629, 0.0, -0.09106445
        %v1910 = vsel %vm630, 0.0, -0.09106445
        %v1911 = vsel %vm631, 0.0, -0.09106445
        %v1912 = vsel %vm632, 0.0, -0.09106445
        %v1913 = vsel %vm633, 0.0, -0.09106445
        %v1914 = vsel %vm634, 0.0, -0.09106445
        %v1915 = vsel %vm635, 0.0, -0.09106445
        %v1916 = vsel %vm636, 0.0, -0.09106445
        %v1917 = vsel %vm637, 0.0, -0.09106445
        %v1918 = vsel %vm638, 0.0, -0.09106445
        %v1919 = vsel %vm639, 0.0, -0.09106445
        %v1920 = vsel %vm640, 0.0, -0.09106445
        %v1921 = vsel %vm641, 0.0, -0.09106445
        %v1922 = vsel %vm642, 0.0, -0.09106445
        %v1923 = vsel %vm643, 0.0, -0.09106445
        %v1924 = vsel %vm644, 0.0, -0.09106445
        %v1925 = vsel %vm645, 0.0, -0.09106445
        %v1926 = vsel %vm646, 0.0, -0.09106445
        %v1927 = vsel %vm647, 0.0, -0.09106445
        %v1928 = vsel %vm648, 0.0, -0.09106445
        %v1929 = vsel %vm649, 0.0, -0.09106445
        %v1930 = vsel %vm650, 0.0, -0.09106445
        %v1931 = vsel %vm651, 0.0, -0.09106445
        %v1932 = vsel %vm652, 0.0, -0.09106445
        %v1933 = vsel %vm653, 0.0, -0.09106445
        %v1934 = vsel %vm654, 0.0, -0.09106445
        %v1935 = vsel %vm655, 0.0, -0.09106445
        %v1936 = vsel %vm656, 0.0, -0.09106445
        %v1937 = vsel %vm657, 0.0, -0.09106445
        %v1938 = vsel %vm658, 0.0, -0.09106445
        %v1939 = vsel %vm659, 0.0, -0.09106445
        %v1940 = vsel %vm660, 0.0, -0.09106445
        %v1941 = vsel %vm661, 0.0, -0.09106445
        %v1942 = vsel %vm662, 0.0, -0.09106445
        %v1943 = vsel %vm663, 0.0, -0.09106445
        %v1944 = vsel %vm664, 0.0, -0.09106445
        %v1945 = vsel %vm665, 0.0, -0.09106445
        %v1946 = vsel %vm666, 0.0, -0.09106445
        %v1947 = vsel %vm667, 0.0, -0.09106445
        %v1948 = vsel %vm668, 0.0, -0.09106445
        %v1949 = vsel %vm669, 0.0, -0.09106445
        %v1950 = vsel %vm670, 0.0, -0.09106445
        %v1951 = vsel %vm671, 0.0, -0.09106445
        %v1952 = vsel %vm672, 0.0, -0.09106445
        %v1953 = vsel %vm673, 0.0, -0.09106445
        %v1954 = vsel %vm674, 0.0, -0.09106445
        %v1955 = vsel %vm675, 0.0, -0.09106445
        %v1956 = vsel %vm676, 0.0, -0.09106445
        %v1957 = vsel %vm677, 0.0, -0.09106445
        %v1958 = vsel %vm678, 0.0, -0.09106445
        %v1959 = vsel %vm679, 0.0, -0.09106445
        %v1960 = vsel %vm680, 0.0, -0.09106445
        %v1961 = vsel %vm681, 0.0, -0.09106445
        %v1962 = vsel %vm682, 0.0, -0.09106445
        %v1963 = vsel %vm683, 0.0, -0.09106445
        %v1964 = vsel %vm684, 0.0, -0.09106445
        %v1965 = vsel %vm685, 0.0, -0.09106445
        %v1966 = vsel %vm686, 0.0, -0.09106445
        %v1967 = vsel %vm687, 0.0, -0.09106445
        %v1968 = vsel %vm688, 0.0, -0.09106445
        %v1969 = vsel %vm689, 0.0, -0.09106445
        %v1970 = vsel %vm690, 0.0, -0.09106445
        %v1971 = vsel %vm691, 0.0, -0.09106445
        %v1972 = vsel %vm692, 0.0, -0.09106445
        %v1973 = vsel %vm693, 0.0, -0.09106445
        %v1974 = vsel %vm694, 0.0, -0.09106445
        %v1975 = vsel %vm695, 0.0, -0.09106445
        %v1976 = vsel %vm696, 0.0, -0.09106445
        %v1977 = vsel %vm697, 0.0, -0.09106445
        %v1978 = vsel %vm698, 0.0, -0.09106445
        %v1979 = vsel %vm699, 0.0, -0.09106445
        %v1980 = vsel %vm700, 0.0, -0.09106445
        %v1981 = vsel %vm701, 0.0, -0.09106445
        %v1982 = vsel %vm702, 0.0, -0.09106445
        %v1983 = vsel %vm703, 0.0, -0.09106445
        %v1984 = vsel %vm704, 0.0, -0.09106445
        %v1985 = vsel %vm705, 0.0, -0.09106445
        %v1986 = vsel %vm706, 0.0, -0.09106445
        %v1987 = vsel %vm707, 0.0, -0.09106445
        %v1988 = vsel %vm708, 0.0, -0.09106445
        %v1989 = vsel %vm709, 0.0, -0.09106445
        %v1990 = vsel %vm710, 0.0, -0.09106445
        %v1991 = vsel %vm711, 0.0, -0.09106445
        %v1992 = vsel %vm712, 0.0, -0.09106445
        %v1993 = vsel %vm713, 0.0, -0.09106445
        %v1994 = vsel %vm714, 0.0, -0.09106445
        %v1995 = vsel %vm715, 0.0, -0.09106445
        %v1996 = vsel %vm716, 0.0, -0.09106445
        %v1997 = vsel %vm717, 0.0, -0.09106445
        %v1998 = vsel %vm718, 0.0, -0.09106445
        %v1999 = vsel %vm719, 0.0, -0.09106445
        %v2000 = vsel %vm720, 0.0, -0.09106445
        %v2001 = vsel %vm721, 0.0, -0.09106445
        %v2002 = vsel %vm722, 0.0, -0.09106445
        %v2003 = vsel %vm723, 0.0, -0.09106445
        %v2004 = vsel %vm724, 0.0, -0.09106445
        %v2005 = vsel %vm725, 0.0, -0.09106445
        %v2006 = vsel %vm726, 0.0, -0.09106445
        %v2007 = vsel %vm727, 0.0, -0.09106445
        %v2008 = vsel %vm728, 0.0, -0.09106445
        %v2009 = vsel %vm729, 0.0, -0.09106445
        %v2010 = vsel %vm730, 0.0, -0.09106445
        %v2011 = vsel %vm731, 0.0, -0.09106445
        %v2012 = vsel %vm732, 0.0, -0.09106445
        %v2013 = vsel %vm733, 0.0, -0.09106445
        %v2014 = vsel %vm734, 0.0, -0.09106445
        %v2015 = vsel %vm735, 0.0, -0.09106445
        %v2016 = vsel %vm736, 0.0, -0.09106445
        %v2017 = vsel %vm737, 0.0, -0.09106445
        %v2018 = vsel %vm738, 0.0, -0.09106445
        %v2019 = vsel %vm739, 0.0, -0.09106445
        %v2020 = vsel %vm740, 0.0, -0.09106445
        %v2021 = vsel %vm741, 0.0, -0.09106445
        %v2022 = vsel %vm614, 0.16088867, 0.079589844
        %v2023 = vsel %vm615, 0.16088867, 0.079589844
        %v2024 = vsel %vm616, 0.16088867, 0.079589844
        %v2025 = vsel %vm617, 0.16088867, 0.079589844
        %v2026 = vsel %vm618, 0.16088867, 0.079589844
        %v2027 = vsel %vm619, 0.16088867, 0.079589844
        %v2028 = vsel %vm620, 0.16088867, 0.079589844
        %v2029 = vsel %vm621, 0.16088867, 0.079589844
        %v2030 = vsel %vm622, 0.16088867, 0.079589844
        %v2031 = vsel %vm623, 0.16088867, 0.079589844
        %v2032 = vsel %vm624, 0.16088867, 0.079589844
        %v2033 = vsel %vm625, 0.16088867, 0.079589844
        %v2034 = vsel %vm626, 0.16088867, 0.079589844
        %v2035 = vsel %vm627, 0.16088867, 0.079589844
        %v2036 = vsel %vm628, 0.16088867, 0.079589844
        %v2037 = vsel %vm629, 0.16088867, 0.079589844
        %v2038 = vsel %vm630, 0.16088867, 0.079589844
        %v2039 = vsel %vm631, 0.16088867, 0.079589844
        %v2040 = vsel %vm632, 0.16088867, 0.079589844
        %v2041 = vsel %vm633, 0.16088867, 0.079589844
        %v2042 = vsel %vm634, 0.16088867, 0.079589844
        %v2043 = vsel %vm635, 0.16088867, 0.079589844
        %v2044 = vsel %vm636, 0.16088867, 0.079589844
        %v2045 = vsel %vm637, 0.16088867, 0.079589844
        %v2046 = vsel %vm638, 0.16088867, 0.079589844
        %v2047 = vsel %vm639, 0.16088867, 0.079589844
        %v2048 = vsel %vm640, 0.16088867, 0.079589844
        %v2049 = vsel %vm641, 0.16088867, 0.079589844
        %v2050 = vsel %vm642, 0.16088867, 0.079589844
        %v2051 = vsel %vm643, 0.16088867, 0.079589844
        %v2052 = vsel %vm644, 0.16088867, 0.079589844
        %v2053 = vsel %vm645, 0.16088867, 0.079589844
        %v2054 = vsel %vm646, 0.16088867, 0.079589844
        %v2055 = vsel %vm647, 0.16088867, 0.079589844
        %v2056 = vsel %vm648, 0.16088867, 0.079589844
        %v2057 = vsel %vm649, 0.16088867, 0.079589844
        %v2058 = vsel %vm650, 0.16088867, 0.079589844
        %v2059 = vsel %vm651, 0.16088867, 0.079589844
        %v2060 = vsel %vm652, 0.16088867, 0.079589844
        %v2061 = vsel %vm653, 0.16088867, 0.079589844
        %v2062 = vsel %vm654, 0.16088867, 0.079589844
        %v2063 = vsel %vm655, 0.16088867, 0.079589844
        %v2064 = vsel %vm656, 0.16088867, 0.079589844
        %v2065 = vsel %vm657, 0.16088867, 0.079589844
        %v2066 = vsel %vm658, 0.16088867, 0.079589844
        %v2067 = vsel %vm659, 0.16088867, 0.079589844
        %v2068 = vsel %vm660, 0.16088867, 0.079589844
        %v2069 = vsel %vm661, 0.16088867, 0.079589844
        %v2070 = vsel %vm662, 0.16088867, 0.079589844
        %v2071 = vsel %vm663, 0.16088867, 0.079589844
        %v2072 = vsel %vm664, 0.16088867, 0.079589844
        %v2073 = vsel %vm665, 0.16088867, 0.079589844
        %v2074 = vsel %vm666, 0.16088867, 0.079589844
        %v2075 = vsel %vm667, 0.16088867, 0.079589844
        %v2076 = vsel %vm668, 0.16088867, 0.079589844
        %v2077 = vsel %vm669, 0.16088867, 0.079589844
        %v2078 = vsel %vm670, 0.16088867, 0.079589844
        %v2079 = vsel %vm671, 0.16088867, 0.079589844
        %v2080 = vsel %vm672, 0.16088867, 0.079589844
        %v2081 = vsel %vm673, 0.16088867, 0.079589844
        %v2082 = vsel %vm674, 0.16088867, 0.079589844
        %v2083 = vsel %vm675, 0.16088867, 0.079589844
        %v2084 = vsel %vm676, 0.16088867, 0.079589844
        %v2085 = vsel %vm677, 0.16088867, 0.079589844
        %v2086 = vsel %vm678, 0.16088867, 0.079589844
        %v2087 = vsel %vm679, 0.16088867, 0.079589844
        %v2088 = vsel %vm680, 0.16088867, 0.079589844
        %v2089 = vsel %vm681, 0.16088867, 0.079589844
        %v2090 = vsel %vm682, 0.16088867, 0.079589844
        %v2091 = vsel %vm683, 0.16088867, 0.079589844
        %v2092 = vsel %vm684, 0.16088867, 0.079589844
        %v2093 = vsel %vm685, 0.16088867, 0.079589844
        %v2094 = vsel %vm686, 0.16088867, 0.079589844
        %v2095 = vsel %vm687, 0.16088867, 0.079589844
        %v2096 = vsel %vm688, 0.16088867, 0.079589844
        %v2097 = vsel %vm689, 0.16088867, 0.079589844
        %v2098 = vsel %vm690, 0.16088867, 0.079589844
        %v2099 = vsel %vm691, 0.16088867, 0.079589844
        %v2100 = vsel %vm692, 0.16088867, 0.079589844
        %v2101 = vsel %vm693, 0.16088867, 0.079589844
        %v2102 = vsel %vm694, 0.16088867, 0.079589844
        %v2103 = vsel %vm695, 0.16088867, 0.079589844
        %v2104 = vsel %vm696, 0.16088867, 0.079589844
        %v2105 = vsel %vm697, 0.16088867, 0.079589844
        %v2106 = vsel %vm698, 0.16088867, 0.079589844
        %v2107 = vsel %vm699, 0.16088867, 0.079589844
        %v2108 = vsel %vm700, 0.16088867, 0.079589844
        %v2109 = vsel %vm701, 0.16088867, 0.079589844
        %v2110 = vsel %vm702, 0.16088867, 0.079589844
        %v2111 = vsel %vm703, 0.16088867, 0.079589844
        %v2112 = vsel %vm704, 0.16088867, 0.079589844
        %v2113 = vsel %vm705, 0.16088867, 0.079589844
        %v2114 = vsel %vm706, 0.16088867, 0.079589844
        %v2115 = vsel %vm707, 0.16088867, 0.079589844
        %v2116 = vsel %vm708, 0.16088867, 0.079589844
        %v2117 = vsel %vm709, 0.16088867, 0.079589844
        %v2118 = vsel %vm710, 0.16088867, 0.079589844
        %v2119 = vsel %vm711, 0.16088867, 0.079589844
        %v2120 = vsel %vm712, 0.16088867, 0.079589844
        %v2121 = vsel %vm713, 0.16088867, 0.079589844
        %v2122 = vsel %vm714, 0.16088867, 0.079589844
        %v2123 = vsel %vm715, 0.16088867, 0.079589844
        %v2124 = vsel %vm716, 0.16088867, 0.079589844
        %v2125 = vsel %vm717, 0.16088867, 0.079589844
        %v2126 = vsel %vm718, 0.16088867, 0.079589844
        %v2127 = vsel %vm719, 0.16088867, 0.079589844
        %v2128 = vsel %vm720, 0.16088867, 0.079589844
        %v2129 = vsel %vm721, 0.16088867, 0.079589844
        %v2130 = vsel %vm722, 0.16088867, 0.079589844
        %v2131 = vsel %vm723, 0.16088867, 0.079589844
        %v2132 = vsel %vm724, 0.16088867, 0.079589844
        %v2133 = vsel %vm725, 0.16088867, 0.079589844
        %v2134 = vsel %vm726, 0.16088867, 0.079589844
        %v2135 = vsel %vm727, 0.16088867, 0.079589844
        %v2136 = vsel %vm728, 0.16088867, 0.079589844
        %v2137 = vsel %vm729, 0.16088867, 0.079589844
        %v2138 = vsel %vm730, 0.16088867, 0.079589844
        %v2139 = vsel %vm731, 0.16088867, 0.079589844
        %v2140 = vsel %vm732, 0.16088867, 0.079589844
        %v2141 = vsel %vm733, 0.16088867, 0.079589844
        %v2142 = vsel %vm734, 0.16088867, 0.079589844
        %v2143 = vsel %vm735, 0.16088867, 0.079589844
        %v2144 = vsel %vm736, 0.16088867, 0.079589844
        %v2145 = vsel %vm737, 0.16088867, 0.079589844
        %v2146 = vsel %vm738, 0.16088867, 0.079589844
        %v2147 = vsel %vm739, 0.16088867, 0.079589844
        %v2148 = vsel %vm740, 0.16088867, 0.079589844
        %v2149 = vsel %vm741, 0.16088867, 0.079589844
        %v2150 = vsel %vm614, 0.33789063, 0.24609375
        %v2151 = vsel %vm615, 0.33789063, 0.24609375
        %v2152 = vsel %vm616, 0.33789063, 0.24609375
        %v2153 = vsel %vm617, 0.33789063, 0.24609375
        %v2154 = vsel %vm618, 0.33789063, 0.24609375
        %v2155 = vsel %vm619, 0.33789063, 0.24609375
        %v2156 = vsel %vm620, 0.33789063, 0.24609375
        %v2157 = vsel %vm621, 0.33789063, 0.24609375
        %v2158 = vsel %vm622, 0.33789063, 0.24609375
        %v2159 = vsel %vm623, 0.33789063, 0.24609375
        %v2160 = vsel %vm624, 0.33789063, 0.24609375
        %v2161 = vsel %vm625, 0.33789063, 0.24609375
        %v2162 = vsel %vm626, 0.33789063, 0.24609375
        %v2163 = vsel %vm627, 0.33789063, 0.24609375
        %v2164 = vsel %vm628, 0.33789063, 0.24609375
        %v2165 = vsel %vm629, 0.33789063, 0.24609375
        %v2166 = vsel %vm630, 0.33789063, 0.24609375
        %v2167 = vsel %vm631, 0.33789063, 0.24609375
        %v2168 = vsel %vm632, 0.33789063, 0.24609375
        %v2169 = vsel %vm633, 0.33789063, 0.24609375
        %v2170 = vsel %vm634, 0.33789063, 0.24609375
        %v2171 = vsel %vm635, 0.33789063, 0.24609375
        %v2172 = vsel %vm636, 0.33789063, 0.24609375
        %v2173 = vsel %vm637, 0.33789063, 0.24609375
        %v2174 = vsel %vm638, 0.33789063, 0.24609375
        %v2175 = vsel %vm639, 0.33789063, 0.24609375
        %v2176 = vsel %vm640, 0.33789063, 0.24609375
        %v2177 = vsel %vm641, 0.33789063, 0.24609375
        %v2178 = vsel %vm642, 0.33789063, 0.24609375
        %v2179 = vsel %vm643, 0.33789063, 0.24609375
        %v2180 = vsel %vm644, 0.33789063, 0.24609375
        %v2181 = vsel %vm645, 0.33789063, 0.24609375
        %v2182 = vsel %vm646, 0.33789063, 0.24609375
        %v2183 = vsel %vm647, 0.33789063, 0.24609375
        %v2184 = vsel %vm648, 0.33789063, 0.24609375
        %v2185 = vsel %vm649, 0.33789063, 0.24609375
        %v2186 = vsel %vm650, 0.33789063, 0.24609375
        %v2187 = vsel %vm651, 0.33789063, 0.24609375
        %v2188 = vsel %vm652, 0.33789063, 0.24609375
        %v2189 = vsel %vm653, 0.33789063, 0.24609375
        %v2190 = vsel %vm654, 0.33789063, 0.24609375
        %v2191 = vsel %vm655, 0.33789063, 0.24609375
        %v2192 = vsel %vm656, 0.33789063, 0.24609375
        %v2193 = vsel %vm657, 0.33789063, 0.24609375
        %v2194 = vsel %vm658, 0.33789063, 0.24609375
        %v2195 = vsel %vm659, 0.33789063, 0.24609375
        %v2196 = vsel %vm660, 0.33789063, 0.24609375
        %v2197 = vsel %vm661, 0.33789063, 0.24609375
        %v2198 = vsel %vm662, 0.33789063, 0.24609375
        %v2199 = vsel %vm663, 0.33789063, 0.24609375
        %v2200 = vsel %vm664, 0.33789063, 0.24609375
        %v2201 = vsel %vm665, 0.33789063, 0.24609375
        %v2202 = vsel %vm666, 0.33789063, 0.24609375
        %v2203 = vsel %vm667, 0.33789063, 0.24609375
        %v2204 = vsel %vm668, 0.33789063, 0.24609375
        %v2205 = vsel %vm669, 0.33789063, 0.24609375
        %v2206 = vsel %vm670, 0.33789063, 0.24609375
        %v2207 = vsel %vm671, 0.33789063, 0.24609375
        %v2208 = vsel %vm672, 0.33789063, 0.24609375
        %v2209 = vsel %vm673, 0.33789063, 0.24609375
        %v2210 = vsel %vm674, 0.33789063, 0.24609375
        %v2211 = vsel %vm675, 0.33789063, 0.24609375
        %v2212 = vsel %vm676, 0.33789063, 0.24609375
        %v2213 = vsel %vm677, 0.33789063, 0.24609375
        %v2214 = vsel %vm678, 0.33789063, 0.24609375
        %v2215 = vsel %vm679, 0.33789063, 0.24609375
        %v2216 = vsel %vm680, 0.33789063, 0.24609375
        %v2217 = vsel %vm681, 0.33789063, 0.24609375
        %v2218 = vsel %vm682, 0.33789063, 0.24609375
        %v2219 = vsel %vm683, 0.33789063, 0.24609375
        %v2220 = vsel %vm684, 0.33789063, 0.24609375
        %v2221 = vsel %vm685, 0.33789063, 0.24609375
        %v2222 = vsel %vm686, 0.33789063, 0.24609375
        %v2223 = vsel %vm687, 0.33789063, 0.24609375
        %v2224 = vsel %vm688, 0.33789063, 0.24609375
        %v2225 = vsel %vm689, 0.33789063, 0.24609375
        %v2226 = vsel %vm690, 0.33789063, 0.24609375
        %v2227 = vsel %vm691, 0.33789063, 0.24609375
        %v2228 = vsel %vm692, 0.33789063, 0.24609375
        %v2229 = vsel %vm693, 0.33789063, 0.24609375
        %v2230 = vsel %vm694, 0.33789063, 0.24609375
        %v2231 = vsel %vm695, 0.33789063, 0.24609375
        %v2232 = vsel %vm696, 0.33789063, 0.24609375
        %v2233 = vsel %vm697, 0.33789063, 0.24609375
        %v2234 = vsel %vm698, 0.33789063, 0.24609375
        %v2235 = vsel %vm699, 0.33789063, 0.24609375
        %v2236 = vsel %vm700, 0.33789063, 0.24609375
        %v2237 = vsel %vm701, 0.33789063, 0.24609375
        %v2238 = vsel %vm702, 0.33789063, 0.24609375
        %v2239 = vsel %vm703, 0.33789063, 0.24609375
        %v2240 = vsel %vm704, 0.33789063, 0.24609375
        %v2241 = vsel %vm705, 0.33789063, 0.24609375
        %v2242 = vsel %vm706, 0.33789063, 0.24609375
        %v2243 = vsel %vm707, 0.33789063, 0.24609375
        %v2244 = vsel %vm708, 0.33789063, 0.24609375
        %v2245 = vsel %vm709, 0.33789063, 0.24609375
        %v2246 = vsel %vm710, 0.33789063, 0.24609375
        %v2247 = vsel %vm711, 0.33789063, 0.24609375
        %v2248 = vsel %vm712, 0.33789063, 0.24609375
        %v2249 = vsel %vm713, 0.33789063, 0.24609375
        %v2250 = vsel %vm714, 0.33789063, 0.24609375
        %v2251 = vsel %vm715, 0.33789063, 0.24609375
        %v2252 = vsel %vm716, 0.33789063, 0.24609375
        %v2253 = vsel %vm717, 0.33789063, 0.24609375
        %v2254 = vsel %vm718, 0.33789063, 0.24609375
        %v2255 = vsel %vm719, 0.33789063, 0.24609375
        %v2256 = vsel %vm720, 0.33789063, 0.24609375
        %v2257 = vsel %vm721, 0.33789063, 0.24609375
        %v2258 = vsel %vm722, 0.33789063, 0.24609375
        %v2259 = vsel %vm723, 0.33789063, 0.24609375
        %v2260 = vsel %vm724, 0.33789063, 0.24609375
        %v2261 = vsel %vm725, 0.33789063, 0.24609375
        %v2262 = vsel %vm726, 0.33789063, 0.24609375
        %v2263 = vsel %vm727, 0.33789063, 0.24609375
        %v2264 = vsel %vm728, 0.33789063, 0.24609375
        %v2265 = vsel %vm729, 0.33789063, 0.24609375
        %v2266 = vsel %vm730, 0.33789063, 0.24609375
        %v2267 = vsel %vm731, 0.33789063, 0.24609375
        %v2268 = vsel %vm732, 0.33789063, 0.24609375
        %v2269 = vsel %vm733, 0.33789063, 0.24609375
        %v2270 = vsel %vm734, 0.33789063, 0.24609375
        %v2271 = vsel %vm735, 0.33789063, 0.24609375
        %v2272 = vsel %vm736, 0.33789063, 0.24609375
        %v2273 = vsel %vm737, 0.33789063, 0.24609375
        %v2274 = vsel %vm738, 0.33789063, 0.24609375
        %v2275 = vsel %vm739, 0.33789063, 0.24609375
        %v2276 = vsel %vm740, 0.33789063, 0.24609375
        %v2277 = vsel %vm741, 0.33789063, 0.24609375
        %v2278 = vsel %vm614, 0.5625, 0.44067383
        %v2279 = vsel %vm615, 0.5625, 0.44067383
        %v2280 = vsel %vm616, 0.5625, 0.44067383
        %v2281 = vsel %vm617, 0.5625, 0.44067383
        %v2282 = vsel %vm618, 0.5625, 0.44067383
        %v2283 = vsel %vm619, 0.5625, 0.44067383
        %v2284 = vsel %vm620, 0.5625, 0.44067383
        %v2285 = vsel %vm621, 0.5625, 0.44067383
        %v2286 = vsel %vm622, 0.5625, 0.44067383
        %v2287 = vsel %vm623, 0.5625, 0.44067383
        %v2288 = vsel %vm624, 0.5625, 0.44067383
        %v2289 = vsel %vm625, 0.5625, 0.44067383
        %v2290 = vsel %vm626, 0.5625, 0.44067383
        %v2291 = vsel %vm627, 0.5625, 0.44067383
        %v2292 = vsel %vm628, 0.5625, 0.44067383
        %v2293 = vsel %vm629, 0.5625, 0.44067383
        %v2294 = vsel %vm630, 0.5625, 0.44067383
        %v2295 = vsel %vm631, 0.5625, 0.44067383
        %v2296 = vsel %vm632, 0.5625, 0.44067383
        %v2297 = vsel %vm633, 0.5625, 0.44067383
        %v2298 = vsel %vm634, 0.5625, 0.44067383
        %v2299 = vsel %vm635, 0.5625, 0.44067383
        %v2300 = vsel %vm636, 0.5625, 0.44067383
        %v2301 = vsel %vm637, 0.5625, 0.44067383
        %v2302 = vsel %vm638, 0.5625, 0.44067383
        %v2303 = vsel %vm639, 0.5625, 0.44067383
        %v2304 = vsel %vm640, 0.5625, 0.44067383
        %v2305 = vsel %vm641, 0.5625, 0.44067383
        %v2306 = vsel %vm642, 0.5625, 0.44067383
        %v2307 = vsel %vm643, 0.5625, 0.44067383
        %v2308 = vsel %vm644, 0.5625, 0.44067383
        %v2309 = vsel %vm645, 0.5625, 0.44067383
        %v2310 = vsel %vm646, 0.5625, 0.44067383
        %v2311 = vsel %vm647, 0.5625, 0.44067383
        %v2312 = vsel %vm648, 0.5625, 0.44067383
        %v2313 = vsel %vm649, 0.5625, 0.44067383
        %v2314 = vsel %vm650, 0.5625, 0.44067383
        %v2315 = vsel %vm651, 0.5625, 0.44067383
        %v2316 = vsel %vm652, 0.5625, 0.44067383
        %v2317 = vsel %vm653, 0.5625, 0.44067383
        %v2318 = vsel %vm654, 0.5625, 0.44067383
        %v2319 = vsel %vm655, 0.5625, 0.44067383
        %v2320 = vsel %vm656, 0.5625, 0.44067383
        %v2321 = vsel %vm657, 0.5625, 0.44067383
        %v2322 = vsel %vm658, 0.5625, 0.44067383
        %v2323 = vsel %vm659, 0.5625, 0.44067383
        %v2324 = vsel %vm660, 0.5625, 0.44067383
        %v2325 = vsel %vm661, 0.5625, 0.44067383
        %v2326 = vsel %vm662, 0.5625, 0.44067383
        %v2327 = vsel %vm663, 0.5625, 0.44067383
        %v2328 = vsel %vm664, 0.5625, 0.44067383
        %v2329 = vsel %vm665, 0.5625, 0.44067383
        %v2330 = vsel %vm666, 0.5625, 0.44067383
        %v2331 = vsel %vm667, 0.5625, 0.44067383
        %v2332 = vsel %vm668, 0.5625, 0.44067383
        %v2333 = vsel %vm669, 0.5625, 0.44067383
        %v2334 = vsel %vm670, 0.5625, 0.44067383
        %v2335 = vsel %vm671, 0.5625, 0.44067383
        %v2336 = vsel %vm672, 0.5625, 0.44067383
        %v2337 = vsel %vm673, 0.5625, 0.44067383
        %v2338 = vsel %vm674, 0.5625, 0.44067383
        %v2339 = vsel %vm675, 0.5625, 0.44067383
        %v2340 = vsel %vm676, 0.5625, 0.44067383
        %v2341 = vsel %vm677, 0.5625, 0.44067383
        %v2342 = vsel %vm678, 0.5625, 0.44067383
        %v2343 = vsel %vm679, 0.5625, 0.44067383
        %v2344 = vsel %vm680, 0.5625, 0.44067383
        %v2345 = vsel %vm681, 0.5625, 0.44067383
        %v2346 = vsel %vm682, 0.5625, 0.44067383
        %v2347 = vsel %vm683, 0.5625, 0.44067383
        %v2348 = vsel %vm684, 0.5625, 0.44067383
        %v2349 = vsel %vm685, 0.5625, 0.44067383
        %v2350 = vsel %vm686, 0.5625, 0.44067383
        %v2351 = vsel %vm687, 0.5625, 0.44067383
        %v2352 = vsel %vm688, 0.5625, 0.44067383
        %v2353 = vsel %vm689, 0.5625, 0.44067383
        %v2354 = vsel %vm690, 0.5625, 0.44067383
        %v2355 = vsel %vm691, 0.5625, 0.44067383
        %v2356 = vsel %vm692, 0.5625, 0.44067383
        %v2357 = vsel %vm693, 0.5625, 0.44067383
        %v2358 = vsel %vm694, 0.5625, 0.44067383
        %v2359 = vsel %vm695, 0.5625, 0.44067383
        %v2360 = vsel %vm696, 0.5625, 0.44067383
        %v2361 = vsel %vm697, 0.5625, 0.44067383
        %v2362 = vsel %vm698, 0.5625, 0.44067383
        %v2363 = vsel %vm699, 0.5625, 0.44067383
        %v2364 = vsel %vm700, 0.5625, 0.44067383
        %v2365 = vsel %vm701, 0.5625, 0.44067383
        %v2366 = vsel %vm702, 0.5625, 0.44067383
        %v2367 = vsel %vm703, 0.5625, 0.44067383
        %v2368 = vsel %vm704, 0.5625, 0.44067383
        %v2369 = vsel %vm705, 0.5625, 0.44067383
        %v2370 = vsel %vm706, 0.5625, 0.44067383
        %v2371 = vsel %vm707, 0.5625, 0.44067383
        %v2372 = vsel %vm708, 0.5625, 0.44067383
        %v2373 = vsel %vm709, 0.5625, 0.44067383
        %v2374 = vsel %vm710, 0.5625, 0.44067383
        %v2375 = vsel %vm711, 0.5625, 0.44067383
        %v2376 = vsel %vm712, 0.5625, 0.44067383
        %v2377 = vsel %vm713, 0.5625, 0.44067383
        %v2378 = vsel %vm714, 0.5625, 0.44067383
        %v2379 = vsel %vm715, 0.5625, 0.44067383
        %v2380 = vsel %vm716, 0.5625, 0.44067383
        %v2381 = vsel %vm717, 0.5625, 0.44067383
        %v2382 = vsel %vm718, 0.5625, 0.44067383
        %v2383 = vsel %vm719, 0.5625, 0.44067383
        %v2384 = vsel %vm720, 0.5625, 0.44067383
        %v2385 = vsel %vm721, 0.5625, 0.44067383
        %v2386 = vsel %vm722, 0.5625, 0.44067383
        %v2387 = vsel %vm723, 0.5625, 0.44067383
        %v2388 = vsel %vm724, 0.5625, 0.44067383
        %v2389 = vsel %vm725, 0.5625, 0.44067383
        %v2390 = vsel %vm726, 0.5625, 0.44067383
        %v2391 = vsel %vm727, 0.5625, 0.44067383
        %v2392 = vsel %vm728, 0.5625, 0.44067383
        %v2393 = vsel %vm729, 0.5625, 0.44067383
        %v2394 = vsel %vm730, 0.5625, 0.44067383
        %v2395 = vsel %vm731, 0.5625, 0.44067383
        %v2396 = vsel %vm732, 0.5625, 0.44067383
        %v2397 = vsel %vm733, 0.5625, 0.44067383
        %v2398 = vsel %vm734, 0.5625, 0.44067383
        %v2399 = vsel %vm735, 0.5625, 0.44067383
        %v2400 = vsel %vm736, 0.5625, 0.44067383
        %v2401 = vsel %vm737, 0.5625, 0.44067383
        %v2402 = vsel %vm738, 0.5625, 0.44067383
        %v2403 = vsel %vm739, 0.5625, 0.44067383
        %v2404 = vsel %vm740, 0.5625, 0.44067383
        %v2405 = vsel %vm741, 0.5625, 0.44067383
        %v2406 = vsel %vm614, 1.0, 0.72314453
        %v2407 = vsel %vm615, 1.0, 0.72314453
        %v2408 = vsel %vm616, 1.0, 0.72314453
        %v2409 = vsel %vm617, 1.0, 0.72314453
        %v2410 = vsel %vm618, 1.0, 0.72314453
        %v2411 = vsel %vm619, 1.0, 0.72314453
        %v2412 = vsel %vm620, 1.0, 0.72314453
        %v2413 = vsel %vm621, 1.0, 0.72314453
        %v2414 = vsel %vm622, 1.0, 0.72314453
        %v2415 = vsel %vm623, 1.0, 0.72314453
        %v2416 = vsel %vm624, 1.0, 0.72314453
        %v2417 = vsel %vm625, 1.0, 0.72314453
        %v2418 = vsel %vm626, 1.0, 0.72314453
        %v2419 = vsel %vm627, 1.0, 0.72314453
        %v2420 = vsel %vm628, 1.0, 0.72314453
        %v2421 = vsel %vm629, 1.0, 0.72314453
        %v2422 = vsel %vm630, 1.0, 0.72314453
        %v2423 = vsel %vm631, 1.0, 0.72314453
        %v2424 = vsel %vm632, 1.0, 0.72314453
        %v2425 = vsel %vm633, 1.0, 0.72314453
        %v2426 = vsel %vm634, 1.0, 0.72314453
        %v2427 = vsel %vm635, 1.0, 0.72314453
        %v2428 = vsel %vm636, 1.0, 0.72314453
        %v2429 = vsel %vm637, 1.0, 0.72314453
        %v2430 = vsel %vm638, 1.0, 0.72314453
        %v2431 = vsel %vm639, 1.0, 0.72314453
        %v2432 = vsel %vm640, 1.0, 0.72314453
        %v2433 = vsel %vm641, 1.0, 0.72314453
        %v2434 = vsel %vm642, 1.0, 0.72314453
        %v2435 = vsel %vm643, 1.0, 0.72314453
        %v2436 = vsel %vm644, 1.0, 0.72314453
        %v2437 = vsel %vm645, 1.0, 0.72314453
        %v2438 = vsel %vm646, 1.0, 0.72314453
        %v2439 = vsel %vm647, 1.0, 0.72314453
        %v2440 = vsel %vm648, 1.0, 0.72314453
        %v2441 = vsel %vm649, 1.0, 0.72314453
        %v2442 = vsel %vm650, 1.0, 0.72314453
        %v2443 = vsel %vm651, 1.0, 0.72314453
        %v2444 = vsel %vm652, 1.0, 0.72314453
        %v2445 = vsel %vm653, 1.0, 0.72314453
        %v2446 = vsel %vm654, 1.0, 0.72314453
        %v2447 = vsel %vm655, 1.0, 0.72314453
        %v2448 = vsel %vm656, 1.0, 0.72314453
        %v2449 = vsel %vm657, 1.0, 0.72314453
        %v2450 = vsel %vm658, 1.0, 0.72314453
        %v2451 = vsel %vm659, 1.0, 0.72314453
        %v2452 = vsel %vm660, 1.0, 0.72314453
        %v2453 = vsel %vm661, 1.0, 0.72314453
        %v2454 = vsel %vm662, 1.0, 0.72314453
        %v2455 = vsel %vm663, 1.0, 0.72314453
        %v2456 = vsel %vm664, 1.0, 0.72314453
        %v2457 = vsel %vm665, 1.0, 0.72314453
        %v2458 = vsel %vm666, 1.0, 0.72314453
        %v2459 = vsel %vm667, 1.0, 0.72314453
        %v2460 = vsel %vm668, 1.0, 0.72314453
        %v2461 = vsel %vm669, 1.0, 0.72314453
        %v2462 = vsel %vm670, 1.0, 0.72314453
        %v2463 = vsel %vm671, 1.0, 0.72314453
        %v2464 = vsel %vm672, 1.0, 0.72314453
        %v2465 = vsel %vm673, 1.0, 0.72314453
        %v2466 = vsel %vm674, 1.0, 0.72314453
        %v2467 = vsel %vm675, 1.0, 0.72314453
        %v2468 = vsel %vm676, 1.0, 0.72314453
        %v2469 = vsel %vm677, 1.0, 0.72314453
        %v2470 = vsel %vm678, 1.0, 0.72314453
        %v2471 = vsel %vm679, 1.0, 0.72314453
        %v2472 = vsel %vm680, 1.0, 0.72314453
        %v2473 = vsel %vm681, 1.0, 0.72314453
        %v2474 = vsel %vm682, 1.0, 0.72314453
        %v2475 = vsel %vm683, 1.0, 0.72314453
        %v2476 = vsel %vm684, 1.0, 0.72314453
        %v2477 = vsel %vm685, 1.0, 0.72314453
        %v2478 = vsel %vm686, 1.0, 0.72314453
        %v2479 = vsel %vm687, 1.0, 0.72314453
        %v2480 = vsel %vm688, 1.0, 0.72314453
        %v2481 = vsel %vm689, 1.0, 0.72314453
        %v2482 = vsel %vm690, 1.0, 0.72314453
        %v2483 = vsel %vm691, 1.0, 0.72314453
        %v2484 = vsel %vm692, 1.0, 0.72314453
        %v2485 = vsel %vm693, 1.0, 0.72314453
        %v2486 = vsel %vm694, 1.0, 0.72314453
        %v2487 = vsel %vm695, 1.0, 0.72314453
        %v2488 = vsel %vm696, 1.0, 0.72314453
        %v2489 = vsel %vm697, 1.0, 0.72314453
        %v2490 = vsel %vm698, 1.0, 0.72314453
        %v2491 = vsel %vm699, 1.0, 0.72314453
        %v2492 = vsel %vm700, 1.0, 0.72314453
        %v2493 = vsel %vm701, 1.0, 0.72314453
        %v2494 = vsel %vm702, 1.0, 0.72314453
        %v2495 = vsel %vm703, 1.0, 0.72314453
        %v2496 = vsel %vm704, 1.0, 0.72314453
        %v2497 = vsel %vm705, 1.0, 0.72314453
        %v2498 = vsel %vm706, 1.0, 0.72314453
        %v2499 = vsel %vm707, 1.0, 0.72314453
        %v2500 = vsel %vm708, 1.0, 0.72314453
        %v2501 = vsel %vm709, 1.0, 0.72314453
        %v2502 = vsel %vm710, 1.0, 0.72314453
        %v2503 = vsel %vm711, 1.0, 0.72314453
        %v2504 = vsel %vm712, 1.0, 0.72314453
        %v2505 = vsel %vm713, 1.0, 0.72314453
        %v2506 = vsel %vm714, 1.0, 0.72314453
        %v2507 = vsel %vm715, 1.0, 0.72314453
        %v2508 = vsel %vm716, 1.0, 0.72314453
        %v2509 = vsel %vm717, 1.0, 0.72314453
        %v2510 = vsel %vm718, 1.0, 0.72314453
        %v2511 = vsel %vm719, 1.0, 0.72314453
        %v2512 = vsel %vm720, 1.0, 0.72314453
        %v2513 = vsel %vm721, 1.0, 0.72314453
        %v2514 = vsel %vm722, 1.0, 0.72314453
        %v2515 = vsel %vm723, 1.0, 0.72314453
        %v2516 = vsel %vm724, 1.0, 0.72314453
        %v2517 = vsel %vm725, 1.0, 0.72314453
        %v2518 = vsel %vm726, 1.0, 0.72314453
        %v2519 = vsel %vm727, 1.0, 0.72314453
        %v2520 = vsel %vm728, 1.0, 0.72314453
        %v2521 = vsel %vm729, 1.0, 0.72314453
        %v2522 = vsel %vm730, 1.0, 0.72314453
        %v2523 = vsel %vm731, 1.0, 0.72314453
        %v2524 = vsel %vm732, 1.0, 0.72314453
        %v2525 = vsel %vm733, 1.0, 0.72314453
        %v2526 = vsel %vm734, 1.0, 0.72314453
        %v2527 = vsel %vm735, 1.0, 0.72314453
        %v2528 = vsel %vm736, 1.0, 0.72314453
        %v2529 = vsel %vm737, 1.0, 0.72314453
        %v2530 = vsel %vm738, 1.0, 0.72314453
        %v2531 = vsel %vm739, 1.0, 0.72314453
        %v2532 = vsel %vm740, 1.0, 0.72314453
        %v2533 = vsel %vm741, 1.0, 0.72314453
        %v2534 = vsel %vm870, %v1638, %v1510
        %v2535 = vsel %vm871, %v1639, %v1511
        %v2536 = vsel %vm872, %v1640, %v1512
        %v2537 = vsel %vm873, %v1641, %v1513
        %v2538 = vsel %vm874, %v1642, %v1514
        %v2539 = vsel %vm875, %v1643, %v1515
        %v2540 = vsel %vm876, %v1644, %v1516
        %v2541 = vsel %vm877, %v1645, %v1517
        %v2542 = vsel %vm878, %v1646, %v1518
        %v2543 = vsel %vm879, %v1647, %v1519
        %v2544 = vsel %vm880, %v1648, %v1520
        %v2545 = vsel %vm881, %v1649, %v1521
        %v2546 = vsel %vm882, %v1650, %v1522
        %v2547 = vsel %vm883, %v1651, %v1523
        %v2548 = vsel %vm884, %v1652, %v1524
        %v2549 = vsel %vm885, %v1653, %v1525
        %v2550 = vsel %vm886, %v1654, %v1526
        %v2551 = vsel %vm887, %v1655, %v1527
        %v2552 = vsel %vm888, %v1656, %v1528
        %v2553 = vsel %vm889, %v1657, %v1529
        %v2554 = vsel %vm890, %v1658, %v1530
        %v2555 = vsel %vm891, %v1659, %v1531
        %v2556 = vsel %vm892, %v1660, %v1532
        %v2557 = vsel %vm893, %v1661, %v1533
        %v2558 = vsel %vm894, %v1662, %v1534
        %v2559 = vsel %vm895, %v1663, %v1535
        %v2560 = vsel %vm896, %v1664, %v1536
        %v2561 = vsel %vm897, %v1665, %v1537
        %v2562 = vsel %vm898, %v1666, %v1538
        %v2563 = vsel %vm899, %v1667, %v1539
        %v2564 = vsel %vm900, %v1668, %v1540
        %v2565 = vsel %vm901, %v1669, %v1541
        %v2566 = vsel %vm902, %v1670, %v1542
        %v2567 = vsel %vm903, %v1671, %v1543
        %v2568 = vsel %vm904, %v1672, %v1544
        %v2569 = vsel %vm905, %v1673, %v1545
        %v2570 = vsel %vm906, %v1674, %v1546
        %v2571 = vsel %vm907, %v1675, %v1547
        %v2572 = vsel %vm908, %v1676, %v1548
        %v2573 = vsel %vm909, %v1677, %v1549
        %v2574 = vsel %vm910, %v1678, %v1550
        %v2575 = vsel %vm911, %v1679, %v1551
        %v2576 = vsel %vm912, %v1680, %v1552
        %v2577 = vsel %vm913, %v1681, %v1553
        %v2578 = vsel %vm914, %v1682, %v1554
        %v2579 = vsel %vm915, %v1683, %v1555
        %v2580 = vsel %vm916, %v1684, %v1556
        %v2581 = vsel %vm917, %v1685, %v1557
        %v2582 = vsel %vm918, %v1686, %v1558
        %v2583 = vsel %vm919, %v1687, %v1559
        %v2584 = vsel %vm920, %v1688, %v1560
        %v2585 = vsel %vm921, %v1689, %v1561
        %v2586 = vsel %vm922, %v1690, %v1562
        %v2587 = vsel %vm923, %v1691, %v1563
        %v2588 = vsel %vm924, %v1692, %v1564
        %v2589 = vsel %vm925, %v1693, %v1565
        %v2590 = vsel %vm926, %v1694, %v1566
        %v2591 = vsel %vm927, %v1695, %v1567
        %v2592 = vsel %vm928, %v1696, %v1568
        %v2593 = vsel %vm929, %v1697, %v1569
        %v2594 = vsel %vm930, %v1698, %v1570
        %v2595 = vsel %vm931, %v1699, %v1571
        %v2596 = vsel %vm932, %v1700, %v1572
        %v2597 = vsel %vm933, %v1701, %v1573
        %v2598 = vsel %vm934, %v1702, %v1574
        %v2599 = vsel %vm935, %v1703, %v1575
        %v2600 = vsel %vm936, %v1704, %v1576
        %v2601 = vsel %vm937, %v1705, %v1577
        %v2602 = vsel %vm938, %v1706, %v1578
        %v2603 = vsel %vm939, %v1707, %v1579
        %v2604 = vsel %vm940, %v1708, %v1580
        %v2605 = vsel %vm941, %v1709, %v1581
        %v2606 = vsel %vm942, %v1710, %v1582
        %v2607 = vsel %vm943, %v1711, %v1583
        %v2608 = vsel %vm944, %v1712, %v1584
        %v2609 = vsel %vm945, %v1713, %v1585
        %v2610 = vsel %vm946, %v1714, %v1586
        %v2611 = vsel %vm947, %v1715, %v1587
        %v2612 = vsel %vm948, %v1716, %v1588
        %v2613 = vsel %vm949, %v1717, %v1589
        %v2614 = vsel %vm950, %v1718, %v1590
        %v2615 = vsel %vm951, %v1719, %v1591
        %v2616 = vsel %vm952, %v1720, %v1592
        %v2617 = vsel %vm953, %v1721, %v1593
        %v2618 = vsel %vm954, %v1722, %v1594
        %v2619 = vsel %vm955, %v1723, %v1595
        %v2620 = vsel %vm956, %v1724, %v1596
        %v2621 = vsel %vm957, %v1725, %v1597
        %v2622 = vsel %vm958, %v1726, %v1598
        %v2623 = vsel %vm959, %v1727, %v1599
        %v2624 = vsel %vm960, %v1728, %v1600
        %v2625 = vsel %vm961, %v1729, %v1601
        %v2626 = vsel %vm962, %v1730, %v1602
        %v2627 = vsel %vm963, %v1731, %v1603
        %v2628 = vsel %vm964, %v1732, %v1604
        %v2629 = vsel %vm965, %v1733, %v1605
        %v2630 = vsel %vm966, %v1734, %v1606
        %v2631 = vsel %vm967, %v1735, %v1607
        %v2632 = vsel %vm968, %v1736, %v1608
        %v2633 = vsel %vm969, %v1737, %v1609
        %v2634 = vsel %vm970, %v1738, %v1610
        %v2635 = vsel %vm971, %v1739, %v1611
        %v2636 = vsel %vm972, %v1740, %v1612
        %v2637 = vsel %vm973, %v1741, %v1613
        %v2638 = vsel %vm974, %v1742, %v1614
        %v2639 = vsel %vm975, %v1743, %v1615
        %v2640 = vsel %vm976, %v1744, %v1616
        %v2641 = vsel %vm977, %v1745, %v1617
        %v2642 = vsel %vm978, %v1746, %v1618
        %v2643 = vsel %vm979, %v1747, %v1619
        %v2644 = vsel %vm980, %v1748, %v1620
        %v2645 = vsel %vm981, %v1749, %v1621
        %v2646 = vsel %vm982, %v1750, %v1622
        %v2647 = vsel %vm983, %v1751, %v1623
        %v2648 = vsel %vm984, %v1752, %v1624
        %v2649 = vsel %vm985, %v1753, %v1625
        %v2650 = vsel %vm986, %v1754, %v1626
        %v2651 = vsel %vm987, %v1755, %v1627
        %v2652 = vsel %vm988, %v1756, %v1628
        %v2653 = vsel %vm989, %v1757, %v1629
        %v2654 = vsel %vm990, %v1758, %v1630
        %v2655 = vsel %vm991, %v1759, %v1631
        %v2656 = vsel %vm992, %v1760, %v1632
        %v2657 = vsel %vm993, %v1761, %v1633
        %v2658 = vsel %vm994, %v1762, %v1634
        %v2659 = vsel %vm995, %v1763, %v1635
        %v2660 = vsel %vm996, %v1764, %v1636
        %v2661 = vsel %vm997, %v1765, %v1637
        %v2662 = vsel %vm870, %v1894, %v1766
        %v2663 = vsel %vm871, %v1895, %v1767
        %v2664 = vsel %vm872, %v1896, %v1768
        %v2665 = vsel %vm873, %v1897, %v1769
        %v2666 = vsel %vm874, %v1898, %v1770
        %v2667 = vsel %vm875, %v1899, %v1771
        %v2668 = vsel %vm876, %v1900, %v1772
        %v2669 = vsel %vm877, %v1901, %v1773
        %v2670 = vsel %vm878, %v1902, %v1774
        %v2671 = vsel %vm879, %v1903, %v1775
        %v2672 = vsel %vm880, %v1904, %v1776
        %v2673 = vsel %vm881, %v1905, %v1777
        %v2674 = vsel %vm882, %v1906, %v1778
        %v2675 = vsel %vm883, %v1907, %v1779
        %v2676 = vsel %vm884, %v1908, %v1780
        %v2677 = vsel %vm885, %v1909, %v1781
        %v2678 = vsel %vm886, %v1910, %v1782
        %v2679 = vsel %vm887, %v1911, %v1783
        %v2680 = vsel %vm888, %v1912, %v1784
        %v2681 = vsel %vm889, %v1913, %v1785
        %v2682 = vsel %vm890, %v1914, %v1786
        %v2683 = vsel %vm891, %v1915, %v1787
        %v2684 = vsel %vm892, %v1916, %v1788
        %v2685 = vsel %vm893, %v1917, %v1789
        %v2686 = vsel %vm894, %v1918, %v1790
        %v2687 = vsel %vm895, %v1919, %v1791
        %v2688 = vsel %vm896, %v1920, %v1792
        %v2689 = vsel %vm897, %v1921, %v1793
        %v2690 = vsel %vm898, %v1922, %v1794
        %v2691 = vsel %vm899, %v1923, %v1795
        %v2692 = vsel %vm900, %v1924, %v1796
        %v2693 = vsel %vm901, %v1925, %v1797
        %v2694 = vsel %vm902, %v1926, %v1798
        %v2695 = vsel %vm903, %v1927, %v1799
        %v2696 = vsel %vm904, %v1928, %v1800
        %v2697 = vsel %vm905, %v1929, %v1801
        %v2698 = vsel %vm906, %v1930, %v1802
        %v2699 = vsel %vm907, %v1931, %v1803
        %v2700 = vsel %vm908, %v1932, %v1804
        %v2701 = vsel %vm909, %v1933, %v1805
        %v2702 = vsel %vm910, %v1934, %v1806
        %v2703 = vsel %vm911, %v1935, %v1807
        %v2704 = vsel %vm912, %v1936, %v1808
        %v2705 = vsel %vm913, %v1937, %v1809
        %v2706 = vsel %vm914, %v1938, %v1810
        %v2707 = vsel %vm915, %v1939, %v1811
        %v2708 = vsel %vm916, %v1940, %v1812
        %v2709 = vsel %vm917, %v1941, %v1813
        %v2710 = vsel %vm918, %v1942, %v1814
        %v2711 = vsel %vm919, %v1943, %v1815
        %v2712 = vsel %vm920, %v1944, %v1816
        %v2713 = vsel %vm921, %v1945, %v1817
        %v2714 = vsel %vm922, %v1946, %v1818
        %v2715 = vsel %vm923, %v1947, %v1819
        %v2716 = vsel %vm924, %v1948, %v1820
        %v2717 = vsel %vm925, %v1949, %v1821
        %v2718 = vsel %vm926, %v1950, %v1822
        %v2719 = vsel %vm927, %v1951, %v1823
        %v2720 = vsel %vm928, %v1952, %v1824
        %v2721 = vsel %vm929, %v1953, %v1825
        %v2722 = vsel %vm930, %v1954, %v1826
        %v2723 = vsel %vm931, %v1955, %v1827
        %v2724 = vsel %vm932, %v1956, %v1828
        %v2725 = vsel %vm933, %v1957, %v1829
        %v2726 = vsel %vm934, %v1958, %v1830
        %v2727 = vsel %vm935, %v1959, %v1831
        %v2728 = vsel %vm936, %v1960, %v1832
        %v2729 = vsel %vm937, %v1961, %v1833
        %v2730 = vsel %vm938, %v1962, %v1834
        %v2731 = vsel %vm939, %v1963, %v1835
        %v2732 = vsel %vm940, %v1964, %v1836
        %v2733 = vsel %vm941, %v1965, %v1837
        %v2734 = vsel %vm942, %v1966, %v1838
        %v2735 = vsel %vm943, %v1967, %v1839
        %v2736 = vsel %vm944, %v1968, %v1840
        %v2737 = vsel %vm945, %v1969, %v1841
        %v2738 = vsel %vm946, %v1970, %v1842
        %v2739 = vsel %vm947, %v1971, %v1843
        %v2740 = vsel %vm948, %v1972, %v1844
        %v2741 = vsel %vm949, %v1973, %v1845
        %v2742 = vsel %vm950, %v1974, %v1846
        %v2743 = vsel %vm951, %v1975, %v1847
        %v2744 = vsel %vm952, %v1976, %v1848
        %v2745 = vsel %vm953, %v1977, %v1849
        %v2746 = vsel %vm954, %v1978, %v1850
        %v2747 = vsel %vm955, %v1979, %v1851
        %v2748 = vsel %vm956, %v1980, %v1852
        %v2749 = vsel %vm957, %v1981, %v1853
        %v2750 = vsel %vm958, %v1982, %v1854
        %v2751 = vsel %vm959, %v1983, %v1855
        %v2752 = vsel %vm960, %v1984, %v1856
        %v2753 = vsel %vm961, %v1985, %v1857
        %v2754 = vsel %vm962, %v1986, %v1858
        %v2755 = vsel %vm963, %v1987, %v1859
        %v2756 = vsel %vm964, %v1988, %v1860
        %v2757 = vsel %vm965, %v1989, %v1861
        %v2758 = vsel %vm966, %v1990, %v1862
        %v2759 = vsel %vm967, %v1991, %v1863
        %v2760 = vsel %vm968, %v1992, %v1864
        %v2761 = vsel %vm969, %v1993, %v1865
        %v2762 = vsel %vm970, %v1994, %v1866
        %v2763 = vsel %vm971, %v1995, %v1867
        %v2764 = vsel %vm972, %v1996, %v1868
        %v2765 = vsel %vm973, %v1997, %v1869
        %v2766 = vsel %vm974, %v1998, %v1870
        %v2767 = vsel %vm975, %v1999, %v1871
        %v2768 = vsel %vm976, %v2000, %v1872
        %v2769 = vsel %vm977, %v2001, %v1873
        %v2770 = vsel %vm978, %v2002, %v1874
        %v2771 = vsel %vm979, %v2003, %v1875
        %v2772 = vsel %vm980, %v2004, %v1876
        %v2773 = vsel %vm981, %v2005, %v1877
        %v2774 = vsel %vm982, %v2006, %v1878
        %v2775 = vsel %vm983, %v2007, %v1879
        %v2776 = vsel %vm984, %v2008, %v1880
        %v2777 = vsel %vm985, %v2009, %v1881
        %v2778 = vsel %vm986, %v2010, %v1882
        %v2779 = vsel %vm987, %v2011, %v1883
        %v2780 = vsel %vm988, %v2012, %v1884
        %v2781 = vsel %vm989, %v2013, %v1885
        %v2782 = vsel %vm990, %v2014, %v1886
        %v2783 = vsel %vm991, %v2015, %v1887
        %v2784 = vsel %vm992, %v2016, %v1888
        %v2785 = vsel %vm993, %v2017, %v1889
        %v2786 = vsel %vm994, %v2018, %v1890
        %v2787 = vsel %vm995, %v2019, %v1891
        %v2788 = vsel %vm996, %v2020, %v1892
        %v2789 = vsel %vm997, %v2021, %v1893
        %v2790 = vsel %vm870, %v2150, %v2022
        %v2791 = vsel %vm871, %v2151, %v2023
        %v2792 = vsel %vm872, %v2152, %v2024
        %v2793 = vsel %vm873, %v2153, %v2025
        %v2794 = vsel %vm874, %v2154, %v2026
        %v2795 = vsel %vm875, %v2155, %v2027
        %v2796 = vsel %vm876, %v2156, %v2028
        %v2797 = vsel %vm877, %v2157, %v2029
        %v2798 = vsel %vm878, %v2158, %v2030
        %v2799 = vsel %vm879, %v2159, %v2031
        %v2800 = vsel %vm880, %v2160, %v2032
        %v2801 = vsel %vm881, %v2161, %v2033
        %v2802 = vsel %vm882, %v2162, %v2034
        %v2803 = vsel %vm883, %v2163, %v2035
        %v2804 = vsel %vm884, %v2164, %v2036
        %v2805 = vsel %vm885, %v2165, %v2037
        %v2806 = vsel %vm886, %v2166, %v2038
        %v2807 = vsel %vm887, %v2167, %v2039
        %v2808 = vsel %vm888, %v2168, %v2040
        %v2809 = vsel %vm889, %v2169, %v2041
        %v2810 = vsel %vm890, %v2170, %v2042
        %v2811 = vsel %vm891, %v2171, %v2043
        %v2812 = vsel %vm892, %v2172, %v2044
        %v2813 = vsel %vm893, %v2173, %v2045
        %v2814 = vsel %vm894, %v2174, %v2046
        %v2815 = vsel %vm895, %v2175, %v2047
        %v2816 = vsel %vm896, %v2176, %v2048
        %v2817 = vsel %vm897, %v2177, %v2049
        %v2818 = vsel %vm898, %v2178, %v2050
        %v2819 = vsel %vm899, %v2179, %v2051
        %v2820 = vsel %vm900, %v2180, %v2052
        %v2821 = vsel %vm901, %v2181, %v2053
        %v2822 = vsel %vm902, %v2182, %v2054
        %v2823 = vsel %vm903, %v2183, %v2055
        %v2824 = vsel %vm904, %v2184, %v2056
        %v2825 = vsel %vm905, %v2185, %v2057
        %v2826 = vsel %vm906, %v2186, %v2058
        %v2827 = vsel %vm907, %v2187, %v2059
        %v2828 = vsel %vm908, %v2188, %v2060
        %v2829 = vsel %vm909, %v2189, %v2061
        %v2830 = vsel %vm910, %v2190, %v2062
        %v2831 = vsel %vm911, %v2191, %v2063
        %v2832 = vsel %vm912, %v2192, %v2064
        %v2833 = vsel %vm913, %v2193, %v2065
        %v2834 = vsel %vm914, %v2194, %v2066
        %v2835 = vsel %vm915, %v2195, %v2067
        %v2836 = vsel %vm916, %v2196, %v2068
        %v2837 = vsel %vm917, %v2197, %v2069
        %v2838 = vsel %vm918, %v2198, %v2070
        %v2839 = vsel %vm919, %v2199, %v2071
        %v2840 = vsel %vm920, %v2200, %v2072
        %v2841 = vsel %vm921, %v2201, %v2073
        %v2842 = vsel %vm922, %v2202, %v2074
        %v2843 = vsel %vm923, %v2203, %v2075
        %v2844 = vsel %vm924, %v2204, %v2076
        %v2845 = vsel %vm925, %v2205, %v2077
        %v2846 = vsel %vm926, %v2206, %v2078
        %v2847 = vsel %vm927, %v2207, %v2079
        %v2848 = vsel %vm928, %v2208, %v2080
        %v2849 = vsel %vm929, %v2209, %v2081
        %v2850 = vsel %vm930, %v2210, %v2082
        %v2851 = vsel %vm931, %v2211, %v2083
        %v2852 = vsel %vm932, %v2212, %v2084
        %v2853 = vsel %vm933, %v2213, %v2085
        %v2854 = vsel %vm934, %v2214, %v2086
        %v2855 = vsel %vm935, %v2215, %v2087
        %v2856 = vsel %vm936, %v2216, %v2088
        %v2857 = vsel %vm937, %v2217, %v2089
        %v2858 = vsel %vm938, %v2218, %v2090
        %v2859 = vsel %vm939, %v2219, %v2091
        %v2860 = vsel %vm940, %v2220, %v2092
        %v2861 = vsel %vm941, %v2221, %v2093
        %v2862 = vsel %vm942, %v2222, %v2094
        %v2863 = vsel %vm943, %v2223, %v2095
        %v2864 = vsel %vm944, %v2224, %v2096
        %v2865 = vsel %vm945, %v2225, %v2097
        %v2866 = vsel %vm946, %v2226, %v2098
        %v2867 = vsel %vm947, %v2227, %v2099
        %v2868 = vsel %vm948, %v2228, %v2100
        %v2869 = vsel %vm949, %v2229, %v2101
        %v2870 = vsel %vm950, %v2230, %v2102
        %v2871 = vsel %vm951, %v2231, %v2103
        %v2872 = vsel %vm952, %v2232, %v2104
        %v2873 = vsel %vm953, %v2233, %v2105
        %v2874 = vsel %vm954, %v2234, %v2106
        %v2875 = vsel %vm955, %v2235, %v2107
        %v2876 = vsel %vm956, %v2236, %v2108
        %v2877 = vsel %vm957, %v2237, %v2109
        %v2878 = vsel %vm958, %v2238, %v2110
        %v2879 = vsel %vm959, %v2239, %v2111
        %v2880 = vsel %vm960, %v2240, %v2112
        %v2881 = vsel %vm961, %v2241, %v2113
        %v2882 = vsel %vm962, %v2242, %v2114
        %v2883 = vsel %vm963, %v2243, %v2115
        %v2884 = vsel %vm964, %v2244, %v2116
        %v2885 = vsel %vm965, %v2245, %v2117
        %v2886 = vsel %vm966, %v2246, %v2118
        %v2887 = vsel %vm967, %v2247, %v2119
        %v2888 = vsel %vm968, %v2248, %v2120
        %v2889 = vsel %vm969, %v2249, %v2121
        %v2890 = vsel %vm970, %v2250, %v2122
        %v2891 = vsel %vm971, %v2251, %v2123
        %v2892 = vsel %vm972, %v2252, %v2124
        %v2893 = vsel %vm973, %v2253, %v2125
        %v2894 = vsel %vm974, %v2254, %v2126
        %v2895 = vsel %vm975, %v2255, %v2127
        %v2896 = vsel %vm976, %v2256, %v2128
        %v2897 = vsel %vm977, %v2257, %v2129
        %v2898 = vsel %vm978, %v2258, %v2130
        %v2899 = vsel %vm979, %v2259, %v2131
        %v2900 = vsel %vm980, %v2260, %v2132
        %v2901 = vsel %vm981, %v2261, %v2133
        %v2902 = vsel %vm982, %v2262, %v2134
        %v2903 = vsel %vm983, %v2263, %v2135
        %v2904 = vsel %vm984, %v2264, %v2136
        %v2905 = vsel %vm985, %v2265, %v2137
        %v2906 = vsel %vm986, %v2266, %v2138
        %v2907 = vsel %vm987, %v2267, %v2139
        %v2908 = vsel %vm988, %v2268, %v2140
        %v2909 = vsel %vm989, %v2269, %v2141
        %v2910 = vsel %vm990, %v2270, %v2142
        %v2911 = vsel %vm991, %v2271, %v2143
        %v2912 = vsel %vm992, %v2272, %v2144
        %v2913 = vsel %vm993, %v2273, %v2145
        %v2914 = vsel %vm994, %v2274, %v2146
        %v2915 = vsel %vm995, %v2275, %v2147
        %v2916 = vsel %vm996, %v2276, %v2148
        %v2917 = vsel %vm997, %v2277, %v2149
        %v2918 = vsel %vm870, %v2406, %v2278
        %v2919 = vsel %vm871, %v2407, %v2279
        %v2920 = vsel %vm872, %v2408, %v2280
        %v2921 = vsel %vm873, %v2409, %v2281
        %v2922 = vsel %vm874, %v2410, %v2282
        %v2923 = vsel %vm875, %v2411, %v2283
        %v2924 = vsel %vm876, %v2412, %v2284
        %v2925 = vsel %vm877, %v2413, %v2285
        %v2926 = vsel %vm878, %v2414, %v2286
        %v2927 = vsel %vm879, %v2415, %v2287
        %v2928 = vsel %vm880, %v2416, %v2288
        %v2929 = vsel %vm881, %v2417, %v2289
        %v2930 = vsel %vm882, %v2418, %v2290
        %v2931 = vsel %vm883, %v2419, %v2291
        %v2932 = vsel %vm884, %v2420, %v2292
        %v2933 = vsel %vm885, %v2421, %v2293
        %v2934 = vsel %vm886, %v2422, %v2294
        %v2935 = vsel %vm887, %v2423, %v2295
        %v2936 = vsel %vm888, %v2424, %v2296
        %v2937 = vsel %vm889, %v2425, %v2297
        %v2938 = vsel %vm890, %v2426, %v2298
        %v2939 = vsel %vm891, %v2427, %v2299
        %v2940 = vsel %vm892, %v2428, %v2300
        %v2941 = vsel %vm893, %v2429, %v2301
        %v2942 = vsel %vm894, %v2430, %v2302
        %v2943 = vsel %vm895, %v2431, %v2303
        %v2944 = vsel %vm896, %v2432, %v2304
        %v2945 = vsel %vm897, %v2433, %v2305
        %v2946 = vsel %vm898, %v2434, %v2306
        %v2947 = vsel %vm899, %v2435, %v2307
        %v2948 = vsel %vm900, %v2436, %v2308
        %v2949 = vsel %vm901, %v2437, %v2309
        %v2950 = vsel %vm902, %v2438, %v2310
        %v2951 = vsel %vm903, %v2439, %v2311
        %v2952 = vsel %vm904, %v2440, %v2312
        %v2953 = vsel %vm905, %v2441, %v2313
        %v2954 = vsel %vm906, %v2442, %v2314
        %v2955 = vsel %vm907, %v2443, %v2315
        %v2956 = vsel %vm908, %v2444, %v2316
        %v2957 = vsel %vm909, %v2445, %v2317
        %v2958 = vsel %vm910, %v2446, %v2318
        %v2959 = vsel %vm911, %v2447, %v2319
        %v2960 = vsel %vm912, %v2448, %v2320
        %v2961 = vsel %vm913, %v2449, %v2321
        %v2962 = vsel %vm914, %v2450, %v2322
        %v2963 = vsel %vm915, %v2451, %v2323
        %v2964 = vsel %vm916, %v2452, %v2324
        %v2965 = vsel %vm917, %v2453, %v2325
        %v2966 = vsel %vm918, %v2454, %v2326
        %v2967 = vsel %vm919, %v2455, %v2327
        %v2968 = vsel %vm920, %v2456, %v2328
        %v2969 = vsel %vm921, %v2457, %v2329
        %v2970 = vsel %vm922, %v2458, %v2330
        %v2971 = vsel %vm923, %v2459, %v2331
        %v2972 = vsel %vm924, %v2460, %v2332
        %v2973 = vsel %vm925, %v2461, %v2333
        %v2974 = vsel %vm926, %v2462, %v2334
        %v2975 = vsel %vm927, %v2463, %v2335
        %v2976 = vsel %vm928, %v2464, %v2336
        %v2977 = vsel %vm929, %v2465, %v2337
        %v2978 = vsel %vm930, %v2466, %v2338
        %v2979 = vsel %vm931, %v2467, %v2339
        %v2980 = vsel %vm932, %v2468, %v2340
        %v2981 = vsel %vm933, %v2469, %v2341
        %v2982 = vsel %vm934, %v2470, %v2342
        %v2983 = vsel %vm935, %v2471, %v2343
        %v2984 = vsel %vm936, %v2472, %v2344
        %v2985 = vsel %vm937, %v2473, %v2345
        %v2986 = vsel %vm938, %v2474, %v2346
        %v2987 = vsel %vm939, %v2475, %v2347
        %v2988 = vsel %vm940, %v2476, %v2348
        %v2989 = vsel %vm941, %v2477, %v2349
        %v2990 = vsel %vm942, %v2478, %v2350
        %v2991 = vsel %vm943, %v2479, %v2351
        %v2992 = vsel %vm944, %v2480, %v2352
        %v2993 = vsel %vm945, %v2481, %v2353
        %v2994 = vsel %vm946, %v2482, %v2354
        %v2995 = vsel %vm947, %v2483, %v2355
        %v2996 = vsel %vm948, %v2484, %v2356
        %v2997 = vsel %vm949, %v2485, %v2357
        %v2998 = vsel %vm950, %v2486, %v2358
        %v2999 = vsel %vm951, %v2487, %v2359
        %v3000 = vsel %vm952, %v2488, %v2360
        %v3001 = vsel %vm953, %v2489, %v2361
        %v3002 = vsel %vm954, %v2490, %v2362
        %v3003 = vsel %vm955, %v2491, %v2363
        %v3004 = vsel %vm956, %v2492, %v2364
        %v3005 = vsel %vm957, %v2493, %v2365
        %v3006 = vsel %vm958, %v2494, %v2366
        %v3007 = vsel %vm959, %v2495, %v2367
        %v3008 = vsel %vm960, %v2496, %v2368
        %v3009 = vsel %vm961, %v2497, %v2369
        %v3010 = vsel %vm962, %v2498, %v2370
        %v3011 = vsel %vm963, %v2499, %v2371
        %v3012 = vsel %vm964, %v2500, %v2372
        %v3013 = vsel %vm965, %v2501, %v2373
        %v3014 = vsel %vm966, %v2502, %v2374
        %v3015 = vsel %vm967, %v2503, %v2375
        %v3016 = vsel %vm968, %v2504, %v2376
        %v3017 = vsel %vm969, %v2505, %v2377
        %v3018 = vsel %vm970, %v2506, %v2378
        %v3019 = vsel %vm971, %v2507, %v2379
        %v3020 = vsel %vm972, %v2508, %v2380
        %v3021 = vsel %vm973, %v2509, %v2381
        %v3022 = vsel %vm974, %v2510, %v2382
        %v3023 = vsel %vm975, %v2511, %v2383
        %v3024 = vsel %vm976, %v2512, %v2384
        %v3025 = vsel %vm977, %v2513, %v2385
        %v3026 = vsel %vm978, %v2514, %v2386
        %v3027 = vsel %vm979, %v2515, %v2387
        %v3028 = vsel %vm980, %v2516, %v2388
        %v3029 = vsel %vm981, %v2517, %v2389
        %v3030 = vsel %vm982, %v2518, %v2390
        %v3031 = vsel %vm983, %v2519, %v2391
        %v3032 = vsel %vm984, %v2520, %v2392
        %v3033 = vsel %vm985, %v2521, %v2393
        %v3034 = vsel %vm986, %v2522, %v2394
        %v3035 = vsel %vm987, %v2523, %v2395
        %v3036 = vsel %vm988, %v2524, %v2396
        %v3037 = vsel %vm989, %v2525, %v2397
        %v3038 = vsel %vm990, %v2526, %v2398
        %v3039 = vsel %vm991, %v2527, %v2399
        %v3040 = vsel %vm992, %v2528, %v2400
        %v3041 = vsel %vm993, %v2529, %v2401
        %v3042 = vsel %vm994, %v2530, %v2402
        %v3043 = vsel %vm995, %v2531, %v2403
        %v3044 = vsel %vm996, %v2532, %v2404
        %v3045 = vsel %vm997, %v2533, %v2405
        %v3046 = vsel %vm1126, %v2662, %v2534
        %v3047 = vsel %vm1127, %v2663, %v2535
        %v3048 = vsel %vm1128, %v2664, %v2536
        %v3049 = vsel %vm1129, %v2665, %v2537
        %v3050 = vsel %vm1130, %v2666, %v2538
        %v3051 = vsel %vm1131, %v2667, %v2539
        %v3052 = vsel %vm1132, %v2668, %v2540
        %v3053 = vsel %vm1133, %v2669, %v2541
        %v3054 = vsel %vm1134, %v2670, %v2542
        %v3055 = vsel %vm1135, %v2671, %v2543
        %v3056 = vsel %vm1136, %v2672, %v2544
        %v3057 = vsel %vm1137, %v2673, %v2545
        %v3058 = vsel %vm1138, %v2674, %v2546
        %v3059 = vsel %vm1139, %v2675, %v2547
        %v3060 = vsel %vm1140, %v2676, %v2548
        %v3061 = vsel %vm1141, %v2677, %v2549
        %v3062 = vsel %vm1142, %v2678, %v2550
        %v3063 = vsel %vm1143, %v2679, %v2551
        %v3064 = vsel %vm1144, %v2680, %v2552
        %v3065 = vsel %vm1145, %v2681, %v2553
        %v3066 = vsel %vm1146, %v2682, %v2554
        %v3067 = vsel %vm1147, %v2683, %v2555
        %v3068 = vsel %vm1148, %v2684, %v2556
        %v3069 = vsel %vm1149, %v2685, %v2557
        %v3070 = vsel %vm1150, %v2686, %v2558
        %v3071 = vsel %vm1151, %v2687, %v2559
        %v3072 = vsel %vm1152, %v2688, %v2560
        %v3073 = vsel %vm1153, %v2689, %v2561
        %v3074 = vsel %vm1154, %v2690, %v2562
        %v3075 = vsel %vm1155, %v2691, %v2563
        %v3076 = vsel %vm1156, %v2692, %v2564
        %v3077 = vsel %vm1157, %v2693, %v2565
        %v3078 = vsel %vm1158, %v2694, %v2566
        %v3079 = vsel %vm1159, %v2695, %v2567
        %v3080 = vsel %vm1160, %v2696, %v2568
        %v3081 = vsel %vm1161, %v2697, %v2569
        %v3082 = vsel %vm1162, %v2698, %v2570
        %v3083 = vsel %vm1163, %v2699, %v2571
        %v3084 = vsel %vm1164, %v2700, %v2572
        %v3085 = vsel %vm1165, %v2701, %v2573
        %v3086 = vsel %vm1166, %v2702, %v2574
        %v3087 = vsel %vm1167, %v2703, %v2575
        %v3088 = vsel %vm1168, %v2704, %v2576
        %v3089 = vsel %vm1169, %v2705, %v2577
        %v3090 = vsel %vm1170, %v2706, %v2578
        %v3091 = vsel %vm1171, %v2707, %v2579
        %v3092 = vsel %vm1172, %v2708, %v2580
        %v3093 = vsel %vm1173, %v2709, %v2581
        %v3094 = vsel %vm1174, %v2710, %v2582
        %v3095 = vsel %vm1175, %v2711, %v2583
        %v3096 = vsel %vm1176, %v2712, %v2584
        %v3097 = vsel %vm1177, %v2713, %v2585
        %v3098 = vsel %vm1178, %v2714, %v2586
        %v3099 = vsel %vm1179, %v2715, %v2587
        %v3100 = vsel %vm1180, %v2716, %v2588
        %v3101 = vsel %vm1181, %v2717, %v2589
        %v3102 = vsel %vm1182, %v2718, %v2590
        %v3103 = vsel %vm1183, %v2719, %v2591
        %v3104 = vsel %vm1184, %v2720, %v2592
        %v3105 = vsel %vm1185, %v2721, %v2593
        %v3106 = vsel %vm1186, %v2722, %v2594
        %v3107 = vsel %vm1187, %v2723, %v2595
        %v3108 = vsel %vm1188, %v2724, %v2596
        %v3109 = vsel %vm1189, %v2725, %v2597
        %v3110 = vsel %vm1190, %v2726, %v2598
        %v3111 = vsel %vm1191, %v2727, %v2599
        %v3112 = vsel %vm1192, %v2728, %v2600
        %v3113 = vsel %vm1193, %v2729, %v2601
        %v3114 = vsel %vm1194, %v2730, %v2602
        %v3115 = vsel %vm1195, %v2731, %v2603
        %v3116 = vsel %vm1196, %v2732, %v2604
        %v3117 = vsel %vm1197, %v2733, %v2605
        %v3118 = vsel %vm1198, %v2734, %v2606
        %v3119 = vsel %vm1199, %v2735, %v2607
        %v3120 = vsel %vm1200, %v2736, %v2608
        %v3121 = vsel %vm1201, %v2737, %v2609
        %v3122 = vsel %vm1202, %v2738, %v2610
        %v3123 = vsel %vm1203, %v2739, %v2611
        %v3124 = vsel %vm1204, %v2740, %v2612
        %v3125 = vsel %vm1205, %v2741, %v2613
        %v3126 = vsel %vm1206, %v2742, %v2614
        %v3127 = vsel %vm1207, %v2743, %v2615
        %v3128 = vsel %vm1208, %v2744, %v2616
        %v3129 = vsel %vm1209, %v2745, %v2617
        %v3130 = vsel %vm1210, %v2746, %v2618
        %v3131 = vsel %vm1211, %v2747, %v2619
        %v3132 = vsel %vm1212, %v2748, %v2620
        %v3133 = vsel %vm1213, %v2749, %v2621
        %v3134 = vsel %vm1214, %v2750, %v2622
        %v3135 = vsel %vm1215, %v2751, %v2623
        %v3136 = vsel %vm1216, %v2752, %v2624
        %v3137 = vsel %vm1217, %v2753, %v2625
        %v3138 = vsel %vm1218, %v2754, %v2626
        %v3139 = vsel %vm1219, %v2755, %v2627
        %v3140 = vsel %vm1220, %v2756, %v2628
        %v3141 = vsel %vm1221, %v2757, %v2629
        %v3142 = vsel %vm1222, %v2758, %v2630
        %v3143 = vsel %vm1223, %v2759, %v2631
        %v3144 = vsel %vm1224, %v2760, %v2632
        %v3145 = vsel %vm1225, %v2761, %v2633
        %v3146 = vsel %vm1226, %v2762, %v2634
        %v3147 = vsel %vm1227, %v2763, %v2635
        %v3148 = vsel %vm1228, %v2764, %v2636
        %v3149 = vsel %vm1229, %v2765, %v2637
        %v3150 = vsel %vm1230, %v2766, %v2638
        %v3151 = vsel %vm1231, %v2767, %v2639
        %v3152 = vsel %vm1232, %v2768, %v2640
        %v3153 = vsel %vm1233, %v2769, %v2641
        %v3154 = vsel %vm1234, %v2770, %v2642
        %v3155 = vsel %vm1235, %v2771, %v2643
        %v3156 = vsel %vm1236, %v2772, %v2644
        %v3157 = vsel %vm1237, %v2773, %v2645
        %v3158 = vsel %vm1238, %v2774, %v2646
        %v3159 = vsel %vm1239, %v2775, %v2647
        %v3160 = vsel %vm1240, %v2776, %v2648
        %v3161 = vsel %vm1241, %v2777, %v2649
        %v3162 = vsel %vm1242, %v2778, %v2650
        %v3163 = vsel %vm1243, %v2779, %v2651
        %v3164 = vsel %vm1244, %v2780, %v2652
        %v3165 = vsel %vm1245, %v2781, %v2653
        %v3166 = vsel %vm1246, %v2782, %v2654
        %v3167 = vsel %vm1247, %v2783, %v2655
        %v3168 = vsel %vm1248, %v2784, %v2656
        %v3169 = vsel %vm1249, %v2785, %v2657
        %v3170 = vsel %vm1250, %v2786, %v2658
        %v3171 = vsel %vm1251, %v2787, %v2659
        %v3172 = vsel %vm1252, %v2788, %v2660
        %v3173 = vsel %vm1253, %v2789, %v2661
        %v3174 = vsel %vm1126, %v2918, %v2790
        %v3175 = vsel %vm1127, %v2919, %v2791
        %v3176 = vsel %vm1128, %v2920, %v2792
        %v3177 = vsel %vm1129, %v2921, %v2793
        %v3178 = vsel %vm1130, %v2922, %v2794
        %v3179 = vsel %vm1131, %v2923, %v2795
        %v3180 = vsel %vm1132, %v2924, %v2796
        %v3181 = vsel %vm1133, %v2925, %v2797
        %v3182 = vsel %vm1134, %v2926, %v2798
        %v3183 = vsel %vm1135, %v2927, %v2799
        %v3184 = vsel %vm1136, %v2928, %v2800
        %v3185 = vsel %vm1137, %v2929, %v2801
        %v3186 = vsel %vm1138, %v2930, %v2802
        %v3187 = vsel %vm1139, %v2931, %v2803
        %v3188 = vsel %vm1140, %v2932, %v2804
        %v3189 = vsel %vm1141, %v2933, %v2805
        %v3190 = vsel %vm1142, %v2934, %v2806
        %v3191 = vsel %vm1143, %v2935, %v2807
        %v3192 = vsel %vm1144, %v2936, %v2808
        %v3193 = vsel %vm1145, %v2937, %v2809
        %v3194 = vsel %vm1146, %v2938, %v2810
        %v3195 = vsel %vm1147, %v2939, %v2811
        %v3196 = vsel %vm1148, %v2940, %v2812
        %v3197 = vsel %vm1149, %v2941, %v2813
        %v3198 = vsel %vm1150, %v2942, %v2814
        %v3199 = vsel %vm1151, %v2943, %v2815
        %v3200 = vsel %vm1152, %v2944, %v2816
        %v3201 = vsel %vm1153, %v2945, %v2817
        %v3202 = vsel %vm1154, %v2946, %v2818
        %v3203 = vsel %vm1155, %v2947, %v2819
        %v3204 = vsel %vm1156, %v2948, %v2820
        %v3205 = vsel %vm1157, %v2949, %v2821
        %v3206 = vsel %vm1158, %v2950, %v2822
        %v3207 = vsel %vm1159, %v2951, %v2823
        %v3208 = vsel %vm1160, %v2952, %v2824
        %v3209 = vsel %vm1161, %v2953, %v2825
        %v3210 = vsel %vm1162, %v2954, %v2826
        %v3211 = vsel %vm1163, %v2955, %v2827
        %v3212 = vsel %vm1164, %v2956, %v2828
        %v3213 = vsel %vm1165, %v2957, %v2829
        %v3214 = vsel %vm1166, %v2958, %v2830
        %v3215 = vsel %vm1167, %v2959, %v2831
        %v3216 = vsel %vm1168, %v2960, %v2832
        %v3217 = vsel %vm1169, %v2961, %v2833
        %v3218 = vsel %vm1170, %v2962, %v2834
        %v3219 = vsel %vm1171, %v2963, %v2835
        %v3220 = vsel %vm1172, %v2964, %v2836
        %v3221 = vsel %vm1173, %v2965, %v2837
        %v3222 = vsel %vm1174, %v2966, %v2838
        %v3223 = vsel %vm1175, %v2967, %v2839
        %v3224 = vsel %vm1176, %v2968, %v2840
        %v3225 = vsel %vm1177, %v2969, %v2841
        %v3226 = vsel %vm1178, %v2970, %v2842
        %v3227 = vsel %vm1179, %v2971, %v2843
        %v3228 = vsel %vm1180, %v2972, %v2844
        %v3229 = vsel %vm1181, %v2973, %v2845
        %v3230 = vsel %vm1182, %v2974, %v2846
        %v3231 = vsel %vm1183, %v2975, %v2847
        %v3232 = vsel %vm1184, %v2976, %v2848
        %v3233 = vsel %vm1185, %v2977, %v2849
        %v3234 = vsel %vm1186, %v2978, %v2850
        %v3235 = vsel %vm1187, %v2979, %v2851
        %v3236 = vsel %vm1188, %v2980, %v2852
        %v3237 = vsel %vm1189, %v2981, %v2853
        %v3238 = vsel %vm1190, %v2982, %v2854
        %v3239 = vsel %vm1191, %v2983, %v2855
        %v3240 = vsel %vm1192, %v2984, %v2856
        %v3241 = vsel %vm1193, %v2985, %v2857
        %v3242 = vsel %vm1194, %v2986, %v2858
        %v3243 = vsel %vm1195, %v2987, %v2859
        %v3244 = vsel %vm1196, %v2988, %v2860
        %v3245 = vsel %vm1197, %v2989, %v2861
        %v3246 = vsel %vm1198, %v2990, %v2862
        %v3247 = vsel %vm1199, %v2991, %v2863
        %v3248 = vsel %vm1200, %v2992, %v2864
        %v3249 = vsel %vm1201, %v2993, %v2865
        %v3250 = vsel %vm1202, %v2994, %v2866
        %v3251 = vsel %vm1203, %v2995, %v2867
        %v3252 = vsel %vm1204, %v2996, %v2868
        %v3253 = vsel %vm1205, %v2997, %v2869
        %v3254 = vsel %vm1206, %v2998, %v2870
        %v3255 = vsel %vm1207, %v2999, %v2871
        %v3256 = vsel %vm1208, %v3000, %v2872
        %v3257 = vsel %vm1209, %v3001, %v2873
        %v3258 = vsel %vm1210, %v3002, %v2874
        %v3259 = vsel %vm1211, %v3003, %v2875
        %v3260 = vsel %vm1212, %v3004, %v2876
        %v3261 = vsel %vm1213, %v3005, %v2877
        %v3262 = vsel %vm1214, %v3006, %v2878
        %v3263 = vsel %vm1215, %v3007, %v2879
        %v3264 = vsel %vm1216, %v3008, %v2880
        %v3265 = vsel %vm1217, %v3009, %v2881
        %v3266 = vsel %vm1218, %v3010, %v2882
        %v3267 = vsel %vm1219, %v3011, %v2883
        %v3268 = vsel %vm1220, %v3012, %v2884
        %v3269 = vsel %vm1221, %v3013, %v2885
        %v3270 = vsel %vm1222, %v3014, %v2886
        %v3271 = vsel %vm1223, %v3015, %v2887
        %v3272 = vsel %vm1224, %v3016, %v2888
        %v3273 = vsel %vm1225, %v3017, %v2889
        %v3274 = vsel %vm1226, %v3018, %v2890
        %v3275 = vsel %vm1227, %v3019, %v2891
        %v3276 = vsel %vm1228, %v3020, %v2892
        %v3277 = vsel %vm1229, %v3021, %v2893
        %v3278 = vsel %vm1230, %v3022, %v2894
        %v3279 = vsel %vm1231, %v3023, %v2895
        %v3280 = vsel %vm1232, %v3024, %v2896
        %v3281 = vsel %vm1233, %v3025, %v2897
        %v3282 = vsel %vm1234, %v3026, %v2898
        %v3283 = vsel %vm1235, %v3027, %v2899
        %v3284 = vsel %vm1236, %v3028, %v2900
        %v3285 = vsel %vm1237, %v3029, %v2901
        %v3286 = vsel %vm1238, %v3030, %v2902
        %v3287 = vsel %vm1239, %v3031, %v2903
        %v3288 = vsel %vm1240, %v3032, %v2904
        %v3289 = vsel %vm1241, %v3033, %v2905
        %v3290 = vsel %vm1242, %v3034, %v2906
        %v3291 = vsel %vm1243, %v3035, %v2907
        %v3292 = vsel %vm1244, %v3036, %v2908
        %v3293 = vsel %vm1245, %v3037, %v2909
        %v3294 = vsel %vm1246, %v3038, %v2910
        %v3295 = vsel %vm1247, %v3039, %v2911
        %v3296 = vsel %vm1248, %v3040, %v2912
        %v3297 = vsel %vm1249, %v3041, %v2913
        %v3298 = vsel %vm1250, %v3042, %v2914
        %v3299 = vsel %vm1251, %v3043, %v2915
        %v3300 = vsel %vm1252, %v3044, %v2916
        %v3301 = vsel %vm1253, %v3045, %v2917
        %v3302 = vsel %vm1382, %v3174, %v3046
        %v3303 = vsel %vm1383, %v3175, %v3047
        %v3304 = vsel %vm1384, %v3176, %v3048
        %v3305 = vsel %vm1385, %v3177, %v3049
        %v3306 = vsel %vm1386, %v3178, %v3050
        %v3307 = vsel %vm1387, %v3179, %v3051
        %v3308 = vsel %vm1388, %v3180, %v3052
        %v3309 = vsel %vm1389, %v3181, %v3053
        %v3310 = vsel %vm1390, %v3182, %v3054
        %v3311 = vsel %vm1391, %v3183, %v3055
        %v3312 = vsel %vm1392, %v3184, %v3056
        %v3313 = vsel %vm1393, %v3185, %v3057
        %v3314 = vsel %vm1394, %v3186, %v3058
        %v3315 = vsel %vm1395, %v3187, %v3059
        %v3316 = vsel %vm1396, %v3188, %v3060
        %v3317 = vsel %vm1397, %v3189, %v3061
        %v3318 = vsel %vm1398, %v3190, %v3062
        %v3319 = vsel %vm1399, %v3191, %v3063
        %v3320 = vsel %vm1400, %v3192, %v3064
        %v3321 = vsel %vm1401, %v3193, %v3065
        %v3322 = vsel %vm1402, %v3194, %v3066
        %v3323 = vsel %vm1403, %v3195, %v3067
        %v3324 = vsel %vm1404, %v3196, %v3068
        %v3325 = vsel %vm1405, %v3197, %v3069
        %v3326 = vsel %vm1406, %v3198, %v3070
        %v3327 = vsel %vm1407, %v3199, %v3071
        %v3328 = vsel %vm1408, %v3200, %v3072
        %v3329 = vsel %vm1409, %v3201, %v3073
        %v3330 = vsel %vm1410, %v3202, %v3074
        %v3331 = vsel %vm1411, %v3203, %v3075
        %v3332 = vsel %vm1412, %v3204, %v3076
        %v3333 = vsel %vm1413, %v3205, %v3077
        %v3334 = vsel %vm1414, %v3206, %v3078
        %v3335 = vsel %vm1415, %v3207, %v3079
        %v3336 = vsel %vm1416, %v3208, %v3080
        %v3337 = vsel %vm1417, %v3209, %v3081
        %v3338 = vsel %vm1418, %v3210, %v3082
        %v3339 = vsel %vm1419, %v3211, %v3083
        %v3340 = vsel %vm1420, %v3212, %v3084
        %v3341 = vsel %vm1421, %v3213, %v3085
        %v3342 = vsel %vm1422, %v3214, %v3086
        %v3343 = vsel %vm1423, %v3215, %v3087
        %v3344 = vsel %vm1424, %v3216, %v3088
        %v3345 = vsel %vm1425, %v3217, %v3089
        %v3346 = vsel %vm1426, %v3218, %v3090
        %v3347 = vsel %vm1427, %v3219, %v3091
        %v3348 = vsel %vm1428, %v3220, %v3092
        %v3349 = vsel %vm1429, %v3221, %v3093
        %v3350 = vsel %vm1430, %v3222, %v3094
        %v3351 = vsel %vm1431, %v3223, %v3095
        %v3352 = vsel %vm1432, %v3224, %v3096
        %v3353 = vsel %vm1433, %v3225, %v3097
        %v3354 = vsel %vm1434, %v3226, %v3098
        %v3355 = vsel %vm1435, %v3227, %v3099
        %v3356 = vsel %vm1436, %v3228, %v3100
        %v3357 = vsel %vm1437, %v3229, %v3101
        %v3358 = vsel %vm1438, %v3230, %v3102
        %v3359 = vsel %vm1439, %v3231, %v3103
        %v3360 = vsel %vm1440, %v3232, %v3104
        %v3361 = vsel %vm1441, %v3233, %v3105
        %v3362 = vsel %vm1442, %v3234, %v3106
        %v3363 = vsel %vm1443, %v3235, %v3107
        %v3364 = vsel %vm1444, %v3236, %v3108
        %v3365 = vsel %vm1445, %v3237, %v3109
        %v3366 = vsel %vm1446, %v3238, %v3110
        %v3367 = vsel %vm1447, %v3239, %v3111
        %v3368 = vsel %vm1448, %v3240, %v3112
        %v3369 = vsel %vm1449, %v3241, %v3113
        %v3370 = vsel %vm1450, %v3242, %v3114
        %v3371 = vsel %vm1451, %v3243, %v3115
        %v3372 = vsel %vm1452, %v3244, %v3116
        %v3373 = vsel %vm1453, %v3245, %v3117
        %v3374 = vsel %vm1454, %v3246, %v3118
        %v3375 = vsel %vm1455, %v3247, %v3119
        %v3376 = vsel %vm1456, %v3248, %v3120
        %v3377 = vsel %vm1457, %v3249, %v3121
        %v3378 = vsel %vm1458, %v3250, %v3122
        %v3379 = vsel %vm1459, %v3251, %v3123
        %v3380 = vsel %vm1460, %v3252, %v3124
        %v3381 = vsel %vm1461, %v3253, %v3125
        %v3382 = vsel %vm1462, %v3254, %v3126
        %v3383 = vsel %vm1463, %v3255, %v3127
        %v3384 = vsel %vm1464, %v3256, %v3128
        %v3385 = vsel %vm1465, %v3257, %v3129
        %v3386 = vsel %vm1466, %v3258, %v3130
        %v3387 = vsel %vm1467, %v3259, %v3131
        %v3388 = vsel %vm1468, %v3260, %v3132
        %v3389 = vsel %vm1469, %v3261, %v3133
        %v3390 = vsel %vm1470, %v3262, %v3134
        %v3391 = vsel %vm1471, %v3263, %v3135
        %v3392 = vsel %vm1472, %v3264, %v3136
        %v3393 = vsel %vm1473, %v3265, %v3137
        %v3394 = vsel %vm1474, %v3266, %v3138
        %v3395 = vsel %vm1475, %v3267, %v3139
        %v3396 = vsel %vm1476, %v3268, %v3140
        %v3397 = vsel %vm1477, %v3269, %v3141
        %v3398 = vsel %vm1478, %v3270, %v3142
        %v3399 = vsel %vm1479, %v3271, %v3143
        %v3400 = vsel %vm1480, %v3272, %v3144
        %v3401 = vsel %vm1481, %v3273, %v3145
        %v3402 = vsel %vm1482, %v3274, %v3146
        %v3403 = vsel %vm1483, %v3275, %v3147
        %v3404 = vsel %vm1484, %v3276, %v3148
        %v3405 = vsel %vm1485, %v3277, %v3149
        %v3406 = vsel %vm1486, %v3278, %v3150
        %v3407 = vsel %vm1487, %v3279, %v3151
        %v3408 = vsel %vm1488, %v3280, %v3152
        %v3409 = vsel %vm1489, %v3281, %v3153
        %v3410 = vsel %vm1490, %v3282, %v3154
        %v3411 = vsel %vm1491, %v3283, %v3155
        %v3412 = vsel %vm1492, %v3284, %v3156
        %v3413 = vsel %vm1493, %v3285, %v3157
        %v3414 = vsel %vm1494, %v3286, %v3158
        %v3415 = vsel %vm1495, %v3287, %v3159
        %v3416 = vsel %vm1496, %v3288, %v3160
        %v3417 = vsel %vm1497, %v3289, %v3161
        %v3418 = vsel %vm1498, %v3290, %v3162
        %v3419 = vsel %vm1499, %v3291, %v3163
        %v3420 = vsel %vm1500, %v3292, %v3164
        %v3421 = vsel %vm1501, %v3293, %v3165
        %v3422 = vsel %vm1502, %v3294, %v3166
        %v3423 = vsel %vm1503, %v3295, %v3167
        %v3424 = vsel %vm1504, %v3296, %v3168
        %v3425 = vsel %vm1505, %v3297, %v3169
        %v3426 = vsel %vm1506, %v3298, %v3170
        %v3427 = vsel %vm1507, %v3299, %v3171
        %v3428 = vsel %vm1508, %v3300, %v3172
        %v3429 = vsel %vm1509, %v3301, %v3173
        %v3430 = vand.u32 %v358, 16
        %v3431 = vand.u32 %v359, 16
        %v3432 = vand.u32 %v360, 16
        %v3433 = vand.u32 %v361, 16
        %v3434 = vand.u32 %v362, 16
        %v3435 = vand.u32 %v363, 16
        %v3436 = vand.u32 %v364, 16
        %v3437 = vand.u32 %v365, 16
        %v3438 = vand.u32 %v366, 16
        %v3439 = vand.u32 %v367, 16
        %v3440 = vand.u32 %v368, 16
        %v3441 = vand.u32 %v369, 16
        %v3442 = vand.u32 %v370, 16
        %v3443 = vand.u32 %v371, 16
        %v3444 = vand.u32 %v372, 16
        %v3445 = vand.u32 %v373, 16
        %v3446 = vand.u32 %v374, 16
        %v3447 = vand.u32 %v375, 16
        %v3448 = vand.u32 %v376, 16
        %v3449 = vand.u32 %v377, 16
        %v3450 = vand.u32 %v378, 16
        %v3451 = vand.u32 %v379, 16
        %v3452 = vand.u32 %v380, 16
        %v3453 = vand.u32 %v381, 16
        %v3454 = vand.u32 %v382, 16
        %v3455 = vand.u32 %v383, 16
        %v3456 = vand.u32 %v384, 16
        %v3457 = vand.u32 %v385, 16
        %v3458 = vand.u32 %v386, 16
        %v3459 = vand.u32 %v387, 16
        %v3460 = vand.u32 %v388, 16
        %v3461 = vand.u32 %v389, 16
        %v3462 = vand.u32 %v390, 16
        %v3463 = vand.u32 %v391, 16
        %v3464 = vand.u32 %v392, 16
        %v3465 = vand.u32 %v393, 16
        %v3466 = vand.u32 %v394, 16
        %v3467 = vand.u32 %v395, 16
        %v3468 = vand.u32 %v396, 16
        %v3469 = vand.u32 %v397, 16
        %v3470 = vand.u32 %v398, 16
        %v3471 = vand.u32 %v399, 16
        %v3472 = vand.u32 %v400, 16
        %v3473 = vand.u32 %v401, 16
        %v3474 = vand.u32 %v402, 16
        %v3475 = vand.u32 %v403, 16
        %v3476 = vand.u32 %v404, 16
        %v3477 = vand.u32 %v405, 16
        %v3478 = vand.u32 %v406, 16
        %v3479 = vand.u32 %v407, 16
        %v3480 = vand.u32 %v408, 16
        %v3481 = vand.u32 %v409, 16
        %v3482 = vand.u32 %v410, 16
        %v3483 = vand.u32 %v411, 16
        %v3484 = vand.u32 %v412, 16
        %v3485 = vand.u32 %v413, 16
        %v3486 = vand.u32 %v414, 16
        %v3487 = vand.u32 %v415, 16
        %v3488 = vand.u32 %v416, 16
        %v3489 = vand.u32 %v417, 16
        %v3490 = vand.u32 %v418, 16
        %v3491 = vand.u32 %v419, 16
        %v3492 = vand.u32 %v420, 16
        %v3493 = vand.u32 %v421, 16
        %v3494 = vand.u32 %v422, 16
        %v3495 = vand.u32 %v423, 16
        %v3496 = vand.u32 %v424, 16
        %v3497 = vand.u32 %v425, 16
        %v3498 = vand.u32 %v426, 16
        %v3499 = vand.u32 %v427, 16
        %v3500 = vand.u32 %v428, 16
        %v3501 = vand.u32 %v429, 16
        %v3502 = vand.u32 %v430, 16
        %v3503 = vand.u32 %v431, 16
        %v3504 = vand.u32 %v432, 16
        %v3505 = vand.u32 %v433, 16
        %v3506 = vand.u32 %v434, 16
        %v3507 = vand.u32 %v435, 16
        %v3508 = vand.u32 %v436, 16
        %v3509 = vand.u32 %v437, 16
        %v3510 = vand.u32 %v438, 16
        %v3511 = vand.u32 %v439, 16
        %v3512 = vand.u32 %v440, 16
        %v3513 = vand.u32 %v441, 16
        %v3514 = vand.u32 %v442, 16
        %v3515 = vand.u32 %v443, 16
        %v3516 = vand.u32 %v444, 16
        %v3517 = vand.u32 %v445, 16
        %v3518 = vand.u32 %v446, 16
        %v3519 = vand.u32 %v447, 16
        %v3520 = vand.u32 %v448, 16
        %v3521 = vand.u32 %v449, 16
        %v3522 = vand.u32 %v450, 16
        %v3523 = vand.u32 %v451, 16
        %v3524 = vand.u32 %v452, 16
        %v3525 = vand.u32 %v453, 16
        %v3526 = vand.u32 %v454, 16
        %v3527 = vand.u32 %v455, 16
        %v3528 = vand.u32 %v456, 16
        %v3529 = vand.u32 %v457, 16
        %v3530 = vand.u32 %v458, 16
        %v3531 = vand.u32 %v459, 16
        %v3532 = vand.u32 %v460, 16
        %v3533 = vand.u32 %v461, 16
        %v3534 = vand.u32 %v462, 16
        %v3535 = vand.u32 %v463, 16
        %v3536 = vand.u32 %v464, 16
        %v3537 = vand.u32 %v465, 16
        %v3538 = vand.u32 %v466, 16
        %v3539 = vand.u32 %v467, 16
        %v3540 = vand.u32 %v468, 16
        %v3541 = vand.u32 %v469, 16
        %v3542 = vand.u32 %v470, 16
        %v3543 = vand.u32 %v471, 16
        %v3544 = vand.u32 %v472, 16
        %v3545 = vand.u32 %v473, 16
        %v3546 = vand.u32 %v474, 16
        %v3547 = vand.u32 %v475, 16
        %v3548 = vand.u32 %v476, 16
        %v3549 = vand.u32 %v477, 16
        %v3550 = vand.u32 %v478, 16
        %v3551 = vand.u32 %v479, 16
        %v3552 = vand.u32 %v480, 16
        %v3553 = vand.u32 %v481, 16
        %v3554 = vand.u32 %v482, 16
        %v3555 = vand.u32 %v483, 16
        %v3556 = vand.u32 %v484, 16
        %v3557 = vand.u32 %v485, 16
        %vm3558 = vcmp.ne.s32.totalorder %v3430, 0
        %vm3559 = vcmp.ne.s32.totalorder %v3431, 0
        %vm3560 = vcmp.ne.s32.totalorder %v3432, 0
        %vm3561 = vcmp.ne.s32.totalorder %v3433, 0
        %vm3562 = vcmp.ne.s32.totalorder %v3434, 0
        %vm3563 = vcmp.ne.s32.totalorder %v3435, 0
        %vm3564 = vcmp.ne.s32.totalorder %v3436, 0
        %vm3565 = vcmp.ne.s32.totalorder %v3437, 0
        %vm3566 = vcmp.ne.s32.totalorder %v3438, 0
        %vm3567 = vcmp.ne.s32.totalorder %v3439, 0
        %vm3568 = vcmp.ne.s32.totalorder %v3440, 0
        %vm3569 = vcmp.ne.s32.totalorder %v3441, 0
        %vm3570 = vcmp.ne.s32.totalorder %v3442, 0
        %vm3571 = vcmp.ne.s32.totalorder %v3443, 0
        %vm3572 = vcmp.ne.s32.totalorder %v3444, 0
        %vm3573 = vcmp.ne.s32.totalorder %v3445, 0
        %vm3574 = vcmp.ne.s32.totalorder %v3446, 0
        %vm3575 = vcmp.ne.s32.totalorder %v3447, 0
        %vm3576 = vcmp.ne.s32.totalorder %v3448, 0
        %vm3577 = vcmp.ne.s32.totalorder %v3449, 0
        %vm3578 = vcmp.ne.s32.totalorder %v3450, 0
        %vm3579 = vcmp.ne.s32.totalorder %v3451, 0
        %vm3580 = vcmp.ne.s32.totalorder %v3452, 0
        %vm3581 = vcmp.ne.s32.totalorder %v3453, 0
        %vm3582 = vcmp.ne.s32.totalorder %v3454, 0
        %vm3583 = vcmp.ne.s32.totalorder %v3455, 0
        %vm3584 = vcmp.ne.s32.totalorder %v3456, 0
        %vm3585 = vcmp.ne.s32.totalorder %v3457, 0
        %vm3586 = vcmp.ne.s32.totalorder %v3458, 0
        %vm3587 = vcmp.ne.s32.totalorder %v3459, 0
        %vm3588 = vcmp.ne.s32.totalorder %v3460, 0
        %vm3589 = vcmp.ne.s32.totalorder %v3461, 0
        %vm3590 = vcmp.ne.s32.totalorder %v3462, 0
        %vm3591 = vcmp.ne.s32.totalorder %v3463, 0
        %vm3592 = vcmp.ne.s32.totalorder %v3464, 0
        %vm3593 = vcmp.ne.s32.totalorder %v3465, 0
        %vm3594 = vcmp.ne.s32.totalorder %v3466, 0
        %vm3595 = vcmp.ne.s32.totalorder %v3467, 0
        %vm3596 = vcmp.ne.s32.totalorder %v3468, 0
        %vm3597 = vcmp.ne.s32.totalorder %v3469, 0
        %vm3598 = vcmp.ne.s32.totalorder %v3470, 0
        %vm3599 = vcmp.ne.s32.totalorder %v3471, 0
        %vm3600 = vcmp.ne.s32.totalorder %v3472, 0
        %vm3601 = vcmp.ne.s32.totalorder %v3473, 0
        %vm3602 = vcmp.ne.s32.totalorder %v3474, 0
        %vm3603 = vcmp.ne.s32.totalorder %v3475, 0
        %vm3604 = vcmp.ne.s32.totalorder %v3476, 0
        %vm3605 = vcmp.ne.s32.totalorder %v3477, 0
        %vm3606 = vcmp.ne.s32.totalorder %v3478, 0
        %vm3607 = vcmp.ne.s32.totalorder %v3479, 0
        %vm3608 = vcmp.ne.s32.totalorder %v3480, 0
        %vm3609 = vcmp.ne.s32.totalorder %v3481, 0
        %vm3610 = vcmp.ne.s32.totalorder %v3482, 0
        %vm3611 = vcmp.ne.s32.totalorder %v3483, 0
        %vm3612 = vcmp.ne.s32.totalorder %v3484, 0
        %vm3613 = vcmp.ne.s32.totalorder %v3485, 0
        %vm3614 = vcmp.ne.s32.totalorder %v3486, 0
        %vm3615 = vcmp.ne.s32.totalorder %v3487, 0
        %vm3616 = vcmp.ne.s32.totalorder %v3488, 0
        %vm3617 = vcmp.ne.s32.totalorder %v3489, 0
        %vm3618 = vcmp.ne.s32.totalorder %v3490, 0
        %vm3619 = vcmp.ne.s32.totalorder %v3491, 0
        %vm3620 = vcmp.ne.s32.totalorder %v3492, 0
        %vm3621 = vcmp.ne.s32.totalorder %v3493, 0
        %vm3622 = vcmp.ne.s32.totalorder %v3494, 0
        %vm3623 = vcmp.ne.s32.totalorder %v3495, 0
        %vm3624 = vcmp.ne.s32.totalorder %v3496, 0
        %vm3625 = vcmp.ne.s32.totalorder %v3497, 0
        %vm3626 = vcmp.ne.s32.totalorder %v3498, 0
        %vm3627 = vcmp.ne.s32.totalorder %v3499, 0
        %vm3628 = vcmp.ne.s32.totalorder %v3500, 0
        %vm3629 = vcmp.ne.s32.totalorder %v3501, 0
        %vm3630 = vcmp.ne.s32.totalorder %v3502, 0
        %vm3631 = vcmp.ne.s32.totalorder %v3503, 0
        %vm3632 = vcmp.ne.s32.totalorder %v3504, 0
        %vm3633 = vcmp.ne.s32.totalorder %v3505, 0
        %vm3634 = vcmp.ne.s32.totalorder %v3506, 0
        %vm3635 = vcmp.ne.s32.totalorder %v3507, 0
        %vm3636 = vcmp.ne.s32.totalorder %v3508, 0
        %vm3637 = vcmp.ne.s32.totalorder %v3509, 0
        %vm3638 = vcmp.ne.s32.totalorder %v3510, 0
        %vm3639 = vcmp.ne.s32.totalorder %v3511, 0
        %vm3640 = vcmp.ne.s32.totalorder %v3512, 0
        %vm3641 = vcmp.ne.s32.totalorder %v3513, 0
        %vm3642 = vcmp.ne.s32.totalorder %v3514, 0
        %vm3643 = vcmp.ne.s32.totalorder %v3515, 0
        %vm3644 = vcmp.ne.s32.totalorder %v3516, 0
        %vm3645 = vcmp.ne.s32.totalorder %v3517, 0
        %vm3646 = vcmp.ne.s32.totalorder %v3518, 0
        %vm3647 = vcmp.ne.s32.totalorder %v3519, 0
        %vm3648 = vcmp.ne.s32.totalorder %v3520, 0
        %vm3649 = vcmp.ne.s32.totalorder %v3521, 0
        %vm3650 = vcmp.ne.s32.totalorder %v3522, 0
        %vm3651 = vcmp.ne.s32.totalorder %v3523, 0
        %vm3652 = vcmp.ne.s32.totalorder %v3524, 0
        %vm3653 = vcmp.ne.s32.totalorder %v3525, 0
        %vm3654 = vcmp.ne.s32.totalorder %v3526, 0
        %vm3655 = vcmp.ne.s32.totalorder %v3527, 0
        %vm3656 = vcmp.ne.s32.totalorder %v3528, 0
        %vm3657 = vcmp.ne.s32.totalorder %v3529, 0
        %vm3658 = vcmp.ne.s32.totalorder %v3530, 0
        %vm3659 = vcmp.ne.s32.totalorder %v3531, 0
        %vm3660 = vcmp.ne.s32.totalorder %v3532, 0
        %vm3661 = vcmp.ne.s32.totalorder %v3533, 0
        %vm3662 = vcmp.ne.s32.totalorder %v3534, 0
        %vm3663 = vcmp.ne.s32.totalorder %v3535, 0
        %vm3664 = vcmp.ne.s32.totalorder %v3536, 0
        %vm3665 = vcmp.ne.s32.totalorder %v3537, 0
        %vm3666 = vcmp.ne.s32.totalorder %v3538, 0
        %vm3667 = vcmp.ne.s32.totalorder %v3539, 0
        %vm3668 = vcmp.ne.s32.totalorder %v3540, 0
        %vm3669 = vcmp.ne.s32.totalorder %v3541, 0
        %vm3670 = vcmp.ne.s32.totalorder %v3542, 0
        %vm3671 = vcmp.ne.s32.totalorder %v3543, 0
        %vm3672 = vcmp.ne.s32.totalorder %v3544, 0
        %vm3673 = vcmp.ne.s32.totalorder %v3545, 0
        %vm3674 = vcmp.ne.s32.totalorder %v3546, 0
        %vm3675 = vcmp.ne.s32.totalorder %v3547, 0
        %vm3676 = vcmp.ne.s32.totalorder %v3548, 0
        %vm3677 = vcmp.ne.s32.totalorder %v3549, 0
        %vm3678 = vcmp.ne.s32.totalorder %v3550, 0
        %vm3679 = vcmp.ne.s32.totalorder %v3551, 0
        %vm3680 = vcmp.ne.s32.totalorder %v3552, 0
        %vm3681 = vcmp.ne.s32.totalorder %v3553, 0
        %vm3682 = vcmp.ne.s32.totalorder %v3554, 0
        %vm3683 = vcmp.ne.s32.totalorder %v3555, 0
        %vm3684 = vcmp.ne.s32.totalorder %v3556, 0
        %vm3685 = vcmp.ne.s32.totalorder %v3557, 0
        %v3686 = vand.u32 %v358, 32
        %v3687 = vand.u32 %v359, 32
        %v3688 = vand.u32 %v360, 32
        %v3689 = vand.u32 %v361, 32
        %v3690 = vand.u32 %v362, 32
        %v3691 = vand.u32 %v363, 32
        %v3692 = vand.u32 %v364, 32
        %v3693 = vand.u32 %v365, 32
        %v3694 = vand.u32 %v366, 32
        %v3695 = vand.u32 %v367, 32
        %v3696 = vand.u32 %v368, 32
        %v3697 = vand.u32 %v369, 32
        %v3698 = vand.u32 %v370, 32
        %v3699 = vand.u32 %v371, 32
        %v3700 = vand.u32 %v372, 32
        %v3701 = vand.u32 %v373, 32
        %v3702 = vand.u32 %v374, 32
        %v3703 = vand.u32 %v375, 32
        %v3704 = vand.u32 %v376, 32
        %v3705 = vand.u32 %v377, 32
        %v3706 = vand.u32 %v378, 32
        %v3707 = vand.u32 %v379, 32
        %v3708 = vand.u32 %v380, 32
        %v3709 = vand.u32 %v381, 32
        %v3710 = vand.u32 %v382, 32
        %v3711 = vand.u32 %v383, 32
        %v3712 = vand.u32 %v384, 32
        %v3713 = vand.u32 %v385, 32
        %v3714 = vand.u32 %v386, 32
        %v3715 = vand.u32 %v387, 32
        %v3716 = vand.u32 %v388, 32
        %v3717 = vand.u32 %v389, 32
        %v3718 = vand.u32 %v390, 32
        %v3719 = vand.u32 %v391, 32
        %v3720 = vand.u32 %v392, 32
        %v3721 = vand.u32 %v393, 32
        %v3722 = vand.u32 %v394, 32
        %v3723 = vand.u32 %v395, 32
        %v3724 = vand.u32 %v396, 32
        %v3725 = vand.u32 %v397, 32
        %v3726 = vand.u32 %v398, 32
        %v3727 = vand.u32 %v399, 32
        %v3728 = vand.u32 %v400, 32
        %v3729 = vand.u32 %v401, 32
        %v3730 = vand.u32 %v402, 32
        %v3731 = vand.u32 %v403, 32
        %v3732 = vand.u32 %v404, 32
        %v3733 = vand.u32 %v405, 32
        %v3734 = vand.u32 %v406, 32
        %v3735 = vand.u32 %v407, 32
        %v3736 = vand.u32 %v408, 32
        %v3737 = vand.u32 %v409, 32
        %v3738 = vand.u32 %v410, 32
        %v3739 = vand.u32 %v411, 32
        %v3740 = vand.u32 %v412, 32
        %v3741 = vand.u32 %v413, 32
        %v3742 = vand.u32 %v414, 32
        %v3743 = vand.u32 %v415, 32
        %v3744 = vand.u32 %v416, 32
        %v3745 = vand.u32 %v417, 32
        %v3746 = vand.u32 %v418, 32
        %v3747 = vand.u32 %v419, 32
        %v3748 = vand.u32 %v420, 32
        %v3749 = vand.u32 %v421, 32
        %v3750 = vand.u32 %v422, 32
        %v3751 = vand.u32 %v423, 32
        %v3752 = vand.u32 %v424, 32
        %v3753 = vand.u32 %v425, 32
        %v3754 = vand.u32 %v426, 32
        %v3755 = vand.u32 %v427, 32
        %v3756 = vand.u32 %v428, 32
        %v3757 = vand.u32 %v429, 32
        %v3758 = vand.u32 %v430, 32
        %v3759 = vand.u32 %v431, 32
        %v3760 = vand.u32 %v432, 32
        %v3761 = vand.u32 %v433, 32
        %v3762 = vand.u32 %v434, 32
        %v3763 = vand.u32 %v435, 32
        %v3764 = vand.u32 %v436, 32
        %v3765 = vand.u32 %v437, 32
        %v3766 = vand.u32 %v438, 32
        %v3767 = vand.u32 %v439, 32
        %v3768 = vand.u32 %v440, 32
        %v3769 = vand.u32 %v441, 32
        %v3770 = vand.u32 %v442, 32
        %v3771 = vand.u32 %v443, 32
        %v3772 = vand.u32 %v444, 32
        %v3773 = vand.u32 %v445, 32
        %v3774 = vand.u32 %v446, 32
        %v3775 = vand.u32 %v447, 32
        %v3776 = vand.u32 %v448, 32
        %v3777 = vand.u32 %v449, 32
        %v3778 = vand.u32 %v450, 32
        %v3779 = vand.u32 %v451, 32
        %v3780 = vand.u32 %v452, 32
        %v3781 = vand.u32 %v453, 32
        %v3782 = vand.u32 %v454, 32
        %v3783 = vand.u32 %v455, 32
        %v3784 = vand.u32 %v456, 32
        %v3785 = vand.u32 %v457, 32
        %v3786 = vand.u32 %v458, 32
        %v3787 = vand.u32 %v459, 32
        %v3788 = vand.u32 %v460, 32
        %v3789 = vand.u32 %v461, 32
        %v3790 = vand.u32 %v462, 32
        %v3791 = vand.u32 %v463, 32
        %v3792 = vand.u32 %v464, 32
        %v3793 = vand.u32 %v465, 32
        %v3794 = vand.u32 %v466, 32
        %v3795 = vand.u32 %v467, 32
        %v3796 = vand.u32 %v468, 32
        %v3797 = vand.u32 %v469, 32
        %v3798 = vand.u32 %v470, 32
        %v3799 = vand.u32 %v471, 32
        %v3800 = vand.u32 %v472, 32
        %v3801 = vand.u32 %v473, 32
        %v3802 = vand.u32 %v474, 32
        %v3803 = vand.u32 %v475, 32
        %v3804 = vand.u32 %v476, 32
        %v3805 = vand.u32 %v477, 32
        %v3806 = vand.u32 %v478, 32
        %v3807 = vand.u32 %v479, 32
        %v3808 = vand.u32 %v480, 32
        %v3809 = vand.u32 %v481, 32
        %v3810 = vand.u32 %v482, 32
        %v3811 = vand.u32 %v483, 32
        %v3812 = vand.u32 %v484, 32
        %v3813 = vand.u32 %v485, 32
        %vm3814 = vcmp.ne.s32.totalorder %v3686, 0
        %vm3815 = vcmp.ne.s32.totalorder %v3687, 0
        %vm3816 = vcmp.ne.s32.totalorder %v3688, 0
        %vm3817 = vcmp.ne.s32.totalorder %v3689, 0
        %vm3818 = vcmp.ne.s32.totalorder %v3690, 0
        %vm3819 = vcmp.ne.s32.totalorder %v3691, 0
        %vm3820 = vcmp.ne.s32.totalorder %v3692, 0
        %vm3821 = vcmp.ne.s32.totalorder %v3693, 0
        %vm3822 = vcmp.ne.s32.totalorder %v3694, 0
        %vm3823 = vcmp.ne.s32.totalorder %v3695, 0
        %vm3824 = vcmp.ne.s32.totalorder %v3696, 0
        %vm3825 = vcmp.ne.s32.totalorder %v3697, 0
        %vm3826 = vcmp.ne.s32.totalorder %v3698, 0
        %vm3827 = vcmp.ne.s32.totalorder %v3699, 0
        %vm3828 = vcmp.ne.s32.totalorder %v3700, 0
        %vm3829 = vcmp.ne.s32.totalorder %v3701, 0
        %vm3830 = vcmp.ne.s32.totalorder %v3702, 0
        %vm3831 = vcmp.ne.s32.totalorder %v3703, 0
        %vm3832 = vcmp.ne.s32.totalorder %v3704, 0
        %vm3833 = vcmp.ne.s32.totalorder %v3705, 0
        %vm3834 = vcmp.ne.s32.totalorder %v3706, 0
        %vm3835 = vcmp.ne.s32.totalorder %v3707, 0
        %vm3836 = vcmp.ne.s32.totalorder %v3708, 0
        %vm3837 = vcmp.ne.s32.totalorder %v3709, 0
        %vm3838 = vcmp.ne.s32.totalorder %v3710, 0
        %vm3839 = vcmp.ne.s32.totalorder %v3711, 0
        %vm3840 = vcmp.ne.s32.totalorder %v3712, 0
        %vm3841 = vcmp.ne.s32.totalorder %v3713, 0
        %vm3842 = vcmp.ne.s32.totalorder %v3714, 0
        %vm3843 = vcmp.ne.s32.totalorder %v3715, 0
        %vm3844 = vcmp.ne.s32.totalorder %v3716, 0
        %vm3845 = vcmp.ne.s32.totalorder %v3717, 0
        %vm3846 = vcmp.ne.s32.totalorder %v3718, 0
        %vm3847 = vcmp.ne.s32.totalorder %v3719, 0
        %vm3848 = vcmp.ne.s32.totalorder %v3720, 0
        %vm3849 = vcmp.ne.s32.totalorder %v3721, 0
        %vm3850 = vcmp.ne.s32.totalorder %v3722, 0
        %vm3851 = vcmp.ne.s32.totalorder %v3723, 0
        %vm3852 = vcmp.ne.s32.totalorder %v3724, 0
        %vm3853 = vcmp.ne.s32.totalorder %v3725, 0
        %vm3854 = vcmp.ne.s32.totalorder %v3726, 0
        %vm3855 = vcmp.ne.s32.totalorder %v3727, 0
        %vm3856 = vcmp.ne.s32.totalorder %v3728, 0
        %vm3857 = vcmp.ne.s32.totalorder %v3729, 0
        %vm3858 = vcmp.ne.s32.totalorder %v3730, 0
        %vm3859 = vcmp.ne.s32.totalorder %v3731, 0
        %vm3860 = vcmp.ne.s32.totalorder %v3732, 0
        %vm3861 = vcmp.ne.s32.totalorder %v3733, 0
        %vm3862 = vcmp.ne.s32.totalorder %v3734, 0
        %vm3863 = vcmp.ne.s32.totalorder %v3735, 0
        %vm3864 = vcmp.ne.s32.totalorder %v3736, 0
        %vm3865 = vcmp.ne.s32.totalorder %v3737, 0
        %vm3866 = vcmp.ne.s32.totalorder %v3738, 0
        %vm3867 = vcmp.ne.s32.totalorder %v3739, 0
        %vm3868 = vcmp.ne.s32.totalorder %v3740, 0
        %vm3869 = vcmp.ne.s32.totalorder %v3741, 0
        %vm3870 = vcmp.ne.s32.totalorder %v3742, 0
        %vm3871 = vcmp.ne.s32.totalorder %v3743, 0
        %vm3872 = vcmp.ne.s32.totalorder %v3744, 0
        %vm3873 = vcmp.ne.s32.totalorder %v3745, 0
        %vm3874 = vcmp.ne.s32.totalorder %v3746, 0
        %vm3875 = vcmp.ne.s32.totalorder %v3747, 0
        %vm3876 = vcmp.ne.s32.totalorder %v3748, 0
        %vm3877 = vcmp.ne.s32.totalorder %v3749, 0
        %vm3878 = vcmp.ne.s32.totalorder %v3750, 0
        %vm3879 = vcmp.ne.s32.totalorder %v3751, 0
        %vm3880 = vcmp.ne.s32.totalorder %v3752, 0
        %vm3881 = vcmp.ne.s32.totalorder %v3753, 0
        %vm3882 = vcmp.ne.s32.totalorder %v3754, 0
        %vm3883 = vcmp.ne.s32.totalorder %v3755, 0
        %vm3884 = vcmp.ne.s32.totalorder %v3756, 0
        %vm3885 = vcmp.ne.s32.totalorder %v3757, 0
        %vm3886 = vcmp.ne.s32.totalorder %v3758, 0
        %vm3887 = vcmp.ne.s32.totalorder %v3759, 0
        %vm3888 = vcmp.ne.s32.totalorder %v3760, 0
        %vm3889 = vcmp.ne.s32.totalorder %v3761, 0
        %vm3890 = vcmp.ne.s32.totalorder %v3762, 0
        %vm3891 = vcmp.ne.s32.totalorder %v3763, 0
        %vm3892 = vcmp.ne.s32.totalorder %v3764, 0
        %vm3893 = vcmp.ne.s32.totalorder %v3765, 0
        %vm3894 = vcmp.ne.s32.totalorder %v3766, 0
        %vm3895 = vcmp.ne.s32.totalorder %v3767, 0
        %vm3896 = vcmp.ne.s32.totalorder %v3768, 0
        %vm3897 = vcmp.ne.s32.totalorder %v3769, 0
        %vm3898 = vcmp.ne.s32.totalorder %v3770, 0
        %vm3899 = vcmp.ne.s32.totalorder %v3771, 0
        %vm3900 = vcmp.ne.s32.totalorder %v3772, 0
        %vm3901 = vcmp.ne.s32.totalorder %v3773, 0
        %vm3902 = vcmp.ne.s32.totalorder %v3774, 0
        %vm3903 = vcmp.ne.s32.totalorder %v3775, 0
        %vm3904 = vcmp.ne.s32.totalorder %v3776, 0
        %vm3905 = vcmp.ne.s32.totalorder %v3777, 0
        %vm3906 = vcmp.ne.s32.totalorder %v3778, 0
        %vm3907 = vcmp.ne.s32.totalorder %v3779, 0
        %vm3908 = vcmp.ne.s32.totalorder %v3780, 0
        %vm3909 = vcmp.ne.s32.totalorder %v3781, 0
        %vm3910 = vcmp.ne.s32.totalorder %v3782, 0
        %vm3911 = vcmp.ne.s32.totalorder %v3783, 0
        %vm3912 = vcmp.ne.s32.totalorder %v3784, 0
        %vm3913 = vcmp.ne.s32.totalorder %v3785, 0
        %vm3914 = vcmp.ne.s32.totalorder %v3786, 0
        %vm3915 = vcmp.ne.s32.totalorder %v3787, 0
        %vm3916 = vcmp.ne.s32.totalorder %v3788, 0
        %vm3917 = vcmp.ne.s32.totalorder %v3789, 0
        %vm3918 = vcmp.ne.s32.totalorder %v3790, 0
        %vm3919 = vcmp.ne.s32.totalorder %v3791, 0
        %vm3920 = vcmp.ne.s32.totalorder %v3792, 0
        %vm3921 = vcmp.ne.s32.totalorder %v3793, 0
        %vm3922 = vcmp.ne.s32.totalorder %v3794, 0
        %vm3923 = vcmp.ne.s32.totalorder %v3795, 0
        %vm3924 = vcmp.ne.s32.totalorder %v3796, 0
        %vm3925 = vcmp.ne.s32.totalorder %v3797, 0
        %vm3926 = vcmp.ne.s32.totalorder %v3798, 0
        %vm3927 = vcmp.ne.s32.totalorder %v3799, 0
        %vm3928 = vcmp.ne.s32.totalorder %v3800, 0
        %vm3929 = vcmp.ne.s32.totalorder %v3801, 0
        %vm3930 = vcmp.ne.s32.totalorder %v3802, 0
        %vm3931 = vcmp.ne.s32.totalorder %v3803, 0
        %vm3932 = vcmp.ne.s32.totalorder %v3804, 0
        %vm3933 = vcmp.ne.s32.totalorder %v3805, 0
        %vm3934 = vcmp.ne.s32.totalorder %v3806, 0
        %vm3935 = vcmp.ne.s32.totalorder %v3807, 0
        %vm3936 = vcmp.ne.s32.totalorder %v3808, 0
        %vm3937 = vcmp.ne.s32.totalorder %v3809, 0
        %vm3938 = vcmp.ne.s32.totalorder %v3810, 0
        %vm3939 = vcmp.ne.s32.totalorder %v3811, 0
        %vm3940 = vcmp.ne.s32.totalorder %v3812, 0
        %vm3941 = vcmp.ne.s32.totalorder %v3813, 0
        %v3942 = vand.u32 %v358, 64
        %v3943 = vand.u32 %v359, 64
        %v3944 = vand.u32 %v360, 64
        %v3945 = vand.u32 %v361, 64
        %v3946 = vand.u32 %v362, 64
        %v3947 = vand.u32 %v363, 64
        %v3948 = vand.u32 %v364, 64
        %v3949 = vand.u32 %v365, 64
        %v3950 = vand.u32 %v366, 64
        %v3951 = vand.u32 %v367, 64
        %v3952 = vand.u32 %v368, 64
        %v3953 = vand.u32 %v369, 64
        %v3954 = vand.u32 %v370, 64
        %v3955 = vand.u32 %v371, 64
        %v3956 = vand.u32 %v372, 64
        %v3957 = vand.u32 %v373, 64
        %v3958 = vand.u32 %v374, 64
        %v3959 = vand.u32 %v375, 64
        %v3960 = vand.u32 %v376, 64
        %v3961 = vand.u32 %v377, 64
        %v3962 = vand.u32 %v378, 64
        %v3963 = vand.u32 %v379, 64
        %v3964 = vand.u32 %v380, 64
        %v3965 = vand.u32 %v381, 64
        %v3966 = vand.u32 %v382, 64
        %v3967 = vand.u32 %v383, 64
        %v3968 = vand.u32 %v384, 64
        %v3969 = vand.u32 %v385, 64
        %v3970 = vand.u32 %v386, 64
        %v3971 = vand.u32 %v387, 64
        %v3972 = vand.u32 %v388, 64
        %v3973 = vand.u32 %v389, 64
        %v3974 = vand.u32 %v390, 64
        %v3975 = vand.u32 %v391, 64
        %v3976 = vand.u32 %v392, 64
        %v3977 = vand.u32 %v393, 64
        %v3978 = vand.u32 %v394, 64
        %v3979 = vand.u32 %v395, 64
        %v3980 = vand.u32 %v396, 64
        %v3981 = vand.u32 %v397, 64
        %v3982 = vand.u32 %v398, 64
        %v3983 = vand.u32 %v399, 64
        %v3984 = vand.u32 %v400, 64
        %v3985 = vand.u32 %v401, 64
        %v3986 = vand.u32 %v402, 64
        %v3987 = vand.u32 %v403, 64
        %v3988 = vand.u32 %v404, 64
        %v3989 = vand.u32 %v405, 64
        %v3990 = vand.u32 %v406, 64
        %v3991 = vand.u32 %v407, 64
        %v3992 = vand.u32 %v408, 64
        %v3993 = vand.u32 %v409, 64
        %v3994 = vand.u32 %v410, 64
        %v3995 = vand.u32 %v411, 64
        %v3996 = vand.u32 %v412, 64
        %v3997 = vand.u32 %v413, 64
        %v3998 = vand.u32 %v414, 64
        %v3999 = vand.u32 %v415, 64
        %v4000 = vand.u32 %v416, 64
        %v4001 = vand.u32 %v417, 64
        %v4002 = vand.u32 %v418, 64
        %v4003 = vand.u32 %v419, 64
        %v4004 = vand.u32 %v420, 64
        %v4005 = vand.u32 %v421, 64
        %v4006 = vand.u32 %v422, 64
        %v4007 = vand.u32 %v423, 64
        %v4008 = vand.u32 %v424, 64
        %v4009 = vand.u32 %v425, 64
        %v4010 = vand.u32 %v426, 64
        %v4011 = vand.u32 %v427, 64
        %v4012 = vand.u32 %v428, 64
        %v4013 = vand.u32 %v429, 64
        %v4014 = vand.u32 %v430, 64
        %v4015 = vand.u32 %v431, 64
        %v4016 = vand.u32 %v432, 64
        %v4017 = vand.u32 %v433, 64
        %v4018 = vand.u32 %v434, 64
        %v4019 = vand.u32 %v435, 64
        %v4020 = vand.u32 %v436, 64
        %v4021 = vand.u32 %v437, 64
        %v4022 = vand.u32 %v438, 64
        %v4023 = vand.u32 %v439, 64
        %v4024 = vand.u32 %v440, 64
        %v4025 = vand.u32 %v441, 64
        %v4026 = vand.u32 %v442, 64
        %v4027 = vand.u32 %v443, 64
        %v4028 = vand.u32 %v444, 64
        %v4029 = vand.u32 %v445, 64
        %v4030 = vand.u32 %v446, 64
        %v4031 = vand.u32 %v447, 64
        %v4032 = vand.u32 %v448, 64
        %v4033 = vand.u32 %v449, 64
        %v4034 = vand.u32 %v450, 64
        %v4035 = vand.u32 %v451, 64
        %v4036 = vand.u32 %v452, 64
        %v4037 = vand.u32 %v453, 64
        %v4038 = vand.u32 %v454, 64
        %v4039 = vand.u32 %v455, 64
        %v4040 = vand.u32 %v456, 64
        %v4041 = vand.u32 %v457, 64
        %v4042 = vand.u32 %v458, 64
        %v4043 = vand.u32 %v459, 64
        %v4044 = vand.u32 %v460, 64
        %v4045 = vand.u32 %v461, 64
        %v4046 = vand.u32 %v462, 64
        %v4047 = vand.u32 %v463, 64
        %v4048 = vand.u32 %v464, 64
        %v4049 = vand.u32 %v465, 64
        %v4050 = vand.u32 %v466, 64
        %v4051 = vand.u32 %v467, 64
        %v4052 = vand.u32 %v468, 64
        %v4053 = vand.u32 %v469, 64
        %v4054 = vand.u32 %v470, 64
        %v4055 = vand.u32 %v471, 64
        %v4056 = vand.u32 %v472, 64
        %v4057 = vand.u32 %v473, 64
        %v4058 = vand.u32 %v474, 64
        %v4059 = vand.u32 %v475, 64
        %v4060 = vand.u32 %v476, 64
        %v4061 = vand.u32 %v477, 64
        %v4062 = vand.u32 %v478, 64
        %v4063 = vand.u32 %v479, 64
        %v4064 = vand.u32 %v480, 64
        %v4065 = vand.u32 %v481, 64
        %v4066 = vand.u32 %v482, 64
        %v4067 = vand.u32 %v483, 64
        %v4068 = vand.u32 %v484, 64
        %v4069 = vand.u32 %v485, 64
        %vm4070 = vcmp.ne.s32.totalorder %v3942, 0
        %vm4071 = vcmp.ne.s32.totalorder %v3943, 0
        %vm4072 = vcmp.ne.s32.totalorder %v3944, 0
        %vm4073 = vcmp.ne.s32.totalorder %v3945, 0
        %vm4074 = vcmp.ne.s32.totalorder %v3946, 0
        %vm4075 = vcmp.ne.s32.totalorder %v3947, 0
        %vm4076 = vcmp.ne.s32.totalorder %v3948, 0
        %vm4077 = vcmp.ne.s32.totalorder %v3949, 0
        %vm4078 = vcmp.ne.s32.totalorder %v3950, 0
        %vm4079 = vcmp.ne.s32.totalorder %v3951, 0
        %vm4080 = vcmp.ne.s32.totalorder %v3952, 0
        %vm4081 = vcmp.ne.s32.totalorder %v3953, 0
        %vm4082 = vcmp.ne.s32.totalorder %v3954, 0
        %vm4083 = vcmp.ne.s32.totalorder %v3955, 0
        %vm4084 = vcmp.ne.s32.totalorder %v3956, 0
        %vm4085 = vcmp.ne.s32.totalorder %v3957, 0
        %vm4086 = vcmp.ne.s32.totalorder %v3958, 0
        %vm4087 = vcmp.ne.s32.totalorder %v3959, 0
        %vm4088 = vcmp.ne.s32.totalorder %v3960, 0
        %vm4089 = vcmp.ne.s32.totalorder %v3961, 0
        %vm4090 = vcmp.ne.s32.totalorder %v3962, 0
        %vm4091 = vcmp.ne.s32.totalorder %v3963, 0
        %vm4092 = vcmp.ne.s32.totalorder %v3964, 0
        %vm4093 = vcmp.ne.s32.totalorder %v3965, 0
        %vm4094 = vcmp.ne.s32.totalorder %v3966, 0
        %vm4095 = vcmp.ne.s32.totalorder %v3967, 0
        %vm4096 = vcmp.ne.s32.totalorder %v3968, 0
        %vm4097 = vcmp.ne.s32.totalorder %v3969, 0
        %vm4098 = vcmp.ne.s32.totalorder %v3970, 0
        %vm4099 = vcmp.ne.s32.totalorder %v3971, 0
        %vm4100 = vcmp.ne.s32.totalorder %v3972, 0
        %vm4101 = vcmp.ne.s32.totalorder %v3973, 0
        %vm4102 = vcmp.ne.s32.totalorder %v3974, 0
        %vm4103 = vcmp.ne.s32.totalorder %v3975, 0
        %vm4104 = vcmp.ne.s32.totalorder %v3976, 0
        %vm4105 = vcmp.ne.s32.totalorder %v3977, 0
        %vm4106 = vcmp.ne.s32.totalorder %v3978, 0
        %vm4107 = vcmp.ne.s32.totalorder %v3979, 0
        %vm4108 = vcmp.ne.s32.totalorder %v3980, 0
        %vm4109 = vcmp.ne.s32.totalorder %v3981, 0
        %vm4110 = vcmp.ne.s32.totalorder %v3982, 0
        %vm4111 = vcmp.ne.s32.totalorder %v3983, 0
        %vm4112 = vcmp.ne.s32.totalorder %v3984, 0
        %vm4113 = vcmp.ne.s32.totalorder %v3985, 0
        %vm4114 = vcmp.ne.s32.totalorder %v3986, 0
        %vm4115 = vcmp.ne.s32.totalorder %v3987, 0
        %vm4116 = vcmp.ne.s32.totalorder %v3988, 0
        %vm4117 = vcmp.ne.s32.totalorder %v3989, 0
        %vm4118 = vcmp.ne.s32.totalorder %v3990, 0
        %vm4119 = vcmp.ne.s32.totalorder %v3991, 0
        %vm4120 = vcmp.ne.s32.totalorder %v3992, 0
        %vm4121 = vcmp.ne.s32.totalorder %v3993, 0
        %vm4122 = vcmp.ne.s32.totalorder %v3994, 0
        %vm4123 = vcmp.ne.s32.totalorder %v3995, 0
        %vm4124 = vcmp.ne.s32.totalorder %v3996, 0
        %vm4125 = vcmp.ne.s32.totalorder %v3997, 0
        %vm4126 = vcmp.ne.s32.totalorder %v3998, 0
        %vm4127 = vcmp.ne.s32.totalorder %v3999, 0
        %vm4128 = vcmp.ne.s32.totalorder %v4000, 0
        %vm4129 = vcmp.ne.s32.totalorder %v4001, 0
        %vm4130 = vcmp.ne.s32.totalorder %v4002, 0
        %vm4131 = vcmp.ne.s32.totalorder %v4003, 0
        %vm4132 = vcmp.ne.s32.totalorder %v4004, 0
        %vm4133 = vcmp.ne.s32.totalorder %v4005, 0
        %vm4134 = vcmp.ne.s32.totalorder %v4006, 0
        %vm4135 = vcmp.ne.s32.totalorder %v4007, 0
        %vm4136 = vcmp.ne.s32.totalorder %v4008, 0
        %vm4137 = vcmp.ne.s32.totalorder %v4009, 0
        %vm4138 = vcmp.ne.s32.totalorder %v4010, 0
        %vm4139 = vcmp.ne.s32.totalorder %v4011, 0
        %vm4140 = vcmp.ne.s32.totalorder %v4012, 0
        %vm4141 = vcmp.ne.s32.totalorder %v4013, 0
        %vm4142 = vcmp.ne.s32.totalorder %v4014, 0
        %vm4143 = vcmp.ne.s32.totalorder %v4015, 0
        %vm4144 = vcmp.ne.s32.totalorder %v4016, 0
        %vm4145 = vcmp.ne.s32.totalorder %v4017, 0
        %vm4146 = vcmp.ne.s32.totalorder %v4018, 0
        %vm4147 = vcmp.ne.s32.totalorder %v4019, 0
        %vm4148 = vcmp.ne.s32.totalorder %v4020, 0
        %vm4149 = vcmp.ne.s32.totalorder %v4021, 0
        %vm4150 = vcmp.ne.s32.totalorder %v4022, 0
        %vm4151 = vcmp.ne.s32.totalorder %v4023, 0
        %vm4152 = vcmp.ne.s32.totalorder %v4024, 0
        %vm4153 = vcmp.ne.s32.totalorder %v4025, 0
        %vm4154 = vcmp.ne.s32.totalorder %v4026, 0
        %vm4155 = vcmp.ne.s32.totalorder %v4027, 0
        %vm4156 = vcmp.ne.s32.totalorder %v4028, 0
        %vm4157 = vcmp.ne.s32.totalorder %v4029, 0
        %vm4158 = vcmp.ne.s32.totalorder %v4030, 0
        %vm4159 = vcmp.ne.s32.totalorder %v4031, 0
        %vm4160 = vcmp.ne.s32.totalorder %v4032, 0
        %vm4161 = vcmp.ne.s32.totalorder %v4033, 0
        %vm4162 = vcmp.ne.s32.totalorder %v4034, 0
        %vm4163 = vcmp.ne.s32.totalorder %v4035, 0
        %vm4164 = vcmp.ne.s32.totalorder %v4036, 0
        %vm4165 = vcmp.ne.s32.totalorder %v4037, 0
        %vm4166 = vcmp.ne.s32.totalorder %v4038, 0
        %vm4167 = vcmp.ne.s32.totalorder %v4039, 0
        %vm4168 = vcmp.ne.s32.totalorder %v4040, 0
        %vm4169 = vcmp.ne.s32.totalorder %v4041, 0
        %vm4170 = vcmp.ne.s32.totalorder %v4042, 0
        %vm4171 = vcmp.ne.s32.totalorder %v4043, 0
        %vm4172 = vcmp.ne.s32.totalorder %v4044, 0
        %vm4173 = vcmp.ne.s32.totalorder %v4045, 0
        %vm4174 = vcmp.ne.s32.totalorder %v4046, 0
        %vm4175 = vcmp.ne.s32.totalorder %v4047, 0
        %vm4176 = vcmp.ne.s32.totalorder %v4048, 0
        %vm4177 = vcmp.ne.s32.totalorder %v4049, 0
        %vm4178 = vcmp.ne.s32.totalorder %v4050, 0
        %vm4179 = vcmp.ne.s32.totalorder %v4051, 0
        %vm4180 = vcmp.ne.s32.totalorder %v4052, 0
        %vm4181 = vcmp.ne.s32.totalorder %v4053, 0
        %vm4182 = vcmp.ne.s32.totalorder %v4054, 0
        %vm4183 = vcmp.ne.s32.totalorder %v4055, 0
        %vm4184 = vcmp.ne.s32.totalorder %v4056, 0
        %vm4185 = vcmp.ne.s32.totalorder %v4057, 0
        %vm4186 = vcmp.ne.s32.totalorder %v4058, 0
        %vm4187 = vcmp.ne.s32.totalorder %v4059, 0
        %vm4188 = vcmp.ne.s32.totalorder %v4060, 0
        %vm4189 = vcmp.ne.s32.totalorder %v4061, 0
        %vm4190 = vcmp.ne.s32.totalorder %v4062, 0
        %vm4191 = vcmp.ne.s32.totalorder %v4063, 0
        %vm4192 = vcmp.ne.s32.totalorder %v4064, 0
        %vm4193 = vcmp.ne.s32.totalorder %v4065, 0
        %vm4194 = vcmp.ne.s32.totalorder %v4066, 0
        %vm4195 = vcmp.ne.s32.totalorder %v4067, 0
        %vm4196 = vcmp.ne.s32.totalorder %v4068, 0
        %vm4197 = vcmp.ne.s32.totalorder %v4069, 0
        %v4198 = vand.u32 %v358, 128
        %v4199 = vand.u32 %v359, 128
        %v4200 = vand.u32 %v360, 128
        %v4201 = vand.u32 %v361, 128
        %v4202 = vand.u32 %v362, 128
        %v4203 = vand.u32 %v363, 128
        %v4204 = vand.u32 %v364, 128
        %v4205 = vand.u32 %v365, 128
        %v4206 = vand.u32 %v366, 128
        %v4207 = vand.u32 %v367, 128
        %v4208 = vand.u32 %v368, 128
        %v4209 = vand.u32 %v369, 128
        %v4210 = vand.u32 %v370, 128
        %v4211 = vand.u32 %v371, 128
        %v4212 = vand.u32 %v372, 128
        %v4213 = vand.u32 %v373, 128
        %v4214 = vand.u32 %v374, 128
        %v4215 = vand.u32 %v375, 128
        %v4216 = vand.u32 %v376, 128
        %v4217 = vand.u32 %v377, 128
        %v4218 = vand.u32 %v378, 128
        %v4219 = vand.u32 %v379, 128
        %v4220 = vand.u32 %v380, 128
        %v4221 = vand.u32 %v381, 128
        %v4222 = vand.u32 %v382, 128
        %v4223 = vand.u32 %v383, 128
        %v4224 = vand.u32 %v384, 128
        %v4225 = vand.u32 %v385, 128
        %v4226 = vand.u32 %v386, 128
        %v4227 = vand.u32 %v387, 128
        %v4228 = vand.u32 %v388, 128
        %v4229 = vand.u32 %v389, 128
        %v4230 = vand.u32 %v390, 128
        %v4231 = vand.u32 %v391, 128
        %v4232 = vand.u32 %v392, 128
        %v4233 = vand.u32 %v393, 128
        %v4234 = vand.u32 %v394, 128
        %v4235 = vand.u32 %v395, 128
        %v4236 = vand.u32 %v396, 128
        %v4237 = vand.u32 %v397, 128
        %v4238 = vand.u32 %v398, 128
        %v4239 = vand.u32 %v399, 128
        %v4240 = vand.u32 %v400, 128
        %v4241 = vand.u32 %v401, 128
        %v4242 = vand.u32 %v402, 128
        %v4243 = vand.u32 %v403, 128
        %v4244 = vand.u32 %v404, 128
        %v4245 = vand.u32 %v405, 128
        %v4246 = vand.u32 %v406, 128
        %v4247 = vand.u32 %v407, 128
        %v4248 = vand.u32 %v408, 128
        %v4249 = vand.u32 %v409, 128
        %v4250 = vand.u32 %v410, 128
        %v4251 = vand.u32 %v411, 128
        %v4252 = vand.u32 %v412, 128
        %v4253 = vand.u32 %v413, 128
        %v4254 = vand.u32 %v414, 128
        %v4255 = vand.u32 %v415, 128
        %v4256 = vand.u32 %v416, 128
        %v4257 = vand.u32 %v417, 128
        %v4258 = vand.u32 %v418, 128
        %v4259 = vand.u32 %v419, 128
        %v4260 = vand.u32 %v420, 128
        %v4261 = vand.u32 %v421, 128
        %v4262 = vand.u32 %v422, 128
        %v4263 = vand.u32 %v423, 128
        %v4264 = vand.u32 %v424, 128
        %v4265 = vand.u32 %v425, 128
        %v4266 = vand.u32 %v426, 128
        %v4267 = vand.u32 %v427, 128
        %v4268 = vand.u32 %v428, 128
        %v4269 = vand.u32 %v429, 128
        %v4270 = vand.u32 %v430, 128
        %v4271 = vand.u32 %v431, 128
        %v4272 = vand.u32 %v432, 128
        %v4273 = vand.u32 %v433, 128
        %v4274 = vand.u32 %v434, 128
        %v4275 = vand.u32 %v435, 128
        %v4276 = vand.u32 %v436, 128
        %v4277 = vand.u32 %v437, 128
        %v4278 = vand.u32 %v438, 128
        %v4279 = vand.u32 %v439, 128
        %v4280 = vand.u32 %v440, 128
        %v4281 = vand.u32 %v441, 128
        %v4282 = vand.u32 %v442, 128
        %v4283 = vand.u32 %v443, 128
        %v4284 = vand.u32 %v444, 128
        %v4285 = vand.u32 %v445, 128
        %v4286 = vand.u32 %v446, 128
        %v4287 = vand.u32 %v447, 128
        %v4288 = vand.u32 %v448, 128
        %v4289 = vand.u32 %v449, 128
        %v4290 = vand.u32 %v450, 128
        %v4291 = vand.u32 %v451, 128
        %v4292 = vand.u32 %v452, 128
        %v4293 = vand.u32 %v453, 128
        %v4294 = vand.u32 %v454, 128
        %v4295 = vand.u32 %v455, 128
        %v4296 = vand.u32 %v456, 128
        %v4297 = vand.u32 %v457, 128
        %v4298 = vand.u32 %v458, 128
        %v4299 = vand.u32 %v459, 128
        %v4300 = vand.u32 %v460, 128
        %v4301 = vand.u32 %v461, 128
        %v4302 = vand.u32 %v462, 128
        %v4303 = vand.u32 %v463, 128
        %v4304 = vand.u32 %v464, 128
        %v4305 = vand.u32 %v465, 128
        %v4306 = vand.u32 %v466, 128
        %v4307 = vand.u32 %v467, 128
        %v4308 = vand.u32 %v468, 128
        %v4309 = vand.u32 %v469, 128
        %v4310 = vand.u32 %v470, 128
        %v4311 = vand.u32 %v471, 128
        %v4312 = vand.u32 %v472, 128
        %v4313 = vand.u32 %v473, 128
        %v4314 = vand.u32 %v474, 128
        %v4315 = vand.u32 %v475, 128
        %v4316 = vand.u32 %v476, 128
        %v4317 = vand.u32 %v477, 128
        %v4318 = vand.u32 %v478, 128
        %v4319 = vand.u32 %v479, 128
        %v4320 = vand.u32 %v480, 128
        %v4321 = vand.u32 %v481, 128
        %v4322 = vand.u32 %v482, 128
        %v4323 = vand.u32 %v483, 128
        %v4324 = vand.u32 %v484, 128
        %v4325 = vand.u32 %v485, 128
        %vm4326 = vcmp.ne.s32.totalorder %v4198, 0
        %vm4327 = vcmp.ne.s32.totalorder %v4199, 0
        %vm4328 = vcmp.ne.s32.totalorder %v4200, 0
        %vm4329 = vcmp.ne.s32.totalorder %v4201, 0
        %vm4330 = vcmp.ne.s32.totalorder %v4202, 0
        %vm4331 = vcmp.ne.s32.totalorder %v4203, 0
        %vm4332 = vcmp.ne.s32.totalorder %v4204, 0
        %vm4333 = vcmp.ne.s32.totalorder %v4205, 0
        %vm4334 = vcmp.ne.s32.totalorder %v4206, 0
        %vm4335 = vcmp.ne.s32.totalorder %v4207, 0
        %vm4336 = vcmp.ne.s32.totalorder %v4208, 0
        %vm4337 = vcmp.ne.s32.totalorder %v4209, 0
        %vm4338 = vcmp.ne.s32.totalorder %v4210, 0
        %vm4339 = vcmp.ne.s32.totalorder %v4211, 0
        %vm4340 = vcmp.ne.s32.totalorder %v4212, 0
        %vm4341 = vcmp.ne.s32.totalorder %v4213, 0
        %vm4342 = vcmp.ne.s32.totalorder %v4214, 0
        %vm4343 = vcmp.ne.s32.totalorder %v4215, 0
        %vm4344 = vcmp.ne.s32.totalorder %v4216, 0
        %vm4345 = vcmp.ne.s32.totalorder %v4217, 0
        %vm4346 = vcmp.ne.s32.totalorder %v4218, 0
        %vm4347 = vcmp.ne.s32.totalorder %v4219, 0
        %vm4348 = vcmp.ne.s32.totalorder %v4220, 0
        %vm4349 = vcmp.ne.s32.totalorder %v4221, 0
        %vm4350 = vcmp.ne.s32.totalorder %v4222, 0
        %vm4351 = vcmp.ne.s32.totalorder %v4223, 0
        %vm4352 = vcmp.ne.s32.totalorder %v4224, 0
        %vm4353 = vcmp.ne.s32.totalorder %v4225, 0
        %vm4354 = vcmp.ne.s32.totalorder %v4226, 0
        %vm4355 = vcmp.ne.s32.totalorder %v4227, 0
        %vm4356 = vcmp.ne.s32.totalorder %v4228, 0
        %vm4357 = vcmp.ne.s32.totalorder %v4229, 0
        %vm4358 = vcmp.ne.s32.totalorder %v4230, 0
        %vm4359 = vcmp.ne.s32.totalorder %v4231, 0
        %vm4360 = vcmp.ne.s32.totalorder %v4232, 0
        %vm4361 = vcmp.ne.s32.totalorder %v4233, 0
        %vm4362 = vcmp.ne.s32.totalorder %v4234, 0
        %vm4363 = vcmp.ne.s32.totalorder %v4235, 0
        %vm4364 = vcmp.ne.s32.totalorder %v4236, 0
        %vm4365 = vcmp.ne.s32.totalorder %v4237, 0
        %vm4366 = vcmp.ne.s32.totalorder %v4238, 0
        %vm4367 = vcmp.ne.s32.totalorder %v4239, 0
        %vm4368 = vcmp.ne.s32.totalorder %v4240, 0
        %vm4369 = vcmp.ne.s32.totalorder %v4241, 0
        %vm4370 = vcmp.ne.s32.totalorder %v4242, 0
        %vm4371 = vcmp.ne.s32.totalorder %v4243, 0
        %vm4372 = vcmp.ne.s32.totalorder %v4244, 0
        %vm4373 = vcmp.ne.s32.totalorder %v4245, 0
        %vm4374 = vcmp.ne.s32.totalorder %v4246, 0
        %vm4375 = vcmp.ne.s32.totalorder %v4247, 0
        %vm4376 = vcmp.ne.s32.totalorder %v4248, 0
        %vm4377 = vcmp.ne.s32.totalorder %v4249, 0
        %vm4378 = vcmp.ne.s32.totalorder %v4250, 0
        %vm4379 = vcmp.ne.s32.totalorder %v4251, 0
        %vm4380 = vcmp.ne.s32.totalorder %v4252, 0
        %vm4381 = vcmp.ne.s32.totalorder %v4253, 0
        %vm4382 = vcmp.ne.s32.totalorder %v4254, 0
        %vm4383 = vcmp.ne.s32.totalorder %v4255, 0
        %vm4384 = vcmp.ne.s32.totalorder %v4256, 0
        %vm4385 = vcmp.ne.s32.totalorder %v4257, 0
        %vm4386 = vcmp.ne.s32.totalorder %v4258, 0
        %vm4387 = vcmp.ne.s32.totalorder %v4259, 0
        %vm4388 = vcmp.ne.s32.totalorder %v4260, 0
        %vm4389 = vcmp.ne.s32.totalorder %v4261, 0
        %vm4390 = vcmp.ne.s32.totalorder %v4262, 0
        %vm4391 = vcmp.ne.s32.totalorder %v4263, 0
        %vm4392 = vcmp.ne.s32.totalorder %v4264, 0
        %vm4393 = vcmp.ne.s32.totalorder %v4265, 0
        %vm4394 = vcmp.ne.s32.totalorder %v4266, 0
        %vm4395 = vcmp.ne.s32.totalorder %v4267, 0
        %vm4396 = vcmp.ne.s32.totalorder %v4268, 0
        %vm4397 = vcmp.ne.s32.totalorder %v4269, 0
        %vm4398 = vcmp.ne.s32.totalorder %v4270, 0
        %vm4399 = vcmp.ne.s32.totalorder %v4271, 0
        %vm4400 = vcmp.ne.s32.totalorder %v4272, 0
        %vm4401 = vcmp.ne.s32.totalorder %v4273, 0
        %vm4402 = vcmp.ne.s32.totalorder %v4274, 0
        %vm4403 = vcmp.ne.s32.totalorder %v4275, 0
        %vm4404 = vcmp.ne.s32.totalorder %v4276, 0
        %vm4405 = vcmp.ne.s32.totalorder %v4277, 0
        %vm4406 = vcmp.ne.s32.totalorder %v4278, 0
        %vm4407 = vcmp.ne.s32.totalorder %v4279, 0
        %vm4408 = vcmp.ne.s32.totalorder %v4280, 0
        %vm4409 = vcmp.ne.s32.totalorder %v4281, 0
        %vm4410 = vcmp.ne.s32.totalorder %v4282, 0
        %vm4411 = vcmp.ne.s32.totalorder %v4283, 0
        %vm4412 = vcmp.ne.s32.totalorder %v4284, 0
        %vm4413 = vcmp.ne.s32.totalorder %v4285, 0
        %vm4414 = vcmp.ne.s32.totalorder %v4286, 0
        %vm4415 = vcmp.ne.s32.totalorder %v4287, 0
        %vm4416 = vcmp.ne.s32.totalorder %v4288, 0
        %vm4417 = vcmp.ne.s32.totalorder %v4289, 0
        %vm4418 = vcmp.ne.s32.totalorder %v4290, 0
        %vm4419 = vcmp.ne.s32.totalorder %v4291, 0
        %vm4420 = vcmp.ne.s32.totalorder %v4292, 0
        %vm4421 = vcmp.ne.s32.totalorder %v4293, 0
        %vm4422 = vcmp.ne.s32.totalorder %v4294, 0
        %vm4423 = vcmp.ne.s32.totalorder %v4295, 0
        %vm4424 = vcmp.ne.s32.totalorder %v4296, 0
        %vm4425 = vcmp.ne.s32.totalorder %v4297, 0
        %vm4426 = vcmp.ne.s32.totalorder %v4298, 0
        %vm4427 = vcmp.ne.s32.totalorder %v4299, 0
        %vm4428 = vcmp.ne.s32.totalorder %v4300, 0
        %vm4429 = vcmp.ne.s32.totalorder %v4301, 0
        %vm4430 = vcmp.ne.s32.totalorder %v4302, 0
        %vm4431 = vcmp.ne.s32.totalorder %v4303, 0
        %vm4432 = vcmp.ne.s32.totalorder %v4304, 0
        %vm4433 = vcmp.ne.s32.totalorder %v4305, 0
        %vm4434 = vcmp.ne.s32.totalorder %v4306, 0
        %vm4435 = vcmp.ne.s32.totalorder %v4307, 0
        %vm4436 = vcmp.ne.s32.totalorder %v4308, 0
        %vm4437 = vcmp.ne.s32.totalorder %v4309, 0
        %vm4438 = vcmp.ne.s32.totalorder %v4310, 0
        %vm4439 = vcmp.ne.s32.totalorder %v4311, 0
        %vm4440 = vcmp.ne.s32.totalorder %v4312, 0
        %vm4441 = vcmp.ne.s32.totalorder %v4313, 0
        %vm4442 = vcmp.ne.s32.totalorder %v4314, 0
        %vm4443 = vcmp.ne.s32.totalorder %v4315, 0
        %vm4444 = vcmp.ne.s32.totalorder %v4316, 0
        %vm4445 = vcmp.ne.s32.totalorder %v4317, 0
        %vm4446 = vcmp.ne.s32.totalorder %v4318, 0
        %vm4447 = vcmp.ne.s32.totalorder %v4319, 0
        %vm4448 = vcmp.ne.s32.totalorder %v4320, 0
        %vm4449 = vcmp.ne.s32.totalorder %v4321, 0
        %vm4450 = vcmp.ne.s32.totalorder %v4322, 0
        %vm4451 = vcmp.ne.s32.totalorder %v4323, 0
        %vm4452 = vcmp.ne.s32.totalorder %v4324, 0
        %vm4453 = vcmp.ne.s32.totalorder %v4325, 0
        %v4454 = vsel %vm3558, -0.69628906, -1.0
        %v4455 = vsel %vm3559, -0.69628906, -1.0
        %v4456 = vsel %vm3560, -0.69628906, -1.0
        %v4457 = vsel %vm3561, -0.69628906, -1.0
        %v4458 = vsel %vm3562, -0.69628906, -1.0
        %v4459 = vsel %vm3563, -0.69628906, -1.0
        %v4460 = vsel %vm3564, -0.69628906, -1.0
        %v4461 = vsel %vm3565, -0.69628906, -1.0
        %v4462 = vsel %vm3566, -0.69628906, -1.0
        %v4463 = vsel %vm3567, -0.69628906, -1.0
        %v4464 = vsel %vm3568, -0.69628906, -1.0
        %v4465 = vsel %vm3569, -0.69628906, -1.0
        %v4466 = vsel %vm3570, -0.69628906, -1.0
        %v4467 = vsel %vm3571, -0.69628906, -1.0
        %v4468 = vsel %vm3572, -0.69628906, -1.0
        %v4469 = vsel %vm3573, -0.69628906, -1.0
        %v4470 = vsel %vm3574, -0.69628906, -1.0
        %v4471 = vsel %vm3575, -0.69628906, -1.0
        %v4472 = vsel %vm3576, -0.69628906, -1.0
        %v4473 = vsel %vm3577, -0.69628906, -1.0
        %v4474 = vsel %vm3578, -0.69628906, -1.0
        %v4475 = vsel %vm3579, -0.69628906, -1.0
        %v4476 = vsel %vm3580, -0.69628906, -1.0
        %v4477 = vsel %vm3581, -0.69628906, -1.0
        %v4478 = vsel %vm3582, -0.69628906, -1.0
        %v4479 = vsel %vm3583, -0.69628906, -1.0
        %v4480 = vsel %vm3584, -0.69628906, -1.0
        %v4481 = vsel %vm3585, -0.69628906, -1.0
        %v4482 = vsel %vm3586, -0.69628906, -1.0
        %v4483 = vsel %vm3587, -0.69628906, -1.0
        %v4484 = vsel %vm3588, -0.69628906, -1.0
        %v4485 = vsel %vm3589, -0.69628906, -1.0
        %v4486 = vsel %vm3590, -0.69628906, -1.0
        %v4487 = vsel %vm3591, -0.69628906, -1.0
        %v4488 = vsel %vm3592, -0.69628906, -1.0
        %v4489 = vsel %vm3593, -0.69628906, -1.0
        %v4490 = vsel %vm3594, -0.69628906, -1.0
        %v4491 = vsel %vm3595, -0.69628906, -1.0
        %v4492 = vsel %vm3596, -0.69628906, -1.0
        %v4493 = vsel %vm3597, -0.69628906, -1.0
        %v4494 = vsel %vm3598, -0.69628906, -1.0
        %v4495 = vsel %vm3599, -0.69628906, -1.0
        %v4496 = vsel %vm3600, -0.69628906, -1.0
        %v4497 = vsel %vm3601, -0.69628906, -1.0
        %v4498 = vsel %vm3602, -0.69628906, -1.0
        %v4499 = vsel %vm3603, -0.69628906, -1.0
        %v4500 = vsel %vm3604, -0.69628906, -1.0
        %v4501 = vsel %vm3605, -0.69628906, -1.0
        %v4502 = vsel %vm3606, -0.69628906, -1.0
        %v4503 = vsel %vm3607, -0.69628906, -1.0
        %v4504 = vsel %vm3608, -0.69628906, -1.0
        %v4505 = vsel %vm3609, -0.69628906, -1.0
        %v4506 = vsel %vm3610, -0.69628906, -1.0
        %v4507 = vsel %vm3611, -0.69628906, -1.0
        %v4508 = vsel %vm3612, -0.69628906, -1.0
        %v4509 = vsel %vm3613, -0.69628906, -1.0
        %v4510 = vsel %vm3614, -0.69628906, -1.0
        %v4511 = vsel %vm3615, -0.69628906, -1.0
        %v4512 = vsel %vm3616, -0.69628906, -1.0
        %v4513 = vsel %vm3617, -0.69628906, -1.0
        %v4514 = vsel %vm3618, -0.69628906, -1.0
        %v4515 = vsel %vm3619, -0.69628906, -1.0
        %v4516 = vsel %vm3620, -0.69628906, -1.0
        %v4517 = vsel %vm3621, -0.69628906, -1.0
        %v4518 = vsel %vm3622, -0.69628906, -1.0
        %v4519 = vsel %vm3623, -0.69628906, -1.0
        %v4520 = vsel %vm3624, -0.69628906, -1.0
        %v4521 = vsel %vm3625, -0.69628906, -1.0
        %v4522 = vsel %vm3626, -0.69628906, -1.0
        %v4523 = vsel %vm3627, -0.69628906, -1.0
        %v4524 = vsel %vm3628, -0.69628906, -1.0
        %v4525 = vsel %vm3629, -0.69628906, -1.0
        %v4526 = vsel %vm3630, -0.69628906, -1.0
        %v4527 = vsel %vm3631, -0.69628906, -1.0
        %v4528 = vsel %vm3632, -0.69628906, -1.0
        %v4529 = vsel %vm3633, -0.69628906, -1.0
        %v4530 = vsel %vm3634, -0.69628906, -1.0
        %v4531 = vsel %vm3635, -0.69628906, -1.0
        %v4532 = vsel %vm3636, -0.69628906, -1.0
        %v4533 = vsel %vm3637, -0.69628906, -1.0
        %v4534 = vsel %vm3638, -0.69628906, -1.0
        %v4535 = vsel %vm3639, -0.69628906, -1.0
        %v4536 = vsel %vm3640, -0.69628906, -1.0
        %v4537 = vsel %vm3641, -0.69628906, -1.0
        %v4538 = vsel %vm3642, -0.69628906, -1.0
        %v4539 = vsel %vm3643, -0.69628906, -1.0
        %v4540 = vsel %vm3644, -0.69628906, -1.0
        %v4541 = vsel %vm3645, -0.69628906, -1.0
        %v4542 = vsel %vm3646, -0.69628906, -1.0
        %v4543 = vsel %vm3647, -0.69628906, -1.0
        %v4544 = vsel %vm3648, -0.69628906, -1.0
        %v4545 = vsel %vm3649, -0.69628906, -1.0
        %v4546 = vsel %vm3650, -0.69628906, -1.0
        %v4547 = vsel %vm3651, -0.69628906, -1.0
        %v4548 = vsel %vm3652, -0.69628906, -1.0
        %v4549 = vsel %vm3653, -0.69628906, -1.0
        %v4550 = vsel %vm3654, -0.69628906, -1.0
        %v4551 = vsel %vm3655, -0.69628906, -1.0
        %v4552 = vsel %vm3656, -0.69628906, -1.0
        %v4553 = vsel %vm3657, -0.69628906, -1.0
        %v4554 = vsel %vm3658, -0.69628906, -1.0
        %v4555 = vsel %vm3659, -0.69628906, -1.0
        %v4556 = vsel %vm3660, -0.69628906, -1.0
        %v4557 = vsel %vm3661, -0.69628906, -1.0
        %v4558 = vsel %vm3662, -0.69628906, -1.0
        %v4559 = vsel %vm3663, -0.69628906, -1.0
        %v4560 = vsel %vm3664, -0.69628906, -1.0
        %v4561 = vsel %vm3665, -0.69628906, -1.0
        %v4562 = vsel %vm3666, -0.69628906, -1.0
        %v4563 = vsel %vm3667, -0.69628906, -1.0
        %v4564 = vsel %vm3668, -0.69628906, -1.0
        %v4565 = vsel %vm3669, -0.69628906, -1.0
        %v4566 = vsel %vm3670, -0.69628906, -1.0
        %v4567 = vsel %vm3671, -0.69628906, -1.0
        %v4568 = vsel %vm3672, -0.69628906, -1.0
        %v4569 = vsel %vm3673, -0.69628906, -1.0
        %v4570 = vsel %vm3674, -0.69628906, -1.0
        %v4571 = vsel %vm3675, -0.69628906, -1.0
        %v4572 = vsel %vm3676, -0.69628906, -1.0
        %v4573 = vsel %vm3677, -0.69628906, -1.0
        %v4574 = vsel %vm3678, -0.69628906, -1.0
        %v4575 = vsel %vm3679, -0.69628906, -1.0
        %v4576 = vsel %vm3680, -0.69628906, -1.0
        %v4577 = vsel %vm3681, -0.69628906, -1.0
        %v4578 = vsel %vm3682, -0.69628906, -1.0
        %v4579 = vsel %vm3683, -0.69628906, -1.0
        %v4580 = vsel %vm3684, -0.69628906, -1.0
        %v4581 = vsel %vm3685, -0.69628906, -1.0
        %v4582 = vsel %vm3558, -0.39501953, -0.52490234
        %v4583 = vsel %vm3559, -0.39501953, -0.52490234
        %v4584 = vsel %vm3560, -0.39501953, -0.52490234
        %v4585 = vsel %vm3561, -0.39501953, -0.52490234
        %v4586 = vsel %vm3562, -0.39501953, -0.52490234
        %v4587 = vsel %vm3563, -0.39501953, -0.52490234
        %v4588 = vsel %vm3564, -0.39501953, -0.52490234
        %v4589 = vsel %vm3565, -0.39501953, -0.52490234
        %v4590 = vsel %vm3566, -0.39501953, -0.52490234
        %v4591 = vsel %vm3567, -0.39501953, -0.52490234
        %v4592 = vsel %vm3568, -0.39501953, -0.52490234
        %v4593 = vsel %vm3569, -0.39501953, -0.52490234
        %v4594 = vsel %vm3570, -0.39501953, -0.52490234
        %v4595 = vsel %vm3571, -0.39501953, -0.52490234
        %v4596 = vsel %vm3572, -0.39501953, -0.52490234
        %v4597 = vsel %vm3573, -0.39501953, -0.52490234
        %v4598 = vsel %vm3574, -0.39501953, -0.52490234
        %v4599 = vsel %vm3575, -0.39501953, -0.52490234
        %v4600 = vsel %vm3576, -0.39501953, -0.52490234
        %v4601 = vsel %vm3577, -0.39501953, -0.52490234
        %v4602 = vsel %vm3578, -0.39501953, -0.52490234
        %v4603 = vsel %vm3579, -0.39501953, -0.52490234
        %v4604 = vsel %vm3580, -0.39501953, -0.52490234
        %v4605 = vsel %vm3581, -0.39501953, -0.52490234
        %v4606 = vsel %vm3582, -0.39501953, -0.52490234
        %v4607 = vsel %vm3583, -0.39501953, -0.52490234
        %v4608 = vsel %vm3584, -0.39501953, -0.52490234
        %v4609 = vsel %vm3585, -0.39501953, -0.52490234
        %v4610 = vsel %vm3586, -0.39501953, -0.52490234
        %v4611 = vsel %vm3587, -0.39501953, -0.52490234
        %v4612 = vsel %vm3588, -0.39501953, -0.52490234
        %v4613 = vsel %vm3589, -0.39501953, -0.52490234
        %v4614 = vsel %vm3590, -0.39501953, -0.52490234
        %v4615 = vsel %vm3591, -0.39501953, -0.52490234
        %v4616 = vsel %vm3592, -0.39501953, -0.52490234
        %v4617 = vsel %vm3593, -0.39501953, -0.52490234
        %v4618 = vsel %vm3594, -0.39501953, -0.52490234
        %v4619 = vsel %vm3595, -0.39501953, -0.52490234
        %v4620 = vsel %vm3596, -0.39501953, -0.52490234
        %v4621 = vsel %vm3597, -0.39501953, -0.52490234
        %v4622 = vsel %vm3598, -0.39501953, -0.52490234
        %v4623 = vsel %vm3599, -0.39501953, -0.52490234
        %v4624 = vsel %vm3600, -0.39501953, -0.52490234
        %v4625 = vsel %vm3601, -0.39501953, -0.52490234
        %v4626 = vsel %vm3602, -0.39501953, -0.52490234
        %v4627 = vsel %vm3603, -0.39501953, -0.52490234
        %v4628 = vsel %vm3604, -0.39501953, -0.52490234
        %v4629 = vsel %vm3605, -0.39501953, -0.52490234
        %v4630 = vsel %vm3606, -0.39501953, -0.52490234
        %v4631 = vsel %vm3607, -0.39501953, -0.52490234
        %v4632 = vsel %vm3608, -0.39501953, -0.52490234
        %v4633 = vsel %vm3609, -0.39501953, -0.52490234
        %v4634 = vsel %vm3610, -0.39501953, -0.52490234
        %v4635 = vsel %vm3611, -0.39501953, -0.52490234
        %v4636 = vsel %vm3612, -0.39501953, -0.52490234
        %v4637 = vsel %vm3613, -0.39501953, -0.52490234
        %v4638 = vsel %vm3614, -0.39501953, -0.52490234
        %v4639 = vsel %vm3615, -0.39501953, -0.52490234
        %v4640 = vsel %vm3616, -0.39501953, -0.52490234
        %v4641 = vsel %vm3617, -0.39501953, -0.52490234
        %v4642 = vsel %vm3618, -0.39501953, -0.52490234
        %v4643 = vsel %vm3619, -0.39501953, -0.52490234
        %v4644 = vsel %vm3620, -0.39501953, -0.52490234
        %v4645 = vsel %vm3621, -0.39501953, -0.52490234
        %v4646 = vsel %vm3622, -0.39501953, -0.52490234
        %v4647 = vsel %vm3623, -0.39501953, -0.52490234
        %v4648 = vsel %vm3624, -0.39501953, -0.52490234
        %v4649 = vsel %vm3625, -0.39501953, -0.52490234
        %v4650 = vsel %vm3626, -0.39501953, -0.52490234
        %v4651 = vsel %vm3627, -0.39501953, -0.52490234
        %v4652 = vsel %vm3628, -0.39501953, -0.52490234
        %v4653 = vsel %vm3629, -0.39501953, -0.52490234
        %v4654 = vsel %vm3630, -0.39501953, -0.52490234
        %v4655 = vsel %vm3631, -0.39501953, -0.52490234
        %v4656 = vsel %vm3632, -0.39501953, -0.52490234
        %v4657 = vsel %vm3633, -0.39501953, -0.52490234
        %v4658 = vsel %vm3634, -0.39501953, -0.52490234
        %v4659 = vsel %vm3635, -0.39501953, -0.52490234
        %v4660 = vsel %vm3636, -0.39501953, -0.52490234
        %v4661 = vsel %vm3637, -0.39501953, -0.52490234
        %v4662 = vsel %vm3638, -0.39501953, -0.52490234
        %v4663 = vsel %vm3639, -0.39501953, -0.52490234
        %v4664 = vsel %vm3640, -0.39501953, -0.52490234
        %v4665 = vsel %vm3641, -0.39501953, -0.52490234
        %v4666 = vsel %vm3642, -0.39501953, -0.52490234
        %v4667 = vsel %vm3643, -0.39501953, -0.52490234
        %v4668 = vsel %vm3644, -0.39501953, -0.52490234
        %v4669 = vsel %vm3645, -0.39501953, -0.52490234
        %v4670 = vsel %vm3646, -0.39501953, -0.52490234
        %v4671 = vsel %vm3647, -0.39501953, -0.52490234
        %v4672 = vsel %vm3648, -0.39501953, -0.52490234
        %v4673 = vsel %vm3649, -0.39501953, -0.52490234
        %v4674 = vsel %vm3650, -0.39501953, -0.52490234
        %v4675 = vsel %vm3651, -0.39501953, -0.52490234
        %v4676 = vsel %vm3652, -0.39501953, -0.52490234
        %v4677 = vsel %vm3653, -0.39501953, -0.52490234
        %v4678 = vsel %vm3654, -0.39501953, -0.52490234
        %v4679 = vsel %vm3655, -0.39501953, -0.52490234
        %v4680 = vsel %vm3656, -0.39501953, -0.52490234
        %v4681 = vsel %vm3657, -0.39501953, -0.52490234
        %v4682 = vsel %vm3658, -0.39501953, -0.52490234
        %v4683 = vsel %vm3659, -0.39501953, -0.52490234
        %v4684 = vsel %vm3660, -0.39501953, -0.52490234
        %v4685 = vsel %vm3661, -0.39501953, -0.52490234
        %v4686 = vsel %vm3662, -0.39501953, -0.52490234
        %v4687 = vsel %vm3663, -0.39501953, -0.52490234
        %v4688 = vsel %vm3664, -0.39501953, -0.52490234
        %v4689 = vsel %vm3665, -0.39501953, -0.52490234
        %v4690 = vsel %vm3666, -0.39501953, -0.52490234
        %v4691 = vsel %vm3667, -0.39501953, -0.52490234
        %v4692 = vsel %vm3668, -0.39501953, -0.52490234
        %v4693 = vsel %vm3669, -0.39501953, -0.52490234
        %v4694 = vsel %vm3670, -0.39501953, -0.52490234
        %v4695 = vsel %vm3671, -0.39501953, -0.52490234
        %v4696 = vsel %vm3672, -0.39501953, -0.52490234
        %v4697 = vsel %vm3673, -0.39501953, -0.52490234
        %v4698 = vsel %vm3674, -0.39501953, -0.52490234
        %v4699 = vsel %vm3675, -0.39501953, -0.52490234
        %v4700 = vsel %vm3676, -0.39501953, -0.52490234
        %v4701 = vsel %vm3677, -0.39501953, -0.52490234
        %v4702 = vsel %vm3678, -0.39501953, -0.52490234
        %v4703 = vsel %vm3679, -0.39501953, -0.52490234
        %v4704 = vsel %vm3680, -0.39501953, -0.52490234
        %v4705 = vsel %vm3681, -0.39501953, -0.52490234
        %v4706 = vsel %vm3682, -0.39501953, -0.52490234
        %v4707 = vsel %vm3683, -0.39501953, -0.52490234
        %v4708 = vsel %vm3684, -0.39501953, -0.52490234
        %v4709 = vsel %vm3685, -0.39501953, -0.52490234
        %v4710 = vsel %vm3558, -0.18481445, -0.28442383
        %v4711 = vsel %vm3559, -0.18481445, -0.28442383
        %v4712 = vsel %vm3560, -0.18481445, -0.28442383
        %v4713 = vsel %vm3561, -0.18481445, -0.28442383
        %v4714 = vsel %vm3562, -0.18481445, -0.28442383
        %v4715 = vsel %vm3563, -0.18481445, -0.28442383
        %v4716 = vsel %vm3564, -0.18481445, -0.28442383
        %v4717 = vsel %vm3565, -0.18481445, -0.28442383
        %v4718 = vsel %vm3566, -0.18481445, -0.28442383
        %v4719 = vsel %vm3567, -0.18481445, -0.28442383
        %v4720 = vsel %vm3568, -0.18481445, -0.28442383
        %v4721 = vsel %vm3569, -0.18481445, -0.28442383
        %v4722 = vsel %vm3570, -0.18481445, -0.28442383
        %v4723 = vsel %vm3571, -0.18481445, -0.28442383
        %v4724 = vsel %vm3572, -0.18481445, -0.28442383
        %v4725 = vsel %vm3573, -0.18481445, -0.28442383
        %v4726 = vsel %vm3574, -0.18481445, -0.28442383
        %v4727 = vsel %vm3575, -0.18481445, -0.28442383
        %v4728 = vsel %vm3576, -0.18481445, -0.28442383
        %v4729 = vsel %vm3577, -0.18481445, -0.28442383
        %v4730 = vsel %vm3578, -0.18481445, -0.28442383
        %v4731 = vsel %vm3579, -0.18481445, -0.28442383
        %v4732 = vsel %vm3580, -0.18481445, -0.28442383
        %v4733 = vsel %vm3581, -0.18481445, -0.28442383
        %v4734 = vsel %vm3582, -0.18481445, -0.28442383
        %v4735 = vsel %vm3583, -0.18481445, -0.28442383
        %v4736 = vsel %vm3584, -0.18481445, -0.28442383
        %v4737 = vsel %vm3585, -0.18481445, -0.28442383
        %v4738 = vsel %vm3586, -0.18481445, -0.28442383
        %v4739 = vsel %vm3587, -0.18481445, -0.28442383
        %v4740 = vsel %vm3588, -0.18481445, -0.28442383
        %v4741 = vsel %vm3589, -0.18481445, -0.28442383
        %v4742 = vsel %vm3590, -0.18481445, -0.28442383
        %v4743 = vsel %vm3591, -0.18481445, -0.28442383
        %v4744 = vsel %vm3592, -0.18481445, -0.28442383
        %v4745 = vsel %vm3593, -0.18481445, -0.28442383
        %v4746 = vsel %vm3594, -0.18481445, -0.28442383
        %v4747 = vsel %vm3595, -0.18481445, -0.28442383
        %v4748 = vsel %vm3596, -0.18481445, -0.28442383
        %v4749 = vsel %vm3597, -0.18481445, -0.28442383
        %v4750 = vsel %vm3598, -0.18481445, -0.28442383
        %v4751 = vsel %vm3599, -0.18481445, -0.28442383
        %v4752 = vsel %vm3600, -0.18481445, -0.28442383
        %v4753 = vsel %vm3601, -0.18481445, -0.28442383
        %v4754 = vsel %vm3602, -0.18481445, -0.28442383
        %v4755 = vsel %vm3603, -0.18481445, -0.28442383
        %v4756 = vsel %vm3604, -0.18481445, -0.28442383
        %v4757 = vsel %vm3605, -0.18481445, -0.28442383
        %v4758 = vsel %vm3606, -0.18481445, -0.28442383
        %v4759 = vsel %vm3607, -0.18481445, -0.28442383
        %v4760 = vsel %vm3608, -0.18481445, -0.28442383
        %v4761 = vsel %vm3609, -0.18481445, -0.28442383
        %v4762 = vsel %vm3610, -0.18481445, -0.28442383
        %v4763 = vsel %vm3611, -0.18481445, -0.28442383
        %v4764 = vsel %vm3612, -0.18481445, -0.28442383
        %v4765 = vsel %vm3613, -0.18481445, -0.28442383
        %v4766 = vsel %vm3614, -0.18481445, -0.28442383
        %v4767 = vsel %vm3615, -0.18481445, -0.28442383
        %v4768 = vsel %vm3616, -0.18481445, -0.28442383
        %v4769 = vsel %vm3617, -0.18481445, -0.28442383
        %v4770 = vsel %vm3618, -0.18481445, -0.28442383
        %v4771 = vsel %vm3619, -0.18481445, -0.28442383
        %v4772 = vsel %vm3620, -0.18481445, -0.28442383
        %v4773 = vsel %vm3621, -0.18481445, -0.28442383
        %v4774 = vsel %vm3622, -0.18481445, -0.28442383
        %v4775 = vsel %vm3623, -0.18481445, -0.28442383
        %v4776 = vsel %vm3624, -0.18481445, -0.28442383
        %v4777 = vsel %vm3625, -0.18481445, -0.28442383
        %v4778 = vsel %vm3626, -0.18481445, -0.28442383
        %v4779 = vsel %vm3627, -0.18481445, -0.28442383
        %v4780 = vsel %vm3628, -0.18481445, -0.28442383
        %v4781 = vsel %vm3629, -0.18481445, -0.28442383
        %v4782 = vsel %vm3630, -0.18481445, -0.28442383
        %v4783 = vsel %vm3631, -0.18481445, -0.28442383
        %v4784 = vsel %vm3632, -0.18481445, -0.28442383
        %v4785 = vsel %vm3633, -0.18481445, -0.28442383
        %v4786 = vsel %vm3634, -0.18481445, -0.28442383
        %v4787 = vsel %vm3635, -0.18481445, -0.28442383
        %v4788 = vsel %vm3636, -0.18481445, -0.28442383
        %v4789 = vsel %vm3637, -0.18481445, -0.28442383
        %v4790 = vsel %vm3638, -0.18481445, -0.28442383
        %v4791 = vsel %vm3639, -0.18481445, -0.28442383
        %v4792 = vsel %vm3640, -0.18481445, -0.28442383
        %v4793 = vsel %vm3641, -0.18481445, -0.28442383
        %v4794 = vsel %vm3642, -0.18481445, -0.28442383
        %v4795 = vsel %vm3643, -0.18481445, -0.28442383
        %v4796 = vsel %vm3644, -0.18481445, -0.28442383
        %v4797 = vsel %vm3645, -0.18481445, -0.28442383
        %v4798 = vsel %vm3646, -0.18481445, -0.28442383
        %v4799 = vsel %vm3647, -0.18481445, -0.28442383
        %v4800 = vsel %vm3648, -0.18481445, -0.28442383
        %v4801 = vsel %vm3649, -0.18481445, -0.28442383
        %v4802 = vsel %vm3650, -0.18481445, -0.28442383
        %v4803 = vsel %vm3651, -0.18481445, -0.28442383
        %v4804 = vsel %vm3652, -0.18481445, -0.28442383
        %v4805 = vsel %vm3653, -0.18481445, -0.28442383
        %v4806 = vsel %vm3654, -0.18481445, -0.28442383
        %v4807 = vsel %vm3655, -0.18481445, -0.28442383
        %v4808 = vsel %vm3656, -0.18481445, -0.28442383
        %v4809 = vsel %vm3657, -0.18481445, -0.28442383
        %v4810 = vsel %vm3658, -0.18481445, -0.28442383
        %v4811 = vsel %vm3659, -0.18481445, -0.28442383
        %v4812 = vsel %vm3660, -0.18481445, -0.28442383
        %v4813 = vsel %vm3661, -0.18481445, -0.28442383
        %v4814 = vsel %vm3662, -0.18481445, -0.28442383
        %v4815 = vsel %vm3663, -0.18481445, -0.28442383
        %v4816 = vsel %vm3664, -0.18481445, -0.28442383
        %v4817 = vsel %vm3665, -0.18481445, -0.28442383
        %v4818 = vsel %vm3666, -0.18481445, -0.28442383
        %v4819 = vsel %vm3667, -0.18481445, -0.28442383
        %v4820 = vsel %vm3668, -0.18481445, -0.28442383
        %v4821 = vsel %vm3669, -0.18481445, -0.28442383
        %v4822 = vsel %vm3670, -0.18481445, -0.28442383
        %v4823 = vsel %vm3671, -0.18481445, -0.28442383
        %v4824 = vsel %vm3672, -0.18481445, -0.28442383
        %v4825 = vsel %vm3673, -0.18481445, -0.28442383
        %v4826 = vsel %vm3674, -0.18481445, -0.28442383
        %v4827 = vsel %vm3675, -0.18481445, -0.28442383
        %v4828 = vsel %vm3676, -0.18481445, -0.28442383
        %v4829 = vsel %vm3677, -0.18481445, -0.28442383
        %v4830 = vsel %vm3678, -0.18481445, -0.28442383
        %v4831 = vsel %vm3679, -0.18481445, -0.28442383
        %v4832 = vsel %vm3680, -0.18481445, -0.28442383
        %v4833 = vsel %vm3681, -0.18481445, -0.28442383
        %v4834 = vsel %vm3682, -0.18481445, -0.28442383
        %v4835 = vsel %vm3683, -0.18481445, -0.28442383
        %v4836 = vsel %vm3684, -0.18481445, -0.28442383
        %v4837 = vsel %vm3685, -0.18481445, -0.28442383
        %v4838 = vsel %vm3558, 0.0, -0.09106445
        %v4839 = vsel %vm3559, 0.0, -0.09106445
        %v4840 = vsel %vm3560, 0.0, -0.09106445
        %v4841 = vsel %vm3561, 0.0, -0.09106445
        %v4842 = vsel %vm3562, 0.0, -0.09106445
        %v4843 = vsel %vm3563, 0.0, -0.09106445
        %v4844 = vsel %vm3564, 0.0, -0.09106445
        %v4845 = vsel %vm3565, 0.0, -0.09106445
        %v4846 = vsel %vm3566, 0.0, -0.09106445
        %v4847 = vsel %vm3567, 0.0, -0.09106445
        %v4848 = vsel %vm3568, 0.0, -0.09106445
        %v4849 = vsel %vm3569, 0.0, -0.09106445
        %v4850 = vsel %vm3570, 0.0, -0.09106445
        %v4851 = vsel %vm3571, 0.0, -0.09106445
        %v4852 = vsel %vm3572, 0.0, -0.09106445
        %v4853 = vsel %vm3573, 0.0, -0.09106445
        %v4854 = vsel %vm3574, 0.0, -0.09106445
        %v4855 = vsel %vm3575, 0.0, -0.09106445
        %v4856 = vsel %vm3576, 0.0, -0.09106445
        %v4857 = vsel %vm3577, 0.0, -0.09106445
        %v4858 = vsel %vm3578, 0.0, -0.09106445
        %v4859 = vsel %vm3579, 0.0, -0.09106445
        %v4860 = vsel %vm3580, 0.0, -0.09106445
        %v4861 = vsel %vm3581, 0.0, -0.09106445
        %v4862 = vsel %vm3582, 0.0, -0.09106445
        %v4863 = vsel %vm3583, 0.0, -0.09106445
        %v4864 = vsel %vm3584, 0.0, -0.09106445
        %v4865 = vsel %vm3585, 0.0, -0.09106445
        %v4866 = vsel %vm3586, 0.0, -0.09106445
        %v4867 = vsel %vm3587, 0.0, -0.09106445
        %v4868 = vsel %vm3588, 0.0, -0.09106445
        %v4869 = vsel %vm3589, 0.0, -0.09106445
        %v4870 = vsel %vm3590, 0.0, -0.09106445
        %v4871 = vsel %vm3591, 0.0, -0.09106445
        %v4872 = vsel %vm3592, 0.0, -0.09106445
        %v4873 = vsel %vm3593, 0.0, -0.09106445
        %v4874 = vsel %vm3594, 0.0, -0.09106445
        %v4875 = vsel %vm3595, 0.0, -0.09106445
        %v4876 = vsel %vm3596, 0.0, -0.09106445
        %v4877 = vsel %vm3597, 0.0, -0.09106445
        %v4878 = vsel %vm3598, 0.0, -0.09106445
        %v4879 = vsel %vm3599, 0.0, -0.09106445
        %v4880 = vsel %vm3600, 0.0, -0.09106445
        %v4881 = vsel %vm3601, 0.0, -0.09106445
        %v4882 = vsel %vm3602, 0.0, -0.09106445
        %v4883 = vsel %vm3603, 0.0, -0.09106445
        %v4884 = vsel %vm3604, 0.0, -0.09106445
        %v4885 = vsel %vm3605, 0.0, -0.09106445
        %v4886 = vsel %vm3606, 0.0, -0.09106445
        %v4887 = vsel %vm3607, 0.0, -0.09106445
        %v4888 = vsel %vm3608, 0.0, -0.09106445
        %v4889 = vsel %vm3609, 0.0, -0.09106445
        %v4890 = vsel %vm3610, 0.0, -0.09106445
        %v4891 = vsel %vm3611, 0.0, -0.09106445
        %v4892 = vsel %vm3612, 0.0, -0.09106445
        %v4893 = vsel %vm3613, 0.0, -0.09106445
        %v4894 = vsel %vm3614, 0.0, -0.09106445
        %v4895 = vsel %vm3615, 0.0, -0.09106445
        %v4896 = vsel %vm3616, 0.0, -0.09106445
        %v4897 = vsel %vm3617, 0.0, -0.09106445
        %v4898 = vsel %vm3618, 0.0, -0.09106445
        %v4899 = vsel %vm3619, 0.0, -0.09106445
        %v4900 = vsel %vm3620, 0.0, -0.09106445
        %v4901 = vsel %vm3621, 0.0, -0.09106445
        %v4902 = vsel %vm3622, 0.0, -0.09106445
        %v4903 = vsel %vm3623, 0.0, -0.09106445
        %v4904 = vsel %vm3624, 0.0, -0.09106445
        %v4905 = vsel %vm3625, 0.0, -0.09106445
        %v4906 = vsel %vm3626, 0.0, -0.09106445
        %v4907 = vsel %vm3627, 0.0, -0.09106445
        %v4908 = vsel %vm3628, 0.0, -0.09106445
        %v4909 = vsel %vm3629, 0.0, -0.09106445
        %v4910 = vsel %vm3630, 0.0, -0.09106445
        %v4911 = vsel %vm3631, 0.0, -0.09106445
        %v4912 = vsel %vm3632, 0.0, -0.09106445
        %v4913 = vsel %vm3633, 0.0, -0.09106445
        %v4914 = vsel %vm3634, 0.0, -0.09106445
        %v4915 = vsel %vm3635, 0.0, -0.09106445
        %v4916 = vsel %vm3636, 0.0, -0.09106445
        %v4917 = vsel %vm3637, 0.0, -0.09106445
        %v4918 = vsel %vm3638, 0.0, -0.09106445
        %v4919 = vsel %vm3639, 0.0, -0.09106445
        %v4920 = vsel %vm3640, 0.0, -0.09106445
        %v4921 = vsel %vm3641, 0.0, -0.09106445
        %v4922 = vsel %vm3642, 0.0, -0.09106445
        %v4923 = vsel %vm3643, 0.0, -0.09106445
        %v4924 = vsel %vm3644, 0.0, -0.09106445
        %v4925 = vsel %vm3645, 0.0, -0.09106445
        %v4926 = vsel %vm3646, 0.0, -0.09106445
        %v4927 = vsel %vm3647, 0.0, -0.09106445
        %v4928 = vsel %vm3648, 0.0, -0.09106445
        %v4929 = vsel %vm3649, 0.0, -0.09106445
        %v4930 = vsel %vm3650, 0.0, -0.09106445
        %v4931 = vsel %vm3651, 0.0, -0.09106445
        %v4932 = vsel %vm3652, 0.0, -0.09106445
        %v4933 = vsel %vm3653, 0.0, -0.09106445
        %v4934 = vsel %vm3654, 0.0, -0.09106445
        %v4935 = vsel %vm3655, 0.0, -0.09106445
        %v4936 = vsel %vm3656, 0.0, -0.09106445
        %v4937 = vsel %vm3657, 0.0, -0.09106445
        %v4938 = vsel %vm3658, 0.0, -0.09106445
        %v4939 = vsel %vm3659, 0.0, -0.09106445
        %v4940 = vsel %vm3660, 0.0, -0.09106445
        %v4941 = vsel %vm3661, 0.0, -0.09106445
        %v4942 = vsel %vm3662, 0.0, -0.09106445
        %v4943 = vsel %vm3663, 0.0, -0.09106445
        %v4944 = vsel %vm3664, 0.0, -0.09106445
        %v4945 = vsel %vm3665, 0.0, -0.09106445
        %v4946 = vsel %vm3666, 0.0, -0.09106445
        %v4947 = vsel %vm3667, 0.0, -0.09106445
        %v4948 = vsel %vm3668, 0.0, -0.09106445
        %v4949 = vsel %vm3669, 0.0, -0.09106445
        %v4950 = vsel %vm3670, 0.0, -0.09106445
        %v4951 = vsel %vm3671, 0.0, -0.09106445
        %v4952 = vsel %vm3672, 0.0, -0.09106445
        %v4953 = vsel %vm3673, 0.0, -0.09106445
        %v4954 = vsel %vm3674, 0.0, -0.09106445
        %v4955 = vsel %vm3675, 0.0, -0.09106445
        %v4956 = vsel %vm3676, 0.0, -0.09106445
        %v4957 = vsel %vm3677, 0.0, -0.09106445
        %v4958 = vsel %vm3678, 0.0, -0.09106445
        %v4959 = vsel %vm3679, 0.0, -0.09106445
        %v4960 = vsel %vm3680, 0.0, -0.09106445
        %v4961 = vsel %vm3681, 0.0, -0.09106445
        %v4962 = vsel %vm3682, 0.0, -0.09106445
        %v4963 = vsel %vm3683, 0.0, -0.09106445
        %v4964 = vsel %vm3684, 0.0, -0.09106445
        %v4965 = vsel %vm3685, 0.0, -0.09106445
        %v4966 = vsel %vm3558, 0.16088867, 0.079589844
        %v4967 = vsel %vm3559, 0.16088867, 0.079589844
        %v4968 = vsel %vm3560, 0.16088867, 0.079589844
        %v4969 = vsel %vm3561, 0.16088867, 0.079589844
        %v4970 = vsel %vm3562, 0.16088867, 0.079589844
        %v4971 = vsel %vm3563, 0.16088867, 0.079589844
        %v4972 = vsel %vm3564, 0.16088867, 0.079589844
        %v4973 = vsel %vm3565, 0.16088867, 0.079589844
        %v4974 = vsel %vm3566, 0.16088867, 0.079589844
        %v4975 = vsel %vm3567, 0.16088867, 0.079589844
        %v4976 = vsel %vm3568, 0.16088867, 0.079589844
        %v4977 = vsel %vm3569, 0.16088867, 0.079589844
        %v4978 = vsel %vm3570, 0.16088867, 0.079589844
        %v4979 = vsel %vm3571, 0.16088867, 0.079589844
        %v4980 = vsel %vm3572, 0.16088867, 0.079589844
        %v4981 = vsel %vm3573, 0.16088867, 0.079589844
        %v4982 = vsel %vm3574, 0.16088867, 0.079589844
        %v4983 = vsel %vm3575, 0.16088867, 0.079589844
        %v4984 = vsel %vm3576, 0.16088867, 0.079589844
        %v4985 = vsel %vm3577, 0.16088867, 0.079589844
        %v4986 = vsel %vm3578, 0.16088867, 0.079589844
        %v4987 = vsel %vm3579, 0.16088867, 0.079589844
        %v4988 = vsel %vm3580, 0.16088867, 0.079589844
        %v4989 = vsel %vm3581, 0.16088867, 0.079589844
        %v4990 = vsel %vm3582, 0.16088867, 0.079589844
        %v4991 = vsel %vm3583, 0.16088867, 0.079589844
        %v4992 = vsel %vm3584, 0.16088867, 0.079589844
        %v4993 = vsel %vm3585, 0.16088867, 0.079589844
        %v4994 = vsel %vm3586, 0.16088867, 0.079589844
        %v4995 = vsel %vm3587, 0.16088867, 0.079589844
        %v4996 = vsel %vm3588, 0.16088867, 0.079589844
        %v4997 = vsel %vm3589, 0.16088867, 0.079589844
        %v4998 = vsel %vm3590, 0.16088867, 0.079589844
        %v4999 = vsel %vm3591, 0.16088867, 0.079589844
        %v5000 = vsel %vm3592, 0.16088867, 0.079589844
        %v5001 = vsel %vm3593, 0.16088867, 0.079589844
        %v5002 = vsel %vm3594, 0.16088867, 0.079589844
        %v5003 = vsel %vm3595, 0.16088867, 0.079589844
        %v5004 = vsel %vm3596, 0.16088867, 0.079589844
        %v5005 = vsel %vm3597, 0.16088867, 0.079589844
        %v5006 = vsel %vm3598, 0.16088867, 0.079589844
        %v5007 = vsel %vm3599, 0.16088867, 0.079589844
        %v5008 = vsel %vm3600, 0.16088867, 0.079589844
        %v5009 = vsel %vm3601, 0.16088867, 0.079589844
        %v5010 = vsel %vm3602, 0.16088867, 0.079589844
        %v5011 = vsel %vm3603, 0.16088867, 0.079589844
        %v5012 = vsel %vm3604, 0.16088867, 0.079589844
        %v5013 = vsel %vm3605, 0.16088867, 0.079589844
        %v5014 = vsel %vm3606, 0.16088867, 0.079589844
        %v5015 = vsel %vm3607, 0.16088867, 0.079589844
        %v5016 = vsel %vm3608, 0.16088867, 0.079589844
        %v5017 = vsel %vm3609, 0.16088867, 0.079589844
        %v5018 = vsel %vm3610, 0.16088867, 0.079589844
        %v5019 = vsel %vm3611, 0.16088867, 0.079589844
        %v5020 = vsel %vm3612, 0.16088867, 0.079589844
        %v5021 = vsel %vm3613, 0.16088867, 0.079589844
        %v5022 = vsel %vm3614, 0.16088867, 0.079589844
        %v5023 = vsel %vm3615, 0.16088867, 0.079589844
        %v5024 = vsel %vm3616, 0.16088867, 0.079589844
        %v5025 = vsel %vm3617, 0.16088867, 0.079589844
        %v5026 = vsel %vm3618, 0.16088867, 0.079589844
        %v5027 = vsel %vm3619, 0.16088867, 0.079589844
        %v5028 = vsel %vm3620, 0.16088867, 0.079589844
        %v5029 = vsel %vm3621, 0.16088867, 0.079589844
        %v5030 = vsel %vm3622, 0.16088867, 0.079589844
        %v5031 = vsel %vm3623, 0.16088867, 0.079589844
        %v5032 = vsel %vm3624, 0.16088867, 0.079589844
        %v5033 = vsel %vm3625, 0.16088867, 0.079589844
        %v5034 = vsel %vm3626, 0.16088867, 0.079589844
        %v5035 = vsel %vm3627, 0.16088867, 0.079589844
        %v5036 = vsel %vm3628, 0.16088867, 0.079589844
        %v5037 = vsel %vm3629, 0.16088867, 0.079589844
        %v5038 = vsel %vm3630, 0.16088867, 0.079589844
        %v5039 = vsel %vm3631, 0.16088867, 0.079589844
        %v5040 = vsel %vm3632, 0.16088867, 0.079589844
        %v5041 = vsel %vm3633, 0.16088867, 0.079589844
        %v5042 = vsel %vm3634, 0.16088867, 0.079589844
        %v5043 = vsel %vm3635, 0.16088867, 0.079589844
        %v5044 = vsel %vm3636, 0.16088867, 0.079589844
        %v5045 = vsel %vm3637, 0.16088867, 0.079589844
        %v5046 = vsel %vm3638, 0.16088867, 0.079589844
        %v5047 = vsel %vm3639, 0.16088867, 0.079589844
        %v5048 = vsel %vm3640, 0.16088867, 0.079589844
        %v5049 = vsel %vm3641, 0.16088867, 0.079589844
        %v5050 = vsel %vm3642, 0.16088867, 0.079589844
        %v5051 = vsel %vm3643, 0.16088867, 0.079589844
        %v5052 = vsel %vm3644, 0.16088867, 0.079589844
        %v5053 = vsel %vm3645, 0.16088867, 0.079589844
        %v5054 = vsel %vm3646, 0.16088867, 0.079589844
        %v5055 = vsel %vm3647, 0.16088867, 0.079589844
        %v5056 = vsel %vm3648, 0.16088867, 0.079589844
        %v5057 = vsel %vm3649, 0.16088867, 0.079589844
        %v5058 = vsel %vm3650, 0.16088867, 0.079589844
        %v5059 = vsel %vm3651, 0.16088867, 0.079589844
        %v5060 = vsel %vm3652, 0.16088867, 0.079589844
        %v5061 = vsel %vm3653, 0.16088867, 0.079589844
        %v5062 = vsel %vm3654, 0.16088867, 0.079589844
        %v5063 = vsel %vm3655, 0.16088867, 0.079589844
        %v5064 = vsel %vm3656, 0.16088867, 0.079589844
        %v5065 = vsel %vm3657, 0.16088867, 0.079589844
        %v5066 = vsel %vm3658, 0.16088867, 0.079589844
        %v5067 = vsel %vm3659, 0.16088867, 0.079589844
        %v5068 = vsel %vm3660, 0.16088867, 0.079589844
        %v5069 = vsel %vm3661, 0.16088867, 0.079589844
        %v5070 = vsel %vm3662, 0.16088867, 0.079589844
        %v5071 = vsel %vm3663, 0.16088867, 0.079589844
        %v5072 = vsel %vm3664, 0.16088867, 0.079589844
        %v5073 = vsel %vm3665, 0.16088867, 0.079589844
        %v5074 = vsel %vm3666, 0.16088867, 0.079589844
        %v5075 = vsel %vm3667, 0.16088867, 0.079589844
        %v5076 = vsel %vm3668, 0.16088867, 0.079589844
        %v5077 = vsel %vm3669, 0.16088867, 0.079589844
        %v5078 = vsel %vm3670, 0.16088867, 0.079589844
        %v5079 = vsel %vm3671, 0.16088867, 0.079589844
        %v5080 = vsel %vm3672, 0.16088867, 0.079589844
        %v5081 = vsel %vm3673, 0.16088867, 0.079589844
        %v5082 = vsel %vm3674, 0.16088867, 0.079589844
        %v5083 = vsel %vm3675, 0.16088867, 0.079589844
        %v5084 = vsel %vm3676, 0.16088867, 0.079589844
        %v5085 = vsel %vm3677, 0.16088867, 0.079589844
        %v5086 = vsel %vm3678, 0.16088867, 0.079589844
        %v5087 = vsel %vm3679, 0.16088867, 0.079589844
        %v5088 = vsel %vm3680, 0.16088867, 0.079589844
        %v5089 = vsel %vm3681, 0.16088867, 0.079589844
        %v5090 = vsel %vm3682, 0.16088867, 0.079589844
        %v5091 = vsel %vm3683, 0.16088867, 0.079589844
        %v5092 = vsel %vm3684, 0.16088867, 0.079589844
        %v5093 = vsel %vm3685, 0.16088867, 0.079589844
        %v5094 = vsel %vm3558, 0.33789063, 0.24609375
        %v5095 = vsel %vm3559, 0.33789063, 0.24609375
        %v5096 = vsel %vm3560, 0.33789063, 0.24609375
        %v5097 = vsel %vm3561, 0.33789063, 0.24609375
        %v5098 = vsel %vm3562, 0.33789063, 0.24609375
        %v5099 = vsel %vm3563, 0.33789063, 0.24609375
        %v5100 = vsel %vm3564, 0.33789063, 0.24609375
        %v5101 = vsel %vm3565, 0.33789063, 0.24609375
        %v5102 = vsel %vm3566, 0.33789063, 0.24609375
        %v5103 = vsel %vm3567, 0.33789063, 0.24609375
        %v5104 = vsel %vm3568, 0.33789063, 0.24609375
        %v5105 = vsel %vm3569, 0.33789063, 0.24609375
        %v5106 = vsel %vm3570, 0.33789063, 0.24609375
        %v5107 = vsel %vm3571, 0.33789063, 0.24609375
        %v5108 = vsel %vm3572, 0.33789063, 0.24609375
        %v5109 = vsel %vm3573, 0.33789063, 0.24609375
        %v5110 = vsel %vm3574, 0.33789063, 0.24609375
        %v5111 = vsel %vm3575, 0.33789063, 0.24609375
        %v5112 = vsel %vm3576, 0.33789063, 0.24609375
        %v5113 = vsel %vm3577, 0.33789063, 0.24609375
        %v5114 = vsel %vm3578, 0.33789063, 0.24609375
        %v5115 = vsel %vm3579, 0.33789063, 0.24609375
        %v5116 = vsel %vm3580, 0.33789063, 0.24609375
        %v5117 = vsel %vm3581, 0.33789063, 0.24609375
        %v5118 = vsel %vm3582, 0.33789063, 0.24609375
        %v5119 = vsel %vm3583, 0.33789063, 0.24609375
        %v5120 = vsel %vm3584, 0.33789063, 0.24609375
        %v5121 = vsel %vm3585, 0.33789063, 0.24609375
        %v5122 = vsel %vm3586, 0.33789063, 0.24609375
        %v5123 = vsel %vm3587, 0.33789063, 0.24609375
        %v5124 = vsel %vm3588, 0.33789063, 0.24609375
        %v5125 = vsel %vm3589, 0.33789063, 0.24609375
        %v5126 = vsel %vm3590, 0.33789063, 0.24609375
        %v5127 = vsel %vm3591, 0.33789063, 0.24609375
        %v5128 = vsel %vm3592, 0.33789063, 0.24609375
        %v5129 = vsel %vm3593, 0.33789063, 0.24609375
        %v5130 = vsel %vm3594, 0.33789063, 0.24609375
        %v5131 = vsel %vm3595, 0.33789063, 0.24609375
        %v5132 = vsel %vm3596, 0.33789063, 0.24609375
        %v5133 = vsel %vm3597, 0.33789063, 0.24609375
        %v5134 = vsel %vm3598, 0.33789063, 0.24609375
        %v5135 = vsel %vm3599, 0.33789063, 0.24609375
        %v5136 = vsel %vm3600, 0.33789063, 0.24609375
        %v5137 = vsel %vm3601, 0.33789063, 0.24609375
        %v5138 = vsel %vm3602, 0.33789063, 0.24609375
        %v5139 = vsel %vm3603, 0.33789063, 0.24609375
        %v5140 = vsel %vm3604, 0.33789063, 0.24609375
        %v5141 = vsel %vm3605, 0.33789063, 0.24609375
        %v5142 = vsel %vm3606, 0.33789063, 0.24609375
        %v5143 = vsel %vm3607, 0.33789063, 0.24609375
        %v5144 = vsel %vm3608, 0.33789063, 0.24609375
        %v5145 = vsel %vm3609, 0.33789063, 0.24609375
        %v5146 = vsel %vm3610, 0.33789063, 0.24609375
        %v5147 = vsel %vm3611, 0.33789063, 0.24609375
        %v5148 = vsel %vm3612, 0.33789063, 0.24609375
        %v5149 = vsel %vm3613, 0.33789063, 0.24609375
        %v5150 = vsel %vm3614, 0.33789063, 0.24609375
        %v5151 = vsel %vm3615, 0.33789063, 0.24609375
        %v5152 = vsel %vm3616, 0.33789063, 0.24609375
        %v5153 = vsel %vm3617, 0.33789063, 0.24609375
        %v5154 = vsel %vm3618, 0.33789063, 0.24609375
        %v5155 = vsel %vm3619, 0.33789063, 0.24609375
        %v5156 = vsel %vm3620, 0.33789063, 0.24609375
        %v5157 = vsel %vm3621, 0.33789063, 0.24609375
        %v5158 = vsel %vm3622, 0.33789063, 0.24609375
        %v5159 = vsel %vm3623, 0.33789063, 0.24609375
        %v5160 = vsel %vm3624, 0.33789063, 0.24609375
        %v5161 = vsel %vm3625, 0.33789063, 0.24609375
        %v5162 = vsel %vm3626, 0.33789063, 0.24609375
        %v5163 = vsel %vm3627, 0.33789063, 0.24609375
        %v5164 = vsel %vm3628, 0.33789063, 0.24609375
        %v5165 = vsel %vm3629, 0.33789063, 0.24609375
        %v5166 = vsel %vm3630, 0.33789063, 0.24609375
        %v5167 = vsel %vm3631, 0.33789063, 0.24609375
        %v5168 = vsel %vm3632, 0.33789063, 0.24609375
        %v5169 = vsel %vm3633, 0.33789063, 0.24609375
        %v5170 = vsel %vm3634, 0.33789063, 0.24609375
        %v5171 = vsel %vm3635, 0.33789063, 0.24609375
        %v5172 = vsel %vm3636, 0.33789063, 0.24609375
        %v5173 = vsel %vm3637, 0.33789063, 0.24609375
        %v5174 = vsel %vm3638, 0.33789063, 0.24609375
        %v5175 = vsel %vm3639, 0.33789063, 0.24609375
        %v5176 = vsel %vm3640, 0.33789063, 0.24609375
        %v5177 = vsel %vm3641, 0.33789063, 0.24609375
        %v5178 = vsel %vm3642, 0.33789063, 0.24609375
        %v5179 = vsel %vm3643, 0.33789063, 0.24609375
        %v5180 = vsel %vm3644, 0.33789063, 0.24609375
        %v5181 = vsel %vm3645, 0.33789063, 0.24609375
        %v5182 = vsel %vm3646, 0.33789063, 0.24609375
        %v5183 = vsel %vm3647, 0.33789063, 0.24609375
        %v5184 = vsel %vm3648, 0.33789063, 0.24609375
        %v5185 = vsel %vm3649, 0.33789063, 0.24609375
        %v5186 = vsel %vm3650, 0.33789063, 0.24609375
        %v5187 = vsel %vm3651, 0.33789063, 0.24609375
        %v5188 = vsel %vm3652, 0.33789063, 0.24609375
        %v5189 = vsel %vm3653, 0.33789063, 0.24609375
        %v5190 = vsel %vm3654, 0.33789063, 0.24609375
        %v5191 = vsel %vm3655, 0.33789063, 0.24609375
        %v5192 = vsel %vm3656, 0.33789063, 0.24609375
        %v5193 = vsel %vm3657, 0.33789063, 0.24609375
        %v5194 = vsel %vm3658, 0.33789063, 0.24609375
        %v5195 = vsel %vm3659, 0.33789063, 0.24609375
        %v5196 = vsel %vm3660, 0.33789063, 0.24609375
        %v5197 = vsel %vm3661, 0.33789063, 0.24609375
        %v5198 = vsel %vm3662, 0.33789063, 0.24609375
        %v5199 = vsel %vm3663, 0.33789063, 0.24609375
        %v5200 = vsel %vm3664, 0.33789063, 0.24609375
        %v5201 = vsel %vm3665, 0.33789063, 0.24609375
        %v5202 = vsel %vm3666, 0.33789063, 0.24609375
        %v5203 = vsel %vm3667, 0.33789063, 0.24609375
        %v5204 = vsel %vm3668, 0.33789063, 0.24609375
        %v5205 = vsel %vm3669, 0.33789063, 0.24609375
        %v5206 = vsel %vm3670, 0.33789063, 0.24609375
        %v5207 = vsel %vm3671, 0.33789063, 0.24609375
        %v5208 = vsel %vm3672, 0.33789063, 0.24609375
        %v5209 = vsel %vm3673, 0.33789063, 0.24609375
        %v5210 = vsel %vm3674, 0.33789063, 0.24609375
        %v5211 = vsel %vm3675, 0.33789063, 0.24609375
        %v5212 = vsel %vm3676, 0.33789063, 0.24609375
        %v5213 = vsel %vm3677, 0.33789063, 0.24609375
        %v5214 = vsel %vm3678, 0.33789063, 0.24609375
        %v5215 = vsel %vm3679, 0.33789063, 0.24609375
        %v5216 = vsel %vm3680, 0.33789063, 0.24609375
        %v5217 = vsel %vm3681, 0.33789063, 0.24609375
        %v5218 = vsel %vm3682, 0.33789063, 0.24609375
        %v5219 = vsel %vm3683, 0.33789063, 0.24609375
        %v5220 = vsel %vm3684, 0.33789063, 0.24609375
        %v5221 = vsel %vm3685, 0.33789063, 0.24609375
        %v5222 = vsel %vm3558, 0.5625, 0.44067383
        %v5223 = vsel %vm3559, 0.5625, 0.44067383
        %v5224 = vsel %vm3560, 0.5625, 0.44067383
        %v5225 = vsel %vm3561, 0.5625, 0.44067383
        %v5226 = vsel %vm3562, 0.5625, 0.44067383
        %v5227 = vsel %vm3563, 0.5625, 0.44067383
        %v5228 = vsel %vm3564, 0.5625, 0.44067383
        %v5229 = vsel %vm3565, 0.5625, 0.44067383
        %v5230 = vsel %vm3566, 0.5625, 0.44067383
        %v5231 = vsel %vm3567, 0.5625, 0.44067383
        %v5232 = vsel %vm3568, 0.5625, 0.44067383
        %v5233 = vsel %vm3569, 0.5625, 0.44067383
        %v5234 = vsel %vm3570, 0.5625, 0.44067383
        %v5235 = vsel %vm3571, 0.5625, 0.44067383
        %v5236 = vsel %vm3572, 0.5625, 0.44067383
        %v5237 = vsel %vm3573, 0.5625, 0.44067383
        %v5238 = vsel %vm3574, 0.5625, 0.44067383
        %v5239 = vsel %vm3575, 0.5625, 0.44067383
        %v5240 = vsel %vm3576, 0.5625, 0.44067383
        %v5241 = vsel %vm3577, 0.5625, 0.44067383
        %v5242 = vsel %vm3578, 0.5625, 0.44067383
        %v5243 = vsel %vm3579, 0.5625, 0.44067383
        %v5244 = vsel %vm3580, 0.5625, 0.44067383
        %v5245 = vsel %vm3581, 0.5625, 0.44067383
        %v5246 = vsel %vm3582, 0.5625, 0.44067383
        %v5247 = vsel %vm3583, 0.5625, 0.44067383
        %v5248 = vsel %vm3584, 0.5625, 0.44067383
        %v5249 = vsel %vm3585, 0.5625, 0.44067383
        %v5250 = vsel %vm3586, 0.5625, 0.44067383
        %v5251 = vsel %vm3587, 0.5625, 0.44067383
        %v5252 = vsel %vm3588, 0.5625, 0.44067383
        %v5253 = vsel %vm3589, 0.5625, 0.44067383
        %v5254 = vsel %vm3590, 0.5625, 0.44067383
        %v5255 = vsel %vm3591, 0.5625, 0.44067383
        %v5256 = vsel %vm3592, 0.5625, 0.44067383
        %v5257 = vsel %vm3593, 0.5625, 0.44067383
        %v5258 = vsel %vm3594, 0.5625, 0.44067383
        %v5259 = vsel %vm3595, 0.5625, 0.44067383
        %v5260 = vsel %vm3596, 0.5625, 0.44067383
        %v5261 = vsel %vm3597, 0.5625, 0.44067383
        %v5262 = vsel %vm3598, 0.5625, 0.44067383
        %v5263 = vsel %vm3599, 0.5625, 0.44067383
        %v5264 = vsel %vm3600, 0.5625, 0.44067383
        %v5265 = vsel %vm3601, 0.5625, 0.44067383
        %v5266 = vsel %vm3602, 0.5625, 0.44067383
        %v5267 = vsel %vm3603, 0.5625, 0.44067383
        %v5268 = vsel %vm3604, 0.5625, 0.44067383
        %v5269 = vsel %vm3605, 0.5625, 0.44067383
        %v5270 = vsel %vm3606, 0.5625, 0.44067383
        %v5271 = vsel %vm3607, 0.5625, 0.44067383
        %v5272 = vsel %vm3608, 0.5625, 0.44067383
        %v5273 = vsel %vm3609, 0.5625, 0.44067383
        %v5274 = vsel %vm3610, 0.5625, 0.44067383
        %v5275 = vsel %vm3611, 0.5625, 0.44067383
        %v5276 = vsel %vm3612, 0.5625, 0.44067383
        %v5277 = vsel %vm3613, 0.5625, 0.44067383
        %v5278 = vsel %vm3614, 0.5625, 0.44067383
        %v5279 = vsel %vm3615, 0.5625, 0.44067383
        %v5280 = vsel %vm3616, 0.5625, 0.44067383
        %v5281 = vsel %vm3617, 0.5625, 0.44067383
        %v5282 = vsel %vm3618, 0.5625, 0.44067383
        %v5283 = vsel %vm3619, 0.5625, 0.44067383
        %v5284 = vsel %vm3620, 0.5625, 0.44067383
        %v5285 = vsel %vm3621, 0.5625, 0.44067383
        %v5286 = vsel %vm3622, 0.5625, 0.44067383
        %v5287 = vsel %vm3623, 0.5625, 0.44067383
        %v5288 = vsel %vm3624, 0.5625, 0.44067383
        %v5289 = vsel %vm3625, 0.5625, 0.44067383
        %v5290 = vsel %vm3626, 0.5625, 0.44067383
        %v5291 = vsel %vm3627, 0.5625, 0.44067383
        %v5292 = vsel %vm3628, 0.5625, 0.44067383
        %v5293 = vsel %vm3629, 0.5625, 0.44067383
        %v5294 = vsel %vm3630, 0.5625, 0.44067383
        %v5295 = vsel %vm3631, 0.5625, 0.44067383
        %v5296 = vsel %vm3632, 0.5625, 0.44067383
        %v5297 = vsel %vm3633, 0.5625, 0.44067383
        %v5298 = vsel %vm3634, 0.5625, 0.44067383
        %v5299 = vsel %vm3635, 0.5625, 0.44067383
        %v5300 = vsel %vm3636, 0.5625, 0.44067383
        %v5301 = vsel %vm3637, 0.5625, 0.44067383
        %v5302 = vsel %vm3638, 0.5625, 0.44067383
        %v5303 = vsel %vm3639, 0.5625, 0.44067383
        %v5304 = vsel %vm3640, 0.5625, 0.44067383
        %v5305 = vsel %vm3641, 0.5625, 0.44067383
        %v5306 = vsel %vm3642, 0.5625, 0.44067383
        %v5307 = vsel %vm3643, 0.5625, 0.44067383
        %v5308 = vsel %vm3644, 0.5625, 0.44067383
        %v5309 = vsel %vm3645, 0.5625, 0.44067383
        %v5310 = vsel %vm3646, 0.5625, 0.44067383
        %v5311 = vsel %vm3647, 0.5625, 0.44067383
        %v5312 = vsel %vm3648, 0.5625, 0.44067383
        %v5313 = vsel %vm3649, 0.5625, 0.44067383
        %v5314 = vsel %vm3650, 0.5625, 0.44067383
        %v5315 = vsel %vm3651, 0.5625, 0.44067383
        %v5316 = vsel %vm3652, 0.5625, 0.44067383
        %v5317 = vsel %vm3653, 0.5625, 0.44067383
        %v5318 = vsel %vm3654, 0.5625, 0.44067383
        %v5319 = vsel %vm3655, 0.5625, 0.44067383
        %v5320 = vsel %vm3656, 0.5625, 0.44067383
        %v5321 = vsel %vm3657, 0.5625, 0.44067383
        %v5322 = vsel %vm3658, 0.5625, 0.44067383
        %v5323 = vsel %vm3659, 0.5625, 0.44067383
        %v5324 = vsel %vm3660, 0.5625, 0.44067383
        %v5325 = vsel %vm3661, 0.5625, 0.44067383
        %v5326 = vsel %vm3662, 0.5625, 0.44067383
        %v5327 = vsel %vm3663, 0.5625, 0.44067383
        %v5328 = vsel %vm3664, 0.5625, 0.44067383
        %v5329 = vsel %vm3665, 0.5625, 0.44067383
        %v5330 = vsel %vm3666, 0.5625, 0.44067383
        %v5331 = vsel %vm3667, 0.5625, 0.44067383
        %v5332 = vsel %vm3668, 0.5625, 0.44067383
        %v5333 = vsel %vm3669, 0.5625, 0.44067383
        %v5334 = vsel %vm3670, 0.5625, 0.44067383
        %v5335 = vsel %vm3671, 0.5625, 0.44067383
        %v5336 = vsel %vm3672, 0.5625, 0.44067383
        %v5337 = vsel %vm3673, 0.5625, 0.44067383
        %v5338 = vsel %vm3674, 0.5625, 0.44067383
        %v5339 = vsel %vm3675, 0.5625, 0.44067383
        %v5340 = vsel %vm3676, 0.5625, 0.44067383
        %v5341 = vsel %vm3677, 0.5625, 0.44067383
        %v5342 = vsel %vm3678, 0.5625, 0.44067383
        %v5343 = vsel %vm3679, 0.5625, 0.44067383
        %v5344 = vsel %vm3680, 0.5625, 0.44067383
        %v5345 = vsel %vm3681, 0.5625, 0.44067383
        %v5346 = vsel %vm3682, 0.5625, 0.44067383
        %v5347 = vsel %vm3683, 0.5625, 0.44067383
        %v5348 = vsel %vm3684, 0.5625, 0.44067383
        %v5349 = vsel %vm3685, 0.5625, 0.44067383
        %v5350 = vsel %vm3558, 1.0, 0.72314453
        %v5351 = vsel %vm3559, 1.0, 0.72314453
        %v5352 = vsel %vm3560, 1.0, 0.72314453
        %v5353 = vsel %vm3561, 1.0, 0.72314453
        %v5354 = vsel %vm3562, 1.0, 0.72314453
        %v5355 = vsel %vm3563, 1.0, 0.72314453
        %v5356 = vsel %vm3564, 1.0, 0.72314453
        %v5357 = vsel %vm3565, 1.0, 0.72314453
        %v5358 = vsel %vm3566, 1.0, 0.72314453
        %v5359 = vsel %vm3567, 1.0, 0.72314453
        %v5360 = vsel %vm3568, 1.0, 0.72314453
        %v5361 = vsel %vm3569, 1.0, 0.72314453
        %v5362 = vsel %vm3570, 1.0, 0.72314453
        %v5363 = vsel %vm3571, 1.0, 0.72314453
        %v5364 = vsel %vm3572, 1.0, 0.72314453
        %v5365 = vsel %vm3573, 1.0, 0.72314453
        %v5366 = vsel %vm3574, 1.0, 0.72314453
        %v5367 = vsel %vm3575, 1.0, 0.72314453
        %v5368 = vsel %vm3576, 1.0, 0.72314453
        %v5369 = vsel %vm3577, 1.0, 0.72314453
        %v5370 = vsel %vm3578, 1.0, 0.72314453
        %v5371 = vsel %vm3579, 1.0, 0.72314453
        %v5372 = vsel %vm3580, 1.0, 0.72314453
        %v5373 = vsel %vm3581, 1.0, 0.72314453
        %v5374 = vsel %vm3582, 1.0, 0.72314453
        %v5375 = vsel %vm3583, 1.0, 0.72314453
        %v5376 = vsel %vm3584, 1.0, 0.72314453
        %v5377 = vsel %vm3585, 1.0, 0.72314453
        %v5378 = vsel %vm3586, 1.0, 0.72314453
        %v5379 = vsel %vm3587, 1.0, 0.72314453
        %v5380 = vsel %vm3588, 1.0, 0.72314453
        %v5381 = vsel %vm3589, 1.0, 0.72314453
        %v5382 = vsel %vm3590, 1.0, 0.72314453
        %v5383 = vsel %vm3591, 1.0, 0.72314453
        %v5384 = vsel %vm3592, 1.0, 0.72314453
        %v5385 = vsel %vm3593, 1.0, 0.72314453
        %v5386 = vsel %vm3594, 1.0, 0.72314453
        %v5387 = vsel %vm3595, 1.0, 0.72314453
        %v5388 = vsel %vm3596, 1.0, 0.72314453
        %v5389 = vsel %vm3597, 1.0, 0.72314453
        %v5390 = vsel %vm3598, 1.0, 0.72314453
        %v5391 = vsel %vm3599, 1.0, 0.72314453
        %v5392 = vsel %vm3600, 1.0, 0.72314453
        %v5393 = vsel %vm3601, 1.0, 0.72314453
        %v5394 = vsel %vm3602, 1.0, 0.72314453
        %v5395 = vsel %vm3603, 1.0, 0.72314453
        %v5396 = vsel %vm3604, 1.0, 0.72314453
        %v5397 = vsel %vm3605, 1.0, 0.72314453
        %v5398 = vsel %vm3606, 1.0, 0.72314453
        %v5399 = vsel %vm3607, 1.0, 0.72314453
        %v5400 = vsel %vm3608, 1.0, 0.72314453
        %v5401 = vsel %vm3609, 1.0, 0.72314453
        %v5402 = vsel %vm3610, 1.0, 0.72314453
        %v5403 = vsel %vm3611, 1.0, 0.72314453
        %v5404 = vsel %vm3612, 1.0, 0.72314453
        %v5405 = vsel %vm3613, 1.0, 0.72314453
        %v5406 = vsel %vm3614, 1.0, 0.72314453
        %v5407 = vsel %vm3615, 1.0, 0.72314453
        %v5408 = vsel %vm3616, 1.0, 0.72314453
        %v5409 = vsel %vm3617, 1.0, 0.72314453
        %v5410 = vsel %vm3618, 1.0, 0.72314453
        %v5411 = vsel %vm3619, 1.0, 0.72314453
        %v5412 = vsel %vm3620, 1.0, 0.72314453
        %v5413 = vsel %vm3621, 1.0, 0.72314453
        %v5414 = vsel %vm3622, 1.0, 0.72314453
        %v5415 = vsel %vm3623, 1.0, 0.72314453
        %v5416 = vsel %vm3624, 1.0, 0.72314453
        %v5417 = vsel %vm3625, 1.0, 0.72314453
        %v5418 = vsel %vm3626, 1.0, 0.72314453
        %v5419 = vsel %vm3627, 1.0, 0.72314453
        %v5420 = vsel %vm3628, 1.0, 0.72314453
        %v5421 = vsel %vm3629, 1.0, 0.72314453
        %v5422 = vsel %vm3630, 1.0, 0.72314453
        %v5423 = vsel %vm3631, 1.0, 0.72314453
        %v5424 = vsel %vm3632, 1.0, 0.72314453
        %v5425 = vsel %vm3633, 1.0, 0.72314453
        %v5426 = vsel %vm3634, 1.0, 0.72314453
        %v5427 = vsel %vm3635, 1.0, 0.72314453
        %v5428 = vsel %vm3636, 1.0, 0.72314453
        %v5429 = vsel %vm3637, 1.0, 0.72314453
        %v5430 = vsel %vm3638, 1.0, 0.72314453
        %v5431 = vsel %vm3639, 1.0, 0.72314453
        %v5432 = vsel %vm3640, 1.0, 0.72314453
        %v5433 = vsel %vm3641, 1.0, 0.72314453
        %v5434 = vsel %vm3642, 1.0, 0.72314453
        %v5435 = vsel %vm3643, 1.0, 0.72314453
        %v5436 = vsel %vm3644, 1.0, 0.72314453
        %v5437 = vsel %vm3645, 1.0, 0.72314453
        %v5438 = vsel %vm3646, 1.0, 0.72314453
        %v5439 = vsel %vm3647, 1.0, 0.72314453
        %v5440 = vsel %vm3648, 1.0, 0.72314453
        %v5441 = vsel %vm3649, 1.0, 0.72314453
        %v5442 = vsel %vm3650, 1.0, 0.72314453
        %v5443 = vsel %vm3651, 1.0, 0.72314453
        %v5444 = vsel %vm3652, 1.0, 0.72314453
        %v5445 = vsel %vm3653, 1.0, 0.72314453
        %v5446 = vsel %vm3654, 1.0, 0.72314453
        %v5447 = vsel %vm3655, 1.0, 0.72314453
        %v5448 = vsel %vm3656, 1.0, 0.72314453
        %v5449 = vsel %vm3657, 1.0, 0.72314453
        %v5450 = vsel %vm3658, 1.0, 0.72314453
        %v5451 = vsel %vm3659, 1.0, 0.72314453
        %v5452 = vsel %vm3660, 1.0, 0.72314453
        %v5453 = vsel %vm3661, 1.0, 0.72314453
        %v5454 = vsel %vm3662, 1.0, 0.72314453
        %v5455 = vsel %vm3663, 1.0, 0.72314453
        %v5456 = vsel %vm3664, 1.0, 0.72314453
        %v5457 = vsel %vm3665, 1.0, 0.72314453
        %v5458 = vsel %vm3666, 1.0, 0.72314453
        %v5459 = vsel %vm3667, 1.0, 0.72314453
        %v5460 = vsel %vm3668, 1.0, 0.72314453
        %v5461 = vsel %vm3669, 1.0, 0.72314453
        %v5462 = vsel %vm3670, 1.0, 0.72314453
        %v5463 = vsel %vm3671, 1.0, 0.72314453
        %v5464 = vsel %vm3672, 1.0, 0.72314453
        %v5465 = vsel %vm3673, 1.0, 0.72314453
        %v5466 = vsel %vm3674, 1.0, 0.72314453
        %v5467 = vsel %vm3675, 1.0, 0.72314453
        %v5468 = vsel %vm3676, 1.0, 0.72314453
        %v5469 = vsel %vm3677, 1.0, 0.72314453
        %v5470 = vsel %vm3678, 1.0, 0.72314453
        %v5471 = vsel %vm3679, 1.0, 0.72314453
        %v5472 = vsel %vm3680, 1.0, 0.72314453
        %v5473 = vsel %vm3681, 1.0, 0.72314453
        %v5474 = vsel %vm3682, 1.0, 0.72314453
        %v5475 = vsel %vm3683, 1.0, 0.72314453
        %v5476 = vsel %vm3684, 1.0, 0.72314453
        %v5477 = vsel %vm3685, 1.0, 0.72314453
        %v5478 = vsel %vm3814, %v4582, %v4454
        %v5479 = vsel %vm3815, %v4583, %v4455
        %v5480 = vsel %vm3816, %v4584, %v4456
        %v5481 = vsel %vm3817, %v4585, %v4457
        %v5482 = vsel %vm3818, %v4586, %v4458
        %v5483 = vsel %vm3819, %v4587, %v4459
        %v5484 = vsel %vm3820, %v4588, %v4460
        %v5485 = vsel %vm3821, %v4589, %v4461
        %v5486 = vsel %vm3822, %v4590, %v4462
        %v5487 = vsel %vm3823, %v4591, %v4463
        %v5488 = vsel %vm3824, %v4592, %v4464
        %v5489 = vsel %vm3825, %v4593, %v4465
        %v5490 = vsel %vm3826, %v4594, %v4466
        %v5491 = vsel %vm3827, %v4595, %v4467
        %v5492 = vsel %vm3828, %v4596, %v4468
        %v5493 = vsel %vm3829, %v4597, %v4469
        %v5494 = vsel %vm3830, %v4598, %v4470
        %v5495 = vsel %vm3831, %v4599, %v4471
        %v5496 = vsel %vm3832, %v4600, %v4472
        %v5497 = vsel %vm3833, %v4601, %v4473
        %v5498 = vsel %vm3834, %v4602, %v4474
        %v5499 = vsel %vm3835, %v4603, %v4475
        %v5500 = vsel %vm3836, %v4604, %v4476
        %v5501 = vsel %vm3837, %v4605, %v4477
        %v5502 = vsel %vm3838, %v4606, %v4478
        %v5503 = vsel %vm3839, %v4607, %v4479
        %v5504 = vsel %vm3840, %v4608, %v4480
        %v5505 = vsel %vm3841, %v4609, %v4481
        %v5506 = vsel %vm3842, %v4610, %v4482
        %v5507 = vsel %vm3843, %v4611, %v4483
        %v5508 = vsel %vm3844, %v4612, %v4484
        %v5509 = vsel %vm3845, %v4613, %v4485
        %v5510 = vsel %vm3846, %v4614, %v4486
        %v5511 = vsel %vm3847, %v4615, %v4487
        %v5512 = vsel %vm3848, %v4616, %v4488
        %v5513 = vsel %vm3849, %v4617, %v4489
        %v5514 = vsel %vm3850, %v4618, %v4490
        %v5515 = vsel %vm3851, %v4619, %v4491
        %v5516 = vsel %vm3852, %v4620, %v4492
        %v5517 = vsel %vm3853, %v4621, %v4493
        %v5518 = vsel %vm3854, %v4622, %v4494
        %v5519 = vsel %vm3855, %v4623, %v4495
        %v5520 = vsel %vm3856, %v4624, %v4496
        %v5521 = vsel %vm3857, %v4625, %v4497
        %v5522 = vsel %vm3858, %v4626, %v4498
        %v5523 = vsel %vm3859, %v4627, %v4499
        %v5524 = vsel %vm3860, %v4628, %v4500
        %v5525 = vsel %vm3861, %v4629, %v4501
        %v5526 = vsel %vm3862, %v4630, %v4502
        %v5527 = vsel %vm3863, %v4631, %v4503
        %v5528 = vsel %vm3864, %v4632, %v4504
        %v5529 = vsel %vm3865, %v4633, %v4505
        %v5530 = vsel %vm3866, %v4634, %v4506
        %v5531 = vsel %vm3867, %v4635, %v4507
        %v5532 = vsel %vm3868, %v4636, %v4508
        %v5533 = vsel %vm3869, %v4637, %v4509
        %v5534 = vsel %vm3870, %v4638, %v4510
        %v5535 = vsel %vm3871, %v4639, %v4511
        %v5536 = vsel %vm3872, %v4640, %v4512
        %v5537 = vsel %vm3873, %v4641, %v4513
        %v5538 = vsel %vm3874, %v4642, %v4514
        %v5539 = vsel %vm3875, %v4643, %v4515
        %v5540 = vsel %vm3876, %v4644, %v4516
        %v5541 = vsel %vm3877, %v4645, %v4517
        %v5542 = vsel %vm3878, %v4646, %v4518
        %v5543 = vsel %vm3879, %v4647, %v4519
        %v5544 = vsel %vm3880, %v4648, %v4520
        %v5545 = vsel %vm3881, %v4649, %v4521
        %v5546 = vsel %vm3882, %v4650, %v4522
        %v5547 = vsel %vm3883, %v4651, %v4523
        %v5548 = vsel %vm3884, %v4652, %v4524
        %v5549 = vsel %vm3885, %v4653, %v4525
        %v5550 = vsel %vm3886, %v4654, %v4526
        %v5551 = vsel %vm3887, %v4655, %v4527
        %v5552 = vsel %vm3888, %v4656, %v4528
        %v5553 = vsel %vm3889, %v4657, %v4529
        %v5554 = vsel %vm3890, %v4658, %v4530
        %v5555 = vsel %vm3891, %v4659, %v4531
        %v5556 = vsel %vm3892, %v4660, %v4532
        %v5557 = vsel %vm3893, %v4661, %v4533
        %v5558 = vsel %vm3894, %v4662, %v4534
        %v5559 = vsel %vm3895, %v4663, %v4535
        %v5560 = vsel %vm3896, %v4664, %v4536
        %v5561 = vsel %vm3897, %v4665, %v4537
        %v5562 = vsel %vm3898, %v4666, %v4538
        %v5563 = vsel %vm3899, %v4667, %v4539
        %v5564 = vsel %vm3900, %v4668, %v4540
        %v5565 = vsel %vm3901, %v4669, %v4541
        %v5566 = vsel %vm3902, %v4670, %v4542
        %v5567 = vsel %vm3903, %v4671, %v4543
        %v5568 = vsel %vm3904, %v4672, %v4544
        %v5569 = vsel %vm3905, %v4673, %v4545
        %v5570 = vsel %vm3906, %v4674, %v4546
        %v5571 = vsel %vm3907, %v4675, %v4547
        %v5572 = vsel %vm3908, %v4676, %v4548
        %v5573 = vsel %vm3909, %v4677, %v4549
        %v5574 = vsel %vm3910, %v4678, %v4550
        %v5575 = vsel %vm3911, %v4679, %v4551
        %v5576 = vsel %vm3912, %v4680, %v4552
        %v5577 = vsel %vm3913, %v4681, %v4553
        %v5578 = vsel %vm3914, %v4682, %v4554
        %v5579 = vsel %vm3915, %v4683, %v4555
        %v5580 = vsel %vm3916, %v4684, %v4556
        %v5581 = vsel %vm3917, %v4685, %v4557
        %v5582 = vsel %vm3918, %v4686, %v4558
        %v5583 = vsel %vm3919, %v4687, %v4559
        %v5584 = vsel %vm3920, %v4688, %v4560
        %v5585 = vsel %vm3921, %v4689, %v4561
        %v5586 = vsel %vm3922, %v4690, %v4562
        %v5587 = vsel %vm3923, %v4691, %v4563
        %v5588 = vsel %vm3924, %v4692, %v4564
        %v5589 = vsel %vm3925, %v4693, %v4565
        %v5590 = vsel %vm3926, %v4694, %v4566
        %v5591 = vsel %vm3927, %v4695, %v4567
        %v5592 = vsel %vm3928, %v4696, %v4568
        %v5593 = vsel %vm3929, %v4697, %v4569
        %v5594 = vsel %vm3930, %v4698, %v4570
        %v5595 = vsel %vm3931, %v4699, %v4571
        %v5596 = vsel %vm3932, %v4700, %v4572
        %v5597 = vsel %vm3933, %v4701, %v4573
        %v5598 = vsel %vm3934, %v4702, %v4574
        %v5599 = vsel %vm3935, %v4703, %v4575
        %v5600 = vsel %vm3936, %v4704, %v4576
        %v5601 = vsel %vm3937, %v4705, %v4577
        %v5602 = vsel %vm3938, %v4706, %v4578
        %v5603 = vsel %vm3939, %v4707, %v4579
        %v5604 = vsel %vm3940, %v4708, %v4580
        %v5605 = vsel %vm3941, %v4709, %v4581
        %v5606 = vsel %vm3814, %v4838, %v4710
        %v5607 = vsel %vm3815, %v4839, %v4711
        %v5608 = vsel %vm3816, %v4840, %v4712
        %v5609 = vsel %vm3817, %v4841, %v4713
        %v5610 = vsel %vm3818, %v4842, %v4714
        %v5611 = vsel %vm3819, %v4843, %v4715
        %v5612 = vsel %vm3820, %v4844, %v4716
        %v5613 = vsel %vm3821, %v4845, %v4717
        %v5614 = vsel %vm3822, %v4846, %v4718
        %v5615 = vsel %vm3823, %v4847, %v4719
        %v5616 = vsel %vm3824, %v4848, %v4720
        %v5617 = vsel %vm3825, %v4849, %v4721
        %v5618 = vsel %vm3826, %v4850, %v4722
        %v5619 = vsel %vm3827, %v4851, %v4723
        %v5620 = vsel %vm3828, %v4852, %v4724
        %v5621 = vsel %vm3829, %v4853, %v4725
        %v5622 = vsel %vm3830, %v4854, %v4726
        %v5623 = vsel %vm3831, %v4855, %v4727
        %v5624 = vsel %vm3832, %v4856, %v4728
        %v5625 = vsel %vm3833, %v4857, %v4729
        %v5626 = vsel %vm3834, %v4858, %v4730
        %v5627 = vsel %vm3835, %v4859, %v4731
        %v5628 = vsel %vm3836, %v4860, %v4732
        %v5629 = vsel %vm3837, %v4861, %v4733
        %v5630 = vsel %vm3838, %v4862, %v4734
        %v5631 = vsel %vm3839, %v4863, %v4735
        %v5632 = vsel %vm3840, %v4864, %v4736
        %v5633 = vsel %vm3841, %v4865, %v4737
        %v5634 = vsel %vm3842, %v4866, %v4738
        %v5635 = vsel %vm3843, %v4867, %v4739
        %v5636 = vsel %vm3844, %v4868, %v4740
        %v5637 = vsel %vm3845, %v4869, %v4741
        %v5638 = vsel %vm3846, %v4870, %v4742
        %v5639 = vsel %vm3847, %v4871, %v4743
        %v5640 = vsel %vm3848, %v4872, %v4744
        %v5641 = vsel %vm3849, %v4873, %v4745
        %v5642 = vsel %vm3850, %v4874, %v4746
        %v5643 = vsel %vm3851, %v4875, %v4747
        %v5644 = vsel %vm3852, %v4876, %v4748
        %v5645 = vsel %vm3853, %v4877, %v4749
        %v5646 = vsel %vm3854, %v4878, %v4750
        %v5647 = vsel %vm3855, %v4879, %v4751
        %v5648 = vsel %vm3856, %v4880, %v4752
        %v5649 = vsel %vm3857, %v4881, %v4753
        %v5650 = vsel %vm3858, %v4882, %v4754
        %v5651 = vsel %vm3859, %v4883, %v4755
        %v5652 = vsel %vm3860, %v4884, %v4756
        %v5653 = vsel %vm3861, %v4885, %v4757
        %v5654 = vsel %vm3862, %v4886, %v4758
        %v5655 = vsel %vm3863, %v4887, %v4759
        %v5656 = vsel %vm3864, %v4888, %v4760
        %v5657 = vsel %vm3865, %v4889, %v4761
        %v5658 = vsel %vm3866, %v4890, %v4762
        %v5659 = vsel %vm3867, %v4891, %v4763
        %v5660 = vsel %vm3868, %v4892, %v4764
        %v5661 = vsel %vm3869, %v4893, %v4765
        %v5662 = vsel %vm3870, %v4894, %v4766
        %v5663 = vsel %vm3871, %v4895, %v4767
        %v5664 = vsel %vm3872, %v4896, %v4768
        %v5665 = vsel %vm3873, %v4897, %v4769
        %v5666 = vsel %vm3874, %v4898, %v4770
        %v5667 = vsel %vm3875, %v4899, %v4771
        %v5668 = vsel %vm3876, %v4900, %v4772
        %v5669 = vsel %vm3877, %v4901, %v4773
        %v5670 = vsel %vm3878, %v4902, %v4774
        %v5671 = vsel %vm3879, %v4903, %v4775
        %v5672 = vsel %vm3880, %v4904, %v4776
        %v5673 = vsel %vm3881, %v4905, %v4777
        %v5674 = vsel %vm3882, %v4906, %v4778
        %v5675 = vsel %vm3883, %v4907, %v4779
        %v5676 = vsel %vm3884, %v4908, %v4780
        %v5677 = vsel %vm3885, %v4909, %v4781
        %v5678 = vsel %vm3886, %v4910, %v4782
        %v5679 = vsel %vm3887, %v4911, %v4783
        %v5680 = vsel %vm3888, %v4912, %v4784
        %v5681 = vsel %vm3889, %v4913, %v4785
        %v5682 = vsel %vm3890, %v4914, %v4786
        %v5683 = vsel %vm3891, %v4915, %v4787
        %v5684 = vsel %vm3892, %v4916, %v4788
        %v5685 = vsel %vm3893, %v4917, %v4789
        %v5686 = vsel %vm3894, %v4918, %v4790
        %v5687 = vsel %vm3895, %v4919, %v4791
        %v5688 = vsel %vm3896, %v4920, %v4792
        %v5689 = vsel %vm3897, %v4921, %v4793
        %v5690 = vsel %vm3898, %v4922, %v4794
        %v5691 = vsel %vm3899, %v4923, %v4795
        %v5692 = vsel %vm3900, %v4924, %v4796
        %v5693 = vsel %vm3901, %v4925, %v4797
        %v5694 = vsel %vm3902, %v4926, %v4798
        %v5695 = vsel %vm3903, %v4927, %v4799
        %v5696 = vsel %vm3904, %v4928, %v4800
        %v5697 = vsel %vm3905, %v4929, %v4801
        %v5698 = vsel %vm3906, %v4930, %v4802
        %v5699 = vsel %vm3907, %v4931, %v4803
        %v5700 = vsel %vm3908, %v4932, %v4804
        %v5701 = vsel %vm3909, %v4933, %v4805
        %v5702 = vsel %vm3910, %v4934, %v4806
        %v5703 = vsel %vm3911, %v4935, %v4807
        %v5704 = vsel %vm3912, %v4936, %v4808
        %v5705 = vsel %vm3913, %v4937, %v4809
        %v5706 = vsel %vm3914, %v4938, %v4810
        %v5707 = vsel %vm3915, %v4939, %v4811
        %v5708 = vsel %vm3916, %v4940, %v4812
        %v5709 = vsel %vm3917, %v4941, %v4813
        %v5710 = vsel %vm3918, %v4942, %v4814
        %v5711 = vsel %vm3919, %v4943, %v4815
        %v5712 = vsel %vm3920, %v4944, %v4816
        %v5713 = vsel %vm3921, %v4945, %v4817
        %v5714 = vsel %vm3922, %v4946, %v4818
        %v5715 = vsel %vm3923, %v4947, %v4819
        %v5716 = vsel %vm3924, %v4948, %v4820
        %v5717 = vsel %vm3925, %v4949, %v4821
        %v5718 = vsel %vm3926, %v4950, %v4822
        %v5719 = vsel %vm3927, %v4951, %v4823
        %v5720 = vsel %vm3928, %v4952, %v4824
        %v5721 = vsel %vm3929, %v4953, %v4825
        %v5722 = vsel %vm3930, %v4954, %v4826
        %v5723 = vsel %vm3931, %v4955, %v4827
        %v5724 = vsel %vm3932, %v4956, %v4828
        %v5725 = vsel %vm3933, %v4957, %v4829
        %v5726 = vsel %vm3934, %v4958, %v4830
        %v5727 = vsel %vm3935, %v4959, %v4831
        %v5728 = vsel %vm3936, %v4960, %v4832
        %v5729 = vsel %vm3937, %v4961, %v4833
        %v5730 = vsel %vm3938, %v4962, %v4834
        %v5731 = vsel %vm3939, %v4963, %v4835
        %v5732 = vsel %vm3940, %v4964, %v4836
        %v5733 = vsel %vm3941, %v4965, %v4837
        %v5734 = vsel %vm3814, %v5094, %v4966
        %v5735 = vsel %vm3815, %v5095, %v4967
        %v5736 = vsel %vm3816, %v5096, %v4968
        %v5737 = vsel %vm3817, %v5097, %v4969
        %v5738 = vsel %vm3818, %v5098, %v4970
        %v5739 = vsel %vm3819, %v5099, %v4971
        %v5740 = vsel %vm3820, %v5100, %v4972
        %v5741 = vsel %vm3821, %v5101, %v4973
        %v5742 = vsel %vm3822, %v5102, %v4974
        %v5743 = vsel %vm3823, %v5103, %v4975
        %v5744 = vsel %vm3824, %v5104, %v4976
        %v5745 = vsel %vm3825, %v5105, %v4977
        %v5746 = vsel %vm3826, %v5106, %v4978
        %v5747 = vsel %vm3827, %v5107, %v4979
        %v5748 = vsel %vm3828, %v5108, %v4980
        %v5749 = vsel %vm3829, %v5109, %v4981
        %v5750 = vsel %vm3830, %v5110, %v4982
        %v5751 = vsel %vm3831, %v5111, %v4983
        %v5752 = vsel %vm3832, %v5112, %v4984
        %v5753 = vsel %vm3833, %v5113, %v4985
        %v5754 = vsel %vm3834, %v5114, %v4986
        %v5755 = vsel %vm3835, %v5115, %v4987
        %v5756 = vsel %vm3836, %v5116, %v4988
        %v5757 = vsel %vm3837, %v5117, %v4989
        %v5758 = vsel %vm3838, %v5118, %v4990
        %v5759 = vsel %vm3839, %v5119, %v4991
        %v5760 = vsel %vm3840, %v5120, %v4992
        %v5761 = vsel %vm3841, %v5121, %v4993
        %v5762 = vsel %vm3842, %v5122, %v4994
        %v5763 = vsel %vm3843, %v5123, %v4995
        %v5764 = vsel %vm3844, %v5124, %v4996
        %v5765 = vsel %vm3845, %v5125, %v4997
        %v5766 = vsel %vm3846, %v5126, %v4998
        %v5767 = vsel %vm3847, %v5127, %v4999
        %v5768 = vsel %vm3848, %v5128, %v5000
        %v5769 = vsel %vm3849, %v5129, %v5001
        %v5770 = vsel %vm3850, %v5130, %v5002
        %v5771 = vsel %vm3851, %v5131, %v5003
        %v5772 = vsel %vm3852, %v5132, %v5004
        %v5773 = vsel %vm3853, %v5133, %v5005
        %v5774 = vsel %vm3854, %v5134, %v5006
        %v5775 = vsel %vm3855, %v5135, %v5007
        %v5776 = vsel %vm3856, %v5136, %v5008
        %v5777 = vsel %vm3857, %v5137, %v5009
        %v5778 = vsel %vm3858, %v5138, %v5010
        %v5779 = vsel %vm3859, %v5139, %v5011
        %v5780 = vsel %vm3860, %v5140, %v5012
        %v5781 = vsel %vm3861, %v5141, %v5013
        %v5782 = vsel %vm3862, %v5142, %v5014
        %v5783 = vsel %vm3863, %v5143, %v5015
        %v5784 = vsel %vm3864, %v5144, %v5016
        %v5785 = vsel %vm3865, %v5145, %v5017
        %v5786 = vsel %vm3866, %v5146, %v5018
        %v5787 = vsel %vm3867, %v5147, %v5019
        %v5788 = vsel %vm3868, %v5148, %v5020
        %v5789 = vsel %vm3869, %v5149, %v5021
        %v5790 = vsel %vm3870, %v5150, %v5022
        %v5791 = vsel %vm3871, %v5151, %v5023
        %v5792 = vsel %vm3872, %v5152, %v5024
        %v5793 = vsel %vm3873, %v5153, %v5025
        %v5794 = vsel %vm3874, %v5154, %v5026
        %v5795 = vsel %vm3875, %v5155, %v5027
        %v5796 = vsel %vm3876, %v5156, %v5028
        %v5797 = vsel %vm3877, %v5157, %v5029
        %v5798 = vsel %vm3878, %v5158, %v5030
        %v5799 = vsel %vm3879, %v5159, %v5031
        %v5800 = vsel %vm3880, %v5160, %v5032
        %v5801 = vsel %vm3881, %v5161, %v5033
        %v5802 = vsel %vm3882, %v5162, %v5034
        %v5803 = vsel %vm3883, %v5163, %v5035
        %v5804 = vsel %vm3884, %v5164, %v5036
        %v5805 = vsel %vm3885, %v5165, %v5037
        %v5806 = vsel %vm3886, %v5166, %v5038
        %v5807 = vsel %vm3887, %v5167, %v5039
        %v5808 = vsel %vm3888, %v5168, %v5040
        %v5809 = vsel %vm3889, %v5169, %v5041
        %v5810 = vsel %vm3890, %v5170, %v5042
        %v5811 = vsel %vm3891, %v5171, %v5043
        %v5812 = vsel %vm3892, %v5172, %v5044
        %v5813 = vsel %vm3893, %v5173, %v5045
        %v5814 = vsel %vm3894, %v5174, %v5046
        %v5815 = vsel %vm3895, %v5175, %v5047
        %v5816 = vsel %vm3896, %v5176, %v5048
        %v5817 = vsel %vm3897, %v5177, %v5049
        %v5818 = vsel %vm3898, %v5178, %v5050
        %v5819 = vsel %vm3899, %v5179, %v5051
        %v5820 = vsel %vm3900, %v5180, %v5052
        %v5821 = vsel %vm3901, %v5181, %v5053
        %v5822 = vsel %vm3902, %v5182, %v5054
        %v5823 = vsel %vm3903, %v5183, %v5055
        %v5824 = vsel %vm3904, %v5184, %v5056
        %v5825 = vsel %vm3905, %v5185, %v5057
        %v5826 = vsel %vm3906, %v5186, %v5058
        %v5827 = vsel %vm3907, %v5187, %v5059
        %v5828 = vsel %vm3908, %v5188, %v5060
        %v5829 = vsel %vm3909, %v5189, %v5061
        %v5830 = vsel %vm3910, %v5190, %v5062
        %v5831 = vsel %vm3911, %v5191, %v5063
        %v5832 = vsel %vm3912, %v5192, %v5064
        %v5833 = vsel %vm3913, %v5193, %v5065
        %v5834 = vsel %vm3914, %v5194, %v5066
        %v5835 = vsel %vm3915, %v5195, %v5067
        %v5836 = vsel %vm3916, %v5196, %v5068
        %v5837 = vsel %vm3917, %v5197, %v5069
        %v5838 = vsel %vm3918, %v5198, %v5070
        %v5839 = vsel %vm3919, %v5199, %v5071
        %v5840 = vsel %vm3920, %v5200, %v5072
        %v5841 = vsel %vm3921, %v5201, %v5073
        %v5842 = vsel %vm3922, %v5202, %v5074
        %v5843 = vsel %vm3923, %v5203, %v5075
        %v5844 = vsel %vm3924, %v5204, %v5076
        %v5845 = vsel %vm3925, %v5205, %v5077
        %v5846 = vsel %vm3926, %v5206, %v5078
        %v5847 = vsel %vm3927, %v5207, %v5079
        %v5848 = vsel %vm3928, %v5208, %v5080
        %v5849 = vsel %vm3929, %v5209, %v5081
        %v5850 = vsel %vm3930, %v5210, %v5082
        %v5851 = vsel %vm3931, %v5211, %v5083
        %v5852 = vsel %vm3932, %v5212, %v5084
        %v5853 = vsel %vm3933, %v5213, %v5085
        %v5854 = vsel %vm3934, %v5214, %v5086
        %v5855 = vsel %vm3935, %v5215, %v5087
        %v5856 = vsel %vm3936, %v5216, %v5088
        %v5857 = vsel %vm3937, %v5217, %v5089
        %v5858 = vsel %vm3938, %v5218, %v5090
        %v5859 = vsel %vm3939, %v5219, %v5091
        %v5860 = vsel %vm3940, %v5220, %v5092
        %v5861 = vsel %vm3941, %v5221, %v5093
        %v5862 = vsel %vm3814, %v5350, %v5222
        %v5863 = vsel %vm3815, %v5351, %v5223
        %v5864 = vsel %vm3816, %v5352, %v5224
        %v5865 = vsel %vm3817, %v5353, %v5225
        %v5866 = vsel %vm3818, %v5354, %v5226
        %v5867 = vsel %vm3819, %v5355, %v5227
        %v5868 = vsel %vm3820, %v5356, %v5228
        %v5869 = vsel %vm3821, %v5357, %v5229
        %v5870 = vsel %vm3822, %v5358, %v5230
        %v5871 = vsel %vm3823, %v5359, %v5231
        %v5872 = vsel %vm3824, %v5360, %v5232
        %v5873 = vsel %vm3825, %v5361, %v5233
        %v5874 = vsel %vm3826, %v5362, %v5234
        %v5875 = vsel %vm3827, %v5363, %v5235
        %v5876 = vsel %vm3828, %v5364, %v5236
        %v5877 = vsel %vm3829, %v5365, %v5237
        %v5878 = vsel %vm3830, %v5366, %v5238
        %v5879 = vsel %vm3831, %v5367, %v5239
        %v5880 = vsel %vm3832, %v5368, %v5240
        %v5881 = vsel %vm3833, %v5369, %v5241
        %v5882 = vsel %vm3834, %v5370, %v5242
        %v5883 = vsel %vm3835, %v5371, %v5243
        %v5884 = vsel %vm3836, %v5372, %v5244
        %v5885 = vsel %vm3837, %v5373, %v5245
        %v5886 = vsel %vm3838, %v5374, %v5246
        %v5887 = vsel %vm3839, %v5375, %v5247
        %v5888 = vsel %vm3840, %v5376, %v5248
        %v5889 = vsel %vm3841, %v5377, %v5249
        %v5890 = vsel %vm3842, %v5378, %v5250
        %v5891 = vsel %vm3843, %v5379, %v5251
        %v5892 = vsel %vm3844, %v5380, %v5252
        %v5893 = vsel %vm3845, %v5381, %v5253
        %v5894 = vsel %vm3846, %v5382, %v5254
        %v5895 = vsel %vm3847, %v5383, %v5255
        %v5896 = vsel %vm3848, %v5384, %v5256
        %v5897 = vsel %vm3849, %v5385, %v5257
        %v5898 = vsel %vm3850, %v5386, %v5258
        %v5899 = vsel %vm3851, %v5387, %v5259
        %v5900 = vsel %vm3852, %v5388, %v5260
        %v5901 = vsel %vm3853, %v5389, %v5261
        %v5902 = vsel %vm3854, %v5390, %v5262
        %v5903 = vsel %vm3855, %v5391, %v5263
        %v5904 = vsel %vm3856, %v5392, %v5264
        %v5905 = vsel %vm3857, %v5393, %v5265
        %v5906 = vsel %vm3858, %v5394, %v5266
        %v5907 = vsel %vm3859, %v5395, %v5267
        %v5908 = vsel %vm3860, %v5396, %v5268
        %v5909 = vsel %vm3861, %v5397, %v5269
        %v5910 = vsel %vm3862, %v5398, %v5270
        %v5911 = vsel %vm3863, %v5399, %v5271
        %v5912 = vsel %vm3864, %v5400, %v5272
        %v5913 = vsel %vm3865, %v5401, %v5273
        %v5914 = vsel %vm3866, %v5402, %v5274
        %v5915 = vsel %vm3867, %v5403, %v5275
        %v5916 = vsel %vm3868, %v5404, %v5276
        %v5917 = vsel %vm3869, %v5405, %v5277
        %v5918 = vsel %vm3870, %v5406, %v5278
        %v5919 = vsel %vm3871, %v5407, %v5279
        %v5920 = vsel %vm3872, %v5408, %v5280
        %v5921 = vsel %vm3873, %v5409, %v5281
        %v5922 = vsel %vm3874, %v5410, %v5282
        %v5923 = vsel %vm3875, %v5411, %v5283
        %v5924 = vsel %vm3876, %v5412, %v5284
        %v5925 = vsel %vm3877, %v5413, %v5285
        %v5926 = vsel %vm3878, %v5414, %v5286
        %v5927 = vsel %vm3879, %v5415, %v5287
        %v5928 = vsel %vm3880, %v5416, %v5288
        %v5929 = vsel %vm3881, %v5417, %v5289
        %v5930 = vsel %vm3882, %v5418, %v5290
        %v5931 = vsel %vm3883, %v5419, %v5291
        %v5932 = vsel %vm3884, %v5420, %v5292
        %v5933 = vsel %vm3885, %v5421, %v5293
        %v5934 = vsel %vm3886, %v5422, %v5294
        %v5935 = vsel %vm3887, %v5423, %v5295
        %v5936 = vsel %vm3888, %v5424, %v5296
        %v5937 = vsel %vm3889, %v5425, %v5297
        %v5938 = vsel %vm3890, %v5426, %v5298
        %v5939 = vsel %vm3891, %v5427, %v5299
        %v5940 = vsel %vm3892, %v5428, %v5300
        %v5941 = vsel %vm3893, %v5429, %v5301
        %v5942 = vsel %vm3894, %v5430, %v5302
        %v5943 = vsel %vm3895, %v5431, %v5303
        %v5944 = vsel %vm3896, %v5432, %v5304
        %v5945 = vsel %vm3897, %v5433, %v5305
        %v5946 = vsel %vm3898, %v5434, %v5306
        %v5947 = vsel %vm3899, %v5435, %v5307
        %v5948 = vsel %vm3900, %v5436, %v5308
        %v5949 = vsel %vm3901, %v5437, %v5309
        %v5950 = vsel %vm3902, %v5438, %v5310
        %v5951 = vsel %vm3903, %v5439, %v5311
        %v5952 = vsel %vm3904, %v5440, %v5312
        %v5953 = vsel %vm3905, %v5441, %v5313
        %v5954 = vsel %vm3906, %v5442, %v5314
        %v5955 = vsel %vm3907, %v5443, %v5315
        %v5956 = vsel %vm3908, %v5444, %v5316
        %v5957 = vsel %vm3909, %v5445, %v5317
        %v5958 = vsel %vm3910, %v5446, %v5318
        %v5959 = vsel %vm3911, %v5447, %v5319
        %v5960 = vsel %vm3912, %v5448, %v5320
        %v5961 = vsel %vm3913, %v5449, %v5321
        %v5962 = vsel %vm3914, %v5450, %v5322
        %v5963 = vsel %vm3915, %v5451, %v5323
        %v5964 = vsel %vm3916, %v5452, %v5324
        %v5965 = vsel %vm3917, %v5453, %v5325
        %v5966 = vsel %vm3918, %v5454, %v5326
        %v5967 = vsel %vm3919, %v5455, %v5327
        %v5968 = vsel %vm3920, %v5456, %v5328
        %v5969 = vsel %vm3921, %v5457, %v5329
        %v5970 = vsel %vm3922, %v5458, %v5330
        %v5971 = vsel %vm3923, %v5459, %v5331
        %v5972 = vsel %vm3924, %v5460, %v5332
        %v5973 = vsel %vm3925, %v5461, %v5333
        %v5974 = vsel %vm3926, %v5462, %v5334
        %v5975 = vsel %vm3927, %v5463, %v5335
        %v5976 = vsel %vm3928, %v5464, %v5336
        %v5977 = vsel %vm3929, %v5465, %v5337
        %v5978 = vsel %vm3930, %v5466, %v5338
        %v5979 = vsel %vm3931, %v5467, %v5339
        %v5980 = vsel %vm3932, %v5468, %v5340
        %v5981 = vsel %vm3933, %v5469, %v5341
        %v5982 = vsel %vm3934, %v5470, %v5342
        %v5983 = vsel %vm3935, %v5471, %v5343
        %v5984 = vsel %vm3936, %v5472, %v5344
        %v5985 = vsel %vm3937, %v5473, %v5345
        %v5986 = vsel %vm3938, %v5474, %v5346
        %v5987 = vsel %vm3939, %v5475, %v5347
        %v5988 = vsel %vm3940, %v5476, %v5348
        %v5989 = vsel %vm3941, %v5477, %v5349
        %v5990 = vsel %vm4070, %v5606, %v5478
        %v5991 = vsel %vm4071, %v5607, %v5479
        %v5992 = vsel %vm4072, %v5608, %v5480
        %v5993 = vsel %vm4073, %v5609, %v5481
        %v5994 = vsel %vm4074, %v5610, %v5482
        %v5995 = vsel %vm4075, %v5611, %v5483
        %v5996 = vsel %vm4076, %v5612, %v5484
        %v5997 = vsel %vm4077, %v5613, %v5485
        %v5998 = vsel %vm4078, %v5614, %v5486
        %v5999 = vsel %vm4079, %v5615, %v5487
        %v6000 = vsel %vm4080, %v5616, %v5488
        %v6001 = vsel %vm4081, %v5617, %v5489
        %v6002 = vsel %vm4082, %v5618, %v5490
        %v6003 = vsel %vm4083, %v5619, %v5491
        %v6004 = vsel %vm4084, %v5620, %v5492
        %v6005 = vsel %vm4085, %v5621, %v5493
        %v6006 = vsel %vm4086, %v5622, %v5494
        %v6007 = vsel %vm4087, %v5623, %v5495
        %v6008 = vsel %vm4088, %v5624, %v5496
        %v6009 = vsel %vm4089, %v5625, %v5497
        %v6010 = vsel %vm4090, %v5626, %v5498
        %v6011 = vsel %vm4091, %v5627, %v5499
        %v6012 = vsel %vm4092, %v5628, %v5500
        %v6013 = vsel %vm4093, %v5629, %v5501
        %v6014 = vsel %vm4094, %v5630, %v5502
        %v6015 = vsel %vm4095, %v5631, %v5503
        %v6016 = vsel %vm4096, %v5632, %v5504
        %v6017 = vsel %vm4097, %v5633, %v5505
        %v6018 = vsel %vm4098, %v5634, %v5506
        %v6019 = vsel %vm4099, %v5635, %v5507
        %v6020 = vsel %vm4100, %v5636, %v5508
        %v6021 = vsel %vm4101, %v5637, %v5509
        %v6022 = vsel %vm4102, %v5638, %v5510
        %v6023 = vsel %vm4103, %v5639, %v5511
        %v6024 = vsel %vm4104, %v5640, %v5512
        %v6025 = vsel %vm4105, %v5641, %v5513
        %v6026 = vsel %vm4106, %v5642, %v5514
        %v6027 = vsel %vm4107, %v5643, %v5515
        %v6028 = vsel %vm4108, %v5644, %v5516
        %v6029 = vsel %vm4109, %v5645, %v5517
        %v6030 = vsel %vm4110, %v5646, %v5518
        %v6031 = vsel %vm4111, %v5647, %v5519
        %v6032 = vsel %vm4112, %v5648, %v5520
        %v6033 = vsel %vm4113, %v5649, %v5521
        %v6034 = vsel %vm4114, %v5650, %v5522
        %v6035 = vsel %vm4115, %v5651, %v5523
        %v6036 = vsel %vm4116, %v5652, %v5524
        %v6037 = vsel %vm4117, %v5653, %v5525
        %v6038 = vsel %vm4118, %v5654, %v5526
        %v6039 = vsel %vm4119, %v5655, %v5527
        %v6040 = vsel %vm4120, %v5656, %v5528
        %v6041 = vsel %vm4121, %v5657, %v5529
        %v6042 = vsel %vm4122, %v5658, %v5530
        %v6043 = vsel %vm4123, %v5659, %v5531
        %v6044 = vsel %vm4124, %v5660, %v5532
        %v6045 = vsel %vm4125, %v5661, %v5533
        %v6046 = vsel %vm4126, %v5662, %v5534
        %v6047 = vsel %vm4127, %v5663, %v5535
        %v6048 = vsel %vm4128, %v5664, %v5536
        %v6049 = vsel %vm4129, %v5665, %v5537
        %v6050 = vsel %vm4130, %v5666, %v5538
        %v6051 = vsel %vm4131, %v5667, %v5539
        %v6052 = vsel %vm4132, %v5668, %v5540
        %v6053 = vsel %vm4133, %v5669, %v5541
        %v6054 = vsel %vm4134, %v5670, %v5542
        %v6055 = vsel %vm4135, %v5671, %v5543
        %v6056 = vsel %vm4136, %v5672, %v5544
        %v6057 = vsel %vm4137, %v5673, %v5545
        %v6058 = vsel %vm4138, %v5674, %v5546
        %v6059 = vsel %vm4139, %v5675, %v5547
        %v6060 = vsel %vm4140, %v5676, %v5548
        %v6061 = vsel %vm4141, %v5677, %v5549
        %v6062 = vsel %vm4142, %v5678, %v5550
        %v6063 = vsel %vm4143, %v5679, %v5551
        %v6064 = vsel %vm4144, %v5680, %v5552
        %v6065 = vsel %vm4145, %v5681, %v5553
        %v6066 = vsel %vm4146, %v5682, %v5554
        %v6067 = vsel %vm4147, %v5683, %v5555
        %v6068 = vsel %vm4148, %v5684, %v5556
        %v6069 = vsel %vm4149, %v5685, %v5557
        %v6070 = vsel %vm4150, %v5686, %v5558
        %v6071 = vsel %vm4151, %v5687, %v5559
        %v6072 = vsel %vm4152, %v5688, %v5560
        %v6073 = vsel %vm4153, %v5689, %v5561
        %v6074 = vsel %vm4154, %v5690, %v5562
        %v6075 = vsel %vm4155, %v5691, %v5563
        %v6076 = vsel %vm4156, %v5692, %v5564
        %v6077 = vsel %vm4157, %v5693, %v5565
        %v6078 = vsel %vm4158, %v5694, %v5566
        %v6079 = vsel %vm4159, %v5695, %v5567
        %v6080 = vsel %vm4160, %v5696, %v5568
        %v6081 = vsel %vm4161, %v5697, %v5569
        %v6082 = vsel %vm4162, %v5698, %v5570
        %v6083 = vsel %vm4163, %v5699, %v5571
        %v6084 = vsel %vm4164, %v5700, %v5572
        %v6085 = vsel %vm4165, %v5701, %v5573
        %v6086 = vsel %vm4166, %v5702, %v5574
        %v6087 = vsel %vm4167, %v5703, %v5575
        %v6088 = vsel %vm4168, %v5704, %v5576
        %v6089 = vsel %vm4169, %v5705, %v5577
        %v6090 = vsel %vm4170, %v5706, %v5578
        %v6091 = vsel %vm4171, %v5707, %v5579
        %v6092 = vsel %vm4172, %v5708, %v5580
        %v6093 = vsel %vm4173, %v5709, %v5581
        %v6094 = vsel %vm4174, %v5710, %v5582
        %v6095 = vsel %vm4175, %v5711, %v5583
        %v6096 = vsel %vm4176, %v5712, %v5584
        %v6097 = vsel %vm4177, %v5713, %v5585
        %v6098 = vsel %vm4178, %v5714, %v5586
        %v6099 = vsel %vm4179, %v5715, %v5587
        %v6100 = vsel %vm4180, %v5716, %v5588
        %v6101 = vsel %vm4181, %v5717, %v5589
        %v6102 = vsel %vm4182, %v5718, %v5590
        %v6103 = vsel %vm4183, %v5719, %v5591
        %v6104 = vsel %vm4184, %v5720, %v5592
        %v6105 = vsel %vm4185, %v5721, %v5593
        %v6106 = vsel %vm4186, %v5722, %v5594
        %v6107 = vsel %vm4187, %v5723, %v5595
        %v6108 = vsel %vm4188, %v5724, %v5596
        %v6109 = vsel %vm4189, %v5725, %v5597
        %v6110 = vsel %vm4190, %v5726, %v5598
        %v6111 = vsel %vm4191, %v5727, %v5599
        %v6112 = vsel %vm4192, %v5728, %v5600
        %v6113 = vsel %vm4193, %v5729, %v5601
        %v6114 = vsel %vm4194, %v5730, %v5602
        %v6115 = vsel %vm4195, %v5731, %v5603
        %v6116 = vsel %vm4196, %v5732, %v5604
        %v6117 = vsel %vm4197, %v5733, %v5605
        %v6118 = vsel %vm4070, %v5862, %v5734
        %v6119 = vsel %vm4071, %v5863, %v5735
        %v6120 = vsel %vm4072, %v5864, %v5736
        %v6121 = vsel %vm4073, %v5865, %v5737
        %v6122 = vsel %vm4074, %v5866, %v5738
        %v6123 = vsel %vm4075, %v5867, %v5739
        %v6124 = vsel %vm4076, %v5868, %v5740
        %v6125 = vsel %vm4077, %v5869, %v5741
        %v6126 = vsel %vm4078, %v5870, %v5742
        %v6127 = vsel %vm4079, %v5871, %v5743
        %v6128 = vsel %vm4080, %v5872, %v5744
        %v6129 = vsel %vm4081, %v5873, %v5745
        %v6130 = vsel %vm4082, %v5874, %v5746
        %v6131 = vsel %vm4083, %v5875, %v5747
        %v6132 = vsel %vm4084, %v5876, %v5748
        %v6133 = vsel %vm4085, %v5877, %v5749
        %v6134 = vsel %vm4086, %v5878, %v5750
        %v6135 = vsel %vm4087, %v5879, %v5751
        %v6136 = vsel %vm4088, %v5880, %v5752
        %v6137 = vsel %vm4089, %v5881, %v5753
        %v6138 = vsel %vm4090, %v5882, %v5754
        %v6139 = vsel %vm4091, %v5883, %v5755
        %v6140 = vsel %vm4092, %v5884, %v5756
        %v6141 = vsel %vm4093, %v5885, %v5757
        %v6142 = vsel %vm4094, %v5886, %v5758
        %v6143 = vsel %vm4095, %v5887, %v5759
        %v6144 = vsel %vm4096, %v5888, %v5760
        %v6145 = vsel %vm4097, %v5889, %v5761
        %v6146 = vsel %vm4098, %v5890, %v5762
        %v6147 = vsel %vm4099, %v5891, %v5763
        %v6148 = vsel %vm4100, %v5892, %v5764
        %v6149 = vsel %vm4101, %v5893, %v5765
        %v6150 = vsel %vm4102, %v5894, %v5766
        %v6151 = vsel %vm4103, %v5895, %v5767
        %v6152 = vsel %vm4104, %v5896, %v5768
        %v6153 = vsel %vm4105, %v5897, %v5769
        %v6154 = vsel %vm4106, %v5898, %v5770
        %v6155 = vsel %vm4107, %v5899, %v5771
        %v6156 = vsel %vm4108, %v5900, %v5772
        %v6157 = vsel %vm4109, %v5901, %v5773
        %v6158 = vsel %vm4110, %v5902, %v5774
        %v6159 = vsel %vm4111, %v5903, %v5775
        %v6160 = vsel %vm4112, %v5904, %v5776
        %v6161 = vsel %vm4113, %v5905, %v5777
        %v6162 = vsel %vm4114, %v5906, %v5778
        %v6163 = vsel %vm4115, %v5907, %v5779
        %v6164 = vsel %vm4116, %v5908, %v5780
        %v6165 = vsel %vm4117, %v5909, %v5781
        %v6166 = vsel %vm4118, %v5910, %v5782
        %v6167 = vsel %vm4119, %v5911, %v5783
        %v6168 = vsel %vm4120, %v5912, %v5784
        %v6169 = vsel %vm4121, %v5913, %v5785
        %v6170 = vsel %vm4122, %v5914, %v5786
        %v6171 = vsel %vm4123, %v5915, %v5787
        %v6172 = vsel %vm4124, %v5916, %v5788
        %v6173 = vsel %vm4125, %v5917, %v5789
        %v6174 = vsel %vm4126, %v5918, %v5790
        %v6175 = vsel %vm4127, %v5919, %v5791
        %v6176 = vsel %vm4128, %v5920, %v5792
        %v6177 = vsel %vm4129, %v5921, %v5793
        %v6178 = vsel %vm4130, %v5922, %v5794
        %v6179 = vsel %vm4131, %v5923, %v5795
        %v6180 = vsel %vm4132, %v5924, %v5796
        %v6181 = vsel %vm4133, %v5925, %v5797
        %v6182 = vsel %vm4134, %v5926, %v5798
        %v6183 = vsel %vm4135, %v5927, %v5799
        %v6184 = vsel %vm4136, %v5928, %v5800
        %v6185 = vsel %vm4137, %v5929, %v5801
        %v6186 = vsel %vm4138, %v5930, %v5802
        %v6187 = vsel %vm4139, %v5931, %v5803
        %v6188 = vsel %vm4140, %v5932, %v5804
        %v6189 = vsel %vm4141, %v5933, %v5805
        %v6190 = vsel %vm4142, %v5934, %v5806
        %v6191 = vsel %vm4143, %v5935, %v5807
        %v6192 = vsel %vm4144, %v5936, %v5808
        %v6193 = vsel %vm4145, %v5937, %v5809
        %v6194 = vsel %vm4146, %v5938, %v5810
        %v6195 = vsel %vm4147, %v5939, %v5811
        %v6196 = vsel %vm4148, %v5940, %v5812
        %v6197 = vsel %vm4149, %v5941, %v5813
        %v6198 = vsel %vm4150, %v5942, %v5814
        %v6199 = vsel %vm4151, %v5943, %v5815
        %v6200 = vsel %vm4152, %v5944, %v5816
        %v6201 = vsel %vm4153, %v5945, %v5817
        %v6202 = vsel %vm4154, %v5946, %v5818
        %v6203 = vsel %vm4155, %v5947, %v5819
        %v6204 = vsel %vm4156, %v5948, %v5820
        %v6205 = vsel %vm4157, %v5949, %v5821
        %v6206 = vsel %vm4158, %v5950, %v5822
        %v6207 = vsel %vm4159, %v5951, %v5823
        %v6208 = vsel %vm4160, %v5952, %v5824
        %v6209 = vsel %vm4161, %v5953, %v5825
        %v6210 = vsel %vm4162, %v5954, %v5826
        %v6211 = vsel %vm4163, %v5955, %v5827
        %v6212 = vsel %vm4164, %v5956, %v5828
        %v6213 = vsel %vm4165, %v5957, %v5829
        %v6214 = vsel %vm4166, %v5958, %v5830
        %v6215 = vsel %vm4167, %v5959, %v5831
        %v6216 = vsel %vm4168, %v5960, %v5832
        %v6217 = vsel %vm4169, %v5961, %v5833
        %v6218 = vsel %vm4170, %v5962, %v5834
        %v6219 = vsel %vm4171, %v5963, %v5835
        %v6220 = vsel %vm4172, %v5964, %v5836
        %v6221 = vsel %vm4173, %v5965, %v5837
        %v6222 = vsel %vm4174, %v5966, %v5838
        %v6223 = vsel %vm4175, %v5967, %v5839
        %v6224 = vsel %vm4176, %v5968, %v5840
        %v6225 = vsel %vm4177, %v5969, %v5841
        %v6226 = vsel %vm4178, %v5970, %v5842
        %v6227 = vsel %vm4179, %v5971, %v5843
        %v6228 = vsel %vm4180, %v5972, %v5844
        %v6229 = vsel %vm4181, %v5973, %v5845
        %v6230 = vsel %vm4182, %v5974, %v5846
        %v6231 = vsel %vm4183, %v5975, %v5847
        %v6232 = vsel %vm4184, %v5976, %v5848
        %v6233 = vsel %vm4185, %v5977, %v5849
        %v6234 = vsel %vm4186, %v5978, %v5850
        %v6235 = vsel %vm4187, %v5979, %v5851
        %v6236 = vsel %vm4188, %v5980, %v5852
        %v6237 = vsel %vm4189, %v5981, %v5853
        %v6238 = vsel %vm4190, %v5982, %v5854
        %v6239 = vsel %vm4191, %v5983, %v5855
        %v6240 = vsel %vm4192, %v5984, %v5856
        %v6241 = vsel %vm4193, %v5985, %v5857
        %v6242 = vsel %vm4194, %v5986, %v5858
        %v6243 = vsel %vm4195, %v5987, %v5859
        %v6244 = vsel %vm4196, %v5988, %v5860
        %v6245 = vsel %vm4197, %v5989, %v5861
        %v6246 = vsel %vm4326, %v6118, %v5990
        %v6247 = vsel %vm4327, %v6119, %v5991
        %v6248 = vsel %vm4328, %v6120, %v5992
        %v6249 = vsel %vm4329, %v6121, %v5993
        %v6250 = vsel %vm4330, %v6122, %v5994
        %v6251 = vsel %vm4331, %v6123, %v5995
        %v6252 = vsel %vm4332, %v6124, %v5996
        %v6253 = vsel %vm4333, %v6125, %v5997
        %v6254 = vsel %vm4334, %v6126, %v5998
        %v6255 = vsel %vm4335, %v6127, %v5999
        %v6256 = vsel %vm4336, %v6128, %v6000
        %v6257 = vsel %vm4337, %v6129, %v6001
        %v6258 = vsel %vm4338, %v6130, %v6002
        %v6259 = vsel %vm4339, %v6131, %v6003
        %v6260 = vsel %vm4340, %v6132, %v6004
        %v6261 = vsel %vm4341, %v6133, %v6005
        %v6262 = vsel %vm4342, %v6134, %v6006
        %v6263 = vsel %vm4343, %v6135, %v6007
        %v6264 = vsel %vm4344, %v6136, %v6008
        %v6265 = vsel %vm4345, %v6137, %v6009
        %v6266 = vsel %vm4346, %v6138, %v6010
        %v6267 = vsel %vm4347, %v6139, %v6011
        %v6268 = vsel %vm4348, %v6140, %v6012
        %v6269 = vsel %vm4349, %v6141, %v6013
        %v6270 = vsel %vm4350, %v6142, %v6014
        %v6271 = vsel %vm4351, %v6143, %v6015
        %v6272 = vsel %vm4352, %v6144, %v6016
        %v6273 = vsel %vm4353, %v6145, %v6017
        %v6274 = vsel %vm4354, %v6146, %v6018
        %v6275 = vsel %vm4355, %v6147, %v6019
        %v6276 = vsel %vm4356, %v6148, %v6020
        %v6277 = vsel %vm4357, %v6149, %v6021
        %v6278 = vsel %vm4358, %v6150, %v6022
        %v6279 = vsel %vm4359, %v6151, %v6023
        %v6280 = vsel %vm4360, %v6152, %v6024
        %v6281 = vsel %vm4361, %v6153, %v6025
        %v6282 = vsel %vm4362, %v6154, %v6026
        %v6283 = vsel %vm4363, %v6155, %v6027
        %v6284 = vsel %vm4364, %v6156, %v6028
        %v6285 = vsel %vm4365, %v6157, %v6029
        %v6286 = vsel %vm4366, %v6158, %v6030
        %v6287 = vsel %vm4367, %v6159, %v6031
        %v6288 = vsel %vm4368, %v6160, %v6032
        %v6289 = vsel %vm4369, %v6161, %v6033
        %v6290 = vsel %vm4370, %v6162, %v6034
        %v6291 = vsel %vm4371, %v6163, %v6035
        %v6292 = vsel %vm4372, %v6164, %v6036
        %v6293 = vsel %vm4373, %v6165, %v6037
        %v6294 = vsel %vm4374, %v6166, %v6038
        %v6295 = vsel %vm4375, %v6167, %v6039
        %v6296 = vsel %vm4376, %v6168, %v6040
        %v6297 = vsel %vm4377, %v6169, %v6041
        %v6298 = vsel %vm4378, %v6170, %v6042
        %v6299 = vsel %vm4379, %v6171, %v6043
        %v6300 = vsel %vm4380, %v6172, %v6044
        %v6301 = vsel %vm4381, %v6173, %v6045
        %v6302 = vsel %vm4382, %v6174, %v6046
        %v6303 = vsel %vm4383, %v6175, %v6047
        %v6304 = vsel %vm4384, %v6176, %v6048
        %v6305 = vsel %vm4385, %v6177, %v6049
        %v6306 = vsel %vm4386, %v6178, %v6050
        %v6307 = vsel %vm4387, %v6179, %v6051
        %v6308 = vsel %vm4388, %v6180, %v6052
        %v6309 = vsel %vm4389, %v6181, %v6053
        %v6310 = vsel %vm4390, %v6182, %v6054
        %v6311 = vsel %vm4391, %v6183, %v6055
        %v6312 = vsel %vm4392, %v6184, %v6056
        %v6313 = vsel %vm4393, %v6185, %v6057
        %v6314 = vsel %vm4394, %v6186, %v6058
        %v6315 = vsel %vm4395, %v6187, %v6059
        %v6316 = vsel %vm4396, %v6188, %v6060
        %v6317 = vsel %vm4397, %v6189, %v6061
        %v6318 = vsel %vm4398, %v6190, %v6062
        %v6319 = vsel %vm4399, %v6191, %v6063
        %v6320 = vsel %vm4400, %v6192, %v6064
        %v6321 = vsel %vm4401, %v6193, %v6065
        %v6322 = vsel %vm4402, %v6194, %v6066
        %v6323 = vsel %vm4403, %v6195, %v6067
        %v6324 = vsel %vm4404, %v6196, %v6068
        %v6325 = vsel %vm4405, %v6197, %v6069
        %v6326 = vsel %vm4406, %v6198, %v6070
        %v6327 = vsel %vm4407, %v6199, %v6071
        %v6328 = vsel %vm4408, %v6200, %v6072
        %v6329 = vsel %vm4409, %v6201, %v6073
        %v6330 = vsel %vm4410, %v6202, %v6074
        %v6331 = vsel %vm4411, %v6203, %v6075
        %v6332 = vsel %vm4412, %v6204, %v6076
        %v6333 = vsel %vm4413, %v6205, %v6077
        %v6334 = vsel %vm4414, %v6206, %v6078
        %v6335 = vsel %vm4415, %v6207, %v6079
        %v6336 = vsel %vm4416, %v6208, %v6080
        %v6337 = vsel %vm4417, %v6209, %v6081
        %v6338 = vsel %vm4418, %v6210, %v6082
        %v6339 = vsel %vm4419, %v6211, %v6083
        %v6340 = vsel %vm4420, %v6212, %v6084
        %v6341 = vsel %vm4421, %v6213, %v6085
        %v6342 = vsel %vm4422, %v6214, %v6086
        %v6343 = vsel %vm4423, %v6215, %v6087
        %v6344 = vsel %vm4424, %v6216, %v6088
        %v6345 = vsel %vm4425, %v6217, %v6089
        %v6346 = vsel %vm4426, %v6218, %v6090
        %v6347 = vsel %vm4427, %v6219, %v6091
        %v6348 = vsel %vm4428, %v6220, %v6092
        %v6349 = vsel %vm4429, %v6221, %v6093
        %v6350 = vsel %vm4430, %v6222, %v6094
        %v6351 = vsel %vm4431, %v6223, %v6095
        %v6352 = vsel %vm4432, %v6224, %v6096
        %v6353 = vsel %vm4433, %v6225, %v6097
        %v6354 = vsel %vm4434, %v6226, %v6098
        %v6355 = vsel %vm4435, %v6227, %v6099
        %v6356 = vsel %vm4436, %v6228, %v6100
        %v6357 = vsel %vm4437, %v6229, %v6101
        %v6358 = vsel %vm4438, %v6230, %v6102
        %v6359 = vsel %vm4439, %v6231, %v6103
        %v6360 = vsel %vm4440, %v6232, %v6104
        %v6361 = vsel %vm4441, %v6233, %v6105
        %v6362 = vsel %vm4442, %v6234, %v6106
        %v6363 = vsel %vm4443, %v6235, %v6107
        %v6364 = vsel %vm4444, %v6236, %v6108
        %v6365 = vsel %vm4445, %v6237, %v6109
        %v6366 = vsel %vm4446, %v6238, %v6110
        %v6367 = vsel %vm4447, %v6239, %v6111
        %v6368 = vsel %vm4448, %v6240, %v6112
        %v6369 = vsel %vm4449, %v6241, %v6113
        %v6370 = vsel %vm4450, %v6242, %v6114
        %v6371 = vsel %vm4451, %v6243, %v6115
        %v6372 = vsel %vm4452, %v6244, %v6116
        %v6373 = vsel %vm4453, %v6245, %v6117
        %v6374 = vld [vmem:[%s309] sm:$0xff]
        %v6375 = vld [vmem:[%s309 + $0x8] sm:$0xff]
        %v6376 = vld [vmem:[%s309 + $0x10] sm:$0xff]
        %v6377 = vld [vmem:[%s309 + $0x18] sm:$0xff]
        %v6378 = vld [vmem:[%s309 + $0x20] sm:$0xff]
        %v6379 = vld [vmem:[%s309 + $0x28] sm:$0xff]
        %v6380 = vld [vmem:[%s309 + $0x30] sm:$0xff]
        %v6381 = vld [vmem:[%s309 + $0x38] sm:$0xff]
        %v6382 = vld [vmem:[%s309 + $0x40] sm:$0xff]
        %v6383 = vld [vmem:[%s309 + $0x48] sm:$0xff]
        %v6384 = vld [vmem:[%s309 + $0x50] sm:$0xff]
        %v6385 = vld [vmem:[%s309 + $0x58] sm:$0xff]
        %v6386 = vld [vmem:[%s309 + $0x60] sm:$0xff]
        %v6387 = vld [vmem:[%s309 + $0x68] sm:$0xff]
        %v6388 = vld [vmem:[%s309 + $0x70] sm:$0xff]
        %v6389 = vld [vmem:[%s309 + $0x78] sm:$0xff]
        %v6390 = vld [vmem:[%s309 + $0x80] sm:$0xff]
        %v6391 = vld [vmem:[%s309 + $0x88] sm:$0xff]
        %v6392 = vld [vmem:[%s309 + $0x90] sm:$0xff]
        %v6393 = vld [vmem:[%s309 + $0x98] sm:$0xff]
        %v6394 = vld [vmem:[%s309 + $0xa0] sm:$0xff]
        %v6395 = vld [vmem:[%s309 + $0xa8] sm:$0xff]
        %v6396 = vld [vmem:[%s309 + $0xb0] sm:$0xff]
        %v6397 = vld [vmem:[%s309 + $0xb8] sm:$0xff]
        %v6398 = vld [vmem:[%s309 + $0xc0] sm:$0xff]
        %v6399 = vld [vmem:[%s309 + $0xc8] sm:$0xff]
        %v6400 = vld [vmem:[%s309 + $0xd0] sm:$0xff]
        %v6401 = vld [vmem:[%s309 + $0xd8] sm:$0xff]
        %v6402 = vld [vmem:[%s309 + $0xe0] sm:$0xff]
        %v6403 = vld [vmem:[%s309 + $0xe8] sm:$0xff]
        %v6404 = vld [vmem:[%s309 + $0xf0] sm:$0xff]
        %v6405 = vld [vmem:[%s309 + $0xf8] sm:$0xff]
        %6407 = vset.pattern.permute.xlu0 0
        %6408 = vperm.xlu0 %6407, %v6374
        %v6409 = vpop.permute.xlu0 %6408
        %6412 = vset.pattern.permute.xlu0 0
        %6413 = vperm.xlu0 %6412, %v6375
        %v6414 = vpop.permute.xlu0 %6413
        %6417 = vset.pattern.permute.xlu0 0
        %6418 = vperm.xlu0 %6417, %v6376
        %v6419 = vpop.permute.xlu0 %6418
        %6422 = vset.pattern.permute.xlu0 0
        %6423 = vperm.xlu0 %6422, %v6377
        %v6424 = vpop.permute.xlu0 %6423
        %6427 = vset.pattern.permute.xlu0 0
        %6428 = vperm.xlu0 %6427, %v6378
        %v6429 = vpop.permute.xlu0 %6428
        %6432 = vset.pattern.permute.xlu0 0
        %6433 = vperm.xlu0 %6432, %v6379
        %v6434 = vpop.permute.xlu0 %6433
        %6437 = vset.pattern.permute.xlu0 0
        %6438 = vperm.xlu0 %6437, %v6380
        %v6439 = vpop.permute.xlu0 %6438
        %6442 = vset.pattern.permute.xlu0 0
        %6443 = vperm.xlu0 %6442, %v6381
        %v6444 = vpop.permute.xlu0 %6443
        %6447 = vset.pattern.permute.xlu0 0
        %6448 = vperm.xlu0 %6447, %v6382
        %v6449 = vpop.permute.xlu0 %6448
        %6452 = vset.pattern.permute.xlu0 0
        %6453 = vperm.xlu0 %6452, %v6383
        %v6454 = vpop.permute.xlu0 %6453
        %6457 = vset.pattern.permute.xlu0 0
        %6458 = vperm.xlu0 %6457, %v6384
        %v6459 = vpop.permute.xlu0 %6458
        %6462 = vset.pattern.permute.xlu0 0
        %6463 = vperm.xlu0 %6462, %v6385
        %v6464 = vpop.permute.xlu0 %6463
        %6467 = vset.pattern.permute.xlu0 0
        %6468 = vperm.xlu0 %6467, %v6386
        %v6469 = vpop.permute.xlu0 %6468
        %6472 = vset.pattern.permute.xlu0 0
        %6473 = vperm.xlu0 %6472, %v6387
        %v6474 = vpop.permute.xlu0 %6473
        %6477 = vset.pattern.permute.xlu0 0
        %6478 = vperm.xlu0 %6477, %v6388
        %v6479 = vpop.permute.xlu0 %6478
        %6482 = vset.pattern.permute.xlu0 0
        %6483 = vperm.xlu0 %6482, %v6389
        %v6484 = vpop.permute.xlu0 %6483
        %6487 = vset.pattern.permute.xlu0 0
        %6488 = vperm.xlu0 %6487, %v6390
        %v6489 = vpop.permute.xlu0 %6488
        %6492 = vset.pattern.permute.xlu0 0
        %6493 = vperm.xlu0 %6492, %v6391
        %v6494 = vpop.permute.xlu0 %6493
        %6497 = vset.pattern.permute.xlu0 0
        %6498 = vperm.xlu0 %6497, %v6392
        %v6499 = vpop.permute.xlu0 %6498
        %6502 = vset.pattern.permute.xlu0 0
        %6503 = vperm.xlu0 %6502, %v6393
        %v6504 = vpop.permute.xlu0 %6503
        %6507 = vset.pattern.permute.xlu0 0
        %6508 = vperm.xlu0 %6507, %v6394
        %v6509 = vpop.permute.xlu0 %6508
        %6512 = vset.pattern.permute.xlu0 0
        %6513 = vperm.xlu0 %6512, %v6395
        %v6514 = vpop.permute.xlu0 %6513
        %6517 = vset.pattern.permute.xlu0 0
        %6518 = vperm.xlu0 %6517, %v6396
        %v6519 = vpop.permute.xlu0 %6518
        %6522 = vset.pattern.permute.xlu0 0
        %6523 = vperm.xlu0 %6522, %v6397
        %v6524 = vpop.permute.xlu0 %6523
        %6527 = vset.pattern.permute.xlu0 0
        %6528 = vperm.xlu0 %6527, %v6398
        %v6529 = vpop.permute.xlu0 %6528
        %6532 = vset.pattern.permute.xlu0 0
        %6533 = vperm.xlu0 %6532, %v6399
        %v6534 = vpop.permute.xlu0 %6533
        %6537 = vset.pattern.permute.xlu0 0
        %6538 = vperm.xlu0 %6537, %v6400
        %v6539 = vpop.permute.xlu0 %6538
        %6542 = vset.pattern.permute.xlu0 0
        %6543 = vperm.xlu0 %6542, %v6401
        %v6544 = vpop.permute.xlu0 %6543
        %6547 = vset.pattern.permute.xlu0 0
        %6548 = vperm.xlu0 %6547, %v6402
        %v6549 = vpop.permute.xlu0 %6548
        %6552 = vset.pattern.permute.xlu0 0
        %6553 = vperm.xlu0 %6552, %v6403
        %v6554 = vpop.permute.xlu0 %6553
        %6557 = vset.pattern.permute.xlu0 0
        %6558 = vperm.xlu0 %6557, %v6404
        %v6559 = vpop.permute.xlu0 %6558
        %6562 = vset.pattern.permute.xlu0 0
        %6563 = vperm.xlu0 %6562, %v6405
        %v6564 = vpop.permute.xlu0 %6563
        %v6566 = vmul.f32 %v3302, %v6409
        %v6567 = vmul.f32 %v3306, %v6414
        %v6568 = vmul.f32 %v3310, %v6419
        %v6569 = vmul.f32 %v3314, %v6424
        %v6570 = vmul.f32 %v3318, %v6429
        %v6571 = vmul.f32 %v3322, %v6434
        %v6572 = vmul.f32 %v3326, %v6439
        %v6573 = vmul.f32 %v3330, %v6444
        %v6574 = vmul.f32 %v3334, %v6449
        %v6575 = vmul.f32 %v3338, %v6454
        %v6576 = vmul.f32 %v3342, %v6459
        %v6577 = vmul.f32 %v3346, %v6464
        %v6578 = vmul.f32 %v3350, %v6469
        %v6579 = vmul.f32 %v3354, %v6474
        %v6580 = vmul.f32 %v3358, %v6479
        %v6581 = vmul.f32 %v3362, %v6484
        %v6582 = vmul.f32 %v3366, %v6489
        %v6583 = vmul.f32 %v3370, %v6494
        %v6584 = vmul.f32 %v3374, %v6499
        %v6585 = vmul.f32 %v3378, %v6504
        %v6586 = vmul.f32 %v3382, %v6509
        %v6587 = vmul.f32 %v3386, %v6514
        %v6588 = vmul.f32 %v3390, %v6519
        %v6589 = vmul.f32 %v3394, %v6524
        %v6590 = vmul.f32 %v3398, %v6529
        %v6591 = vmul.f32 %v3402, %v6534
        %v6592 = vmul.f32 %v3406, %v6539
        %v6593 = vmul.f32 %v3410, %v6544
        %v6594 = vmul.f32 %v3414, %v6549
        %v6595 = vmul.f32 %v3418, %v6554
        %v6596 = vmul.f32 %v3422, %v6559
        %v6597 = vmul.f32 %v3426, %v6564
        %6598 = vset.pattern.permute.xlu0 1
        %6599 = vperm.xlu0 %6598, %v6374
        %v6600 = vpop.permute.xlu0 %6599
        %6602 = vset.pattern.permute.xlu0 1
        %6603 = vperm.xlu0 %6602, %v6375
        %v6604 = vpop.permute.xlu0 %6603
        %6606 = vset.pattern.permute.xlu0 1
        %6607 = vperm.xlu0 %6606, %v6376
        %v6608 = vpop.permute.xlu0 %6607
        %6610 = vset.pattern.permute.xlu0 1
        %6611 = vperm.xlu0 %6610, %v6377
        %v6612 = vpop.permute.xlu0 %6611
        %6614 = vset.pattern.permute.xlu0 1
        %6615 = vperm.xlu0 %6614, %v6378
        %v6616 = vpop.permute.xlu0 %6615
        %6618 = vset.pattern.permute.xlu0 1
        %6619 = vperm.xlu0 %6618, %v6379
        %v6620 = vpop.permute.xlu0 %6619
        %6622 = vset.pattern.permute.xlu0 1
        %6623 = vperm.xlu0 %6622, %v6380
        %v6624 = vpop.permute.xlu0 %6623
        %6626 = vset.pattern.permute.xlu0 1
        %6627 = vperm.xlu0 %6626, %v6381
        %v6628 = vpop.permute.xlu0 %6627
        %6630 = vset.pattern.permute.xlu0 1
        %6631 = vperm.xlu0 %6630, %v6382
        %v6632 = vpop.permute.xlu0 %6631
        %6634 = vset.pattern.permute.xlu0 1
        %6635 = vperm.xlu0 %6634, %v6383
        %v6636 = vpop.permute.xlu0 %6635
        %6638 = vset.pattern.permute.xlu0 1
        %6639 = vperm.xlu0 %6638, %v6384
        %v6640 = vpop.permute.xlu0 %6639
        %6642 = vset.pattern.permute.xlu0 1
        %6643 = vperm.xlu0 %6642, %v6385
        %v6644 = vpop.permute.xlu0 %6643
        %6646 = vset.pattern.permute.xlu0 1
        %6647 = vperm.xlu0 %6646, %v6386
        %v6648 = vpop.permute.xlu0 %6647
        %6650 = vset.pattern.permute.xlu0 1
        %6651 = vperm.xlu0 %6650, %v6387
        %v6652 = vpop.permute.xlu0 %6651
        %6654 = vset.pattern.permute.xlu0 1
        %6655 = vperm.xlu0 %6654, %v6388
        %v6656 = vpop.permute.xlu0 %6655
        %6658 = vset.pattern.permute.xlu0 1
        %6659 = vperm.xlu0 %6658, %v6389
        %v6660 = vpop.permute.xlu0 %6659
        %6662 = vset.pattern.permute.xlu0 1
        %6663 = vperm.xlu0 %6662, %v6390
        %v6664 = vpop.permute.xlu0 %6663
        %6666 = vset.pattern.permute.xlu0 1
        %6667 = vperm.xlu0 %6666, %v6391
        %v6668 = vpop.permute.xlu0 %6667
        %6670 = vset.pattern.permute.xlu0 1
        %6671 = vperm.xlu0 %6670, %v6392
        %v6672 = vpop.permute.xlu0 %6671
        %6674 = vset.pattern.permute.xlu0 1
        %6675 = vperm.xlu0 %6674, %v6393
        %v6676 = vpop.permute.xlu0 %6675
        %6678 = vset.pattern.permute.xlu0 1
        %6679 = vperm.xlu0 %6678, %v6394
        %v6680 = vpop.permute.xlu0 %6679
        %6682 = vset.pattern.permute.xlu0 1
        %6683 = vperm.xlu0 %6682, %v6395
        %v6684 = vpop.permute.xlu0 %6683
        %6686 = vset.pattern.permute.xlu0 1
        %6687 = vperm.xlu0 %6686, %v6396
        %v6688 = vpop.permute.xlu0 %6687
        %6690 = vset.pattern.permute.xlu0 1
        %6691 = vperm.xlu0 %6690, %v6397
        %v6692 = vpop.permute.xlu0 %6691
        %6694 = vset.pattern.permute.xlu0 1
        %6695 = vperm.xlu0 %6694, %v6398
        %v6696 = vpop.permute.xlu0 %6695
        %6698 = vset.pattern.permute.xlu0 1
        %6699 = vperm.xlu0 %6698, %v6399
        %v6700 = vpop.permute.xlu0 %6699
        %6702 = vset.pattern.permute.xlu0 1
        %6703 = vperm.xlu0 %6702, %v6400
        %v6704 = vpop.permute.xlu0 %6703
        %6706 = vset.pattern.permute.xlu0 1
        %6707 = vperm.xlu0 %6706, %v6401
        %v6708 = vpop.permute.xlu0 %6707
        %6710 = vset.pattern.permute.xlu0 1
        %6711 = vperm.xlu0 %6710, %v6402
        %v6712 = vpop.permute.xlu0 %6711
        %6714 = vset.pattern.permute.xlu0 1
        %6715 = vperm.xlu0 %6714, %v6403
        %v6716 = vpop.permute.xlu0 %6715
        %6718 = vset.pattern.permute.xlu0 1
        %6719 = vperm.xlu0 %6718, %v6404
        %v6720 = vpop.permute.xlu0 %6719
        %6722 = vset.pattern.permute.xlu0 1
        %6723 = vperm.xlu0 %6722, %v6405
        %v6724 = vpop.permute.xlu0 %6723
        %v6726 = vmul.f32 %v3303, %v6600
        %v6727 = vmul.f32 %v3307, %v6604
        %v6728 = vmul.f32 %v3311, %v6608
        %v6729 = vmul.f32 %v3315, %v6612
        %v6730 = vmul.f32 %v3319, %v6616
        %v6731 = vmul.f32 %v3323, %v6620
        %v6732 = vmul.f32 %v3327, %v6624
        %v6733 = vmul.f32 %v3331, %v6628
        %v6734 = vmul.f32 %v3335, %v6632
        %v6735 = vmul.f32 %v3339, %v6636
        %v6736 = vmul.f32 %v3343, %v6640
        %v6737 = vmul.f32 %v3347, %v6644
        %v6738 = vmul.f32 %v3351, %v6648
        %v6739 = vmul.f32 %v3355, %v6652
        %v6740 = vmul.f32 %v3359, %v6656
        %v6741 = vmul.f32 %v3363, %v6660
        %v6742 = vmul.f32 %v3367, %v6664
        %v6743 = vmul.f32 %v3371, %v6668
        %v6744 = vmul.f32 %v3375, %v6672
        %v6745 = vmul.f32 %v3379, %v6676
        %v6746 = vmul.f32 %v3383, %v6680
        %v6747 = vmul.f32 %v3387, %v6684
        %v6748 = vmul.f32 %v3391, %v6688
        %v6749 = vmul.f32 %v3395, %v6692
        %v6750 = vmul.f32 %v3399, %v6696
        %v6751 = vmul.f32 %v3403, %v6700
        %v6752 = vmul.f32 %v3407, %v6704
        %v6753 = vmul.f32 %v3411, %v6708
        %v6754 = vmul.f32 %v3415, %v6712
        %v6755 = vmul.f32 %v3419, %v6716
        %v6756 = vmul.f32 %v3423, %v6720
        %v6757 = vmul.f32 %v3427, %v6724
        %6758 = vset.pattern.permute.xlu0 2
        %6759 = vperm.xlu0 %6758, %v6374
        %v6760 = vpop.permute.xlu0 %6759
        %6762 = vset.pattern.permute.xlu0 2
        %6763 = vperm.xlu0 %6762, %v6375
        %v6764 = vpop.permute.xlu0 %6763
        %6766 = vset.pattern.permute.xlu0 2
        %6767 = vperm.xlu0 %6766, %v6376
        %v6768 = vpop.permute.xlu0 %6767
        %6770 = vset.pattern.permute.xlu0 2
        %6771 = vperm.xlu0 %6770, %v6377
        %v6772 = vpop.permute.xlu0 %6771
        %6774 = vset.pattern.permute.xlu0 2
        %6775 = vperm.xlu0 %6774, %v6378
        %v6776 = vpop.permute.xlu0 %6775
        %6778 = vset.pattern.permute.xlu0 2
        %6779 = vperm.xlu0 %6778, %v6379
        %v6780 = vpop.permute.xlu0 %6779
        %6782 = vset.pattern.permute.xlu0 2
        %6783 = vperm.xlu0 %6782, %v6380
        %v6784 = vpop.permute.xlu0 %6783
        %6786 = vset.pattern.permute.xlu0 2
        %6787 = vperm.xlu0 %6786, %v6381
        %v6788 = vpop.permute.xlu0 %6787
        %6790 = vset.pattern.permute.xlu0 2
        %6791 = vperm.xlu0 %6790, %v6382
        %v6792 = vpop.permute.xlu0 %6791
        %6794 = vset.pattern.permute.xlu0 2
        %6795 = vperm.xlu0 %6794, %v6383
        %v6796 = vpop.permute.xlu0 %6795
        %6798 = vset.pattern.permute.xlu0 2
        %6799 = vperm.xlu0 %6798, %v6384
        %v6800 = vpop.permute.xlu0 %6799
        %6802 = vset.pattern.permute.xlu0 2
        %6803 = vperm.xlu0 %6802, %v6385
        %v6804 = vpop.permute.xlu0 %6803
        %6806 = vset.pattern.permute.xlu0 2
        %6807 = vperm.xlu0 %6806, %v6386
        %v6808 = vpop.permute.xlu0 %6807
        %6810 = vset.pattern.permute.xlu0 2
        %6811 = vperm.xlu0 %6810, %v6387
        %v6812 = vpop.permute.xlu0 %6811
        %6814 = vset.pattern.permute.xlu0 2
        %6815 = vperm.xlu0 %6814, %v6388
        %v6816 = vpop.permute.xlu0 %6815
        %6818 = vset.pattern.permute.xlu0 2
        %6819 = vperm.xlu0 %6818, %v6389
        %v6820 = vpop.permute.xlu0 %6819
        %6822 = vset.pattern.permute.xlu0 2
        %6823 = vperm.xlu0 %6822, %v6390
        %v6824 = vpop.permute.xlu0 %6823
        %6826 = vset.pattern.permute.xlu0 2
        %6827 = vperm.xlu0 %6826, %v6391
        %v6828 = vpop.permute.xlu0 %6827
        %6830 = vset.pattern.permute.xlu0 2
        %6831 = vperm.xlu0 %6830, %v6392
        %v6832 = vpop.permute.xlu0 %6831
        %6834 = vset.pattern.permute.xlu0 2
        %6835 = vperm.xlu0 %6834, %v6393
        %v6836 = vpop.permute.xlu0 %6835
        %6838 = vset.pattern.permute.xlu0 2
        %6839 = vperm.xlu0 %6838, %v6394
        %v6840 = vpop.permute.xlu0 %6839
        %6842 = vset.pattern.permute.xlu0 2
        %6843 = vperm.xlu0 %6842, %v6395
        %v6844 = vpop.permute.xlu0 %6843
        %6846 = vset.pattern.permute.xlu0 2
        %6847 = vperm.xlu0 %6846, %v6396
        %v6848 = vpop.permute.xlu0 %6847
        %6850 = vset.pattern.permute.xlu0 2
        %6851 = vperm.xlu0 %6850, %v6397
        %v6852 = vpop.permute.xlu0 %6851
        %6854 = vset.pattern.permute.xlu0 2
        %6855 = vperm.xlu0 %6854, %v6398
        %v6856 = vpop.permute.xlu0 %6855
        %6858 = vset.pattern.permute.xlu0 2
        %6859 = vperm.xlu0 %6858, %v6399
        %v6860 = vpop.permute.xlu0 %6859
        %6862 = vset.pattern.permute.xlu0 2
        %6863 = vperm.xlu0 %6862, %v6400
        %v6864 = vpop.permute.xlu0 %6863
        %6866 = vset.pattern.permute.xlu0 2
        %6867 = vperm.xlu0 %6866, %v6401
        %v6868 = vpop.permute.xlu0 %6867
        %6870 = vset.pattern.permute.xlu0 2
        %6871 = vperm.xlu0 %6870, %v6402
        %v6872 = vpop.permute.xlu0 %6871
        %6874 = vset.pattern.permute.xlu0 2
        %6875 = vperm.xlu0 %6874, %v6403
        %v6876 = vpop.permute.xlu0 %6875
        %6878 = vset.pattern.permute.xlu0 2
        %6879 = vperm.xlu0 %6878, %v6404
        %v6880 = vpop.permute.xlu0 %6879
        %6882 = vset.pattern.permute.xlu0 2
        %6883 = vperm.xlu0 %6882, %v6405
        %v6884 = vpop.permute.xlu0 %6883
        %v6886 = vmul.f32 %v3304, %v6760
        %v6887 = vmul.f32 %v3308, %v6764
        %v6888 = vmul.f32 %v3312, %v6768
        %v6889 = vmul.f32 %v3316, %v6772
        %v6890 = vmul.f32 %v3320, %v6776
        %v6891 = vmul.f32 %v3324, %v6780
        %v6892 = vmul.f32 %v3328, %v6784
        %v6893 = vmul.f32 %v3332, %v6788
        %v6894 = vmul.f32 %v3336, %v6792
        %v6895 = vmul.f32 %v3340, %v6796
        %v6896 = vmul.f32 %v3344, %v6800
        %v6897 = vmul.f32 %v3348, %v6804
        %v6898 = vmul.f32 %v3352, %v6808
        %v6899 = vmul.f32 %v3356, %v6812
        %v6900 = vmul.f32 %v3360, %v6816
        %v6901 = vmul.f32 %v3364, %v6820
        %v6902 = vmul.f32 %v3368, %v6824
        %v6903 = vmul.f32 %v3372, %v6828
        %v6904 = vmul.f32 %v3376, %v6832
        %v6905 = vmul.f32 %v3380, %v6836
        %v6906 = vmul.f32 %v3384, %v6840
        %v6907 = vmul.f32 %v3388, %v6844
        %v6908 = vmul.f32 %v3392, %v6848
        %v6909 = vmul.f32 %v3396, %v6852
        %v6910 = vmul.f32 %v3400, %v6856
        %v6911 = vmul.f32 %v3404, %v6860
        %v6912 = vmul.f32 %v3408, %v6864
        %v6913 = vmul.f32 %v3412, %v6868
        %v6914 = vmul.f32 %v3416, %v6872
        %v6915 = vmul.f32 %v3420, %v6876
        %v6916 = vmul.f32 %v3424, %v6880
        %v6917 = vmul.f32 %v3428, %v6884
        %6918 = vset.pattern.permute.xlu0 3
        %6919 = vperm.xlu0 %6918, %v6374
        %v6920 = vpop.permute.xlu0 %6919
        %6922 = vset.pattern.permute.xlu0 3
        %6923 = vperm.xlu0 %6922, %v6375
        %v6924 = vpop.permute.xlu0 %6923
        %6926 = vset.pattern.permute.xlu0 3
        %6927 = vperm.xlu0 %6926, %v6376
        %v6928 = vpop.permute.xlu0 %6927
        %6930 = vset.pattern.permute.xlu0 3
        %6931 = vperm.xlu0 %6930, %v6377
        %v6932 = vpop.permute.xlu0 %6931
        %6934 = vset.pattern.permute.xlu0 3
        %6935 = vperm.xlu0 %6934, %v6378
        %v6936 = vpop.permute.xlu0 %6935
        %6938 = vset.pattern.permute.xlu0 3
        %6939 = vperm.xlu0 %6938, %v6379
        %v6940 = vpop.permute.xlu0 %6939
        %6942 = vset.pattern.permute.xlu0 3
        %6943 = vperm.xlu0 %6942, %v6380
        %v6944 = vpop.permute.xlu0 %6943
        %6946 = vset.pattern.permute.xlu0 3
        %6947 = vperm.xlu0 %6946, %v6381
        %v6948 = vpop.permute.xlu0 %6947
        %6950 = vset.pattern.permute.xlu0 3
        %6951 = vperm.xlu0 %6950, %v6382
        %v6952 = vpop.permute.xlu0 %6951
        %6954 = vset.pattern.permute.xlu0 3
        %6955 = vperm.xlu0 %6954, %v6383
        %v6956 = vpop.permute.xlu0 %6955
        %6958 = vset.pattern.permute.xlu0 3
        %6959 = vperm.xlu0 %6958, %v6384
        %v6960 = vpop.permute.xlu0 %6959
        %6962 = vset.pattern.permute.xlu0 3
        %6963 = vperm.xlu0 %6962, %v6385
        %v6964 = vpop.permute.xlu0 %6963
        %6966 = vset.pattern.permute.xlu0 3
        %6967 = vperm.xlu0 %6966, %v6386
        %v6968 = vpop.permute.xlu0 %6967
        %6970 = vset.pattern.permute.xlu0 3
        %6971 = vperm.xlu0 %6970, %v6387
        %v6972 = vpop.permute.xlu0 %6971
        %6974 = vset.pattern.permute.xlu0 3
        %6975 = vperm.xlu0 %6974, %v6388
        %v6976 = vpop.permute.xlu0 %6975
        %6978 = vset.pattern.permute.xlu0 3
        %6979 = vperm.xlu0 %6978, %v6389
        %v6980 = vpop.permute.xlu0 %6979
        %6982 = vset.pattern.permute.xlu0 3
        %6983 = vperm.xlu0 %6982, %v6390
        %v6984 = vpop.permute.xlu0 %6983
        %6986 = vset.pattern.permute.xlu0 3
        %6987 = vperm.xlu0 %6986, %v6391
        %v6988 = vpop.permute.xlu0 %6987
        %6990 = vset.pattern.permute.xlu0 3
        %6991 = vperm.xlu0 %6990, %v6392
        %v6992 = vpop.permute.xlu0 %6991
        %6994 = vset.pattern.permute.xlu0 3
        %6995 = vperm.xlu0 %6994, %v6393
        %v6996 = vpop.permute.xlu0 %6995
        %6998 = vset.pattern.permute.xlu0 3
        %6999 = vperm.xlu0 %6998, %v6394
        %v7000 = vpop.permute.xlu0 %6999
        %7002 = vset.pattern.permute.xlu0 3
        %7003 = vperm.xlu0 %7002, %v6395
        %v7004 = vpop.permute.xlu0 %7003
        %7006 = vset.pattern.permute.xlu0 3
        %7007 = vperm.xlu0 %7006, %v6396
        %v7008 = vpop.permute.xlu0 %7007
        %7010 = vset.pattern.permute.xlu0 3
        %7011 = vperm.xlu0 %7010, %v6397
        %v7012 = vpop.permute.xlu0 %7011
        %7014 = vset.pattern.permute.xlu0 3
        %7015 = vperm.xlu0 %7014, %v6398
        %v7016 = vpop.permute.xlu0 %7015
        %7018 = vset.pattern.permute.xlu0 3
        %7019 = vperm.xlu0 %7018, %v6399
        %v7020 = vpop.permute.xlu0 %7019
        %7022 = vset.pattern.permute.xlu0 3
        %7023 = vperm.xlu0 %7022, %v6400
        %v7024 = vpop.permute.xlu0 %7023
        %7026 = vset.pattern.permute.xlu0 3
        %7027 = vperm.xlu0 %7026, %v6401
        %v7028 = vpop.permute.xlu0 %7027
        %7030 = vset.pattern.permute.xlu0 3
        %7031 = vperm.xlu0 %7030, %v6402
        %v7032 = vpop.permute.xlu0 %7031
        %7034 = vset.pattern.permute.xlu0 3
        %7035 = vperm.xlu0 %7034, %v6403
        %v7036 = vpop.permute.xlu0 %7035
        %7038 = vset.pattern.permute.xlu0 3
        %7039 = vperm.xlu0 %7038, %v6404
        %v7040 = vpop.permute.xlu0 %7039
        %7042 = vset.pattern.permute.xlu0 3
        %7043 = vperm.xlu0 %7042, %v6405
        %v7044 = vpop.permute.xlu0 %7043
        %v7046 = vmul.f32 %v3305, %v6920
        %v7047 = vmul.f32 %v3309, %v6924
        %v7048 = vmul.f32 %v3313, %v6928
        %v7049 = vmul.f32 %v3317, %v6932
        %v7050 = vmul.f32 %v3321, %v6936
        %v7051 = vmul.f32 %v3325, %v6940
        %v7052 = vmul.f32 %v3329, %v6944
        %v7053 = vmul.f32 %v3333, %v6948
        %v7054 = vmul.f32 %v3337, %v6952
        %v7055 = vmul.f32 %v3341, %v6956
        %v7056 = vmul.f32 %v3345, %v6960
        %v7057 = vmul.f32 %v3349, %v6964
        %v7058 = vmul.f32 %v3353, %v6968
        %v7059 = vmul.f32 %v3357, %v6972
        %v7060 = vmul.f32 %v3361, %v6976
        %v7061 = vmul.f32 %v3365, %v6980
        %v7062 = vmul.f32 %v3369, %v6984
        %v7063 = vmul.f32 %v3373, %v6988
        %v7064 = vmul.f32 %v3377, %v6992
        %v7065 = vmul.f32 %v3381, %v6996
        %v7066 = vmul.f32 %v3385, %v7000
        %v7067 = vmul.f32 %v3389, %v7004
        %v7068 = vmul.f32 %v3393, %v7008
        %v7069 = vmul.f32 %v3397, %v7012
        %v7070 = vmul.f32 %v3401, %v7016
        %v7071 = vmul.f32 %v3405, %v7020
        %v7072 = vmul.f32 %v3409, %v7024
        %v7073 = vmul.f32 %v3413, %v7028
        %v7074 = vmul.f32 %v3417, %v7032
        %v7075 = vmul.f32 %v3421, %v7036
        %v7076 = vmul.f32 %v3425, %v7040
        %v7077 = vmul.f32 %v3429, %v7044
        %v7078 = vpack.c.bf16 %v6567, %v6566
        %v7079 = vpack.c.bf16 %v6727, %v6726
        %v7080 = vpack.c.bf16 %v6887, %v6886
        %v7081 = vpack.c.bf16 %v7047, %v7046
        %v7082 = vpack.c.bf16 %v6569, %v6568
        %v7083 = vpack.c.bf16 %v6729, %v6728
        %v7084 = vpack.c.bf16 %v6889, %v6888
        %v7085 = vpack.c.bf16 %v7049, %v7048
        %v7086 = vpack.c.bf16 %v6571, %v6570
        %v7087 = vpack.c.bf16 %v6731, %v6730
        %v7088 = vpack.c.bf16 %v6891, %v6890
        %v7089 = vpack.c.bf16 %v7051, %v7050
        %v7090 = vpack.c.bf16 %v6573, %v6572
        %v7091 = vpack.c.bf16 %v6733, %v6732
        %v7092 = vpack.c.bf16 %v6893, %v6892
        %v7093 = vpack.c.bf16 %v7053, %v7052
        %v7094 = vpack.c.bf16 %v6575, %v6574
        %v7095 = vpack.c.bf16 %v6735, %v6734
        %v7096 = vpack.c.bf16 %v6895, %v6894
        %v7097 = vpack.c.bf16 %v7055, %v7054
        %v7098 = vpack.c.bf16 %v6577, %v6576
        %v7099 = vpack.c.bf16 %v6737, %v6736
        %v7100 = vpack.c.bf16 %v6897, %v6896
        %v7101 = vpack.c.bf16 %v7057, %v7056
        %v7102 = vpack.c.bf16 %v6579, %v6578
        %v7103 = vpack.c.bf16 %v6739, %v6738
        %v7104 = vpack.c.bf16 %v6899, %v6898
        %v7105 = vpack.c.bf16 %v7059, %v7058
        %v7106 = vpack.c.bf16 %v6581, %v6580
        %v7107 = vpack.c.bf16 %v6741, %v6740
        %v7108 = vpack.c.bf16 %v6901, %v6900
        %v7109 = vpack.c.bf16 %v7061, %v7060
        %v7110 = vpack.c.bf16 %v6583, %v6582
        %v7111 = vpack.c.bf16 %v6743, %v6742
        %v7112 = vpack.c.bf16 %v6903, %v6902
        %v7113 = vpack.c.bf16 %v7063, %v7062
        %v7114 = vpack.c.bf16 %v6585, %v6584
        %v7115 = vpack.c.bf16 %v6745, %v6744
        %v7116 = vpack.c.bf16 %v6905, %v6904
        %v7117 = vpack.c.bf16 %v7065, %v7064
        %v7118 = vpack.c.bf16 %v6587, %v6586
        %v7119 = vpack.c.bf16 %v6747, %v6746
        %v7120 = vpack.c.bf16 %v6907, %v6906
        %v7121 = vpack.c.bf16 %v7067, %v7066
        %v7122 = vpack.c.bf16 %v6589, %v6588
        %v7123 = vpack.c.bf16 %v6749, %v6748
        %v7124 = vpack.c.bf16 %v6909, %v6908
        %v7125 = vpack.c.bf16 %v7069, %v7068
        %v7126 = vpack.c.bf16 %v6591, %v6590
        %v7127 = vpack.c.bf16 %v6751, %v6750
        %v7128 = vpack.c.bf16 %v6911, %v6910
        %v7129 = vpack.c.bf16 %v7071, %v7070
        %v7130 = vpack.c.bf16 %v6593, %v6592
        %v7131 = vpack.c.bf16 %v6753, %v6752
        %v7132 = vpack.c.bf16 %v6913, %v6912
        %v7133 = vpack.c.bf16 %v7073, %v7072
        %v7134 = vpack.c.bf16 %v6595, %v6594
        %v7135 = vpack.c.bf16 %v6755, %v6754
        %v7136 = vpack.c.bf16 %v6915, %v6914
        %v7137 = vpack.c.bf16 %v7075, %v7074
        %v7138 = vpack.c.bf16 %v6597, %v6596
        %v7139 = vpack.c.bf16 %v6757, %v6756
        %v7140 = vpack.c.bf16 %v6917, %v6916
        %v7141 = vpack.c.bf16 %v7077, %v7076
        %7142 = vset.pattern.permute.xlu0 4
        %7143 = vperm.xlu0 %7142, %v6374
        %v7144 = vpop.permute.xlu0 %7143
        %7146 = vset.pattern.permute.xlu0 4
        %7147 = vperm.xlu0 %7146, %v6375
        %v7148 = vpop.permute.xlu0 %7147
        %7150 = vset.pattern.permute.xlu0 4
        %7151 = vperm.xlu0 %7150, %v6376
        %v7152 = vpop.permute.xlu0 %7151
        %7154 = vset.pattern.permute.xlu0 4
        %7155 = vperm.xlu0 %7154, %v6377
        %v7156 = vpop.permute.xlu0 %7155
        %7158 = vset.pattern.permute.xlu0 4
        %7159 = vperm.xlu0 %7158, %v6378
        %v7160 = vpop.permute.xlu0 %7159
        %7162 = vset.pattern.permute.xlu0 4
        %7163 = vperm.xlu0 %7162, %v6379
        %v7164 = vpop.permute.xlu0 %7163
        %7166 = vset.pattern.permute.xlu0 4
        %7167 = vperm.xlu0 %7166, %v6380
        %v7168 = vpop.permute.xlu0 %7167
        %7170 = vset.pattern.permute.xlu0 4
        %7171 = vperm.xlu0 %7170, %v6381
        %v7172 = vpop.permute.xlu0 %7171
        %7174 = vset.pattern.permute.xlu0 4
        %7175 = vperm.xlu0 %7174, %v6382
        %v7176 = vpop.permute.xlu0 %7175
        %7178 = vset.pattern.permute.xlu0 4
        %7179 = vperm.xlu0 %7178, %v6383
        %v7180 = vpop.permute.xlu0 %7179
        %7182 = vset.pattern.permute.xlu0 4
        %7183 = vperm.xlu0 %7182, %v6384
        %v7184 = vpop.permute.xlu0 %7183
        %7186 = vset.pattern.permute.xlu0 4
        %7187 = vperm.xlu0 %7186, %v6385
        %v7188 = vpop.permute.xlu0 %7187
        %7190 = vset.pattern.permute.xlu0 4
        %7191 = vperm.xlu0 %7190, %v6386
        %v7192 = vpop.permute.xlu0 %7191
        %7194 = vset.pattern.permute.xlu0 4
        %7195 = vperm.xlu0 %7194, %v6387
        %v7196 = vpop.permute.xlu0 %7195
        %7198 = vset.pattern.permute.xlu0 4
        %7199 = vperm.xlu0 %7198, %v6388
        %v7200 = vpop.permute.xlu0 %7199
        %7202 = vset.pattern.permute.xlu0 4
        %7203 = vperm.xlu0 %7202, %v6389
        %v7204 = vpop.permute.xlu0 %7203
        %7206 = vset.pattern.permute.xlu0 4
        %7207 = vperm.xlu0 %7206, %v6390
        %v7208 = vpop.permute.xlu0 %7207
        %7210 = vset.pattern.permute.xlu0 4
        %7211 = vperm.xlu0 %7210, %v6391
        %v7212 = vpop.permute.xlu0 %7211
        %7214 = vset.pattern.permute.xlu0 4
        %7215 = vperm.xlu0 %7214, %v6392
        %v7216 = vpop.permute.xlu0 %7215
        %7218 = vset.pattern.permute.xlu0 4
        %7219 = vperm.xlu0 %7218, %v6393
        %v7220 = vpop.permute.xlu0 %7219
        %7222 = vset.pattern.permute.xlu0 4
        %7223 = vperm.xlu0 %7222, %v6394
        %v7224 = vpop.permute.xlu0 %7223
        %7226 = vset.pattern.permute.xlu0 4
        %7227 = vperm.xlu0 %7226, %v6395
        %v7228 = vpop.permute.xlu0 %7227
        %7230 = vset.pattern.permute.xlu0 4
        %7231 = vperm.xlu0 %7230, %v6396
        %v7232 = vpop.permute.xlu0 %7231
        %7234 = vset.pattern.permute.xlu0 4
        %7235 = vperm.xlu0 %7234, %v6397
        %v7236 = vpop.permute.xlu0 %7235
        %7238 = vset.pattern.permute.xlu0 4
        %7239 = vperm.xlu0 %7238, %v6398
        %v7240 = vpop.permute.xlu0 %7239
        %7242 = vset.pattern.permute.xlu0 4
        %7243 = vperm.xlu0 %7242, %v6399
        %v7244 = vpop.permute.xlu0 %7243
        %7246 = vset.pattern.permute.xlu0 4
        %7247 = vperm.xlu0 %7246, %v6400
        %v7248 = vpop.permute.xlu0 %7247
        %7250 = vset.pattern.permute.xlu0 4
        %7251 = vperm.xlu0 %7250, %v6401
        %v7252 = vpop.permute.xlu0 %7251
        %7254 = vset.pattern.permute.xlu0 4
        %7255 = vperm.xlu0 %7254, %v6402
        %v7256 = vpop.permute.xlu0 %7255
        %7258 = vset.pattern.permute.xlu0 4
        %7259 = vperm.xlu0 %7258, %v6403
        %v7260 = vpop.permute.xlu0 %7259
        %7262 = vset.pattern.permute.xlu0 4
        %7263 = vperm.xlu0 %7262, %v6404
        %v7264 = vpop.permute.xlu0 %7263
        %7266 = vset.pattern.permute.xlu0 4
        %7267 = vperm.xlu0 %7266, %v6405
        %v7268 = vpop.permute.xlu0 %7267
        %v7270 = vmul.f32 %v6246, %v7144
        %v7271 = vmul.f32 %v6250, %v7148
        %v7272 = vmul.f32 %v6254, %v7152
        %v7273 = vmul.f32 %v6258, %v7156
        %v7274 = vmul.f32 %v6262, %v7160
        %v7275 = vmul.f32 %v6266, %v7164
        %v7276 = vmul.f32 %v6270, %v7168
        %v7277 = vmul.f32 %v6274, %v7172
        %v7278 = vmul.f32 %v6278, %v7176
        %v7279 = vmul.f32 %v6282, %v7180
        %v7280 = vmul.f32 %v6286, %v7184
        %v7281 = vmul.f32 %v6290, %v7188
        %v7282 = vmul.f32 %v6294, %v7192
        %v7283 = vmul.f32 %v6298, %v7196
        %v7284 = vmul.f32 %v6302, %v7200
        %v7285 = vmul.f32 %v6306, %v7204
        %v7286 = vmul.f32 %v6310, %v7208
        %v7287 = vmul.f32 %v6314, %v7212
        %v7288 = vmul.f32 %v6318, %v7216
        %v7289 = vmul.f32 %v6322, %v7220
        %v7290 = vmul.f32 %v6326, %v7224
        %v7291 = vmul.f32 %v6330, %v7228
        %v7292 = vmul.f32 %v6334, %v7232
        %v7293 = vmul.f32 %v6338, %v7236
        %v7294 = vmul.f32 %v6342, %v7240
        %v7295 = vmul.f32 %v6346, %v7244
        %v7296 = vmul.f32 %v6350, %v7248
        %v7297 = vmul.f32 %v6354, %v7252
        %v7298 = vmul.f32 %v6358, %v7256
        %v7299 = vmul.f32 %v6362, %v7260
        %v7300 = vmul.f32 %v6366, %v7264
        %v7301 = vmul.f32 %v6370, %v7268
        %7302 = vset.pattern.permute.xlu0 5
        %7303 = vperm.xlu0 %7302, %v6374
        %v7304 = vpop.permute.xlu0 %7303
        %7306 = vset.pattern.permute.xlu0 5
        %7307 = vperm.xlu0 %7306, %v6375
        %v7308 = vpop.permute.xlu0 %7307
        %7310 = vset.pattern.permute.xlu0 5
        %7311 = vperm.xlu0 %7310, %v6376
        %v7312 = vpop.permute.xlu0 %7311
        %7314 = vset.pattern.permute.xlu0 5
        %7315 = vperm.xlu0 %7314, %v6377
        %v7316 = vpop.permute.xlu0 %7315
        %7318 = vset.pattern.permute.xlu0 5
        %7319 = vperm.xlu0 %7318, %v6378
        %v7320 = vpop.permute.xlu0 %7319
        %7322 = vset.pattern.permute.xlu0 5
        %7323 = vperm.xlu0 %7322, %v6379
        %v7324 = vpop.permute.xlu0 %7323
        %7326 = vset.pattern.permute.xlu0 5
        %7327 = vperm.xlu0 %7326, %v6380
        %v7328 = vpop.permute.xlu0 %7327
        %7330 = vset.pattern.permute.xlu0 5
        %7331 = vperm.xlu0 %7330, %v6381
        %v7332 = vpop.permute.xlu0 %7331
        %7334 = vset.pattern.permute.xlu0 5
        %7335 = vperm.xlu0 %7334, %v6382
        %v7336 = vpop.permute.xlu0 %7335
        %7338 = vset.pattern.permute.xlu0 5
        %7339 = vperm.xlu0 %7338, %v6383
        %v7340 = vpop.permute.xlu0 %7339
        %7342 = vset.pattern.permute.xlu0 5
        %7343 = vperm.xlu0 %7342, %v6384
        %v7344 = vpop.permute.xlu0 %7343
        %7346 = vset.pattern.permute.xlu0 5
        %7347 = vperm.xlu0 %7346, %v6385
        %v7348 = vpop.permute.xlu0 %7347
        %7350 = vset.pattern.permute.xlu0 5
        %7351 = vperm.xlu0 %7350, %v6386
        %v7352 = vpop.permute.xlu0 %7351
        %7354 = vset.pattern.permute.xlu0 5
        %7355 = vperm.xlu0 %7354, %v6387
        %v7356 = vpop.permute.xlu0 %7355
        %7358 = vset.pattern.permute.xlu0 5
        %7359 = vperm.xlu0 %7358, %v6388
        %v7360 = vpop.permute.xlu0 %7359
        %7362 = vset.pattern.permute.xlu0 5
        %7363 = vperm.xlu0 %7362, %v6389
        %v7364 = vpop.permute.xlu0 %7363
        %7366 = vset.pattern.permute.xlu0 5
        %7367 = vperm.xlu0 %7366, %v6390
        %v7368 = vpop.permute.xlu0 %7367
        %7370 = vset.pattern.permute.xlu0 5
        %7371 = vperm.xlu0 %7370, %v6391
        %v7372 = vpop.permute.xlu0 %7371
        %7374 = vset.pattern.permute.xlu0 5
        %7375 = vperm.xlu0 %7374, %v6392
        %v7376 = vpop.permute.xlu0 %7375
        %7378 = vset.pattern.permute.xlu0 5
        %7379 = vperm.xlu0 %7378, %v6393
        %v7380 = vpop.permute.xlu0 %7379
        %7382 = vset.pattern.permute.xlu0 5
        %7383 = vperm.xlu0 %7382, %v6394
        %v7384 = vpop.permute.xlu0 %7383
        %7386 = vset.pattern.permute.xlu0 5
        %7387 = vperm.xlu0 %7386, %v6395
        %v7388 = vpop.permute.xlu0 %7387
        %7390 = vset.pattern.permute.xlu0 5
        %7391 = vperm.xlu0 %7390, %v6396
        %v7392 = vpop.permute.xlu0 %7391
        %7394 = vset.pattern.permute.xlu0 5
        %7395 = vperm.xlu0 %7394, %v6397
        %v7396 = vpop.permute.xlu0 %7395
        %7398 = vset.pattern.permute.xlu0 5
        %7399 = vperm.xlu0 %7398, %v6398
        %v7400 = vpop.permute.xlu0 %7399
        %7402 = vset.pattern.permute.xlu0 5
        %7403 = vperm.xlu0 %7402, %v6399
        %v7404 = vpop.permute.xlu0 %7403
        %7406 = vset.pattern.permute.xlu0 5
        %7407 = vperm.xlu0 %7406, %v6400
        %v7408 = vpop.permute.xlu0 %7407
        %7410 = vset.pattern.permute.xlu0 5
        %7411 = vperm.xlu0 %7410, %v6401
        %v7412 = vpop.permute.xlu0 %7411
        %7414 = vset.pattern.permute.xlu0 5
        %7415 = vperm.xlu0 %7414, %v6402
        %v7416 = vpop.permute.xlu0 %7415
        %7418 = vset.pattern.permute.xlu0 5
        %7419 = vperm.xlu0 %7418, %v6403
        %v7420 = vpop.permute.xlu0 %7419
        %7422 = vset.pattern.permute.xlu0 5
        %7423 = vperm.xlu0 %7422, %v6404
        %v7424 = vpop.permute.xlu0 %7423
        %7426 = vset.pattern.permute.xlu0 5
        %7427 = vperm.xlu0 %7426, %v6405
        %v7428 = vpop.permute.xlu0 %7427
        %v7430 = vmul.f32 %v6247, %v7304
        %v7431 = vmul.f32 %v6251, %v7308
        %v7432 = vmul.f32 %v6255, %v7312
        %v7433 = vmul.f32 %v6259, %v7316
        %v7434 = vmul.f32 %v6263, %v7320
        %v7435 = vmul.f32 %v6267, %v7324
        %v7436 = vmul.f32 %v6271, %v7328
        %v7437 = vmul.f32 %v6275, %v7332
        %v7438 = vmul.f32 %v6279, %v7336
        %v7439 = vmul.f32 %v6283, %v7340
        %v7440 = vmul.f32 %v6287, %v7344
        %v7441 = vmul.f32 %v6291, %v7348
        %v7442 = vmul.f32 %v6295, %v7352
        %v7443 = vmul.f32 %v6299, %v7356
        %v7444 = vmul.f32 %v6303, %v7360
        %v7445 = vmul.f32 %v6307, %v7364
        %v7446 = vmul.f32 %v6311, %v7368
        %v7447 = vmul.f32 %v6315, %v7372
        %v7448 = vmul.f32 %v6319, %v7376
        %v7449 = vmul.f32 %v6323, %v7380
        %v7450 = vmul.f32 %v6327, %v7384
        %v7451 = vmul.f32 %v6331, %v7388
        %v7452 = vmul.f32 %v6335, %v7392
        %v7453 = vmul.f32 %v6339, %v7396
        %v7454 = vmul.f32 %v6343, %v7400
        %v7455 = vmul.f32 %v6347, %v7404
        %v7456 = vmul.f32 %v6351, %v7408
        %v7457 = vmul.f32 %v6355, %v7412
        %v7458 = vmul.f32 %v6359, %v7416
        %v7459 = vmul.f32 %v6363, %v7420
        %v7460 = vmul.f32 %v6367, %v7424
        %v7461 = vmul.f32 %v6371, %v7428
        %7462 = vset.pattern.permute.xlu0 6
        %7463 = vperm.xlu0 %7462, %v6374
        %v7464 = vpop.permute.xlu0 %7463
        %7466 = vset.pattern.permute.xlu0 6
        %7467 = vperm.xlu0 %7466, %v6375
        %v7468 = vpop.permute.xlu0 %7467
        %7470 = vset.pattern.permute.xlu0 6
        %7471 = vperm.xlu0 %7470, %v6376
        %v7472 = vpop.permute.xlu0 %7471
        %7474 = vset.pattern.permute.xlu0 6
        %7475 = vperm.xlu0 %7474, %v6377
        %v7476 = vpop.permute.xlu0 %7475
        %7478 = vset.pattern.permute.xlu0 6
        %7479 = vperm.xlu0 %7478, %v6378
        %v7480 = vpop.permute.xlu0 %7479
        %7482 = vset.pattern.permute.xlu0 6
        %7483 = vperm.xlu0 %7482, %v6379
        %v7484 = vpop.permute.xlu0 %7483
        %7486 = vset.pattern.permute.xlu0 6
        %7487 = vperm.xlu0 %7486, %v6380
        %v7488 = vpop.permute.xlu0 %7487
        %7490 = vset.pattern.permute.xlu0 6
        %7491 = vperm.xlu0 %7490, %v6381
        %v7492 = vpop.permute.xlu0 %7491
        %7494 = vset.pattern.permute.xlu0 6
        %7495 = vperm.xlu0 %7494, %v6382
        %v7496 = vpop.permute.xlu0 %7495
        %7498 = vset.pattern.permute.xlu0 6
        %7499 = vperm.xlu0 %7498, %v6383
        %v7500 = vpop.permute.xlu0 %7499
        %7502 = vset.pattern.permute.xlu0 6
        %7503 = vperm.xlu0 %7502, %v6384
        %v7504 = vpop.permute.xlu0 %7503
        %7506 = vset.pattern.permute.xlu0 6
        %7507 = vperm.xlu0 %7506, %v6385
        %v7508 = vpop.permute.xlu0 %7507
        %7510 = vset.pattern.permute.xlu0 6
        %7511 = vperm.xlu0 %7510, %v6386
        %v7512 = vpop.permute.xlu0 %7511
        %7514 = vset.pattern.permute.xlu0 6
        %7515 = vperm.xlu0 %7514, %v6387
        %v7516 = vpop.permute.xlu0 %7515
        %7518 = vset.pattern.permute.xlu0 6
        %7519 = vperm.xlu0 %7518, %v6388
        %v7520 = vpop.permute.xlu0 %7519
        %7522 = vset.pattern.permute.xlu0 6
        %7523 = vperm.xlu0 %7522, %v6389
        %v7524 = vpop.permute.xlu0 %7523
        %7526 = vset.pattern.permute.xlu0 6
        %7527 = vperm.xlu0 %7526, %v6390
        %v7528 = vpop.permute.xlu0 %7527
        %7530 = vset.pattern.permute.xlu0 6
        %7531 = vperm.xlu0 %7530, %v6391
        %v7532 = vpop.permute.xlu0 %7531
        %7534 = vset.pattern.permute.xlu0 6
        %7535 = vperm.xlu0 %7534, %v6392
        %v7536 = vpop.permute.xlu0 %7535
        %7538 = vset.pattern.permute.xlu0 6
        %7539 = vperm.xlu0 %7538, %v6393
        %v7540 = vpop.permute.xlu0 %7539
        %7542 = vset.pattern.permute.xlu0 6
        %7543 = vperm.xlu0 %7542, %v6394
        %v7544 = vpop.permute.xlu0 %7543
        %7546 = vset.pattern.permute.xlu0 6
        %7547 = vperm.xlu0 %7546, %v6395
        %v7548 = vpop.permute.xlu0 %7547
        %7550 = vset.pattern.permute.xlu0 6
        %7551 = vperm.xlu0 %7550, %v6396
        %v7552 = vpop.permute.xlu0 %7551
        %7554 = vset.pattern.permute.xlu0 6
        %7555 = vperm.xlu0 %7554, %v6397
        %v7556 = vpop.permute.xlu0 %7555
        %7558 = vset.pattern.permute.xlu0 6
        %7559 = vperm.xlu0 %7558, %v6398
        %v7560 = vpop.permute.xlu0 %7559
        %7562 = vset.pattern.permute.xlu0 6
        %7563 = vperm.xlu0 %7562, %v6399
        %v7564 = vpop.permute.xlu0 %7563
        %7566 = vset.pattern.permute.xlu0 6
        %7567 = vperm.xlu0 %7566, %v6400
        %v7568 = vpop.permute.xlu0 %7567
        %7570 = vset.pattern.permute.xlu0 6
        %7571 = vperm.xlu0 %7570, %v6401
        %v7572 = vpop.permute.xlu0 %7571
        %7574 = vset.pattern.permute.xlu0 6
        %7575 = vperm.xlu0 %7574, %v6402
        %v7576 = vpop.permute.xlu0 %7575
        %7578 = vset.pattern.permute.xlu0 6
        %7579 = vperm.xlu0 %7578, %v6403
        %v7580 = vpop.permute.xlu0 %7579
        %7582 = vset.pattern.permute.xlu0 6
        %7583 = vperm.xlu0 %7582, %v6404
        %v7584 = vpop.permute.xlu0 %7583
        %7586 = vset.pattern.permute.xlu0 6
        %7587 = vperm.xlu0 %7586, %v6405
        %v7588 = vpop.permute.xlu0 %7587
        %v7590 = vmul.f32 %v6248, %v7464
        %v7591 = vmul.f32 %v6252, %v7468
        %v7592 = vmul.f32 %v6256, %v7472
        %v7593 = vmul.f32 %v6260, %v7476
        %v7594 = vmul.f32 %v6264, %v7480
        %v7595 = vmul.f32 %v6268, %v7484
        %v7596 = vmul.f32 %v6272, %v7488
        %v7597 = vmul.f32 %v6276, %v7492
        %v7598 = vmul.f32 %v6280, %v7496
        %v7599 = vmul.f32 %v6284, %v7500
        %v7600 = vmul.f32 %v6288, %v7504
        %v7601 = vmul.f32 %v6292, %v7508
        %v7602 = vmul.f32 %v6296, %v7512
        %v7603 = vmul.f32 %v6300, %v7516
        %v7604 = vmul.f32 %v6304, %v7520
        %v7605 = vmul.f32 %v6308, %v7524
        %v7606 = vmul.f32 %v6312, %v7528
        %v7607 = vmul.f32 %v6316, %v7532
        %v7608 = vmul.f32 %v6320, %v7536
        %v7609 = vmul.f32 %v6324, %v7540
        %v7610 = vmul.f32 %v6328, %v7544
        %v7611 = vmul.f32 %v6332, %v7548
        %v7612 = vmul.f32 %v6336, %v7552
        %v7613 = vmul.f32 %v6340, %v7556
        %v7614 = vmul.f32 %v6344, %v7560
        %v7615 = vmul.f32 %v6348, %v7564
        %v7616 = vmul.f32 %v6352, %v7568
        %v7617 = vmul.f32 %v6356, %v7572
        %v7618 = vmul.f32 %v6360, %v7576
        %v7619 = vmul.f32 %v6364, %v7580
        %v7620 = vmul.f32 %v6368, %v7584
        %v7621 = vmul.f32 %v6372, %v7588
        %7622 = vset.pattern.permute.xlu0 7
        %7623 = vperm.xlu0 %7622, %v6374
        %v7624 = vpop.permute.xlu0 %7623
        %7626 = vset.pattern.permute.xlu0 7
        %7627 = vperm.xlu0 %7626, %v6375
        %v7628 = vpop.permute.xlu0 %7627
        %7630 = vset.pattern.permute.xlu0 7
        %7631 = vperm.xlu0 %7630, %v6376
        %v7632 = vpop.permute.xlu0 %7631
        %7634 = vset.pattern.permute.xlu0 7
        %7635 = vperm.xlu0 %7634, %v6377
        %v7636 = vpop.permute.xlu0 %7635
        %7638 = vset.pattern.permute.xlu0 7
        %7639 = vperm.xlu0 %7638, %v6378
        %v7640 = vpop.permute.xlu0 %7639
        %7642 = vset.pattern.permute.xlu0 7
        %7643 = vperm.xlu0 %7642, %v6379
        %v7644 = vpop.permute.xlu0 %7643
        %7646 = vset.pattern.permute.xlu0 7
        %7647 = vperm.xlu0 %7646, %v6380
        %v7648 = vpop.permute.xlu0 %7647
        %7650 = vset.pattern.permute.xlu0 7
        %7651 = vperm.xlu0 %7650, %v6381
        %v7652 = vpop.permute.xlu0 %7651
        %7654 = vset.pattern.permute.xlu0 7
        %7655 = vperm.xlu0 %7654, %v6382
        %v7656 = vpop.permute.xlu0 %7655
        %7658 = vset.pattern.permute.xlu0 7
        %7659 = vperm.xlu0 %7658, %v6383
        %v7660 = vpop.permute.xlu0 %7659
        %7662 = vset.pattern.permute.xlu0 7
        %7663 = vperm.xlu0 %7662, %v6384
        %v7664 = vpop.permute.xlu0 %7663
        %7666 = vset.pattern.permute.xlu0 7
        %7667 = vperm.xlu0 %7666, %v6385
        %v7668 = vpop.permute.xlu0 %7667
        %7670 = vset.pattern.permute.xlu0 7
        %7671 = vperm.xlu0 %7670, %v6386
        %v7672 = vpop.permute.xlu0 %7671
        %7674 = vset.pattern.permute.xlu0 7
        %7675 = vperm.xlu0 %7674, %v6387
        %v7676 = vpop.permute.xlu0 %7675
        %7678 = vset.pattern.permute.xlu0 7
        %7679 = vperm.xlu0 %7678, %v6388
        %v7680 = vpop.permute.xlu0 %7679
        %7682 = vset.pattern.permute.xlu0 7
        %7683 = vperm.xlu0 %7682, %v6389
        %v7684 = vpop.permute.xlu0 %7683
        %7686 = vset.pattern.permute.xlu0 7
        %7687 = vperm.xlu0 %7686, %v6390
        %v7688 = vpop.permute.xlu0 %7687
        %7690 = vset.pattern.permute.xlu0 7
        %7691 = vperm.xlu0 %7690, %v6391
        %v7692 = vpop.permute.xlu0 %7691
        %7694 = vset.pattern.permute.xlu0 7
        %7695 = vperm.xlu0 %7694, %v6392
        %v7696 = vpop.permute.xlu0 %7695
        %7698 = vset.pattern.permute.xlu0 7
        %7699 = vperm.xlu0 %7698, %v6393
        %v7700 = vpop.permute.xlu0 %7699
        %7702 = vset.pattern.permute.xlu0 7
        %7703 = vperm.xlu0 %7702, %v6394
        %v7704 = vpop.permute.xlu0 %7703
        %7706 = vset.pattern.permute.xlu0 7
        %7707 = vperm.xlu0 %7706, %v6395
        %v7708 = vpop.permute.xlu0 %7707
        %7710 = vset.pattern.permute.xlu0 7
        %7711 = vperm.xlu0 %7710, %v6396
        %v7712 = vpop.permute.xlu0 %7711
        %7714 = vset.pattern.permute.xlu0 7
        %7715 = vperm.xlu0 %7714, %v6397
        %v7716 = vpop.permute.xlu0 %7715
        %7718 = vset.pattern.permute.xlu0 7
        %7719 = vperm.xlu0 %7718, %v6398
        %v7720 = vpop.permute.xlu0 %7719
        %7722 = vset.pattern.permute.xlu0 7
        %7723 = vperm.xlu0 %7722, %v6399
        %v7724 = vpop.permute.xlu0 %7723
        %7726 = vset.pattern.permute.xlu0 7
        %7727 = vperm.xlu0 %7726, %v6400
        %v7728 = vpop.permute.xlu0 %7727
        %7730 = vset.pattern.permute.xlu0 7
        %7731 = vperm.xlu0 %7730, %v6401
        %v7732 = vpop.permute.xlu0 %7731
        %7734 = vset.pattern.permute.xlu0 7
        %7735 = vperm.xlu0 %7734, %v6402
        %v7736 = vpop.permute.xlu0 %7735
        %7738 = vset.pattern.permute.xlu0 7
        %7739 = vperm.xlu0 %7738, %v6403
        %v7740 = vpop.permute.xlu0 %7739
        %7742 = vset.pattern.permute.xlu0 7
        %7743 = vperm.xlu0 %7742, %v6404
        %v7744 = vpop.permute.xlu0 %7743
        %7746 = vset.pattern.permute.xlu0 7
        %7747 = vperm.xlu0 %7746, %v6405
        %v7748 = vpop.permute.xlu0 %7747
        %v7750 = vmul.f32 %v6249, %v7624
        %v7751 = vmul.f32 %v6253, %v7628
        %v7752 = vmul.f32 %v6257, %v7632
        %v7753 = vmul.f32 %v6261, %v7636
        %v7754 = vmul.f32 %v6265, %v7640
        %v7755 = vmul.f32 %v6269, %v7644
        %v7756 = vmul.f32 %v6273, %v7648
        %v7757 = vmul.f32 %v6277, %v7652
        %v7758 = vmul.f32 %v6281, %v7656
        %v7759 = vmul.f32 %v6285, %v7660
        %v7760 = vmul.f32 %v6289, %v7664
        %v7761 = vmul.f32 %v6293, %v7668
        %v7762 = vmul.f32 %v6297, %v7672
        %v7763 = vmul.f32 %v6301, %v7676
        %v7764 = vmul.f32 %v6305, %v7680
        %v7765 = vmul.f32 %v6309, %v7684
        %v7766 = vmul.f32 %v6313, %v7688
        %v7767 = vmul.f32 %v6317, %v7692
        %v7768 = vmul.f32 %v6321, %v7696
        %v7769 = vmul.f32 %v6325, %v7700
        %v7770 = vmul.f32 %v6329, %v7704
        %v7771 = vmul.f32 %v6333, %v7708
        %v7772 = vmul.f32 %v6337, %v7712
        %v7773 = vmul.f32 %v6341, %v7716
        %v7774 = vmul.f32 %v6345, %v7720
        %v7775 = vmul.f32 %v6349, %v7724
        %v7776 = vmul.f32 %v6353, %v7728
        %v7777 = vmul.f32 %v6357, %v7732
        %v7778 = vmul.f32 %v6361, %v7736
        %v7779 = vmul.f32 %v6365, %v7740
        %v7780 = vmul.f32 %v6369, %v7744
        %v7781 = vmul.f32 %v6373, %v7748
        %v7782 = vpack.c.bf16 %v7271, %v7270
        %v7783 = vpack.c.bf16 %v7431, %v7430
        %v7784 = vpack.c.bf16 %v7591, %v7590
        %v7785 = vpack.c.bf16 %v7751, %v7750
        %v7786 = vpack.c.bf16 %v7273, %v7272
        %v7787 = vpack.c.bf16 %v7433, %v7432
        %v7788 = vpack.c.bf16 %v7593, %v7592
        %v7789 = vpack.c.bf16 %v7753, %v7752
        %v7790 = vpack.c.bf16 %v7275, %v7274
        %v7791 = vpack.c.bf16 %v7435, %v7434
        %v7792 = vpack.c.bf16 %v7595, %v7594
        %v7793 = vpack.c.bf16 %v7755, %v7754
        %v7794 = vpack.c.bf16 %v7277, %v7276
        %v7795 = vpack.c.bf16 %v7437, %v7436
        %v7796 = vpack.c.bf16 %v7597, %v7596
        %v7797 = vpack.c.bf16 %v7757, %v7756
        %v7798 = vpack.c.bf16 %v7279, %v7278
        %v7799 = vpack.c.bf16 %v7439, %v7438
        %v7800 = vpack.c.bf16 %v7599, %v7598
        %v7801 = vpack.c.bf16 %v7759, %v7758
        %v7802 = vpack.c.bf16 %v7281, %v7280
        %v7803 = vpack.c.bf16 %v7441, %v7440
        %v7804 = vpack.c.bf16 %v7601, %v7600
        %v7805 = vpack.c.bf16 %v7761, %v7760
        %v7806 = vpack.c.bf16 %v7283, %v7282
        %v7807 = vpack.c.bf16 %v7443, %v7442
        %v7808 = vpack.c.bf16 %v7603, %v7602
        %v7809 = vpack.c.bf16 %v7763, %v7762
        %v7810 = vpack.c.bf16 %v7285, %v7284
        %v7811 = vpack.c.bf16 %v7445, %v7444
        %v7812 = vpack.c.bf16 %v7605, %v7604
        %v7813 = vpack.c.bf16 %v7765, %v7764
        %v7814 = vpack.c.bf16 %v7287, %v7286
        %v7815 = vpack.c.bf16 %v7447, %v7446
        %v7816 = vpack.c.bf16 %v7607, %v7606
        %v7817 = vpack.c.bf16 %v7767, %v7766
        %v7818 = vpack.c.bf16 %v7289, %v7288
        %v7819 = vpack.c.bf16 %v7449, %v7448
        %v7820 = vpack.c.bf16 %v7609, %v7608
        %v7821 = vpack.c.bf16 %v7769, %v7768
        %v7822 = vpack.c.bf16 %v7291, %v7290
        %v7823 = vpack.c.bf16 %v7451, %v7450
        %v7824 = vpack.c.bf16 %v7611, %v7610
        %v7825 = vpack.c.bf16 %v7771, %v7770
        %v7826 = vpack.c.bf16 %v7293, %v7292
        %v7827 = vpack.c.bf16 %v7453, %v7452
        %v7828 = vpack.c.bf16 %v7613, %v7612
        %v7829 = vpack.c.bf16 %v7773, %v7772
        %v7830 = vpack.c.bf16 %v7295, %v7294
        %v7831 = vpack.c.bf16 %v7455, %v7454
        %v7832 = vpack.c.bf16 %v7615, %v7614
        %v7833 = vpack.c.bf16 %v7775, %v7774
        %v7834 = vpack.c.bf16 %v7297, %v7296
        %v7835 = vpack.c.bf16 %v7457, %v7456
        %v7836 = vpack.c.bf16 %v7617, %v7616
        %v7837 = vpack.c.bf16 %v7777, %v7776
        %v7838 = vpack.c.bf16 %v7299, %v7298
        %v7839 = vpack.c.bf16 %v7459, %v7458
        %v7840 = vpack.c.bf16 %v7619, %v7618
        %v7841 = vpack.c.bf16 %v7779, %v7778
        %v7842 = vpack.c.bf16 %v7301, %v7300
        %v7843 = vpack.c.bf16 %v7461, %v7460
        %v7844 = vpack.c.bf16 %v7621, %v7620
        %v7845 = vpack.c.bf16 %v7781, %v7780
        %s7846 = smul.u32 %s26, 1024
        %s7847 = sadd.s32 %s7846, 512
        %s7848 = sshra.s32 %s7846, 7
        %s7849 = sand.u32 %s7846, 127
        %s7850 = smul.addr %s7848, 4
        %s7851 = scalar_lea.vmem [#allocation3], %s7850
        %v7852 = vld [vmem:[%s7851] sm:$0xff]
        %v7853 = vld [vmem:[%s7851 + $0x8] sm:$0xff]
        %v7854 = vld [vmem:[%s7851 + $0x20] sm:$0xff]
        %v7855 = vld [vmem:[%s7851 + $0x28] sm:$0xff]
        %s7856 = sshra.s32 %s7847, 7
        %s7857 = sand.u32 %s7847, 127
        %s7858 = smul.addr %s7856, 4
        %s7859 = scalar_lea.vmem [#allocation3], %s7858
        %v7860 = vld [vmem:[%s7859] sm:$0xff]
        %v7861 = vld [vmem:[%s7859 + $0x8] sm:$0xff]
        %v7862 = vld [vmem:[%s7859 + $0x20] sm:$0xff]
        %v7863 = vld [vmem:[%s7859 + $0x28] sm:$0xff]
        %v7868 = vunpack.c.l.b16 %v7860
        %v7869 = vunpack.c.h.b16 %v7860
        %v7870 = vunpack.c.l.b16 %v7861
        %v7871 = vunpack.c.h.b16 %v7861
        %v7872 = vunpack.c.l.b16 %v7862
        %v7873 = vunpack.c.h.b16 %v7862
        %v7874 = vunpack.c.l.b16 %v7863
        %v7875 = vunpack.c.h.b16 %v7863
        %v7876 = vpack.c.b16 %v7872, %v7868
        %v7877 = vpack.c.b16 %v7873, %v7869
        %v7878 = vpack.c.b16 %v7874, %v7870
        %v7879 = vpack.c.b16 %v7875, %v7871
        %7884 = vmatprep.subr.bf16.mxu0 %v7783
        %7885 = vmatpush1.bf16.xpose.msra.mxu0 %v7782
        %7886 = vmatprep.subr.bf16.mxu0 %v7787
        %7887 = vmatpush1.bf16.xpose.msra.mxu0 %v7786
        %7888 = vmatprep.subr.bf16.mxu0 %v7791
        %7889 = vmatpush1.bf16.xpose.msra.mxu0 %v7790
        %7890 = vmatprep.subr.bf16.mxu0 %v7795
        %7891 = vmatpush1.bf16.xpose.msra.mxu0 %v7794
        %7892 = vmatprep.subr.bf16.mxu0 %v7799
        %7893 = vmatpush1.bf16.xpose.msra.mxu0 %v7798
        %7894 = vmatprep.subr.bf16.mxu0 %v7803
        %7895 = vmatpush1.bf16.xpose.msra.mxu0 %v7802
        %7896 = vmatprep.subr.bf16.mxu0 %v7807
        %7897 = vmatpush1.bf16.xpose.msra.mxu0 %v7806
        %7898 = vmatprep.subr.bf16.mxu0 %v7811
        %7899 = vmatpush1.bf16.xpose.msra.mxu0 %v7810
        %7900 = vmatprep.subr.bf16.mxu0 %v7815
        %7901 = vmatpush1.bf16.xpose.msra.mxu0 %v7814
        %7902 = vmatprep.subr.bf16.mxu0 %v7819
        %7903 = vmatpush1.bf16.xpose.msra.mxu0 %v7818
        %7904 = vmatprep.subr.bf16.mxu0 %v7823
        %7905 = vmatpush1.bf16.xpose.msra.mxu0 %v7822
        %7906 = vmatprep.subr.bf16.mxu0 %v7827
        %7907 = vmatpush1.bf16.xpose.msra.mxu0 %v7826
        %7908 = vmatprep.subr.bf16.mxu0 %v7831
        %7909 = vmatpush1.bf16.xpose.msra.mxu0 %v7830
        %7910 = vmatprep.subr.bf16.mxu0 %v7835
        %7911 = vmatpush1.bf16.xpose.msra.mxu0 %v7834
        %7912 = vmatprep.subr.bf16.mxu0 %v7839
        %7913 = vmatpush1.bf16.xpose.msra.mxu0 %v7838
        %7914 = vmatprep.subr.bf16.mxu0 %v7843
        %7915 = vmatpush1.bf16.xpose.msra.mxu0 %v7842
        %7916 = vmatprep.mubr.bf16.mxu0 %v7877
        %7917 = vmatmul.mubr.bf16.gmra.mrb[0].mxu0 %v7876
        %v7918 = vpop.f32.mrb[0].mxu0
        %v7919 = vadd.f32 0.0, %v7918
        %v7920 = vpop.f32.mrb[0].mxu0
        %v7921 = vadd.f32 0.0, %v7920
        %v7922 = vpop.f32.mrb[0].mxu0
        %v7923 = vadd.f32 0.0, %v7922
        %v7924 = vpop.f32.mrb[0].mxu0
        %v7925 = vadd.f32 0.0, %v7924
        %7926 = vdwg.mxu0
        %7927 = vmatprep.subr.bf16.mxu0 %v7785
        %7928 = vmatpush1.bf16.xpose.msra.mxu0 %v7784
        %7929 = vmatprep.subr.bf16.mxu0 %v7789
        %7930 = vmatpush1.bf16.xpose.msra.mxu0 %v7788
        %7931 = vmatprep.subr.bf16.mxu0 %v7793
        %7932 = vmatpush1.bf16.xpose.msra.mxu0 %v7792
        %7933 = vmatprep.subr.bf16.mxu0 %v7797
        %7934 = vmatpush1.bf16.xpose.msra.mxu0 %v7796
        %7935 = vmatprep.subr.bf16.mxu0 %v7801
        %7936 = vmatpush1.bf16.xpose.msra.mxu0 %v7800
        %7937 = vmatprep.subr.bf16.mxu0 %v7805
        %7938 = vmatpush1.bf16.xpose.msra.mxu0 %v7804
        %7939 = vmatprep.subr.bf16.mxu0 %v7809
        %7940 = vmatpush1.bf16.xpose.msra.mxu0 %v7808
        %7941 = vmatprep.subr.bf16.mxu0 %v7813
        %7942 = vmatpush1.bf16.xpose.msra.mxu0 %v7812
        %7943 = vmatprep.subr.bf16.mxu0 %v7817
        %7944 = vmatpush1.bf16.xpose.msra.mxu0 %v7816
        %7945 = vmatprep.subr.bf16.mxu0 %v7821
        %7946 = vmatpush1.bf16.xpose.msra.mxu0 %v7820
        %7947 = vmatprep.subr.bf16.mxu0 %v7825
        %7948 = vmatpush1.bf16.xpose.msra.mxu0 %v7824
        %7949 = vmatprep.subr.bf16.mxu0 %v7829
        %7950 = vmatpush1.bf16.xpose.msra.mxu0 %v7828
        %7951 = vmatprep.subr.bf16.mxu0 %v7833
        %7952 = vmatpush1.bf16.xpose.msra.mxu0 %v7832
        %7953 = vmatprep.subr.bf16.mxu0 %v7837
        %7954 = vmatpush1.bf16.xpose.msra.mxu0 %v7836
        %7955 = vmatprep.subr.bf16.mxu0 %v7841
        %7956 = vmatpush1.bf16.xpose.msra.mxu0 %v7840
        %7957 = vmatprep.subr.bf16.mxu0 %v7845
        %7958 = vmatpush1.bf16.xpose.msra.mxu0 %v7844
        %7959 = vmatprep.mubr.bf16.mxu0 %v7879
        %7960 = vmatmul.mubr.bf16.gmra.mrb[0].mxu0 %v7878
        %v7961 = vpop.f32.mrb[0].mxu0
        %v7962 = vadd.f32 %v7919, %v7961
        %v7963 = vpop.f32.mrb[0].mxu0
        %v7964 = vadd.f32 %v7921, %v7963
        %v7965 = vpop.f32.mrb[0].mxu0
        %v7966 = vadd.f32 %v7923, %v7965
        %v7967 = vpop.f32.mrb[0].mxu0
        %v7968 = vadd.f32 %v7925, %v7967
        %7969 = vdwg.mxu0
        %v7974 = vunpack.c.l.b16 %v7852
        %v7975 = vunpack.c.h.b16 %v7852
        %v7976 = vunpack.c.l.b16 %v7853
        %v7977 = vunpack.c.h.b16 %v7853
        %v7978 = vunpack.c.l.b16 %v7854
        %v7979 = vunpack.c.h.b16 %v7854
        %v7980 = vunpack.c.l.b16 %v7855
        %v7981 = vunpack.c.h.b16 %v7855
        %v7982 = vpack.c.b16 %v7978, %v7974
        %v7983 = vpack.c.b16 %v7979, %v7975
        %v7984 = vpack.c.b16 %v7980, %v7976
        %v7985 = vpack.c.b16 %v7981, %v7977
        %7990 = vmatprep.subr.bf16.mxu0 %v7079
        %7991 = vmatpush1.bf16.xpose.msra.mxu0 %v7078
        %7992 = vmatprep.subr.bf16.mxu0 %v7083
        %7993 = vmatpush1.bf16.xpose.msra.mxu0 %v7082
        %7994 = vmatprep.subr.bf16.mxu0 %v7087
        %7995 = vmatpush1.bf16.xpose.msra.mxu0 %v7086
        %7996 = vmatprep.subr.bf16.mxu0 %v7091
        %7997 = vmatpush1.bf16.xpose.msra.mxu0 %v7090
        %7998 = vmatprep.subr.bf16.mxu0 %v7095
        %7999 = vmatpush1.bf16.xpose.msra.mxu0 %v7094
        %8000 = vmatprep.subr.bf16.mxu0 %v7099
        %8001 = vmatpush1.bf16.xpose.msra.mxu0 %v7098
        %8002 = vmatprep.subr.bf16.mxu0 %v7103
        %8003 = vmatpush1.bf16.xpose.msra.mxu0 %v7102
        %8004 = vmatprep.subr.bf16.mxu0 %v7107
        %8005 = vmatpush1.bf16.xpose.msra.mxu0 %v7106
        %8006 = vmatprep.subr.bf16.mxu0 %v7111
        %8007 = vmatpush1.bf16.xpose.msra.mxu0 %v7110
        %8008 = vmatprep.subr.bf16.mxu0 %v7115
        %8009 = vmatpush1.bf16.xpose.msra.mxu0 %v7114
        %8010 = vmatprep.subr.bf16.mxu0 %v7119
        %8011 = vmatpush1.bf16.xpose.msra.mxu0 %v7118
        %8012 = vmatprep.subr.bf16.mxu0 %v7123
        %8013 = vmatpush1.bf16.xpose.msra.mxu0 %v7122
        %8014 = vmatprep.subr.bf16.mxu0 %v7127
        %8015 = vmatpush1.bf16.xpose.msra.mxu0 %v7126
        %8016 = vmatprep.subr.bf16.mxu0 %v7131
        %8017 = vmatpush1.bf16.xpose.msra.mxu0 %v7130
        %8018 = vmatprep.subr.bf16.mxu0 %v7135
        %8019 = vmatpush1.bf16.xpose.msra.mxu0 %v7134
        %8020 = vmatprep.subr.bf16.mxu0 %v7139
        %8021 = vmatpush1.bf16.xpose.msra.mxu0 %v7138
        %8022 = vmatprep.mubr.bf16.mxu0 %v7983
        %8023 = vmatmul.mubr.bf16.gmra.mrb[0].mxu0 %v7982
        %v8024 = vpop.f32.mrb[0].mxu0
        %v8025 = vadd.f32 %v7962, %v8024
        %v8026 = vpop.f32.mrb[0].mxu0
        %v8027 = vadd.f32 %v7964, %v8026
        %v8028 = vpop.f32.mrb[0].mxu0
        %v8029 = vadd.f32 %v7966, %v8028
        %v8030 = vpop.f32.mrb[0].mxu0
        %v8031 = vadd.f32 %v7968, %v8030
        %8032 = vdwg.mxu0
        %8033 = vmatprep.subr.bf16.mxu0 %v7081
        %8034 = vmatpush1.bf16.xpose.msra.mxu0 %v7080
        %8035 = vmatprep.subr.bf16.mxu0 %v7085
        %8036 = vmatpush1.bf16.xpose.msra.mxu0 %v7084
        %8037 = vmatprep.subr.bf16.mxu0 %v7089
        %8038 = vmatpush1.bf16.xpose.msra.mxu0 %v7088
        %8039 = vmatprep.subr.bf16.mxu0 %v7093
        %8040 = vmatpush1.bf16.xpose.msra.mxu0 %v7092
        %8041 = vmatprep.subr.bf16.mxu0 %v7097
        %8042 = vmatpush1.bf16.xpose.msra.mxu0 %v7096
        %8043 = vmatprep.subr.bf16.mxu0 %v7101
        %8044 = vmatpush1.bf16.xpose.msra.mxu0 %v7100
        %8045 = vmatprep.subr.bf16.mxu0 %v7105
        %8046 = vmatpush1.bf16.xpose.msra.mxu0 %v7104
        %8047 = vmatprep.subr.bf16.mxu0 %v7109
        %8048 = vmatpush1.bf16.xpose.msra.mxu0 %v7108
        %8049 = vmatprep.subr.bf16.mxu0 %v7113
        %8050 = vmatpush1.bf16.xpose.msra.mxu0 %v7112
        %8051 = vmatprep.subr.bf16.mxu0 %v7117
        %8052 = vmatpush1.bf16.xpose.msra.mxu0 %v7116
        %8053 = vmatprep.subr.bf16.mxu0 %v7121
        %8054 = vmatpush1.bf16.xpose.msra.mxu0 %v7120
        %8055 = vmatprep.subr.bf16.mxu0 %v7125
        %8056 = vmatpush1.bf16.xpose.msra.mxu0 %v7124
        %8057 = vmatprep.subr.bf16.mxu0 %v7129
        %8058 = vmatpush1.bf16.xpose.msra.mxu0 %v7128
        %8059 = vmatprep.subr.bf16.mxu0 %v7133
        %8060 = vmatpush1.bf16.xpose.msra.mxu0 %v7132
        %8061 = vmatprep.subr.bf16.mxu0 %v7137
        %8062 = vmatpush1.bf16.xpose.msra.mxu0 %v7136
        %8063 = vmatprep.subr.bf16.mxu0 %v7141
        %8064 = vmatpush1.bf16.xpose.msra.mxu0 %v7140
        %8065 = vmatprep.mubr.bf16.mxu0 %v7985
        %8066 = vmatmul.mubr.bf16.gmra.mrb[0].mxu0 %v7984
        %v8067 = vpop.f32.mrb[0].mxu0
        %v8068 = vadd.f32 %v8025, %v8067
        %v8069 = vpop.f32.mrb[0].mxu0
        %v8070 = vadd.f32 %v8027, %v8069
        %v8071 = vpop.f32.mrb[0].mxu0
        %v8072 = vadd.f32 %v8029, %v8071
        %v8073 = vpop.f32.mrb[0].mxu0
        %v8074 = vadd.f32 %v8031, %v8073
        %8075 = vdwg.mxu0
        %v8076 = vld [vmem:[#allocation2] sm:$0xff]
        %v8077 = vld [vmem:[#allocation2 + $0x8] sm:$0xff]
        %v8078 = vld [vmem:[#allocation2 + $0x10] sm:$0xff]
        %v8079 = vld [vmem:[#allocation2 + $0x18] sm:$0xff]
        %v8080 = vadd.f32 %v8076, %v8068
        %v8081 = vadd.f32 %v8077, %v8070
        %v8082 = vadd.f32 %v8078, %v8072
        %v8083 = vadd.f32 %v8079, %v8074
        %8084 = vst [vmem:[#allocation2] sm:$0xff] %v8080
        %8085 = vst [vmem:[#allocation2 + $0x8] sm:$0xff] %v8081
        %8086 = vst [vmem:[#allocation2 + $0x10] sm:$0xff] %v8082
        %8087 = vst [vmem:[#allocation2 + $0x18] sm:$0xff] %v8083
        // Predicated region
        $region45: #{tpu_custom_call.1} parent=35 // pred_check
          %p8088 = pneg %p318
        $region46: #{tpu_custom_call.1} parent=35 // pred_check_branch
          %8090 = sbr.rel (%p8088) target = $region48
        $region47: #{tpu_custom_call.1} parent=35 // pred_region
          %v8091 = vld [vmem:[#allocation2] sm:$0xff]
          %v8092 = vld [vmem:[#allocation2 + $0x8] sm:$0xff]
          %v8093 = vld [vmem:[#allocation2 + $0x10] sm:$0xff]
          %v8094 = vld [vmem:[#allocation2 + $0x18] sm:$0xff]
          %v8095 = vld [vmem:[%s314] sm:$0x3]
          %v8097 = vlaneseq
          %v8098 = vshrl.u32 %v8097, 7
          %v8099 = vsub.s32 0, %v8098
          %v8100 = vrot.slane %v8095, %v8099
          %v8101 = vlaneseq
          %v8102 = vshrl.u32 %v8101, 7
          %v8103 = vsub.s32 1, %v8102
          %v8104 = vrot.slane %v8095, %v8103
          %v8107 = vadd.f32 %v8091, %v8100
          %v8108 = vadd.f32 %v8092, %v8104
          %v8109 = vadd.f32 %v8093, %v8100
          %v8110 = vadd.f32 %v8094, %v8104
          %8111 = vst [vmem:[%s288] sm:$0xff] %v8107
          %8112 = vst [vmem:[%s288 + $0x8] sm:$0xff] %v8108
          %8113 = vst [vmem:[%s288 + $0x10] sm:$0xff] %v8109
          %8114 = vst [vmem:[%s288 + $0x18] sm:$0xff] %v8110
        $region48: #{tpu_custom_call.1} parent=35 // pred_fallthru
          _
        %s8115 = sand.u32 %s156, 1
        %s8116 = scalar_lea.sflag [#allocation5], %s8115
        %s8117 = sand.u32 %s156, 1
        %s8118 = smul.addr %s8117, 32
        %s8119 = scalar_lea.vmem [#allocation6], %s8118
        // Predicated region
        $region49: #{tpu_custom_call.1} parent=35 // pred_check
          %p8120 = pneg %p166
        $region50: #{tpu_custom_call.1} parent=35 // pred_check_branch
          %8122 = sbr.rel (%p8120) target = $region52
        $region51: #{tpu_custom_call.1} parent=35 // pred_region
          %s8123 = smul.u32 2, %s24
          %s8124 = smul.u32 2, %s25
          %s8126 = ssub.s32 512, 512
          %8127 = vsyncadd %s8116, %s8126
          %s8128 = smul.addr %s8123, 4
          %s8129 = sadd.s32 %s8124, %s8128
          %s8130 = smul.addr %s8129, 128
          %s8131 = scalar_lea.hbm %s4, %s8130
          %s8132 = sshll.u32 %s8119, 4
          %s8133 = int_to_ptr.vmem [resolvable:$true] %s8132
          %8138 = dma.vmem_to_hbm [thread:$0]  %s8133, 512, %s8131, %s8116, 256, 512, 16
        $region52: #{tpu_custom_call.1} parent=35 // pred_fallthru
          _
      $region36: #{tpu_custom_call.1} parent=5 // pred_fallthru
        _
      %p8139 = scmp.le.s32.totalorder 2, %s14
      // Predicated region
      $region53: #{tpu_custom_call.1} parent=5 // pred_check
        %p8140 = pneg %p8139
      $region54: #{tpu_custom_call.1} parent=5 // pred_check_branch
        %8142 = sbr.rel (%p8140) target = $region56
      $region55: #{tpu_custom_call.1} parent=5 // pred_region
        %s8143 = ssub.s32 %s14, 2
        // Predicated region
        $region57: #{tpu_custom_call.1} parent=55 // pred_check
          %p8144 = pneg %p172
        $region58: #{tpu_custom_call.1} parent=55 // pred_check_branch
          %8146 = sbr.rel (%p8144) target = $region60
        $region59: #{tpu_custom_call.1} parent=55 // pred_region
          %s8147 = sand.u32 %s157, 1
          %s8148 = scalar_lea.sflag [#allocation5], %s8147
          %s8149 = sand.u32 %s157, 1
          %s8150 = smul.addr %s8149, 32
          %s8151 = scalar_lea.vmem [#allocation6], %s8150
          %8152 = dma.done %s8148, 512
        $region60: #{tpu_custom_call.1} parent=55 // pred_fallthru
          _
      $region56: #{tpu_custom_call.1} parent=5 // pred_fallthru
        _
    $region6: #{tpu_custom_call.1} parent=1 // loop_footer
      %s18 = sadd.s32 1, %s14
    $region7: #{tpu_custom_call.1} parent=1 // loop_footer_branch
      %13 = sbr.rel target = $region3
    $region8: #{tpu_custom_call.1} parent=1 // loop_exit
      _
    %8153 = vsyncpa [#allocation4], 1
    %s8154 = scalar_lea.sflag [#allocation4], 1
    %8155 = vsyncpa %s8154, 1
    %8156 = vsyncpa [#allocation5], 1
    %s8157 = scalar_lea.sflag [#allocation5], 1
    %8158 = vsyncpa %s8157, 1

</llo_original>
